<compile_context>
chip_gen: v7x
topology: tpu7x:2x2x1
jax: 0.10.0
libtpu: 0.0.40
codegen_flags: <defaults>
</compile_context>

<pallas_src>
import functools

import jax
import jax.numpy as jnp
from jax.experimental import pallas as pl
from jax.experimental.pallas import tpu as pltpu


def _round_up(x, m):
    return (x + m - 1) // m * m


# ---------------------------------------------------------------------------
# Glue: PyG gcn_norm (add remaining self loops + symmetric normalization),
# densified to an (N, N) matrix.  A_norm[i, j] = dinv[i] * A[i, j] * dinv[j]
# where A[i, j] accumulates weights of edges j -> i (edge_index = [src, tgt]).
# ---------------------------------------------------------------------------
def build_norm_adj(edge_index, num_nodes, dtype=jnp.float32):
    row, col = edge_index[0], edge_index[1]            # row = source j, col = target i
    ew = jnp.ones((row.shape[0],), dtype)
    adj = jnp.zeros((num_nodes, num_nodes), dtype).at[col, row].add(ew)
    # add_remaining_self_loops: only nodes without an existing self loop get +1
    has_self = jnp.zeros((num_nodes,), dtype).at[col].add(
        (row == col).astype(dtype)) > 0
    adj = adj + jnp.diag(jnp.where(has_self, 0.0, 1.0).astype(dtype))
    deg = adj.sum(axis=1)                               # scatter_add(edge_weight, col)
    dinv = jnp.where(deg > 0, jax.lax.rsqrt(deg), 0.0)  # deg^-0.5, inf -> 0
    return dinv[:, None] * adj * dinv[None, :]


# ---------------------------------------------------------------------------
# Pallas kernel.
#   grid = (K + 1, num_row_tiles)
#   phase k == 0      : lin1 + relu + lin2 per row tile, hop-0 gate
#   phase k == 1 .. K : hop k propagation (A row-tile @ full cur), gate, accum
#   phase k == K      : additionally masked log_softmax + output writes
# ---------------------------------------------------------------------------
def dagnn_kernel(x_ref, w1_ref, b1_ref, w2_ref, b2_ref, a_ref, pw_ref, pb_ref,
                 out_ref, emb_ref, cur0_ref, cur1_ref, acc_ref,
                 *, num_hops, num_classes, tile_m):
    k = pl.program_id(0)                       # hop / phase index
    i = pl.program_id(1)                       # node-row tile index
    row0 = pl.multiple_of(i * tile_m, tile_m)  # aligned row offset into scratch

    pw = pw_ref[...]                           # (1, C_pad), zero beyond num_classes
    pb = pb_ref[0, 0]                          # scalar bias from SMEM

    def gate(v):
        # sigmoid(v @ pw^T + pb) as VPU multiply + XLU lane reduce (MXU stays free).
        return jax.nn.sigmoid(jnp.sum(v * pw, axis=-1, keepdims=True) + pb)

    @pl.when(k == 0)
    def _transform():
        # TODO(synk): dropout is identity (eval mode); not implemented in-kernel.
        h = jnp.dot(x_ref[...], w1_ref[...], preferred_element_type=jnp.float32)
        h = jnp.maximum(h + b1_ref[...], 0.0)
        z = jnp.dot(h, w2_ref[...], preferred_element_type=jnp.float32) + b2_ref[...]
        cur0_ref[pl.ds(row0, tile_m), :] = z               # hop-0 state -> slot 0
        acc_ref[pl.ds(row0, tile_m), :] = gate(z) * z      # hop-0 gated contribution

    @pl.when(k > 0)
    def _propagate():
        def hop(src_ref, dst_ref):
            new = jnp.dot(a_ref[...], src_ref[...],
                          preferred_element_type=jnp.float32)     # (TM, C_pad)

            # The last hop's state is never read again -> skip the slot write.
            @pl.when(k < num_hops)
            def _():
                dst_ref[pl.ds(row0, tile_m), :] = new

            acc_ref[pl.ds(row0, tile_m), :] = (
                acc_ref[pl.ds(row0, tile_m), :] + gate(new) * new)

        # hop k reads cur slot (k-1) % 2 and writes slot k % 2 (ping-pong).
        odd = (k % 2) == 1
        pl.when(odd)(lambda: hop(cur0_ref, cur1_ref))
        pl.when(jnp.logical_not(odd))(lambda: hop(cur1_ref, cur0_ref))

    @pl.when(k == num_hops)
    def _finalize():
        acc = acc_ref[pl.ds(row0, tile_m), :]
        emb_ref[...] = acc                                 # 'emb' (pad cols are 0)
        # log_softmax over the real class columns only (lanes >= C are padding).
        col = jax.lax.broadcasted_iota(jnp.int32, acc.shape, 1)
        am = jnp.where(col < num_classes, acc, -jnp.inf)
        m = jnp.max(am, axis=1, keepdims=True)
        ex = jnp.exp(am - m)                               # pad lanes: exp(-inf) = 0
        lse = jnp.log(jnp.sum(ex, axis=1, keepdims=True))
        out_ref[...] = acc - m - lse                       # valid cols correct; pads sliced off


def dagnn_forward(x, edge_index, params, *, K, tile_m=128):
    w1, b1, w2, b2, pw, pb = params
    n, f_in = x.shape
    hid = w1.shape[1]
    c = w2.shape[1]

    f_pad = _round_up(f_in, 128)
    h_pad = _round_up(hid, 128)
    c_pad = _round_up(c, 128)
    n_pad = _round_up(n, tile_m)
    nt = n_pad // tile_m

    a_norm = build_norm_adj(edge_index, n, dtype=jnp.float32)

    f32 = jnp.float32
    # Zero-pad everything to lane/tile-friendly shapes (padding is inert:
    # padded adjacency rows/cols are 0 and padded weight rows/cols are 0).
    xp = jnp.zeros((n_pad, f_pad), f32).at[:n, :f_in].set(x.astype(f32))
    ap = jnp.zeros((n_pad, n_pad), f32).at[:n, :n].set(a_norm)
    w1p = jnp.zeros((f_pad, h_pad), f32).at[:f_in, :hid].set(w1)
    b1p = jnp.zeros((1, h_pad), f32).at[0, :hid].set(b1)
    w2p = jnp.zeros((h_pad, c_pad), f32).at[:hid, :c].set(w2)
    b2p = jnp.zeros((1, c_pad), f32).at[0, :c].set(b2)
    pwp = jnp.zeros((1, c_pad), f32).at[0, :c].set(pw[:, 0])
    pbp = pb.reshape(1, 1).astype(f32)

    const = lambda k, i: (0, 0)
    # x row tiles only needed at phase 0; A row tiles only for k >= 1;
    # outputs only written at the last phase.  The multiplicative masks keep the
    # block index constant in unused phases so no redundant DMA sweeps happen.
    x_map = lambda k, i: (i * (k == 0).astype(jnp.int32), 0)
    a_map = lambda k, i: (i * (k > 0).astype(jnp.int32), 0)
    o_map = lambda k, i: (i * (k == K).astype(jnp.int32), 0)

    grid_spec = pltpu.PrefetchScalarGridSpec(
        num_scalar_prefetch=0,
        grid=(K + 1, nt),
        in_specs=[
            pl.BlockSpec((tile_m, f_pad), x_map),                     # x
            pl.BlockSpec((f_pad, h_pad), const),                      # w1
            pl.BlockSpec((1, h_pad), const),                          # b1
            pl.BlockSpec((h_pad, c_pad), const),                      # w2
            pl.BlockSpec((1, c_pad), const),                          # b2
            pl.BlockSpec((tile_m, n_pad), a_map),                     # A row tiles
            pl.BlockSpec((1, c_pad), const),                          # gate weight row
            pl.BlockSpec((1, 1), const,
                         memory_space=pltpu.MemorySpace.SMEM),        # gate bias scalar
        ],
        out_specs=(
            pl.BlockSpec((tile_m, c_pad), o_map),                     # out (log_softmax)
            pl.BlockSpec((tile_m, c_pad), o_map),                     # emb
        ),
        scratch_shapes=[
            pltpu.VMEM((n_pad, c_pad), f32),   # cur slot 0
            pltpu.VMEM((n_pad, c_pad), f32),   # cur slot 1
            pltpu.VMEM((n_pad, c_pad), f32),   # gated accumulator
        ],
    )

    cost = pl.CostEstimate(
        flops=(2 * n_pad * (f_pad * h_pad + h_pad * c_pad + K * n_pad * c_pad)
               + 3 * (K + 1) * n_pad * c_pad),
        transcendentals=(K + 1) * n_pad + n_pad * c_pad,
        bytes_accessed=4 * (n_pad * f_pad + max(K, 1) * n_pad * n_pad
                            + 2 * n_pad * c_pad + f_pad * h_pad + h_pad * c_pad),
    )

    out_p, emb_p = pl.pallas_call(
        functools.partial(dagnn_kernel, num_hops=K, num_classes=c, tile_m=tile_m),
        grid_spec=grid_spec,
        out_shape=(jax.ShapeDtypeStruct((n_pad, c_pad), f32),
                   jax.ShapeDtypeStruct((n_pad, c_pad), f32)),
        compiler_params=pltpu.CompilerParams(
            # Both axes carry dependencies through the shared VMEM hop-state /
            # accumulator scratch, so they must stay sequential on one core.
            dimension_semantics=("arbitrary", "arbitrary"),
            vmem_limit_bytes=32 * 1024 * 1024,
        ),
        cost_estimate=cost,
    )(xp, w1p, b1p, w2p, b2p, ap, pwp, pbp)

    return {"out": out_p[:n, :c], "emb": emb_p[:n, :c]}


# ---------------------------------------------------------------------------
# Pure-JAX reference (mirrors the PyTorch forward, eval mode) for validation.
# ---------------------------------------------------------------------------
def dagnn_reference(x, edge_index, params, *, K):
    w1, b1, w2, b2, pw, pb = params
    h = jnp.maximum(x @ w1 + b1, 0.0)
    z = h @ w2 + b2
    a_norm = build_norm_adj(edge_index, x.shape[0], dtype=jnp.float32)
    preds = [z]
    cur = z
    for _ in range(K):
        cur = a_norm @ cur
        preds.append(cur)
    pps = jnp.stack(preds, axis=1)                   # (N, K+1, C)
    score = jax.nn.sigmoid(pps @ pw + pb)[..., 0]    # (N, K+1)
    out = jnp.einsum("nk,nkc->nc", score, pps)       # (N, C)
    return {"out": jax.nn.log_softmax(out, axis=1), "emb": out}


if __name__ == "__main__":
    # Full-f32 reference matmuls so the comparison tolerance stays tight.
    jax.config.update("jax_default_matmul_precision", "highest")

    # Small shapes that still exercise padding + multiple row tiles (grid nt=2).
    N_NODES, INPUT_DIM, HIDDEN_DIM, OUTPUT_DIM, K = 200, 48, 32, 10, 3

    key = jax.random.PRNGKey(0)
    kx, k1, k2, k3, k4, k5, k6, ke = jax.random.split(key, 8)

    x = jax.random.normal(kx, (N_NODES, INPUT_DIM), jnp.float32)

    # Deterministic parameter init (PyTorch-Linear-like uniform fan-in scaling).
    def lin_init(kw, kb, fan_in, fan_out):
        bound = 1.0 / jnp.sqrt(fan_in)
        w = jax.random.uniform(kw, (fan_in, fan_out), jnp.float32, -bound, bound)
        b = jax.random.uniform(kb, (fan_out,), jnp.float32, -bound, bound)
        return w, b

    w1, b1 = lin_init(k1, k2, INPUT_DIM, HIDDEN_DIM)
    w2, b2 = lin_init(k3, k4, HIDDEN_DIM, OUTPUT_DIM)
    pw, pb = lin_init(k5, k6, OUTPUT_DIM, 1)         # prop.proj: (C -> 1)
    params = (w1, b1, w2, b2, pw, pb)

    # Deterministic directed graph: a ring plus extra pseudo-random edges.
    src = jnp.arange(N_NODES, dtype=jnp.int32)
    dst = (src + 1) % N_NODES
    n_extra = 4 * N_NODES
    extra_src = jax.random.randint(ke, (n_extra,), 0, N_NODES, jnp.int32)
    extra_dst = (extra_src + 3 + jnp.arange(n_extra, dtype=jnp.int32)) % N_NODES
    edge_index = jnp.stack([jnp.concatenate([src, extra_src]),
                            jnp.concatenate([dst, extra_dst])], axis=0)

    result = dagnn_forward(x, edge_index, params, K=K)
    jax.block_until_ready(result)

    ref = dagnn_reference(x, edge_index, params, K=K)
    err_out = float(jnp.max(jnp.abs(result["out"] - ref["out"])))
    err_emb = float(jnp.max(jnp.abs(result["emb"] - ref["emb"])))
    assert jnp.allclose(result["out"], ref["out"], atol=1e-3, rtol=1e-3), err_out
    assert jnp.allclose(result["emb"], ref["emb"], atol=1e-3, rtol=1e-3), err_emb

    print("KERNEL_OK")
</pallas_src>

<mosaic_0001>
module attributes {stable_mosaic.version = 11 : i64} {
  func.func @dagnn_kernel(%arg0: i32, %arg1: i32, %arg2: memref<128x128xf32, #tpu.memory_space<vmem>>, %arg3: memref<128x128xf32, #tpu.memory_space<vmem>>, %arg4: memref<1x128xf32, #tpu.memory_space<vmem>>, %arg5: memref<128x128xf32, #tpu.memory_space<vmem>>, %arg6: memref<1x128xf32, #tpu.memory_space<vmem>>, %arg7: memref<128x256xf32, #tpu.memory_space<vmem>>, %arg8: memref<1x128xf32, #tpu.memory_space<vmem>>, %arg9: memref<1x1xf32, #tpu.memory_space<smem>>, %arg10: memref<128x128xf32, #tpu.memory_space<vmem>>, %arg11: memref<128x128xf32, #tpu.memory_space<vmem>>, %arg12: memref<256x128xf32, #tpu.memory_space<vmem>>, %arg13: memref<256x128xf32, #tpu.memory_space<vmem>>, %arg14: memref<256x128xf32, #tpu.memory_space<vmem>>) attributes {dimension_semantics = [#tpu.dimension_semantics<arbitrary>, #tpu.dimension_semantics<arbitrary>], iteration_bounds = array<i64: 4, 2>, scalar_prefetch = 0 : i64, scratch_operands = 3 : i64, tpu.core_type = #tpu.core_type<tc>, window_params = [{transform_indices = @transform_0, window_bounds = array<i64: 128, 128>}, {pipeline_mode = #tpu.pipeline_mode<synchronous>, transform_indices = @transform_1, window_bounds = array<i64: 128, 128>}, {pipeline_mode = #tpu.pipeline_mode<synchronous>, transform_indices = @transform_2, window_bounds = array<i64: 1, 128>}, {pipeline_mode = #tpu.pipeline_mode<synchronous>, transform_indices = @transform_3, window_bounds = array<i64: 128, 128>}, {pipeline_mode = #tpu.pipeline_mode<synchronous>, transform_indices = @transform_4, window_bounds = array<i64: 1, 128>}, {transform_indices = @transform_5, window_bounds = array<i64: 128, 256>}, {pipeline_mode = #tpu.pipeline_mode<synchronous>, transform_indices = @transform_6, window_bounds = array<i64: 1, 128>}, {transform_indices = @transform_7, window_bounds = array<i64: 1, 1>}, {transform_indices = @transform_8, window_bounds = array<i64: 128, 128>}, {transform_indices = @transform_9, window_bounds = array<i64: 128, 128>}]} {
    %c128_i32 = arith.constant 128 : i32
    %0 = arith.muli %arg1, %c128_i32 : i32
    %1 = tpu.assume_multiple %0, 128 : i32
    %c0 = arith.constant 0 : index
    %c0_0 = arith.constant 0 : index
    %2 = vector.load %arg8[%c0, %c0_0] : memref<1x128xf32, #tpu.memory_space<vmem>>, vector<1x128xf32>
    %c0_1 = arith.constant 0 : index
    %c0_2 = arith.constant 0 : index
    %3 = memref.load %arg9[%c0_1, %c0_2] : memref<1x1xf32, #tpu.memory_space<smem>>
    %c0_i32 = arith.constant 0 : i32
    %4 = arith.cmpi eq, %arg0, %c0_i32 : i32
    %5 = arith.extui %4 : i1 to i32
    %c0_i32_3 = arith.constant 0 : i32
    %6 = arith.cmpi ne, %5, %c0_i32_3 : i32
    scf.if %6 {
      %c0_7 = arith.constant 0 : index
      %c0_8 = arith.constant 0 : index
      %13 = vector.load %arg2[%c0_7, %c0_8] : memref<128x128xf32, #tpu.memory_space<vmem>>, vector<128x128xf32>
      %c0_9 = arith.constant 0 : index
      %c0_10 = arith.constant 0 : index
      %14 = vector.load %arg3[%c0_9, %c0_10] : memref<128x128xf32, #tpu.memory_space<vmem>>, vector<128x128xf32>
      %cst = arith.constant dense<0.000000e+00> : vector<128x128xf32>
      %15 = tpu.matmul %13, %14, %cst {dimension_numbers = #tpu.dot_dimension_numbers<[1], [0], [0], [1], [0, 0, 1, 1], [], []>, precision = #tpu.contract_precision<fp32>} : vector<128x128xf32>, vector<128x128xf32>, vector<128x128xf32> -> vector<128x128xf32>
      %c0_11 = arith.constant 0 : index
      %c0_12 = arith.constant 0 : index
      %16 = vector.load %arg4[%c0_11, %c0_12] : memref<1x128xf32, #tpu.memory_space<vmem>>, vector<1x128xf32>
      %17 = vector.broadcast %16 : vector<1x128xf32> to vector<128x128xf32>
      %18 = arith.addf %15, %17 : vector<128x128xf32>
      %cst_13 = arith.constant 0.000000e+00 : f32
      %19 = vector.broadcast %cst_13 : f32 to vector<128x128xf32>
      %20 = arith.maximumf %18, %19 : vector<128x128xf32>
      %c0_14 = arith.constant 0 : index
      %c0_15 = arith.constant 0 : index
      %21 = vector.load %arg5[%c0_14, %c0_15] : memref<128x128xf32, #tpu.memory_space<vmem>>, vector<128x128xf32>
      %cst_16 = arith.constant dense<0.000000e+00> : vector<128x128xf32>
      %22 = tpu.matmul %20, %21, %cst_16 {dimension_numbers = #tpu.dot_dimension_numbers<[1], [0], [0], [1], [0, 0, 1, 1], [], []>, precision = #tpu.contract_precision<fp32>} : vector<128x128xf32>, vector<128x128xf32>, vector<128x128xf32> -> vector<128x128xf32>
      %c0_17 = arith.constant 0 : index
      %c0_18 = arith.constant 0 : index
      %23 = vector.load %arg6[%c0_17, %c0_18] : memref<1x128xf32, #tpu.memory_space<vmem>>, vector<1x128xf32>
      %24 = vector.broadcast %23 : vector<1x128xf32> to vector<128x128xf32>
      %25 = arith.addf %22, %24 : vector<128x128xf32>
      %26 = arith.index_cast %1 : i32 to index
      %c0_19 = arith.constant 0 : index
      %27 = vector.load %arg12[%26, %c0_19] : memref<256x128xf32, #tpu.memory_space<vmem>>, vector<128x128xf32>
      tpu.vector_store %arg12[%26, %c0_19], %25 {strides = array<i32>} : memref<256x128xf32, #tpu.memory_space<vmem>>, vector<128x128xf32>,
      %28 = vector.broadcast %2 : vector<1x128xf32> to vector<128x128xf32>
      %29 = arith.mulf %25, %28 : vector<128x128xf32>
      %cst_20 = arith.constant dense<0.000000e+00> : vector<128xf32>
      %30 = vector.multi_reduction <add>, %29, %cst_20 [1] : vector<128x128xf32> to vector<128xf32>
      %31 = vector.shape_cast %30 : vector<128xf32> to vector<128x1xf32>
      %32 = vector.broadcast %3 : f32 to vector<128x1xf32>
      %33 = arith.addf %31, %32 : vector<128x1xf32>
      %34 = arith.negf %33 : vector<128x1xf32>
      %35 = math.exp %34 : vector<128x1xf32>
      %cst_21 = arith.constant 1.000000e+00 : f32
      %36 = vector.broadcast %cst_21 : f32 to vector<128x1xf32>
      %37 = arith.addf %36, %35 : vector<128x1xf32>
      %38 = arith.divf %36, %37 : vector<128x1xf32>
      %39 = vector.broadcast %38 : vector<128x1xf32> to vector<128x128xf32>
      %40 = arith.mulf %39, %25 : vector<128x128xf32>
      %41 = arith.index_cast %1 : i32 to index
      %c0_22 = arith.constant 0 : index
      %42 = vector.load %arg14[%41, %c0_22] : memref<256x128xf32, #tpu.memory_space<vmem>>, vector<128x128xf32>
      tpu.vector_store %arg14[%41, %c0_22], %40 {strides = array<i32>} : memref<256x128xf32, #tpu.memory_space<vmem>>, vector<128x128xf32>,
    } else {
    }
    %c0_i32_4 = arith.constant 0 : i32
    %7 = arith.cmpi sgt, %arg0, %c0_i32_4 : i32
    %8 = arith.extui %7 : i1 to i32
    %c0_i32_5 = arith.constant 0 : i32
    %9 = arith.cmpi ne, %8, %c0_i32_5 : i32
    scf.if %9 {
      %c2_i32 = arith.constant 2 : i32
      %c0_i32_7 = arith.constant 0 : i32
      %13 = arith.cmpi eq, %c2_i32, %c0_i32_7 : i32
      %c1_i32 = arith.constant 1 : i32
      %14 = arith.select %13, %c1_i32, %c2_i32 : i32
      %15 = arith.remsi %arg0, %14 : i32
      %c0_i32_8 = arith.constant 0 : i32
      %16 = arith.cmpi ne, %15, %c0_i32_8 : i32
      %c0_i32_9 = arith.constant 0 : i32
      %17 = arith.cmpi slt, %15, %c0_i32_9 : i32
      %c0_i32_10 = arith.constant 0 : i32
      %18 = arith.cmpi slt, %14, %c0_i32_10 : i32
      %19 = arith.xori %17, %18 : i1
      %20 = arith.andi %19, %16 : i1
      %21 = arith.addi %15, %14 : i32
      %22 = arith.select %20, %21, %15 : i32
      %c1_i32_11 = arith.constant 1 : i32
      %23 = arith.cmpi eq, %22, %c1_i32_11 : i32
      %24 = arith.extui %23 : i1 to i32
      %c0_i32_12 = arith.constant 0 : i32
      %25 = arith.cmpi ne, %24, %c0_i32_12 : i32
      scf.if %25 {
        %c0_14 = arith.constant 0 : index
        %c0_15 = arith.constant 0 : index
        %29 = vector.load %arg7[%c0_14, %c0_15] : memref<128x256xf32, #tpu.memory_space<vmem>>, vector<128x256xf32>
        %c0_16 = arith.constant 0 : index
        %c0_17 = arith.constant 0 : index
        %30 = vector.load %arg12[%c0_16, %c0_17] : memref<256x128xf32, #tpu.memory_space<vmem>>, vector<256x128xf32>
        %cst = arith.constant dense<0.000000e+00> : vector<128x128xf32>
        %31 = tpu.matmul %29, %30, %cst {dimension_numbers = #tpu.dot_dimension_numbers<[1], [0], [0], [1], [0, 0, 1, 1], [], []>, precision = #tpu.contract_precision<fp32>} : vector<128x256xf32>, vector<256x128xf32>, vector<128x128xf32> -> vector<128x128xf32>
        %c3_i32_18 = arith.constant 3 : i32
        %32 = arith.cmpi slt, %arg0, %c3_i32_18 : i32
        %33 = arith.extui %32 : i1 to i32
        %c0_i32_19 = arith.constant 0 : i32
        %34 = arith.cmpi ne, %33, %c0_i32_19 : i32
        scf.if %34 {
          %53 = arith.index_cast %1 : i32 to index
          %c0_24 = arith.constant 0 : index
          %54 = vector.load %arg13[%53, %c0_24] : memref<256x128xf32, #tpu.memory_space<vmem>>, vector<128x128xf32>
          tpu.vector_store %arg13[%53, %c0_24], %31 {strides = array<i32>} : memref<256x128xf32, #tpu.memory_space<vmem>>, vector<128x128xf32>,
        } else {
        }
        %35 = arith.index_cast %1 : i32 to index
        %c0_20 = arith.constant 0 : index
        %36 = vector.load %arg14[%35, %c0_20] : memref<256x128xf32, #tpu.memory_space<vmem>>, vector<128x128xf32>
        %37 = vector.broadcast %2 : vector<1x128xf32> to vector<128x128xf32>
        %38 = arith.mulf %31, %37 : vector<128x128xf32>
        %cst_21 = arith.constant dense<0.000000e+00> : vector<128xf32>
        %39 = vector.multi_reduction <add>, %38, %cst_21 [1] : vector<128x128xf32> to vector<128xf32>
        %40 = vector.shape_cast %39 : vector<128xf32> to vector<128x1xf32>
        %41 = vector.broadcast %3 : f32 to vector<128x1xf32>
        %42 = arith.addf %40, %41 : vector<128x1xf32>
        %43 = arith.negf %42 : vector<128x1xf32>
        %44 = math.exp %43 : vector<128x1xf32>
        %cst_22 = arith.constant 1.000000e+00 : f32
        %45 = vector.broadcast %cst_22 : f32 to vector<128x1xf32>
        %46 = arith.addf %45, %44 : vector<128x1xf32>
        %47 = arith.divf %45, %46 : vector<128x1xf32>
        %48 = vector.broadcast %47 : vector<128x1xf32> to vector<128x128xf32>
        %49 = arith.mulf %48, %31 : vector<128x128xf32>
        %50 = arith.addf %36, %49 : vector<128x128xf32>
        %51 = arith.index_cast %1 : i32 to index
        %c0_23 = arith.constant 0 : index
        %52 = vector.load %arg14[%51, %c0_23] : memref<256x128xf32, #tpu.memory_space<vmem>>, vector<128x128xf32>
        tpu.vector_store %arg14[%51, %c0_23], %50 {strides = array<i32>} : memref<256x128xf32, #tpu.memory_space<vmem>>, vector<128x128xf32>,
      } else {
      }
      %true = arith.constant true
      %26 = arith.xori %23, %true : i1
      %27 = arith.extui %26 : i1 to i32
      %c0_i32_13 = arith.constant 0 : i32
      %28 = arith.cmpi ne, %27, %c0_i32_13 : i32
      scf.if %28 {
        %c0_14 = arith.constant 0 : index
        %c0_15 = arith.constant 0 : index
        %29 = vector.load %arg7[%c0_14, %c0_15] : memref<128x256xf32, #tpu.memory_space<vmem>>, vector<128x256xf32>
        %c0_16 = arith.constant 0 : index
        %c0_17 = arith.constant 0 : index
        %30 = vector.load %arg13[%c0_16, %c0_17] : memref<256x128xf32, #tpu.memory_space<vmem>>, vector<256x128xf32>
        %cst = arith.constant dense<0.000000e+00> : vector<128x128xf32>
        %31 = tpu.matmul %29, %30, %cst {dimension_numbers = #tpu.dot_dimension_numbers<[1], [0], [0], [1], [0, 0, 1, 1], [], []>, precision = #tpu.contract_precision<fp32>} : vector<128x256xf32>, vector<256x128xf32>, vector<128x128xf32> -> vector<128x128xf32>
        %c3_i32_18 = arith.constant 3 : i32
        %32 = arith.cmpi slt, %arg0, %c3_i32_18 : i32
        %33 = arith.extui %32 : i1 to i32
        %c0_i32_19 = arith.constant 0 : i32
        %34 = arith.cmpi ne, %33, %c0_i32_19 : i32
        scf.if %34 {
          %53 = arith.index_cast %1 : i32 to index
          %c0_24 = arith.constant 0 : index
          %54 = vector.load %arg12[%53, %c0_24] : memref<256x128xf32, #tpu.memory_space<vmem>>, vector<128x128xf32>
          tpu.vector_store %arg12[%53, %c0_24], %31 {strides = array<i32>} : memref<256x128xf32, #tpu.memory_space<vmem>>, vector<128x128xf32>,
        } else {
        }
        %35 = arith.index_cast %1 : i32 to index
        %c0_20 = arith.constant 0 : index
        %36 = vector.load %arg14[%35, %c0_20] : memref<256x128xf32, #tpu.memory_space<vmem>>, vector<128x128xf32>
        %37 = vector.broadcast %2 : vector<1x128xf32> to vector<128x128xf32>
        %38 = arith.mulf %31, %37 : vector<128x128xf32>
        %cst_21 = arith.constant dense<0.000000e+00> : vector<128xf32>
        %39 = vector.multi_reduction <add>, %38, %cst_21 [1] : vector<128x128xf32> to vector<128xf32>
        %40 = vector.shape_cast %39 : vector<128xf32> to vector<128x1xf32>
        %41 = vector.broadcast %3 : f32 to vector<128x1xf32>
        %42 = arith.addf %40, %41 : vector<128x1xf32>
        %43 = arith.negf %42 : vector<128x1xf32>
        %44 = math.exp %43 : vector<128x1xf32>
        %cst_22 = arith.constant 1.000000e+00 : f32
        %45 = vector.broadcast %cst_22 : f32 to vector<128x1xf32>
        %46 = arith.addf %45, %44 : vector<128x1xf32>
        %47 = arith.divf %45, %46 : vector<128x1xf32>
        %48 = vector.broadcast %47 : vector<128x1xf32> to vector<128x128xf32>
        %49 = arith.mulf %48, %31 : vector<128x128xf32>
        %50 = arith.addf %36, %49 : vector<128x128xf32>
        %51 = arith.index_cast %1 : i32 to index
        %c0_23 = arith.constant 0 : index
        %52 = vector.load %arg14[%51, %c0_23] : memref<256x128xf32, #tpu.memory_space<vmem>>, vector<128x128xf32>
        tpu.vector_store %arg14[%51, %c0_23], %50 {strides = array<i32>} : memref<256x128xf32, #tpu.memory_space<vmem>>, vector<128x128xf32>,
      } else {
      }
    } else {
    }
    %c3_i32 = arith.constant 3 : i32
    %10 = arith.cmpi eq, %arg0, %c3_i32 : i32
    %11 = arith.extui %10 : i1 to i32
    %c0_i32_6 = arith.constant 0 : i32
    %12 = arith.cmpi ne, %11, %c0_i32_6 : i32
    scf.if %12 {
      %13 = arith.index_cast %1 : i32 to index
      %c0_7 = arith.constant 0 : index
      %14 = vector.load %arg14[%13, %c0_7] : memref<256x128xf32, #tpu.memory_space<vmem>>, vector<128x128xf32>
      %c0_8 = arith.constant 0 : index
      %c0_9 = arith.constant 0 : index
      %15 = vector.load %arg11[%c0_8, %c0_9] : memref<128x128xf32, #tpu.memory_space<vmem>>, vector<128x128xf32>
      tpu.vector_store %arg11[%c0_8, %c0_9], %14 {strides = array<i32>} : memref<128x128xf32, #tpu.memory_space<vmem>>, vector<128x128xf32>,
      %16 = tpu.iota {dimensions = array<i32: 1>} : vector<128x128xi32>
      %c10_i32 = arith.constant 10 : i32
      %17 = vector.broadcast %c10_i32 : i32 to vector<128x128xi32>
      %18 = arith.cmpi slt, %16, %17 : vector<128x128xi32>
      %cst = arith.constant 0xFF800000 : f32
      %19 = vector.broadcast %cst : f32 to vector<128x128xf32>
      %20 = arith.select %18, %14, %19 : vector<128x128xi1>, vector<128x128xf32>
      %cst_10 = arith.constant dense<0xFF800000> : vector<128xf32>
      %21 = vector.multi_reduction <maximumf>, %20, %cst_10 [1] : vector<128x128xf32> to vector<128xf32>
      %22 = vector.shape_cast %21 : vector<128xf32> to vector<128x1xf32>
      %23 = vector.broadcast %22 : vector<128x1xf32> to vector<128x128xf32>
      %24 = arith.subf %20, %23 : vector<128x128xf32>
      %25 = math.exp %24 : vector<128x128xf32>
      %cst_11 = arith.constant dense<0.000000e+00> : vector<128xf32>
      %26 = vector.multi_reduction <add>, %25, %cst_11 [1] : vector<128x128xf32> to vector<128xf32>
      %27 = vector.shape_cast %26 : vector<128xf32> to vector<128x1xf32>
      %28 = math.log %27 : vector<128x1xf32>
      %29 = vector.broadcast %22 : vector<128x1xf32> to vector<128x128xf32>
      %30 = arith.subf %14, %29 : vector<128x128xf32>
      %31 = vector.broadcast %28 : vector<128x1xf32> to vector<128x128xf32>
      %32 = arith.subf %30, %31 : vector<128x128xf32>
      %c0_12 = arith.constant 0 : index
      %c0_13 = arith.constant 0 : index
      %33 = vector.load %arg10[%c0_12, %c0_13] : memref<128x128xf32, #tpu.memory_space<vmem>>, vector<128x128xf32>
      tpu.vector_store %arg10[%c0_12, %c0_13], %32 {strides = array<i32>} : memref<128x128xf32, #tpu.memory_space<vmem>>, vector<128x128xf32>,
    } else {
    }
    return
  }
  func.func @transform_0(%arg0: i32, %arg1: i32) -> (i32, i32) {
    %c0_i32 = arith.constant 0 : i32
    %0 = arith.cmpi eq, %arg0, %c0_i32 : i32
    %1 = arith.extui %0 : i1 to i32
    %2 = arith.muli %arg1, %1 : i32
    %c0_i32_0 = arith.constant 0 : i32
    %c0_i32_1 = arith.constant 0 : i32
    return %2, %c0_i32_0 : i32, i32
  }
  func.func @transform_1(%arg0: i32, %arg1: i32) -> (i32, i32) {
    %c0_i32 = arith.constant 0 : i32
    %c0_i32_0 = arith.constant 0 : i32
    %c0_i32_1 = arith.constant 0 : i32
    return %c0_i32, %c0_i32_0 : i32, i32
  }
  func.func @transform_2(%arg0: i32, %arg1: i32) -> (i32, i32) {
    %c0_i32 = arith.constant 0 : i32
    %c0_i32_0 = arith.constant 0 : i32
    %c0_i32_1 = arith.constant 0 : i32
    return %c0_i32, %c0_i32_0 : i32, i32
  }
  func.func @transform_3(%arg0: i32, %arg1: i32) -> (i32, i32) {
    %c0_i32 = arith.constant 0 : i32
    %c0_i32_0 = arith.constant 0 : i32
    %c0_i32_1 = arith.constant 0 : i32
    return %c0_i32, %c0_i32_0 : i32, i32
  }
  func.func @transform_4(%arg0: i32, %arg1: i32) -> (i32, i32) {
    %c0_i32 = arith.constant 0 : i32
    %c0_i32_0 = arith.constant 0 : i32
    %c0_i32_1 = arith.constant 0 : i32
    return %c0_i32, %c0_i32_0 : i32, i32
  }
  func.func @transform_5(%arg0: i32, %arg1: i32) -> (i32, i32) {
    %c0_i32 = arith.constant 0 : i32
    %0 = arith.cmpi sgt, %arg0, %c0_i32 : i32
    %1 = arith.extui %0 : i1 to i32
    %2 = arith.muli %arg1, %1 : i32
    %c0_i32_0 = arith.constant 0 : i32
    %c0_i32_1 = arith.constant 0 : i32
    return %2, %c0_i32_0 : i32, i32
  }
  func.func @transform_6(%arg0: i32, %arg1: i32) -> (i32, i32) {
    %c0_i32 = arith.constant 0 : i32
    %c0_i32_0 = arith.constant 0 : i32
    %c0_i32_1 = arith.constant 0 : i32
    return %c0_i32, %c0_i32_0 : i32, i32
  }
  func.func @transform_7(%arg0: i32, %arg1: i32) -> (i32, i32) {
    %c0_i32 = arith.constant 0 : i32
    %c0_i32_0 = arith.constant 0 : i32
    %c0_i32_1 = arith.constant 0 : i32
    return %c0_i32, %c0_i32_0 : i32, i32
  }
  func.func @transform_8(%arg0: i32, %arg1: i32) -> (i32, i32) {
    %c3_i32 = arith.constant 3 : i32
    %0 = arith.cmpi eq, %arg0, %c3_i32 : i32
    %1 = arith.extui %0 : i1 to i32
    %2 = arith.muli %arg1, %1 : i32
    %c0_i32 = arith.constant 0 : i32
    %c0_i32_0 = arith.constant 0 : i32
    return %2, %c0_i32 : i32, i32
  }
  func.func @transform_9(%arg0: i32, %arg1: i32) -> (i32, i32) {
    %c3_i32 = arith.constant 3 : i32
    %0 = arith.cmpi eq, %arg0, %c3_i32 : i32
    %1 = arith.extui %0 : i1 to i32
    %2 = arith.muli %arg1, %1 : i32
    %c0_i32 = arith.constant 0 : i32
    %c0_i32_0 = arith.constant 0 : i32
    return %2, %c0_i32 : i32, i32
  }
}

</mosaic_0001>

<llo_original>
// kernel: tpu_custom_call.1
$region0: #{tpu_custom_call.1}
  #allocation0 [shape = 'u32[]', space=smem, size = 0x4, offset = 0x4, fixed_abs, tag = 'smem constant byte address 0x4 - core index']
  #allocation1 [shape = 'u32[144,128]{1,0:T(1,128)}', space=vmem, size = 0x12000, scoped, tag = 'internal scratch']
  #allocation2 [shape = 'f32[256,128]{1,0:T(8,128)}', space=vmem, size = 0x20000, scoped, tag = 'scratch operand']
  #allocation3 [shape = 'f32[256,128]{1,0:T(8,128)}', space=vmem, size = 0x20000, scoped, tag = 'scratch operand']
  #allocation4 [shape = 'f32[256,128]{1,0:T(8,128)}', space=vmem, size = 0x20000, scoped, tag = 'scratch operand']
  #allocation5 [shape = 'f32[1,1]{1,0:T(1,128)S(6)}', space=smem, size = 0x200, scoped, tag = 'scoped memory for tpu_custom_call.1']
  %s0 = inlined_call_operand.hbm [shape: f32[256,128], index: 0, kind: input, shape index: {}]
  %s1 = inlined_call_operand.hbm [shape: f32[128,128], index: 1, kind: input, shape index: {}]
  %s2 = inlined_call_operand.vmem [shape: f32[1,128], index: 2, kind: input, shape index: {}]
  %s3 = inlined_call_operand.hbm [shape: f32[128,128], index: 3, kind: input, shape index: {}]
  %s4 = inlined_call_operand.vmem [shape: f32[1,128], index: 4, kind: input, shape index: {}]
  %s5 = inlined_call_operand.hbm [shape: f32[256,256], index: 5, kind: input, shape index: {}]
  %s6 = inlined_call_operand.vmem [shape: f32[1,128], index: 6, kind: input, shape index: {}]
  %s7 = inlined_call_operand.<no memory space> [shape: f32[1,1], index: 7, kind: input, shape index: {}]
  %s8 = inlined_call_operand.hbm [shape: f32[256,128], index: 8, kind: output, shape index: {0}]
  %s9 = inlined_call_operand.hbm [shape: f32[256,128], index: 9, kind: output, shape index: {1}]
  %10 = xla_tuple %s8, %s9
  %s11 = sld [smem:[#allocation0]]
  $region117: #{tpu_custom_call.1} parent=0
    _
  %s13 = ssub.s32 1, %s11
  %s14 = scalar_select 0, %s13, %s11
  %15 = sst [smem:[#allocation5]] %s7
  $region1: #{tpu_custom_call.1} parent=0
    #allocation6 [shape = 'u8[131072]{0}', space=vmem, size = 0x20000, scoped, tag = 'input window, operand 0']
    #allocation7 [shape = 's32[2]{0}', space=sflag, size = 0x8, scoped, tag = 'scoped memory for tpu_custom_call.1']
    #allocation8 [shape = 's32[2]{0}', space=sflag, size = 0x8, scoped, tag = 'scoped memory for tpu_custom_call.1']
    #allocation9 [shape = 'u8[65536]{0}', space=vmem, size = 0x10000, scoped, tag = 'input window, operand 1, single buffered']
    #allocation10 [shape = 's32[1]{0}', space=sflag, size = 0x4, scoped, tag = 'scoped memory for tpu_custom_call.1']
    #allocation11 [shape = 'u8[65536]{0}', space=vmem, size = 0x10000, scoped, tag = 'input window, operand 3, single buffered']
    #allocation12 [shape = 'u8[262144]{0}', space=vmem, size = 0x40000, scoped, tag = 'input window, operand 5']
    #allocation13 [shape = 's32[2]{0}', space=sflag, size = 0x8, scoped, tag = 'scoped memory for tpu_custom_call.1']
    #allocation14 [shape = 'u8[131072]{0}', space=vmem, size = 0x20000, scoped, tag = 'output window, operand 0']
    #allocation15 [shape = 'u8[131072]{0}', space=vmem, size = 0x20000, scoped, tag = 'output window, operand 1']
    #allocation16 [shape = 's32[2]{0}', space=sflag, size = 0x8, scoped, tag = 'scoped memory for tpu_custom_call.1']
    %16 = vsyncpa [#allocation7], 0
    %s17 = scalar_lea.sflag [#allocation7], 1
    %18 = vsyncpa %s17, 0
    %19 = vsyncpa [#allocation10], 0
    %20 = vsyncpa [#allocation13], 0
    %s21 = scalar_lea.sflag [#allocation13], 1
    %22 = vsyncpa %s21, 0
    %23 = vsyncpa [#allocation8], 0
    %s24 = scalar_lea.sflag [#allocation8], 1
    %25 = vsyncpa %s24, 0
    %26 = vsyncpa [#allocation16], 0
    %s27 = scalar_lea.sflag [#allocation16], 1
    %28 = vsyncpa %s27, 0
    loop: start=0, step=1, limit=10
    $region2: #{tpu_custom_call.1} parent=1 // loop_pre_header
      _
    $region3: #{tpu_custom_call.1} parent=1 // loop_header
      %s30 = sphi 0, %s34
      %p31 = scmp.ge.s32.totalorder %s30, 10
      %s37 = sphi 0, %s49
      %s38 = sphi 0, %s45
      %s39 = sphi 0, %s37
      %s40 = sphi 0, %s38
      %s41 = sphi 0, %s39
      %s42 = sphi 0, %s40
      %s58 = sphi 0, %s60
      %s61 = sphi 0, %s58
      %s62 = sphi 0, %s61
      %s78 = sphi 0, %s62
      %s82 = sphi 0, %s82
      %s84 = sphi 0, %s82
      %s85 = sphi 0, %s84
      %s99 = sphi 0, %s85
      %s103 = sphi 0, %s103
      %s105 = sphi 0, %s103
      %s106 = sphi 0, %s105
      %s120 = sphi 0, %s106
      %s124 = sphi 0, %s124
      %s126 = sphi 0, %s124
      %s127 = sphi 0, %s126
      %s141 = sphi 0, %s127
      %s145 = sphi 0, %s145
      %s147 = sphi 0, %s145
      %s148 = sphi 0, %s147
      %s162 = sphi 0, %s148
      %s174 = sphi 0, %s176
      %s177 = sphi 0, %s174
      %s178 = sphi 0, %s177
      %s194 = sphi 0, %s178
      %s198 = sphi 0, %s198
      %s200 = sphi 0, %s198
      %s201 = sphi 0, %s200
      %s215 = sphi 0, %s201
      %s219 = sphi 0, %s219
      %s221 = sphi 0, %s219
      %s222 = sphi 0, %s221
      %s236 = sphi 0, %s222
      %s248 = sphi 0, %s250
      %s251 = sphi 0, %s248
      %s252 = sphi 0, %s251
      %s268 = sphi 0, %s252
      %s280 = sphi 0, %s282
      %s283 = sphi 0, %s280
      %s284 = sphi 0, %s283
      %s300 = sphi 0, %s284
    $region4: #{tpu_custom_call.1} parent=1 // loop_header_branch
      %33 = sbr.rel (%p31) target = $region8
    $region5: #{tpu_custom_call.1} parent=1 // loop_body
      %s35 = ssub.s32 %s30, 1
      %s36 = ssub.s32 %s30, 2
      %s43 = sadd.s32 1, %s38
      %p44 = scmp.ge.s32.totalorder %s43, 2
      %s45 = scalar_select %p44, 0, %s43
      %s46 = sadd.s32 1, %s37
      %s47 = scalar_select %p44, %s46, %s37
      %p48 = scmp.ge.s32.totalorder %s47, 4
      %s49 = scalar_select %p48, 0, %s47
      %p50 = scmp.eq.s32.totalorder %s37, 0
      %s51 = scalar_select %p50, 1, 0
      %s52 = smul.u32 %s38, %s51
      %p53 = scmp.eq.s32.totalorder %s49, 0
      %s54 = scalar_select %p53, 1, 0
      %s55 = smul.u32 %s45, %s54
      %s56 = ssub.s32 %s52, %s55
      %p57 = scmp.eq.s32.totalorder %s56, 0
      %s59 = sadd.s32 %s58, 1
      %s60 = scalar_select %p57, %s58, %s59
      %p63 = pneg %p57
      %p64 = scmp.eq.s32.totalorder %s30, 7
      %p65 = por %p63, %p64
      %p66 = scmp.ne.s32.totalorder %s58, %s61
      %p67 = scmp.eq.s32.totalorder %s30, 0
      %p68 = por %p66, %p67
      %p69 = scmp.ne.s32.totalorder %s58, %s61
      %p70 = scmp.eq.s32.totalorder %s35, 7
      %p71 = por %p69, %p70
      %p72 = scmp.ne.s32.totalorder %s61, %s62
      %p73 = scmp.eq.s32.totalorder %s35, 0
      %p74 = por %p72, %p73
      %p75 = scmp.ne.s32.totalorder %s61, %s62
      %p76 = scmp.eq.s32.totalorder %s36, 7
      %p77 = por %p75, %p76
      %p79 = scmp.ne.s32.totalorder %s62, %s78
      %p80 = scmp.eq.s32.totalorder %s36, 0
      %p81 = por %p79, %p80
      %s83 = sadd.s32 %s82, 1
      %p86 = scmp.eq.s32.totalorder %s30, 7
      %p87 = scmp.ne.s32.totalorder %s82, %s84
      %p88 = scmp.eq.s32.totalorder %s30, 0
      %p89 = por %p87, %p88
      %p90 = scmp.ne.s32.totalorder %s82, %s84
      %p91 = scmp.eq.s32.totalorder %s35, 7
      %p92 = por %p90, %p91
      %p93 = scmp.ne.s32.totalorder %s84, %s85
      %p94 = scmp.eq.s32.totalorder %s35, 0
      %p95 = por %p93, %p94
      %p96 = scmp.ne.s32.totalorder %s84, %s85
      %p97 = scmp.eq.s32.totalorder %s36, 7
      %p98 = por %p96, %p97
      %p100 = scmp.ne.s32.totalorder %s85, %s99
      %p101 = scmp.eq.s32.totalorder %s36, 0
      %p102 = por %p100, %p101
      %s104 = sadd.s32 %s103, 1
      %p107 = scmp.eq.s32.totalorder %s30, 7
      %p108 = scmp.ne.s32.totalorder %s103, %s105
      %p109 = scmp.eq.s32.totalorder %s30, 0
      %p110 = por %p108, %p109
      %p111 = scmp.ne.s32.totalorder %s103, %s105
      %p112 = scmp.eq.s32.totalorder %s35, 7
      %p113 = por %p111, %p112
      %p114 = scmp.ne.s32.totalorder %s105, %s106
      %p115 = scmp.eq.s32.totalorder %s35, 0
      %p116 = por %p114, %p115
      %p117 = scmp.ne.s32.totalorder %s105, %s106
      %p118 = scmp.eq.s32.totalorder %s36, 7
      %p119 = por %p117, %p118
      %p121 = scmp.ne.s32.totalorder %s106, %s120
      %p122 = scmp.eq.s32.totalorder %s36, 0
      %p123 = por %p121, %p122
      %s125 = sadd.s32 %s124, 1
      %p128 = scmp.eq.s32.totalorder %s30, 7
      %p129 = scmp.ne.s32.totalorder %s124, %s126
      %p130 = scmp.eq.s32.totalorder %s30, 0
      %p131 = por %p129, %p130
      %p132 = scmp.ne.s32.totalorder %s124, %s126
      %p133 = scmp.eq.s32.totalorder %s35, 7
      %p134 = por %p132, %p133
      %p135 = scmp.ne.s32.totalorder %s126, %s127
      %p136 = scmp.eq.s32.totalorder %s35, 0
      %p137 = por %p135, %p136
      %p138 = scmp.ne.s32.totalorder %s126, %s127
      %p139 = scmp.eq.s32.totalorder %s36, 7
      %p140 = por %p138, %p139
      %p142 = scmp.ne.s32.totalorder %s127, %s141
      %p143 = scmp.eq.s32.totalorder %s36, 0
      %p144 = por %p142, %p143
      %s146 = sadd.s32 %s145, 1
      %p149 = scmp.eq.s32.totalorder %s30, 7
      %p150 = scmp.ne.s32.totalorder %s145, %s147
      %p151 = scmp.eq.s32.totalorder %s30, 0
      %p152 = por %p150, %p151
      %p153 = scmp.ne.s32.totalorder %s145, %s147
      %p154 = scmp.eq.s32.totalorder %s35, 7
      %p155 = por %p153, %p154
      %p156 = scmp.ne.s32.totalorder %s147, %s148
      %p157 = scmp.eq.s32.totalorder %s35, 0
      %p158 = por %p156, %p157
      %p159 = scmp.ne.s32.totalorder %s147, %s148
      %p160 = scmp.eq.s32.totalorder %s36, 7
      %p161 = por %p159, %p160
      %p163 = scmp.ne.s32.totalorder %s148, %s162
      %p164 = scmp.eq.s32.totalorder %s36, 0
      %p165 = por %p163, %p164
      %p166 = scmp.gt.s32.totalorder %s37, 0
      %s167 = scalar_select %p166, 1, 0
      %s168 = smul.u32 %s38, %s167
      %p169 = scmp.gt.s32.totalorder %s49, 0
      %s170 = scalar_select %p169, 1, 0
      %s171 = smul.u32 %s45, %s170
      %s172 = ssub.s32 %s168, %s171
      %p173 = scmp.eq.s32.totalorder %s172, 0
      %s175 = sadd.s32 %s174, 1
      %s176 = scalar_select %p173, %s174, %s175
      %p179 = pneg %p173
      %p180 = scmp.eq.s32.totalorder %s30, 7
      %p181 = por %p179, %p180
      %p182 = scmp.ne.s32.totalorder %s174, %s177
      %p183 = scmp.eq.s32.totalorder %s30, 0
      %p184 = por %p182, %p183
      %p185 = scmp.ne.s32.totalorder %s174, %s177
      %p186 = scmp.eq.s32.totalorder %s35, 7
      %p187 = por %p185, %p186
      %p188 = scmp.ne.s32.totalorder %s177, %s178
      %p189 = scmp.eq.s32.totalorder %s35, 0
      %p190 = por %p188, %p189
      %p191 = scmp.ne.s32.totalorder %s177, %s178
      %p192 = scmp.eq.s32.totalorder %s36, 7
      %p193 = por %p191, %p192
      %p195 = scmp.ne.s32.totalorder %s178, %s194
      %p196 = scmp.eq.s32.totalorder %s36, 0
      %p197 = por %p195, %p196
      %s199 = sadd.s32 %s198, 1
      %p202 = scmp.eq.s32.totalorder %s30, 7
      %p203 = scmp.ne.s32.totalorder %s198, %s200
      %p204 = scmp.eq.s32.totalorder %s30, 0
      %p205 = por %p203, %p204
      %p206 = scmp.ne.s32.totalorder %s198, %s200
      %p207 = scmp.eq.s32.totalorder %s35, 7
      %p208 = por %p206, %p207
      %p209 = scmp.ne.s32.totalorder %s200, %s201
      %p210 = scmp.eq.s32.totalorder %s35, 0
      %p211 = por %p209, %p210
      %p212 = scmp.ne.s32.totalorder %s200, %s201
      %p213 = scmp.eq.s32.totalorder %s36, 7
      %p214 = por %p212, %p213
      %p216 = scmp.ne.s32.totalorder %s201, %s215
      %p217 = scmp.eq.s32.totalorder %s36, 0
      %p218 = por %p216, %p217
      %s220 = sadd.s32 %s219, 1
      %p223 = scmp.eq.s32.totalorder %s30, 7
      %p224 = scmp.ne.s32.totalorder %s219, %s221
      %p225 = scmp.eq.s32.totalorder %s30, 0
      %p226 = por %p224, %p225
      %p227 = scmp.ne.s32.totalorder %s219, %s221
      %p228 = scmp.eq.s32.totalorder %s35, 7
      %p229 = por %p227, %p228
      %p230 = scmp.ne.s32.totalorder %s221, %s222
      %p231 = scmp.eq.s32.totalorder %s35, 0
      %p232 = por %p230, %p231
      %p233 = scmp.ne.s32.totalorder %s221, %s222
      %p234 = scmp.eq.s32.totalorder %s36, 7
      %p235 = por %p233, %p234
      %p237 = scmp.ne.s32.totalorder %s222, %s236
      %p238 = scmp.eq.s32.totalorder %s36, 0
      %p239 = por %p237, %p238
      %p240 = scmp.eq.s32.totalorder %s37, 3
      %s241 = scalar_select %p240, 1, 0
      %s242 = smul.u32 %s38, %s241
      %p243 = scmp.eq.s32.totalorder %s49, 3
      %s244 = scalar_select %p243, 1, 0
      %s245 = smul.u32 %s45, %s244
      %s246 = ssub.s32 %s242, %s245
      %p247 = scmp.eq.s32.totalorder %s246, 0
      %s249 = sadd.s32 %s248, 1
      %s250 = scalar_select %p247, %s248, %s249
      %p253 = pneg %p247
      %p254 = scmp.eq.s32.totalorder %s30, 7
      %p255 = por %p253, %p254
      %p256 = scmp.ne.s32.totalorder %s248, %s251
      %p257 = scmp.eq.s32.totalorder %s30, 0
      %p258 = por %p256, %p257
      %p259 = scmp.ne.s32.totalorder %s248, %s251
      %p260 = scmp.eq.s32.totalorder %s35, 7
      %p261 = por %p259, %p260
      %p262 = scmp.ne.s32.totalorder %s251, %s252
      %p263 = scmp.eq.s32.totalorder %s35, 0
      %p264 = por %p262, %p263
      %p265 = scmp.ne.s32.totalorder %s251, %s252
      %p266 = scmp.eq.s32.totalorder %s36, 7
      %p267 = por %p265, %p266
      %p269 = scmp.ne.s32.totalorder %s252, %s268
      %p270 = scmp.eq.s32.totalorder %s36, 0
      %p271 = por %p269, %p270
      %p272 = scmp.eq.s32.totalorder %s37, 3
      %s273 = scalar_select %p272, 1, 0
      %s274 = smul.u32 %s38, %s273
      %p275 = scmp.eq.s32.totalorder %s49, 3
      %s276 = scalar_select %p275, 1, 0
      %s277 = smul.u32 %s45, %s276
      %s278 = ssub.s32 %s274, %s277
      %p279 = scmp.eq.s32.totalorder %s278, 0
      %s281 = sadd.s32 %s280, 1
      %s282 = scalar_select %p279, %s280, %s281
      %p285 = pneg %p279
      %p286 = scmp.eq.s32.totalorder %s30, 7
      %p287 = por %p285, %p286
      %p288 = scmp.ne.s32.totalorder %s280, %s283
      %p289 = scmp.eq.s32.totalorder %s30, 0
      %p290 = por %p288, %p289
      %p291 = scmp.ne.s32.totalorder %s280, %s283
      %p292 = scmp.eq.s32.totalorder %s35, 7
      %p293 = por %p291, %p292
      %p294 = scmp.ne.s32.totalorder %s283, %s284
      %p295 = scmp.eq.s32.totalorder %s35, 0
      %p296 = por %p294, %p295
      %p297 = scmp.ne.s32.totalorder %s283, %s284
      %p298 = scmp.eq.s32.totalorder %s36, 7
      %p299 = por %p297, %p298
      %p301 = scmp.ne.s32.totalorder %s284, %s300
      %p302 = scmp.eq.s32.totalorder %s36, 0
      %p303 = por %p301, %p302
      %p304 = scmp.le.s32.totalorder 1, %s30
      %p305 = scmp.lt.s32.totalorder %s30, 9
      %p306 = pnand %p304, %p305
      %p307 = pneg %p306
      // Predicated region
      $region9: #{tpu_custom_call.1} parent=5 // pred_check
        _
      $region10: #{tpu_custom_call.1} parent=5 // pred_check_branch
        %309 = sbr.rel (%p306) target = $region12
      $region11: #{tpu_custom_call.1} parent=5 // pred_region
        %s310 = ssub.s32 %s30, 1
        // Predicated region
        $region13: #{tpu_custom_call.1} parent=11 // pred_check
          %p311 = pneg %p95
        $region14: #{tpu_custom_call.1} parent=11 // pred_check_branch
          %313 = sbr.rel (%p311) target = $region16
        $region15: #{tpu_custom_call.1} parent=11 // pred_region
          %s315 = ssub.s32 2048, 2048
          %316 = vsyncadd [#allocation10], %s315
          %s317 = sshll.u32 [#allocation9], 4
          %s318 = int_to_ptr.vmem [resolvable:$true] %s317
          %323 = dma.hbm_to_vmem [thread:$0]  %s1, 2048, %s318, [#allocation10], 128, 128, 8
        $region16: #{tpu_custom_call.1} parent=11 // pred_fallthru
          _
        // Predicated region
        $region17: #{tpu_custom_call.1} parent=11 // pred_check
          %p324 = pneg %p116
        $region18: #{tpu_custom_call.1} parent=11 // pred_check_branch
          %326 = sbr.rel (%p324) target = $region20
        $region19: #{tpu_custom_call.1} parent=11 // pred_region
          _
        $region20: #{tpu_custom_call.1} parent=11 // pred_fallthru
          _
        // Predicated region
        $region21: #{tpu_custom_call.1} parent=11 // pred_check
          %p327 = pneg %p137
        $region22: #{tpu_custom_call.1} parent=11 // pred_check_branch
          %329 = sbr.rel (%p327) target = $region24
        $region23: #{tpu_custom_call.1} parent=11 // pred_region
          %s331 = ssub.s32 2048, 2048
          %332 = vsyncadd [#allocation10], %s331
          %s333 = sshll.u32 [#allocation11], 4
          %s334 = int_to_ptr.vmem [resolvable:$true] %s333
          %339 = dma.hbm_to_vmem [thread:$0]  %s3, 2048, %s334, [#allocation10], 128, 128, 8
        $region24: #{tpu_custom_call.1} parent=11 // pred_fallthru
          _
        // Predicated region
        $region25: #{tpu_custom_call.1} parent=11 // pred_check
          %p340 = pneg %p158
        $region26: #{tpu_custom_call.1} parent=11 // pred_check_branch
          %342 = sbr.rel (%p340) target = $region28
        $region27: #{tpu_custom_call.1} parent=11 // pred_region
          _
        $region28: #{tpu_custom_call.1} parent=11 // pred_fallthru
          _
        // Predicated region
        $region29: #{tpu_custom_call.1} parent=11 // pred_check
          %p343 = pneg %p211
        $region30: #{tpu_custom_call.1} parent=11 // pred_check_branch
          %345 = sbr.rel (%p343) target = $region32
        $region31: #{tpu_custom_call.1} parent=11 // pred_region
          _
        $region32: #{tpu_custom_call.1} parent=11 // pred_fallthru
          _
        // Predicated region
        $region33: #{tpu_custom_call.1} parent=11 // pred_check
          %p346 = pneg %p232
        $region34: #{tpu_custom_call.1} parent=11 // pred_check_branch
          %348 = sbr.rel (%p346) target = $region36
        $region35: #{tpu_custom_call.1} parent=11 // pred_region
          _
        $region36: #{tpu_custom_call.1} parent=11 // pred_fallthru
          _
      $region12: #{tpu_custom_call.1} parent=5 // pred_fallthru
        _
      %p349 = scmp.lt.s32.totalorder %s30, 8
      // Predicated region
      $region37: #{tpu_custom_call.1} parent=5 // pred_check
        %p350 = pneg %p349
      $region38: #{tpu_custom_call.1} parent=5 // pred_check_branch
        %352 = sbr.rel (%p350) target = $region40
      $region39: #{tpu_custom_call.1} parent=5 // pred_region
        // Predicated region
        $region41: #{tpu_custom_call.1} parent=39 // pred_check
          %p353 = pneg %p68
        $region42: #{tpu_custom_call.1} parent=39 // pred_check_branch
          %355 = sbr.rel (%p353) target = $region44
        $region43: #{tpu_custom_call.1} parent=39 // pred_region
          %s356 = sand.u32 %s58, 1
          %s357 = scalar_lea.sflag [#allocation7], %s356
          %s358 = sand.u32 %s58, 1
          %s359 = smul.addr %s358, 128
          %s360 = scalar_lea.vmem [#allocation6], %s359
          %p361 = scmp.eq.s32.totalorder %s37, 0
          %s362 = scalar_select %p361, 1, 0
          %s363 = smul.u32 %s38, %s362
          %s364 = smul.u32 16, %s363
          %s366 = ssub.s32 2048, 2048
          %367 = vsyncadd %s357, %s366
          %s368 = smul.addr %s364, 128
          %s369 = scalar_lea.hbm %s0, %s368
          %s370 = sshll.u32 %s360, 4
          %s371 = int_to_ptr.vmem [resolvable:$true] %s370
          %376 = dma.hbm_to_vmem [thread:$0]  %s369, 2048, %s371, %s357, 128, 128, 8
        $region44: #{tpu_custom_call.1} parent=39 // pred_fallthru
          _
        // Predicated region
        $region45: #{tpu_custom_call.1} parent=39 // pred_check
          %p377 = pneg %p184
        $region46: #{tpu_custom_call.1} parent=39 // pred_check_branch
          %379 = sbr.rel (%p377) target = $region48
        $region47: #{tpu_custom_call.1} parent=39 // pred_region
          %s380 = sand.u32 %s174, 1
          %s381 = scalar_lea.sflag [#allocation13], %s380
          %s382 = sand.u32 %s174, 1
          %s383 = smul.addr %s382, 256
          %s384 = scalar_lea.vmem [#allocation12], %s383
          %p385 = scmp.gt.s32.totalorder %s37, 0
          %s386 = scalar_select %p385, 1, 0
          %s387 = smul.u32 %s38, %s386
          %s388 = smul.u32 16, %s387
          %s390 = ssub.s32 4096, 4096
          %391 = vsyncadd %s381, %s390
          %s392 = smul.addr %s388, 2
          %s393 = smul.addr %s392, 128
          %s394 = scalar_lea.hbm %s5, %s393
          %s395 = sshll.u32 %s384, 4
          %s396 = int_to_ptr.vmem [resolvable:$true] %s395
          %401 = dma.hbm_to_vmem [thread:$0]  %s394, 4096, %s396, %s381, 256, 256, 16
        $region48: #{tpu_custom_call.1} parent=39 // pred_fallthru
          _
      $region40: #{tpu_custom_call.1} parent=5 // pred_fallthru
        _
      %p402 = scmp.le.s32.totalorder 1, %s30
      %p403 = scmp.lt.s32.totalorder %s30, 9
      %p404 = pnand %p402, %p403
      %p405 = pneg %p404
      // Predicated region
      $region49: #{tpu_custom_call.1} parent=5 // pred_check
        _
      $region50: #{tpu_custom_call.1} parent=5 // pred_check_branch
        %407 = sbr.rel (%p404) target = $region52
      $region51: #{tpu_custom_call.1} parent=5 // pred_region
        %s408 = ssub.s32 %s30, 1
        %s409 = sand.u32 %s61, 1
        %s410 = scalar_lea.sflag [#allocation7], %s409
        %s411 = sand.u32 %s61, 1
        %s412 = smul.addr %s411, 128
        %s413 = scalar_lea.vmem [#allocation6], %s412
        // Predicated region
        $region53: #{tpu_custom_call.1} parent=51 // pred_check
          %p414 = pneg %p74
        $region54: #{tpu_custom_call.1} parent=51 // pred_check_branch
          %416 = sbr.rel (%p414) target = $region56
        $region55: #{tpu_custom_call.1} parent=51 // pred_region
          %417 = dma.done %s410, 2048
        $region56: #{tpu_custom_call.1} parent=51 // pred_fallthru
          _
        // Predicated region
        $region57: #{tpu_custom_call.1} parent=51 // pred_check
          %p418 = pneg %p95
        $region58: #{tpu_custom_call.1} parent=51 // pred_check_branch
          %420 = sbr.rel (%p418) target = $region60
        $region59: #{tpu_custom_call.1} parent=51 // pred_region
          %421 = dma.done [#allocation10], 2048
        $region60: #{tpu_custom_call.1} parent=51 // pred_fallthru
          _
        // Predicated region
        $region61: #{tpu_custom_call.1} parent=51 // pred_check
          %p422 = pneg %p137
        $region62: #{tpu_custom_call.1} parent=51 // pred_check_branch
          %424 = sbr.rel (%p422) target = $region64
        $region63: #{tpu_custom_call.1} parent=51 // pred_region
          %425 = dma.done [#allocation10], 2048
        $region64: #{tpu_custom_call.1} parent=51 // pred_fallthru
          _
        %s426 = sand.u32 %s177, 1
        %s427 = scalar_lea.sflag [#allocation13], %s426
        %s428 = sand.u32 %s177, 1
        %s429 = smul.addr %s428, 256
        %s430 = scalar_lea.vmem [#allocation12], %s429
        // Predicated region
        $region65: #{tpu_custom_call.1} parent=51 // pred_check
          %p431 = pneg %p190
        $region66: #{tpu_custom_call.1} parent=51 // pred_check_branch
          %433 = sbr.rel (%p431) target = $region68
        $region67: #{tpu_custom_call.1} parent=51 // pred_region
          %434 = dma.done %s427, 4096
        $region68: #{tpu_custom_call.1} parent=51 // pred_fallthru
          _
        %s435 = sand.u32 %s61, 1
        %s436 = scalar_lea.sflag [#allocation7], %s435
        %s437 = sand.u32 %s61, 1
        %s438 = smul.addr %s437, 128
        %s439 = scalar_lea.vmem [#allocation6], %s438
        %p440 = pneg %p74
        %p441 = pneg %p71
        %p442 = pneg %p95
        %p443 = pneg %p92
        %p444 = pneg %p116
        %p445 = pneg %p113
        %p446 = pneg %p137
        %p447 = pneg %p134
        %p448 = pneg %p158
        %p449 = pneg %p155
        %s450 = sand.u32 %s177, 1
        %s451 = scalar_lea.sflag [#allocation13], %s450
        %s452 = sand.u32 %s177, 1
        %s453 = smul.addr %s452, 256
        %s454 = scalar_lea.vmem [#allocation12], %s453
        %p455 = pneg %p190
        %p456 = pneg %p187
        %p457 = pneg %p211
        %p458 = pneg %p208
        %p459 = pneg %p232
        %p460 = pneg %p229
        %p461 = pneg %p264
        %p462 = pneg %p261
        %s463 = sand.u32 %s251, 1
        %s464 = scalar_lea.sflag [#allocation8], %s463
        %s465 = sand.u32 %s251, 1
        %s466 = smul.addr %s465, 128
        %s467 = scalar_lea.vmem [#allocation14], %s466
        %p468 = pneg %p296
        %p469 = pneg %p293
        %s470 = sand.u32 %s283, 1
        %s471 = scalar_lea.sflag [#allocation16], %s470
        %s472 = sand.u32 %s283, 1
        %s473 = smul.addr %s472, 128
        %s474 = scalar_lea.vmem [#allocation15], %s473
        %p475 = scmp.eq.s32.totalorder %s39, 0
        %s476 = scalar_select %p475, 1, 0
        %s477 = smul.u32 %s40, %s476
        %s478 = smul.u32 16, %s477
        %p479 = scmp.gt.s32.totalorder %s39, 0
        %s480 = scalar_select %p479, 1, 0
        %s481 = smul.u32 %s40, %s480
        %s482 = smul.u32 16, %s481
        %p483 = scmp.eq.s32.totalorder %s39, 3
        %s484 = scalar_select %p483, 1, 0
        %s485 = smul.u32 %s40, %s484
        %s486 = smul.u32 16, %s485
        %p487 = scmp.eq.s32.totalorder %s39, 3
        %s488 = scalar_select %p487, 1, 0
        %s489 = smul.u32 %s40, %s488
        %s490 = smul.u32 16, %s489
        %s491 = smul.u32 %s40, 128
        %v492 = vld [vmem:[%s6] sm:$0x1]
        %s493 = sld [smem:[#allocation5]]
        %p494 = scmp.eq.s32.totalorder %s39, 0
        // Predicated region
        $region69: #{tpu_custom_call.1} parent=51 // pred_check
          %p495 = pneg %p494
        $region70: #{tpu_custom_call.1} parent=51 // pred_check_branch
          %497 = sbr.rel (%p495) target = $region72
        $region71: #{tpu_custom_call.1} parent=51 // pred_region
          %v498 = vld [vmem:[%s413] sm:$0xff]
          %v499 = vld [vmem:[%s413 + $0x8] sm:$0xff]
          %v500 = vld [vmem:[%s413 + $0x10] sm:$0xff]
          %v501 = vld [vmem:[%s413 + $0x18] sm:$0xff]
          %v502 = vld [vmem:[%s413 + $0x20] sm:$0xff]
          %v503 = vld [vmem:[%s413 + $0x28] sm:$0xff]
          %v504 = vld [vmem:[%s413 + $0x30] sm:$0xff]
          %v505 = vld [vmem:[%s413 + $0x38] sm:$0xff]
          %v506 = vld [vmem:[%s413 + $0x40] sm:$0xff]
          %v507 = vld [vmem:[%s413 + $0x48] sm:$0xff]
          %v508 = vld [vmem:[%s413 + $0x50] sm:$0xff]
          %v509 = vld [vmem:[%s413 + $0x58] sm:$0xff]
          %v510 = vld [vmem:[%s413 + $0x60] sm:$0xff]
          %v511 = vld [vmem:[%s413 + $0x68] sm:$0xff]
          %v512 = vld [vmem:[%s413 + $0x70] sm:$0xff]
          %v513 = vld [vmem:[%s413 + $0x78] sm:$0xff]
          %v514 = vld [vmem:[#allocation9] sm:$0xff]
          %v515 = vld [vmem:[#allocation9 + $0x8] sm:$0xff]
          %v516 = vld [vmem:[#allocation9 + $0x10] sm:$0xff]
          %v517 = vld [vmem:[#allocation9 + $0x18] sm:$0xff]
          %v518 = vld [vmem:[#allocation9 + $0x20] sm:$0xff]
          %v519 = vld [vmem:[#allocation9 + $0x28] sm:$0xff]
          %v520 = vld [vmem:[#allocation9 + $0x30] sm:$0xff]
          %v521 = vld [vmem:[#allocation9 + $0x38] sm:$0xff]
          %v522 = vld [vmem:[#allocation9 + $0x40] sm:$0xff]
          %v523 = vld [vmem:[#allocation9 + $0x48] sm:$0xff]
          %v524 = vld [vmem:[#allocation9 + $0x50] sm:$0xff]
          %v525 = vld [vmem:[#allocation9 + $0x58] sm:$0xff]
          %v526 = vld [vmem:[#allocation9 + $0x60] sm:$0xff]
          %v527 = vld [vmem:[#allocation9 + $0x68] sm:$0xff]
          %v528 = vld [vmem:[#allocation9 + $0x70] sm:$0xff]
          %v529 = vld [vmem:[#allocation9 + $0x78] sm:$0xff]
          %v530 = vld [vmem:[%s2] sm:$0x1]
          %v532 = vlaneseq
          %v533 = vshrl.u32 %v532, 7
          %v534 = vsub.s32 0, %v533
          %v535 = vrot.slane %v530, %v534
          %537 = vmatprep.subr.mxu0 0.0
          %v538 = vand.u32 %v514, 4294901760
          %539 = vmatpush1.msra.mxu0 %v538
          %540 = vmatprep.subr.mxu0 0.0
          %v541 = vand.u32 %v515, 4294901760
          %542 = vmatpush1.msra.mxu0 %v541
          %543 = vmatprep.subr.mxu0 0.0
          %v544 = vand.u32 %v516, 4294901760
          %545 = vmatpush1.msra.mxu0 %v544
          %546 = vmatprep.subr.mxu0 0.0
          %v547 = vand.u32 %v517, 4294901760
          %548 = vmatpush1.msra.mxu0 %v547
          %549 = vmatprep.subr.mxu0 0.0
          %v550 = vand.u32 %v518, 4294901760
          %551 = vmatpush1.msra.mxu0 %v550
          %552 = vmatprep.subr.mxu0 0.0
          %v553 = vand.u32 %v519, 4294901760
          %554 = vmatpush1.msra.mxu0 %v553
          %555 = vmatprep.subr.mxu0 0.0
          %v556 = vand.u32 %v520, 4294901760
          %557 = vmatpush1.msra.mxu0 %v556
          %558 = vmatprep.subr.mxu0 0.0
          %v559 = vand.u32 %v521, 4294901760
          %560 = vmatpush1.msra.mxu0 %v559
          %561 = vmatprep.subr.mxu0 0.0
          %v562 = vand.u32 %v522, 4294901760
          %563 = vmatpush1.msra.mxu0 %v562
          %564 = vmatprep.subr.mxu0 0.0
          %v565 = vand.u32 %v523, 4294901760
          %566 = vmatpush1.msra.mxu0 %v565
          %567 = vmatprep.subr.mxu0 0.0
          %v568 = vand.u32 %v524, 4294901760
          %569 = vmatpush1.msra.mxu0 %v568
          %570 = vmatprep.subr.mxu0 0.0
          %v571 = vand.u32 %v525, 4294901760
          %572 = vmatpush1.msra.mxu0 %v571
          %573 = vmatprep.subr.mxu0 0.0
          %v574 = vand.u32 %v526, 4294901760
          %575 = vmatpush1.msra.mxu0 %v574
          %576 = vmatprep.subr.mxu0 0.0
          %v577 = vand.u32 %v527, 4294901760
          %578 = vmatpush1.msra.mxu0 %v577
          %579 = vmatprep.subr.mxu0 0.0
          %v580 = vand.u32 %v528, 4294901760
          %581 = vmatpush1.msra.mxu0 %v580
          %582 = vmatprep.subr.mxu0 0.0
          %v583 = vand.u32 %v529, 4294901760
          %584 = vmatpush1.msra.mxu0 %v583
          %585 = vmatprep.subr.mxu0 0.0
          %586 = vmatpush1.msra.mxu0 0.0
          %587 = vmatprep.subr.mxu0 0.0
          %588 = vmatpush1.msra.mxu0 0.0
          %589 = vmatprep.subr.mxu0 0.0
          %590 = vmatpush1.msra.mxu0 0.0
          %591 = vmatprep.subr.mxu0 0.0
          %592 = vmatpush1.msra.mxu0 0.0
          %593 = vmatprep.subr.mxu0 0.0
          %594 = vmatpush1.msra.mxu0 0.0
          %595 = vmatprep.subr.mxu0 0.0
          %596 = vmatpush1.msra.mxu0 0.0
          %597 = vmatprep.subr.mxu0 0.0
          %598 = vmatpush1.msra.mxu0 0.0
          %599 = vmatprep.subr.mxu0 0.0
          %600 = vmatpush1.msra.mxu0 0.0
          %601 = vmatprep.subr.mxu0 0.0
          %602 = vmatpush1.msra.mxu0 0.0
          %603 = vmatprep.subr.mxu0 0.0
          %604 = vmatpush1.msra.mxu0 0.0
          %605 = vmatprep.subr.mxu0 0.0
          %606 = vmatpush1.msra.mxu0 0.0
          %607 = vmatprep.subr.mxu0 0.0
          %608 = vmatpush1.msra.mxu0 0.0
          %609 = vmatprep.subr.mxu0 0.0
          %610 = vmatpush1.msra.mxu0 0.0
          %611 = vmatprep.subr.mxu0 0.0
          %612 = vmatpush1.msra.mxu0 0.0
          %613 = vmatprep.subr.mxu0 0.0
          %614 = vmatpush1.msra.mxu0 0.0
          %615 = vmatprep.subr.mxu0 0.0
          %616 = vmatpush1.msra.mxu0 0.0
          %617 = vmatprep.mubr.f32.mxu0 0.0
          %v618 = vand.u32 %v498, 4294901760
          %v619 = vsub.f32 %v498, %v618
          %v620 = vand.u32 %v619, 4294901760
          %v621 = vsub.f32 %v619, %v620
          %v622 = vand.u32 %v621, 4294901760
          %623 = vmatmul.mubr.f32.gmra.mrb[0].mxu0 %v622
          %v624 = vpop.f32.mrb[0].mxu0
          %v625 = vadd.f32 %v535, %v624
          %v626 = vpop.f32.mrb[0].mxu0
          %627 = vmatprep.mubr.f32.mxu0 0.0
          %v628 = vand.u32 %v499, 4294901760
          %v629 = vsub.f32 %v499, %v628
          %v630 = vand.u32 %v629, 4294901760
          %v631 = vsub.f32 %v629, %v630
          %v632 = vand.u32 %v631, 4294901760
          %633 = vmatmul.mubr.f32.gmra.mrb[0].mxu0 %v632
          %v634 = vpop.f32.mrb[0].mxu0
          %v635 = vadd.f32 %v535, %v634
          %v636 = vpop.f32.mrb[0].mxu0
          %637 = vmatprep.mubr.f32.mxu0 0.0
          %v638 = vand.u32 %v500, 4294901760
          %v639 = vsub.f32 %v500, %v638
          %v640 = vand.u32 %v639, 4294901760
          %v641 = vsub.f32 %v639, %v640
          %v642 = vand.u32 %v641, 4294901760
          %643 = vmatmul.mubr.f32.gmra.mrb[0].mxu0 %v642
          %v644 = vpop.f32.mrb[0].mxu0
          %v645 = vadd.f32 %v535, %v644
          %v646 = vpop.f32.mrb[0].mxu0
          %647 = vmatprep.mubr.f32.mxu0 0.0
          %v648 = vand.u32 %v501, 4294901760
          %v649 = vsub.f32 %v501, %v648
          %v650 = vand.u32 %v649, 4294901760
          %v651 = vsub.f32 %v649, %v650
          %v652 = vand.u32 %v651, 4294901760
          %653 = vmatmul.mubr.f32.gmra.mrb[0].mxu0 %v652
          %v654 = vpop.f32.mrb[0].mxu0
          %v655 = vadd.f32 %v535, %v654
          %v656 = vpop.f32.mrb[0].mxu0
          %657 = vmatprep.mubr.f32.mxu0 0.0
          %v658 = vand.u32 %v502, 4294901760
          %v659 = vsub.f32 %v502, %v658
          %v660 = vand.u32 %v659, 4294901760
          %v661 = vsub.f32 %v659, %v660
          %v662 = vand.u32 %v661, 4294901760
          %663 = vmatmul.mubr.f32.gmra.mrb[0].mxu0 %v662
          %v664 = vpop.f32.mrb[0].mxu0
          %v665 = vadd.f32 %v535, %v664
          %v666 = vpop.f32.mrb[0].mxu0
          %667 = vmatprep.mubr.f32.mxu0 0.0
          %v668 = vand.u32 %v503, 4294901760
          %v669 = vsub.f32 %v503, %v668
          %v670 = vand.u32 %v669, 4294901760
          %v671 = vsub.f32 %v669, %v670
          %v672 = vand.u32 %v671, 4294901760
          %673 = vmatmul.mubr.f32.gmra.mrb[0].mxu0 %v672
          %v674 = vpop.f32.mrb[0].mxu0
          %v675 = vadd.f32 %v535, %v674
          %v676 = vpop.f32.mrb[0].mxu0
          %677 = vmatprep.mubr.f32.mxu0 0.0
          %v678 = vand.u32 %v504, 4294901760
          %v679 = vsub.f32 %v504, %v678
          %v680 = vand.u32 %v679, 4294901760
          %v681 = vsub.f32 %v679, %v680
          %v682 = vand.u32 %v681, 4294901760
          %683 = vmatmul.mubr.f32.gmra.mrb[0].mxu0 %v682
          %v684 = vpop.f32.mrb[0].mxu0
          %v685 = vadd.f32 %v535, %v684
          %v686 = vpop.f32.mrb[0].mxu0
          %687 = vmatprep.mubr.f32.mxu0 0.0
          %v688 = vand.u32 %v505, 4294901760
          %v689 = vsub.f32 %v505, %v688
          %v690 = vand.u32 %v689, 4294901760
          %v691 = vsub.f32 %v689, %v690
          %v692 = vand.u32 %v691, 4294901760
          %693 = vmatmul.mubr.f32.gmra.mrb[0].mxu0 %v692
          %v694 = vpop.f32.mrb[0].mxu0
          %v695 = vadd.f32 %v535, %v694
          %v696 = vpop.f32.mrb[0].mxu0
          %697 = vmatprep.mubr.f32.mxu0 0.0
          %v698 = vand.u32 %v506, 4294901760
          %v699 = vsub.f32 %v506, %v698
          %v700 = vand.u32 %v699, 4294901760
          %v701 = vsub.f32 %v699, %v700
          %v702 = vand.u32 %v701, 4294901760
          %703 = vmatmul.mubr.f32.gmra.mrb[0].mxu0 %v702
          %v704 = vpop.f32.mrb[0].mxu0
          %v705 = vadd.f32 %v535, %v704
          %v706 = vpop.f32.mrb[0].mxu0
          %707 = vmatprep.mubr.f32.mxu0 0.0
          %v708 = vand.u32 %v507, 4294901760
          %v709 = vsub.f32 %v507, %v708
          %v710 = vand.u32 %v709, 4294901760
          %v711 = vsub.f32 %v709, %v710
          %v712 = vand.u32 %v711, 4294901760
          %713 = vmatmul.mubr.f32.gmra.mrb[0].mxu0 %v712
          %v714 = vpop.f32.mrb[0].mxu0
          %v715 = vadd.f32 %v535, %v714
          %v716 = vpop.f32.mrb[0].mxu0
          %717 = vmatprep.mubr.f32.mxu0 0.0
          %v718 = vand.u32 %v508, 4294901760
          %v719 = vsub.f32 %v508, %v718
          %v720 = vand.u32 %v719, 4294901760
          %v721 = vsub.f32 %v719, %v720
          %v722 = vand.u32 %v721, 4294901760
          %723 = vmatmul.mubr.f32.gmra.mrb[0].mxu0 %v722
          %v724 = vpop.f32.mrb[0].mxu0
          %v725 = vadd.f32 %v535, %v724
          %v726 = vpop.f32.mrb[0].mxu0
          %727 = vmatprep.mubr.f32.mxu0 0.0
          %v728 = vand.u32 %v509, 4294901760
          %v729 = vsub.f32 %v509, %v728
          %v730 = vand.u32 %v729, 4294901760
          %v731 = vsub.f32 %v729, %v730
          %v732 = vand.u32 %v731, 4294901760
          %733 = vmatmul.mubr.f32.gmra.mrb[0].mxu0 %v732
          %v734 = vpop.f32.mrb[0].mxu0
          %v735 = vadd.f32 %v535, %v734
          %v736 = vpop.f32.mrb[0].mxu0
          %737 = vmatprep.mubr.f32.mxu0 0.0
          %v738 = vand.u32 %v510, 4294901760
          %v739 = vsub.f32 %v510, %v738
          %v740 = vand.u32 %v739, 4294901760
          %v741 = vsub.f32 %v739, %v740
          %v742 = vand.u32 %v741, 4294901760
          %743 = vmatmul.mubr.f32.gmra.mrb[0].mxu0 %v742
          %v744 = vpop.f32.mrb[0].mxu0
          %v745 = vadd.f32 %v535, %v744
          %v746 = vpop.f32.mrb[0].mxu0
          %747 = vmatprep.mubr.f32.mxu0 0.0
          %v748 = vand.u32 %v511, 4294901760
          %v749 = vsub.f32 %v511, %v748
          %v750 = vand.u32 %v749, 4294901760
          %v751 = vsub.f32 %v749, %v750
          %v752 = vand.u32 %v751, 4294901760
          %753 = vmatmul.mubr.f32.gmra.mrb[0].mxu0 %v752
          %v754 = vpop.f32.mrb[0].mxu0
          %v755 = vadd.f32 %v535, %v754
          %v756 = vpop.f32.mrb[0].mxu0
          %757 = vmatprep.mubr.f32.mxu0 0.0
          %v758 = vand.u32 %v512, 4294901760
          %v759 = vsub.f32 %v512, %v758
          %v760 = vand.u32 %v759, 4294901760
          %v761 = vsub.f32 %v759, %v760
          %v762 = vand.u32 %v761, 4294901760
          %763 = vmatmul.mubr.f32.gmra.mrb[0].mxu0 %v762
          %v764 = vpop.f32.mrb[0].mxu0
          %v765 = vadd.f32 %v535, %v764
          %v766 = vpop.f32.mrb[0].mxu0
          %767 = vmatprep.mubr.f32.mxu0 0.0
          %v768 = vand.u32 %v513, 4294901760
          %v769 = vsub.f32 %v513, %v768
          %v770 = vand.u32 %v769, 4294901760
          %v771 = vsub.f32 %v769, %v770
          %v772 = vand.u32 %v771, 4294901760
          %773 = vmatmul.mubr.f32.gmra.mrb[0].mxu0 %v772
          %v774 = vpop.f32.mrb[0].mxu0
          %v775 = vadd.f32 %v535, %v774
          %v776 = vpop.f32.mrb[0].mxu0
          %777 = vdwg.mxu0
          %778 = vmatprep.subr.mxu0 0.0
          %v779 = vand.u32 %v514, 4294901760
          %v780 = vsub.f32 %v514, %v779
          %v781 = vand.u32 %v780, 4294901760
          %v782 = vsub.f32 %v780, %v781
          %v783 = vand.u32 %v782, 4294901760
          %784 = vmatpush1.msra.mxu0 %v783
          %785 = vmatprep.subr.mxu0 0.0
          %v786 = vand.u32 %v515, 4294901760
          %v787 = vsub.f32 %v515, %v786
          %v788 = vand.u32 %v787, 4294901760
          %v789 = vsub.f32 %v787, %v788
          %v790 = vand.u32 %v789, 4294901760
          %791 = vmatpush1.msra.mxu0 %v790
          %792 = vmatprep.subr.mxu0 0.0
          %v793 = vand.u32 %v516, 4294901760
          %v794 = vsub.f32 %v516, %v793
          %v795 = vand.u32 %v794, 4294901760
          %v796 = vsub.f32 %v794, %v795
          %v797 = vand.u32 %v796, 4294901760
          %798 = vmatpush1.msra.mxu0 %v797
          %799 = vmatprep.subr.mxu0 0.0
          %v800 = vand.u32 %v517, 4294901760
          %v801 = vsub.f32 %v517, %v800
          %v802 = vand.u32 %v801, 4294901760
          %v803 = vsub.f32 %v801, %v802
          %v804 = vand.u32 %v803, 4294901760
          %805 = vmatpush1.msra.mxu0 %v804
          %806 = vmatprep.subr.mxu0 0.0
          %v807 = vand.u32 %v518, 4294901760
          %v808 = vsub.f32 %v518, %v807
          %v809 = vand.u32 %v808, 4294901760
          %v810 = vsub.f32 %v808, %v809
          %v811 = vand.u32 %v810, 4294901760
          %812 = vmatpush1.msra.mxu0 %v811
          %813 = vmatprep.subr.mxu0 0.0
          %v814 = vand.u32 %v519, 4294901760
          %v815 = vsub.f32 %v519, %v814
          %v816 = vand.u32 %v815, 4294901760
          %v817 = vsub.f32 %v815, %v816
          %v818 = vand.u32 %v817, 4294901760
          %819 = vmatpush1.msra.mxu0 %v818
          %820 = vmatprep.subr.mxu0 0.0
          %v821 = vand.u32 %v520, 4294901760
          %v822 = vsub.f32 %v520, %v821
          %v823 = vand.u32 %v822, 4294901760
          %v824 = vsub.f32 %v822, %v823
          %v825 = vand.u32 %v824, 4294901760
          %826 = vmatpush1.msra.mxu0 %v825
          %827 = vmatprep.subr.mxu0 0.0
          %v828 = vand.u32 %v521, 4294901760
          %v829 = vsub.f32 %v521, %v828
          %v830 = vand.u32 %v829, 4294901760
          %v831 = vsub.f32 %v829, %v830
          %v832 = vand.u32 %v831, 4294901760
          %833 = vmatpush1.msra.mxu0 %v832
          %834 = vmatprep.subr.mxu0 0.0
          %v835 = vand.u32 %v522, 4294901760
          %v836 = vsub.f32 %v522, %v835
          %v837 = vand.u32 %v836, 4294901760
          %v838 = vsub.f32 %v836, %v837
          %v839 = vand.u32 %v838, 4294901760
          %840 = vmatpush1.msra.mxu0 %v839
          %841 = vmatprep.subr.mxu0 0.0
          %v842 = vand.u32 %v523, 4294901760
          %v843 = vsub.f32 %v523, %v842
          %v844 = vand.u32 %v843, 4294901760
          %v845 = vsub.f32 %v843, %v844
          %v846 = vand.u32 %v845, 4294901760
          %847 = vmatpush1.msra.mxu0 %v846
          %848 = vmatprep.subr.mxu0 0.0
          %v849 = vand.u32 %v524, 4294901760
          %v850 = vsub.f32 %v524, %v849
          %v851 = vand.u32 %v850, 4294901760
          %v852 = vsub.f32 %v850, %v851
          %v853 = vand.u32 %v852, 4294901760
          %854 = vmatpush1.msra.mxu0 %v853
          %855 = vmatprep.subr.mxu0 0.0
          %v856 = vand.u32 %v525, 4294901760
          %v857 = vsub.f32 %v525, %v856
          %v858 = vand.u32 %v857, 4294901760
          %v859 = vsub.f32 %v857, %v858
          %v860 = vand.u32 %v859, 4294901760
          %861 = vmatpush1.msra.mxu0 %v860
          %862 = vmatprep.subr.mxu0 0.0
          %v863 = vand.u32 %v526, 4294901760
          %v864 = vsub.f32 %v526, %v863
          %v865 = vand.u32 %v864, 4294901760
          %v866 = vsub.f32 %v864, %v865
          %v867 = vand.u32 %v866, 4294901760
          %868 = vmatpush1.msra.mxu0 %v867
          %869 = vmatprep.subr.mxu0 0.0
          %v870 = vand.u32 %v527, 4294901760
          %v871 = vsub.f32 %v527, %v870
          %v872 = vand.u32 %v871, 4294901760
          %v873 = vsub.f32 %v871, %v872
          %v874 = vand.u32 %v873, 4294901760
          %875 = vmatpush1.msra.mxu0 %v874
          %876 = vmatprep.subr.mxu0 0.0
          %v877 = vand.u32 %v528, 4294901760
          %v878 = vsub.f32 %v528, %v877
          %v879 = vand.u32 %v878, 4294901760
          %v880 = vsub.f32 %v878, %v879
          %v881 = vand.u32 %v880, 4294901760
          %882 = vmatpush1.msra.mxu0 %v881
          %883 = vmatprep.subr.mxu0 0.0
          %v884 = vand.u32 %v529, 4294901760
          %v885 = vsub.f32 %v529, %v884
          %v886 = vand.u32 %v885, 4294901760
          %v887 = vsub.f32 %v885, %v886
          %v888 = vand.u32 %v887, 4294901760
          %889 = vmatpush1.msra.mxu0 %v888
          %890 = vmatprep.subr.mxu0 0.0
          %891 = vmatpush1.msra.mxu0 0.0
          %892 = vmatprep.subr.mxu0 0.0
          %893 = vmatpush1.msra.mxu0 0.0
          %894 = vmatprep.subr.mxu0 0.0
          %895 = vmatpush1.msra.mxu0 0.0
          %896 = vmatprep.subr.mxu0 0.0
          %897 = vmatpush1.msra.mxu0 0.0
          %898 = vmatprep.subr.mxu0 0.0
          %899 = vmatpush1.msra.mxu0 0.0
          %900 = vmatprep.subr.mxu0 0.0
          %901 = vmatpush1.msra.mxu0 0.0
          %902 = vmatprep.subr.mxu0 0.0
          %903 = vmatpush1.msra.mxu0 0.0
          %904 = vmatprep.subr.mxu0 0.0
          %905 = vmatpush1.msra.mxu0 0.0
          %906 = vmatprep.subr.mxu0 0.0
          %907 = vmatpush1.msra.mxu0 0.0
          %908 = vmatprep.subr.mxu0 0.0
          %909 = vmatpush1.msra.mxu0 0.0
          %910 = vmatprep.subr.mxu0 0.0
          %911 = vmatpush1.msra.mxu0 0.0
          %912 = vmatprep.subr.mxu0 0.0
          %913 = vmatpush1.msra.mxu0 0.0
          %914 = vmatprep.subr.mxu0 0.0
          %915 = vmatpush1.msra.mxu0 0.0
          %916 = vmatprep.subr.mxu0 0.0
          %917 = vmatpush1.msra.mxu0 0.0
          %918 = vmatprep.subr.mxu0 0.0
          %919 = vmatpush1.msra.mxu0 0.0
          %920 = vmatprep.subr.mxu0 0.0
          %921 = vmatpush1.msra.mxu0 0.0
          %922 = vmatprep.mubr.f32.mxu0 0.0
          %v923 = vand.u32 %v498, 4294901760
          %924 = vmatmul.mubr.f32.gmra.mrb[0].mxu0 %v923
          %v925 = vpop.f32.mrb[0].mxu0
          %v926 = vadd.f32 %v625, %v925
          %v927 = vpop.f32.mrb[0].mxu0
          %928 = vmatprep.mubr.f32.mxu0 0.0
          %v929 = vand.u32 %v499, 4294901760
          %930 = vmatmul.mubr.f32.gmra.mrb[0].mxu0 %v929
          %v931 = vpop.f32.mrb[0].mxu0
          %v932 = vadd.f32 %v635, %v931
          %v933 = vpop.f32.mrb[0].mxu0
          %934 = vmatprep.mubr.f32.mxu0 0.0
          %v935 = vand.u32 %v500, 4294901760
          %936 = vmatmul.mubr.f32.gmra.mrb[0].mxu0 %v935
          %v937 = vpop.f32.mrb[0].mxu0
          %v938 = vadd.f32 %v645, %v937
          %v939 = vpop.f32.mrb[0].mxu0
          %940 = vmatprep.mubr.f32.mxu0 0.0
          %v941 = vand.u32 %v501, 4294901760
          %942 = vmatmul.mubr.f32.gmra.mrb[0].mxu0 %v941
          %v943 = vpop.f32.mrb[0].mxu0
          %v944 = vadd.f32 %v655, %v943
          %v945 = vpop.f32.mrb[0].mxu0
          %946 = vmatprep.mubr.f32.mxu0 0.0
          %v947 = vand.u32 %v502, 4294901760
          %948 = vmatmul.mubr.f32.gmra.mrb[0].mxu0 %v947
          %v949 = vpop.f32.mrb[0].mxu0
          %v950 = vadd.f32 %v665, %v949
          %v951 = vpop.f32.mrb[0].mxu0
          %952 = vmatprep.mubr.f32.mxu0 0.0
          %v953 = vand.u32 %v503, 4294901760
          %954 = vmatmul.mubr.f32.gmra.mrb[0].mxu0 %v953
          %v955 = vpop.f32.mrb[0].mxu0
          %v956 = vadd.f32 %v675, %v955
          %v957 = vpop.f32.mrb[0].mxu0
          %958 = vmatprep.mubr.f32.mxu0 0.0
          %v959 = vand.u32 %v504, 4294901760
          %960 = vmatmul.mubr.f32.gmra.mrb[0].mxu0 %v959
          %v961 = vpop.f32.mrb[0].mxu0
          %v962 = vadd.f32 %v685, %v961
          %v963 = vpop.f32.mrb[0].mxu0
          %964 = vmatprep.mubr.f32.mxu0 0.0
          %v965 = vand.u32 %v505, 4294901760
          %966 = vmatmul.mubr.f32.gmra.mrb[0].mxu0 %v965
          %v967 = vpop.f32.mrb[0].mxu0
          %v968 = vadd.f32 %v695, %v967
          %v969 = vpop.f32.mrb[0].mxu0
          %970 = vmatprep.mubr.f32.mxu0 0.0
          %v971 = vand.u32 %v506, 4294901760
          %972 = vmatmul.mubr.f32.gmra.mrb[0].mxu0 %v971
          %v973 = vpop.f32.mrb[0].mxu0
          %v974 = vadd.f32 %v705, %v973
          %v975 = vpop.f32.mrb[0].mxu0
          %976 = vmatprep.mubr.f32.mxu0 0.0
          %v977 = vand.u32 %v507, 4294901760
          %978 = vmatmul.mubr.f32.gmra.mrb[0].mxu0 %v977
          %v979 = vpop.f32.mrb[0].mxu0
          %v980 = vadd.f32 %v715, %v979
          %v981 = vpop.f32.mrb[0].mxu0
          %982 = vmatprep.mubr.f32.mxu0 0.0
          %v983 = vand.u32 %v508, 4294901760
          %984 = vmatmul.mubr.f32.gmra.mrb[0].mxu0 %v983
          %v985 = vpop.f32.mrb[0].mxu0
          %v986 = vadd.f32 %v725, %v985
          %v987 = vpop.f32.mrb[0].mxu0
          %988 = vmatprep.mubr.f32.mxu0 0.0
          %v989 = vand.u32 %v509, 4294901760
          %990 = vmatmul.mubr.f32.gmra.mrb[0].mxu0 %v989
          %v991 = vpop.f32.mrb[0].mxu0
          %v992 = vadd.f32 %v735, %v991
          %v993 = vpop.f32.mrb[0].mxu0
          %994 = vmatprep.mubr.f32.mxu0 0.0
          %v995 = vand.u32 %v510, 4294901760
          %996 = vmatmul.mubr.f32.gmra.mrb[0].mxu0 %v995
          %v997 = vpop.f32.mrb[0].mxu0
          %v998 = vadd.f32 %v745, %v997
          %v999 = vpop.f32.mrb[0].mxu0
          %1000 = vmatprep.mubr.f32.mxu0 0.0
          %v1001 = vand.u32 %v511, 4294901760
          %1002 = vmatmul.mubr.f32.gmra.mrb[0].mxu0 %v1001
          %v1003 = vpop.f32.mrb[0].mxu0
          %v1004 = vadd.f32 %v755, %v1003
          %v1005 = vpop.f32.mrb[0].mxu0
          %1006 = vmatprep.mubr.f32.mxu0 0.0
          %v1007 = vand.u32 %v512, 4294901760
          %1008 = vmatmul.mubr.f32.gmra.mrb[0].mxu0 %v1007
          %v1009 = vpop.f32.mrb[0].mxu0
          %v1010 = vadd.f32 %v765, %v1009
          %v1011 = vpop.f32.mrb[0].mxu0
          %1012 = vmatprep.mubr.f32.mxu0 0.0
          %v1013 = vand.u32 %v513, 4294901760
          %1014 = vmatmul.mubr.f32.gmra.mrb[0].mxu0 %v1013
          %v1015 = vpop.f32.mrb[0].mxu0
          %v1016 = vadd.f32 %v775, %v1015
          %v1017 = vpop.f32.mrb[0].mxu0
          %1018 = vdwg.mxu0
          %1019 = vmatprep.subr.mxu0 0.0
          %v1020 = vand.u32 %v514, 4294901760
          %v1021 = vsub.f32 %v514, %v1020
          %1022 = vmatpush1.msra.mxu0 %v1021
          %1023 = vmatprep.subr.mxu0 0.0
          %v1024 = vand.u32 %v515, 4294901760
          %v1025 = vsub.f32 %v515, %v1024
          %1026 = vmatpush1.msra.mxu0 %v1025
          %1027 = vmatprep.subr.mxu0 0.0
          %v1028 = vand.u32 %v516, 4294901760
          %v1029 = vsub.f32 %v516, %v1028
          %1030 = vmatpush1.msra.mxu0 %v1029
          %1031 = vmatprep.subr.mxu0 0.0
          %v1032 = vand.u32 %v517, 4294901760
          %v1033 = vsub.f32 %v517, %v1032
          %1034 = vmatpush1.msra.mxu0 %v1033
          %1035 = vmatprep.subr.mxu0 0.0
          %v1036 = vand.u32 %v518, 4294901760
          %v1037 = vsub.f32 %v518, %v1036
          %1038 = vmatpush1.msra.mxu0 %v1037
          %1039 = vmatprep.subr.mxu0 0.0
          %v1040 = vand.u32 %v519, 4294901760
          %v1041 = vsub.f32 %v519, %v1040
          %1042 = vmatpush1.msra.mxu0 %v1041
          %1043 = vmatprep.subr.mxu0 0.0
          %v1044 = vand.u32 %v520, 4294901760
          %v1045 = vsub.f32 %v520, %v1044
          %1046 = vmatpush1.msra.mxu0 %v1045
          %1047 = vmatprep.subr.mxu0 0.0
          %v1048 = vand.u32 %v521, 4294901760
          %v1049 = vsub.f32 %v521, %v1048
          %1050 = vmatpush1.msra.mxu0 %v1049
          %1051 = vmatprep.subr.mxu0 0.0
          %v1052 = vand.u32 %v522, 4294901760
          %v1053 = vsub.f32 %v522, %v1052
          %1054 = vmatpush1.msra.mxu0 %v1053
          %1055 = vmatprep.subr.mxu0 0.0
          %v1056 = vand.u32 %v523, 4294901760
          %v1057 = vsub.f32 %v523, %v1056
          %1058 = vmatpush1.msra.mxu0 %v1057
          %1059 = vmatprep.subr.mxu0 0.0
          %v1060 = vand.u32 %v524, 4294901760
          %v1061 = vsub.f32 %v524, %v1060
          %1062 = vmatpush1.msra.mxu0 %v1061
          %1063 = vmatprep.subr.mxu0 0.0
          %v1064 = vand.u32 %v525, 4294901760
          %v1065 = vsub.f32 %v525, %v1064
          %1066 = vmatpush1.msra.mxu0 %v1065
          %1067 = vmatprep.subr.mxu0 0.0
          %v1068 = vand.u32 %v526, 4294901760
          %v1069 = vsub.f32 %v526, %v1068
          %1070 = vmatpush1.msra.mxu0 %v1069
          %1071 = vmatprep.subr.mxu0 0.0
          %v1072 = vand.u32 %v527, 4294901760
          %v1073 = vsub.f32 %v527, %v1072
          %1074 = vmatpush1.msra.mxu0 %v1073
          %1075 = vmatprep.subr.mxu0 0.0
          %v1076 = vand.u32 %v528, 4294901760
          %v1077 = vsub.f32 %v528, %v1076
          %1078 = vmatpush1.msra.mxu0 %v1077
          %1079 = vmatprep.subr.mxu0 0.0
          %v1080 = vand.u32 %v529, 4294901760
          %v1081 = vsub.f32 %v529, %v1080
          %1082 = vmatpush1.msra.mxu0 %v1081
          %1083 = vmatprep.subr.mxu0 0.0
          %1084 = vmatpush1.msra.mxu0 0.0
          %1085 = vmatprep.subr.mxu0 0.0
          %1086 = vmatpush1.msra.mxu0 0.0
          %1087 = vmatprep.subr.mxu0 0.0
          %1088 = vmatpush1.msra.mxu0 0.0
          %1089 = vmatprep.subr.mxu0 0.0
          %1090 = vmatpush1.msra.mxu0 0.0
          %1091 = vmatprep.subr.mxu0 0.0
          %1092 = vmatpush1.msra.mxu0 0.0
          %1093 = vmatprep.subr.mxu0 0.0
          %1094 = vmatpush1.msra.mxu0 0.0
          %1095 = vmatprep.subr.mxu0 0.0
          %1096 = vmatpush1.msra.mxu0 0.0
          %1097 = vmatprep.subr.mxu0 0.0
          %1098 = vmatpush1.msra.mxu0 0.0
          %1099 = vmatprep.subr.mxu0 0.0
          %1100 = vmatpush1.msra.mxu0 0.0
          %1101 = vmatprep.subr.mxu0 0.0
          %1102 = vmatpush1.msra.mxu0 0.0
          %1103 = vmatprep.subr.mxu0 0.0
          %1104 = vmatpush1.msra.mxu0 0.0
          %1105 = vmatprep.subr.mxu0 0.0
          %1106 = vmatpush1.msra.mxu0 0.0
          %1107 = vmatprep.subr.mxu0 0.0
          %1108 = vmatpush1.msra.mxu0 0.0
          %1109 = vmatprep.subr.mxu0 0.0
          %1110 = vmatpush1.msra.mxu0 0.0
          %1111 = vmatprep.subr.mxu0 0.0
          %1112 = vmatpush1.msra.mxu0 0.0
          %1113 = vmatprep.subr.mxu0 0.0
          %1114 = vmatpush1.msra.mxu0 0.0
          %1115 = vmatprep.mubr.f32.mxu0 0.0
          %v1116 = vand.u32 %v498, 4294901760
          %v1117 = vsub.f32 %v498, %v1116
          %1118 = vmatmul.mubr.f32.gmra.mrb[0].mxu0 %v1117
          %v1119 = vpop.f32.mrb[0].mxu0
          %v1120 = vadd.f32 %v926, %v1119
          %v1121 = vpop.f32.mrb[0].mxu0
          %1122 = vmatprep.mubr.f32.mxu0 0.0
          %v1123 = vand.u32 %v499, 4294901760
          %v1124 = vsub.f32 %v499, %v1123
          %1125 = vmatmul.mubr.f32.gmra.mrb[0].mxu0 %v1124
          %v1126 = vpop.f32.mrb[0].mxu0
          %v1127 = vadd.f32 %v932, %v1126
          %v1128 = vpop.f32.mrb[0].mxu0
          %1129 = vmatprep.mubr.f32.mxu0 0.0
          %v1130 = vand.u32 %v500, 4294901760
          %v1131 = vsub.f32 %v500, %v1130
          %1132 = vmatmul.mubr.f32.gmra.mrb[0].mxu0 %v1131
          %v1133 = vpop.f32.mrb[0].mxu0
          %v1134 = vadd.f32 %v938, %v1133
          %v1135 = vpop.f32.mrb[0].mxu0
          %1136 = vmatprep.mubr.f32.mxu0 0.0
          %v1137 = vand.u32 %v501, 4294901760
          %v1138 = vsub.f32 %v501, %v1137
          %1139 = vmatmul.mubr.f32.gmra.mrb[0].mxu0 %v1138
          %v1140 = vpop.f32.mrb[0].mxu0
          %v1141 = vadd.f32 %v944, %v1140
          %v1142 = vpop.f32.mrb[0].mxu0
          %1143 = vmatprep.mubr.f32.mxu0 0.0
          %v1144 = vand.u32 %v502, 4294901760
          %v1145 = vsub.f32 %v502, %v1144
          %1146 = vmatmul.mubr.f32.gmra.mrb[0].mxu0 %v1145
          %v1147 = vpop.f32.mrb[0].mxu0
          %v1148 = vadd.f32 %v950, %v1147
          %v1149 = vpop.f32.mrb[0].mxu0
          %1150 = vmatprep.mubr.f32.mxu0 0.0
          %v1151 = vand.u32 %v503, 4294901760
          %v1152 = vsub.f32 %v503, %v1151
          %1153 = vmatmul.mubr.f32.gmra.mrb[0].mxu0 %v1152
          %v1154 = vpop.f32.mrb[0].mxu0
          %v1155 = vadd.f32 %v956, %v1154
          %v1156 = vpop.f32.mrb[0].mxu0
          %1157 = vmatprep.mubr.f32.mxu0 0.0
          %v1158 = vand.u32 %v504, 4294901760
          %v1159 = vsub.f32 %v504, %v1158
          %1160 = vmatmul.mubr.f32.gmra.mrb[0].mxu0 %v1159
          %v1161 = vpop.f32.mrb[0].mxu0
          %v1162 = vadd.f32 %v962, %v1161
          %v1163 = vpop.f32.mrb[0].mxu0
          %1164 = vmatprep.mubr.f32.mxu0 0.0
          %v1165 = vand.u32 %v505, 4294901760
          %v1166 = vsub.f32 %v505, %v1165
          %1167 = vmatmul.mubr.f32.gmra.mrb[0].mxu0 %v1166
          %v1168 = vpop.f32.mrb[0].mxu0
          %v1169 = vadd.f32 %v968, %v1168
          %v1170 = vpop.f32.mrb[0].mxu0
          %1171 = vmatprep.mubr.f32.mxu0 0.0
          %v1172 = vand.u32 %v506, 4294901760
          %v1173 = vsub.f32 %v506, %v1172
          %1174 = vmatmul.mubr.f32.gmra.mrb[0].mxu0 %v1173
          %v1175 = vpop.f32.mrb[0].mxu0
          %v1176 = vadd.f32 %v974, %v1175
          %v1177 = vpop.f32.mrb[0].mxu0
          %1178 = vmatprep.mubr.f32.mxu0 0.0
          %v1179 = vand.u32 %v507, 4294901760
          %v1180 = vsub.f32 %v507, %v1179
          %1181 = vmatmul.mubr.f32.gmra.mrb[0].mxu0 %v1180
          %v1182 = vpop.f32.mrb[0].mxu0
          %v1183 = vadd.f32 %v980, %v1182
          %v1184 = vpop.f32.mrb[0].mxu0
          %1185 = vmatprep.mubr.f32.mxu0 0.0
          %v1186 = vand.u32 %v508, 4294901760
          %v1187 = vsub.f32 %v508, %v1186
          %1188 = vmatmul.mubr.f32.gmra.mrb[0].mxu0 %v1187
          %v1189 = vpop.f32.mrb[0].mxu0
          %v1190 = vadd.f32 %v986, %v1189
          %v1191 = vpop.f32.mrb[0].mxu0
          %1192 = vmatprep.mubr.f32.mxu0 0.0
          %v1193 = vand.u32 %v509, 4294901760
          %v1194 = vsub.f32 %v509, %v1193
          %1195 = vmatmul.mubr.f32.gmra.mrb[0].mxu0 %v1194
          %v1196 = vpop.f32.mrb[0].mxu0
          %v1197 = vadd.f32 %v992, %v1196
          %v1198 = vpop.f32.mrb[0].mxu0
          %1199 = vmatprep.mubr.f32.mxu0 0.0
          %v1200 = vand.u32 %v510, 4294901760
          %v1201 = vsub.f32 %v510, %v1200
          %1202 = vmatmul.mubr.f32.gmra.mrb[0].mxu0 %v1201
          %v1203 = vpop.f32.mrb[0].mxu0
          %v1204 = vadd.f32 %v998, %v1203
          %v1205 = vpop.f32.mrb[0].mxu0
          %1206 = vmatprep.mubr.f32.mxu0 0.0
          %v1207 = vand.u32 %v511, 4294901760
          %v1208 = vsub.f32 %v511, %v1207
          %1209 = vmatmul.mubr.f32.gmra.mrb[0].mxu0 %v1208
          %v1210 = vpop.f32.mrb[0].mxu0
          %v1211 = vadd.f32 %v1004, %v1210
          %v1212 = vpop.f32.mrb[0].mxu0
          %1213 = vmatprep.mubr.f32.mxu0 0.0
          %v1214 = vand.u32 %v512, 4294901760
          %v1215 = vsub.f32 %v512, %v1214
          %1216 = vmatmul.mubr.f32.gmra.mrb[0].mxu0 %v1215
          %v1217 = vpop.f32.mrb[0].mxu0
          %v1218 = vadd.f32 %v1010, %v1217
          %v1219 = vpop.f32.mrb[0].mxu0
          %1220 = vmatprep.mubr.f32.mxu0 0.0
          %v1221 = vand.u32 %v513, 4294901760
          %v1222 = vsub.f32 %v513, %v1221
          %1223 = vmatmul.mubr.f32.gmra.mrb[0].mxu0 %v1222
          %v1224 = vpop.f32.mrb[0].mxu0
          %v1225 = vadd.f32 %v1016, %v1224
          %v1226 = vpop.f32.mrb[0].mxu0
          %1227 = vdwg.mxu0
          %1228 = vmatprep.subr.mxu0 0.0
          %v1229 = vand.u32 %v514, 4294901760
          %1230 = vmatpush1.msra.mxu0 %v1229
          %1231 = vmatprep.subr.mxu0 0.0
          %v1232 = vand.u32 %v515, 4294901760
          %1233 = vmatpush1.msra.mxu0 %v1232
          %1234 = vmatprep.subr.mxu0 0.0
          %v1235 = vand.u32 %v516, 4294901760
          %1236 = vmatpush1.msra.mxu0 %v1235
          %1237 = vmatprep.subr.mxu0 0.0
          %v1238 = vand.u32 %v517, 4294901760
          %1239 = vmatpush1.msra.mxu0 %v1238
          %1240 = vmatprep.subr.mxu0 0.0
          %v1241 = vand.u32 %v518, 4294901760
          %1242 = vmatpush1.msra.mxu0 %v1241
          %1243 = vmatprep.subr.mxu0 0.0
          %v1244 = vand.u32 %v519, 4294901760
          %1245 = vmatpush1.msra.mxu0 %v1244
          %1246 = vmatprep.subr.mxu0 0.0
          %v1247 = vand.u32 %v520, 4294901760
          %1248 = vmatpush1.msra.mxu0 %v1247
          %1249 = vmatprep.subr.mxu0 0.0
          %v1250 = vand.u32 %v521, 4294901760
          %1251 = vmatpush1.msra.mxu0 %v1250
          %1252 = vmatprep.subr.mxu0 0.0
          %v1253 = vand.u32 %v522, 4294901760
          %1254 = vmatpush1.msra.mxu0 %v1253
          %1255 = vmatprep.subr.mxu0 0.0
          %v1256 = vand.u32 %v523, 4294901760
          %1257 = vmatpush1.msra.mxu0 %v1256
          %1258 = vmatprep.subr.mxu0 0.0
          %v1259 = vand.u32 %v524, 4294901760
          %1260 = vmatpush1.msra.mxu0 %v1259
          %1261 = vmatprep.subr.mxu0 0.0
          %v1262 = vand.u32 %v525, 4294901760
          %1263 = vmatpush1.msra.mxu0 %v1262
          %1264 = vmatprep.subr.mxu0 0.0
          %v1265 = vand.u32 %v526, 4294901760
          %1266 = vmatpush1.msra.mxu0 %v1265
          %1267 = vmatprep.subr.mxu0 0.0
          %v1268 = vand.u32 %v527, 4294901760
          %1269 = vmatpush1.msra.mxu0 %v1268
          %1270 = vmatprep.subr.mxu0 0.0
          %v1271 = vand.u32 %v528, 4294901760
          %1272 = vmatpush1.msra.mxu0 %v1271
          %1273 = vmatprep.subr.mxu0 0.0
          %v1274 = vand.u32 %v529, 4294901760
          %1275 = vmatpush1.msra.mxu0 %v1274
          %1276 = vmatprep.subr.mxu0 0.0
          %1277 = vmatpush1.msra.mxu0 0.0
          %1278 = vmatprep.subr.mxu0 0.0
          %1279 = vmatpush1.msra.mxu0 0.0
          %1280 = vmatprep.subr.mxu0 0.0
          %1281 = vmatpush1.msra.mxu0 0.0
          %1282 = vmatprep.subr.mxu0 0.0
          %1283 = vmatpush1.msra.mxu0 0.0
          %1284 = vmatprep.subr.mxu0 0.0
          %1285 = vmatpush1.msra.mxu0 0.0
          %1286 = vmatprep.subr.mxu0 0.0
          %1287 = vmatpush1.msra.mxu0 0.0
          %1288 = vmatprep.subr.mxu0 0.0
          %1289 = vmatpush1.msra.mxu0 0.0
          %1290 = vmatprep.subr.mxu0 0.0
          %1291 = vmatpush1.msra.mxu0 0.0
          %1292 = vmatprep.subr.mxu0 0.0
          %1293 = vmatpush1.msra.mxu0 0.0
          %1294 = vmatprep.subr.mxu0 0.0
          %1295 = vmatpush1.msra.mxu0 0.0
          %1296 = vmatprep.subr.mxu0 0.0
          %1297 = vmatpush1.msra.mxu0 0.0
          %1298 = vmatprep.subr.mxu0 0.0
          %1299 = vmatpush1.msra.mxu0 0.0
          %1300 = vmatprep.subr.mxu0 0.0
          %1301 = vmatpush1.msra.mxu0 0.0
          %1302 = vmatprep.subr.mxu0 0.0
          %1303 = vmatpush1.msra.mxu0 0.0
          %1304 = vmatprep.subr.mxu0 0.0
          %1305 = vmatpush1.msra.mxu0 0.0
          %1306 = vmatprep.subr.mxu0 0.0
          %1307 = vmatpush1.msra.mxu0 0.0
          %1308 = vmatprep.mubr.f32.mxu0 0.0
          %v1309 = vand.u32 %v498, 4294901760
          %v1310 = vsub.f32 %v498, %v1309
          %v1311 = vand.u32 %v1310, 4294901760
          %1312 = vmatmul.mubr.f32.gmra.mrb[0].mxu0 %v1311
          %v1313 = vpop.f32.mrb[0].mxu0
          %v1314 = vadd.f32 %v1120, %v1313
          %v1315 = vpop.f32.mrb[0].mxu0
          %1316 = vmatprep.mubr.f32.mxu0 0.0
          %v1317 = vand.u32 %v499, 4294901760
          %v1318 = vsub.f32 %v499, %v1317
          %v1319 = vand.u32 %v1318, 4294901760
          %1320 = vmatmul.mubr.f32.gmra.mrb[0].mxu0 %v1319
          %v1321 = vpop.f32.mrb[0].mxu0
          %v1322 = vadd.f32 %v1127, %v1321
          %v1323 = vpop.f32.mrb[0].mxu0
          %1324 = vmatprep.mubr.f32.mxu0 0.0
          %v1325 = vand.u32 %v500, 4294901760
          %v1326 = vsub.f32 %v500, %v1325
          %v1327 = vand.u32 %v1326, 4294901760
          %1328 = vmatmul.mubr.f32.gmra.mrb[0].mxu0 %v1327
          %v1329 = vpop.f32.mrb[0].mxu0
          %v1330 = vadd.f32 %v1134, %v1329
          %v1331 = vpop.f32.mrb[0].mxu0
          %1332 = vmatprep.mubr.f32.mxu0 0.0
          %v1333 = vand.u32 %v501, 4294901760
          %v1334 = vsub.f32 %v501, %v1333
          %v1335 = vand.u32 %v1334, 4294901760
          %1336 = vmatmul.mubr.f32.gmra.mrb[0].mxu0 %v1335
          %v1337 = vpop.f32.mrb[0].mxu0
          %v1338 = vadd.f32 %v1141, %v1337
          %v1339 = vpop.f32.mrb[0].mxu0
          %1340 = vmatprep.mubr.f32.mxu0 0.0
          %v1341 = vand.u32 %v502, 4294901760
          %v1342 = vsub.f32 %v502, %v1341
          %v1343 = vand.u32 %v1342, 4294901760
          %1344 = vmatmul.mubr.f32.gmra.mrb[0].mxu0 %v1343
          %v1345 = vpop.f32.mrb[0].mxu0
          %v1346 = vadd.f32 %v1148, %v1345
          %v1347 = vpop.f32.mrb[0].mxu0
          %1348 = vmatprep.mubr.f32.mxu0 0.0
          %v1349 = vand.u32 %v503, 4294901760
          %v1350 = vsub.f32 %v503, %v1349
          %v1351 = vand.u32 %v1350, 4294901760
          %1352 = vmatmul.mubr.f32.gmra.mrb[0].mxu0 %v1351
          %v1353 = vpop.f32.mrb[0].mxu0
          %v1354 = vadd.f32 %v1155, %v1353
          %v1355 = vpop.f32.mrb[0].mxu0
          %1356 = vmatprep.mubr.f32.mxu0 0.0
          %v1357 = vand.u32 %v504, 4294901760
          %v1358 = vsub.f32 %v504, %v1357
          %v1359 = vand.u32 %v1358, 4294901760
          %1360 = vmatmul.mubr.f32.gmra.mrb[0].mxu0 %v1359
          %v1361 = vpop.f32.mrb[0].mxu0
          %v1362 = vadd.f32 %v1162, %v1361
          %v1363 = vpop.f32.mrb[0].mxu0
          %1364 = vmatprep.mubr.f32.mxu0 0.0
          %v1365 = vand.u32 %v505, 4294901760
          %v1366 = vsub.f32 %v505, %v1365
          %v1367 = vand.u32 %v1366, 4294901760
          %1368 = vmatmul.mubr.f32.gmra.mrb[0].mxu0 %v1367
          %v1369 = vpop.f32.mrb[0].mxu0
          %v1370 = vadd.f32 %v1169, %v1369
          %v1371 = vpop.f32.mrb[0].mxu0
          %1372 = vmatprep.mubr.f32.mxu0 0.0
          %v1373 = vand.u32 %v506, 4294901760
          %v1374 = vsub.f32 %v506, %v1373
          %v1375 = vand.u32 %v1374, 4294901760
          %1376 = vmatmul.mubr.f32.gmra.mrb[0].mxu0 %v1375
          %v1377 = vpop.f32.mrb[0].mxu0
          %v1378 = vadd.f32 %v1176, %v1377
          %v1379 = vpop.f32.mrb[0].mxu0
          %1380 = vmatprep.mubr.f32.mxu0 0.0
          %v1381 = vand.u32 %v507, 4294901760
          %v1382 = vsub.f32 %v507, %v1381
          %v1383 = vand.u32 %v1382, 4294901760
          %1384 = vmatmul.mubr.f32.gmra.mrb[0].mxu0 %v1383
          %v1385 = vpop.f32.mrb[0].mxu0
          %v1386 = vadd.f32 %v1183, %v1385
          %v1387 = vpop.f32.mrb[0].mxu0
          %1388 = vmatprep.mubr.f32.mxu0 0.0
          %v1389 = vand.u32 %v508, 4294901760
          %v1390 = vsub.f32 %v508, %v1389
          %v1391 = vand.u32 %v1390, 4294901760
          %1392 = vmatmul.mubr.f32.gmra.mrb[0].mxu0 %v1391
          %v1393 = vpop.f32.mrb[0].mxu0
          %v1394 = vadd.f32 %v1190, %v1393
          %v1395 = vpop.f32.mrb[0].mxu0
          %1396 = vmatprep.mubr.f32.mxu0 0.0
          %v1397 = vand.u32 %v509, 4294901760
          %v1398 = vsub.f32 %v509, %v1397
          %v1399 = vand.u32 %v1398, 4294901760
          %1400 = vmatmul.mubr.f32.gmra.mrb[0].mxu0 %v1399
          %v1401 = vpop.f32.mrb[0].mxu0
          %v1402 = vadd.f32 %v1197, %v1401
          %v1403 = vpop.f32.mrb[0].mxu0
          %1404 = vmatprep.mubr.f32.mxu0 0.0
          %v1405 = vand.u32 %v510, 4294901760
          %v1406 = vsub.f32 %v510, %v1405
          %v1407 = vand.u32 %v1406, 4294901760
          %1408 = vmatmul.mubr.f32.gmra.mrb[0].mxu0 %v1407
          %v1409 = vpop.f32.mrb[0].mxu0
          %v1410 = vadd.f32 %v1204, %v1409
          %v1411 = vpop.f32.mrb[0].mxu0
          %1412 = vmatprep.mubr.f32.mxu0 0.0
          %v1413 = vand.u32 %v511, 4294901760
          %v1414 = vsub.f32 %v511, %v1413
          %v1415 = vand.u32 %v1414, 4294901760
          %1416 = vmatmul.mubr.f32.gmra.mrb[0].mxu0 %v1415
          %v1417 = vpop.f32.mrb[0].mxu0
          %v1418 = vadd.f32 %v1211, %v1417
          %v1419 = vpop.f32.mrb[0].mxu0
          %1420 = vmatprep.mubr.f32.mxu0 0.0
          %v1421 = vand.u32 %v512, 4294901760
          %v1422 = vsub.f32 %v512, %v1421
          %v1423 = vand.u32 %v1422, 4294901760
          %1424 = vmatmul.mubr.f32.gmra.mrb[0].mxu0 %v1423
          %v1425 = vpop.f32.mrb[0].mxu0
          %v1426 = vadd.f32 %v1218, %v1425
          %v1427 = vpop.f32.mrb[0].mxu0
          %1428 = vmatprep.mubr.f32.mxu0 0.0
          %v1429 = vand.u32 %v513, 4294901760
          %v1430 = vsub.f32 %v513, %v1429
          %v1431 = vand.u32 %v1430, 4294901760
          %1432 = vmatmul.mubr.f32.gmra.mrb[0].mxu0 %v1431
          %v1433 = vpop.f32.mrb[0].mxu0
          %v1434 = vadd.f32 %v1225, %v1433
          %v1435 = vpop.f32.mrb[0].mxu0
          %1436 = vdwg.mxu0
          %1437 = vmatprep.subr.mxu0 0.0
          %v1438 = vand.u32 %v514, 4294901760
          %v1439 = vsub.f32 %v514, %v1438
          %v1440 = vand.u32 %v1439, 4294901760
          %1441 = vmatpush1.msra.mxu0 %v1440
          %1442 = vmatprep.subr.mxu0 0.0
          %v1443 = vand.u32 %v515, 4294901760
          %v1444 = vsub.f32 %v515, %v1443
          %v1445 = vand.u32 %v1444, 4294901760
          %1446 = vmatpush1.msra.mxu0 %v1445
          %1447 = vmatprep.subr.mxu0 0.0
          %v1448 = vand.u32 %v516, 4294901760
          %v1449 = vsub.f32 %v516, %v1448
          %v1450 = vand.u32 %v1449, 4294901760
          %1451 = vmatpush1.msra.mxu0 %v1450
          %1452 = vmatprep.subr.mxu0 0.0
          %v1453 = vand.u32 %v517, 4294901760
          %v1454 = vsub.f32 %v517, %v1453
          %v1455 = vand.u32 %v1454, 4294901760
          %1456 = vmatpush1.msra.mxu0 %v1455
          %1457 = vmatprep.subr.mxu0 0.0
          %v1458 = vand.u32 %v518, 4294901760
          %v1459 = vsub.f32 %v518, %v1458
          %v1460 = vand.u32 %v1459, 4294901760
          %1461 = vmatpush1.msra.mxu0 %v1460
          %1462 = vmatprep.subr.mxu0 0.0
          %v1463 = vand.u32 %v519, 4294901760
          %v1464 = vsub.f32 %v519, %v1463
          %v1465 = vand.u32 %v1464, 4294901760
          %1466 = vmatpush1.msra.mxu0 %v1465
          %1467 = vmatprep.subr.mxu0 0.0
          %v1468 = vand.u32 %v520, 4294901760
          %v1469 = vsub.f32 %v520, %v1468
          %v1470 = vand.u32 %v1469, 4294901760
          %1471 = vmatpush1.msra.mxu0 %v1470
          %1472 = vmatprep.subr.mxu0 0.0
          %v1473 = vand.u32 %v521, 4294901760
          %v1474 = vsub.f32 %v521, %v1473
          %v1475 = vand.u32 %v1474, 4294901760
          %1476 = vmatpush1.msra.mxu0 %v1475
          %1477 = vmatprep.subr.mxu0 0.0
          %v1478 = vand.u32 %v522, 4294901760
          %v1479 = vsub.f32 %v522, %v1478
          %v1480 = vand.u32 %v1479, 4294901760
          %1481 = vmatpush1.msra.mxu0 %v1480
          %1482 = vmatprep.subr.mxu0 0.0
          %v1483 = vand.u32 %v523, 4294901760
          %v1484 = vsub.f32 %v523, %v1483
          %v1485 = vand.u32 %v1484, 4294901760
          %1486 = vmatpush1.msra.mxu0 %v1485
          %1487 = vmatprep.subr.mxu0 0.0
          %v1488 = vand.u32 %v524, 4294901760
          %v1489 = vsub.f32 %v524, %v1488
          %v1490 = vand.u32 %v1489, 4294901760
          %1491 = vmatpush1.msra.mxu0 %v1490
          %1492 = vmatprep.subr.mxu0 0.0
          %v1493 = vand.u32 %v525, 4294901760
          %v1494 = vsub.f32 %v525, %v1493
          %v1495 = vand.u32 %v1494, 4294901760
          %1496 = vmatpush1.msra.mxu0 %v1495
          %1497 = vmatprep.subr.mxu0 0.0
          %v1498 = vand.u32 %v526, 4294901760
          %v1499 = vsub.f32 %v526, %v1498
          %v1500 = vand.u32 %v1499, 4294901760
          %1501 = vmatpush1.msra.mxu0 %v1500
          %1502 = vmatprep.subr.mxu0 0.0
          %v1503 = vand.u32 %v527, 4294901760
          %v1504 = vsub.f32 %v527, %v1503
          %v1505 = vand.u32 %v1504, 4294901760
          %1506 = vmatpush1.msra.mxu0 %v1505
          %1507 = vmatprep.subr.mxu0 0.0
          %v1508 = vand.u32 %v528, 4294901760
          %v1509 = vsub.f32 %v528, %v1508
          %v1510 = vand.u32 %v1509, 4294901760
          %1511 = vmatpush1.msra.mxu0 %v1510
          %1512 = vmatprep.subr.mxu0 0.0
          %v1513 = vand.u32 %v529, 4294901760
          %v1514 = vsub.f32 %v529, %v1513
          %v1515 = vand.u32 %v1514, 4294901760
          %1516 = vmatpush1.msra.mxu0 %v1515
          %1517 = vmatprep.subr.mxu0 0.0
          %1518 = vmatpush1.msra.mxu0 0.0
          %1519 = vmatprep.subr.mxu0 0.0
          %1520 = vmatpush1.msra.mxu0 0.0
          %1521 = vmatprep.subr.mxu0 0.0
          %1522 = vmatpush1.msra.mxu0 0.0
          %1523 = vmatprep.subr.mxu0 0.0
          %1524 = vmatpush1.msra.mxu0 0.0
          %1525 = vmatprep.subr.mxu0 0.0
          %1526 = vmatpush1.msra.mxu0 0.0
          %1527 = vmatprep.subr.mxu0 0.0
          %1528 = vmatpush1.msra.mxu0 0.0
          %1529 = vmatprep.subr.mxu0 0.0
          %1530 = vmatpush1.msra.mxu0 0.0
          %1531 = vmatprep.subr.mxu0 0.0
          %1532 = vmatpush1.msra.mxu0 0.0
          %1533 = vmatprep.subr.mxu0 0.0
          %1534 = vmatpush1.msra.mxu0 0.0
          %1535 = vmatprep.subr.mxu0 0.0
          %1536 = vmatpush1.msra.mxu0 0.0
          %1537 = vmatprep.subr.mxu0 0.0
          %1538 = vmatpush1.msra.mxu0 0.0
          %1539 = vmatprep.subr.mxu0 0.0
          %1540 = vmatpush1.msra.mxu0 0.0
          %1541 = vmatprep.subr.mxu0 0.0
          %1542 = vmatpush1.msra.mxu0 0.0
          %1543 = vmatprep.subr.mxu0 0.0
          %1544 = vmatpush1.msra.mxu0 0.0
          %1545 = vmatprep.subr.mxu0 0.0
          %1546 = vmatpush1.msra.mxu0 0.0
          %1547 = vmatprep.subr.mxu0 0.0
          %1548 = vmatpush1.msra.mxu0 0.0
          %1549 = vmatprep.mubr.f32.mxu0 0.0
          %v1550 = vand.u32 %v498, 4294901760
          %1551 = vmatmul.mubr.f32.gmra.mrb[0].mxu0 %v1550
          %v1552 = vpop.f32.mrb[0].mxu0
          %v1553 = vadd.f32 %v1314, %v1552
          %v1554 = vpop.f32.mrb[0].mxu0
          %1555 = vmatprep.mubr.f32.mxu0 0.0
          %v1556 = vand.u32 %v499, 4294901760
          %1557 = vmatmul.mubr.f32.gmra.mrb[0].mxu0 %v1556
          %v1558 = vpop.f32.mrb[0].mxu0
          %v1559 = vadd.f32 %v1322, %v1558
          %v1560 = vpop.f32.mrb[0].mxu0
          %1561 = vmatprep.mubr.f32.mxu0 0.0
          %v1562 = vand.u32 %v500, 4294901760
          %1563 = vmatmul.mubr.f32.gmra.mrb[0].mxu0 %v1562
          %v1564 = vpop.f32.mrb[0].mxu0
          %v1565 = vadd.f32 %v1330, %v1564
          %v1566 = vpop.f32.mrb[0].mxu0
          %1567 = vmatprep.mubr.f32.mxu0 0.0
          %v1568 = vand.u32 %v501, 4294901760
          %1569 = vmatmul.mubr.f32.gmra.mrb[0].mxu0 %v1568
          %v1570 = vpop.f32.mrb[0].mxu0
          %v1571 = vadd.f32 %v1338, %v1570
          %v1572 = vpop.f32.mrb[0].mxu0
          %1573 = vmatprep.mubr.f32.mxu0 0.0
          %v1574 = vand.u32 %v502, 4294901760
          %1575 = vmatmul.mubr.f32.gmra.mrb[0].mxu0 %v1574
          %v1576 = vpop.f32.mrb[0].mxu0
          %v1577 = vadd.f32 %v1346, %v1576
          %v1578 = vpop.f32.mrb[0].mxu0
          %1579 = vmatprep.mubr.f32.mxu0 0.0
          %v1580 = vand.u32 %v503, 4294901760
          %1581 = vmatmul.mubr.f32.gmra.mrb[0].mxu0 %v1580
          %v1582 = vpop.f32.mrb[0].mxu0
          %v1583 = vadd.f32 %v1354, %v1582
          %v1584 = vpop.f32.mrb[0].mxu0
          %1585 = vmatprep.mubr.f32.mxu0 0.0
          %v1586 = vand.u32 %v504, 4294901760
          %1587 = vmatmul.mubr.f32.gmra.mrb[0].mxu0 %v1586
          %v1588 = vpop.f32.mrb[0].mxu0
          %v1589 = vadd.f32 %v1362, %v1588
          %v1590 = vpop.f32.mrb[0].mxu0
          %1591 = vmatprep.mubr.f32.mxu0 0.0
          %v1592 = vand.u32 %v505, 4294901760
          %1593 = vmatmul.mubr.f32.gmra.mrb[0].mxu0 %v1592
          %v1594 = vpop.f32.mrb[0].mxu0
          %v1595 = vadd.f32 %v1370, %v1594
          %v1596 = vpop.f32.mrb[0].mxu0
          %1597 = vmatprep.mubr.f32.mxu0 0.0
          %v1598 = vand.u32 %v506, 4294901760
          %1599 = vmatmul.mubr.f32.gmra.mrb[0].mxu0 %v1598
          %v1600 = vpop.f32.mrb[0].mxu0
          %v1601 = vadd.f32 %v1378, %v1600
          %v1602 = vpop.f32.mrb[0].mxu0
          %1603 = vmatprep.mubr.f32.mxu0 0.0
          %v1604 = vand.u32 %v507, 4294901760
          %1605 = vmatmul.mubr.f32.gmra.mrb[0].mxu0 %v1604
          %v1606 = vpop.f32.mrb[0].mxu0
          %v1607 = vadd.f32 %v1386, %v1606
          %v1608 = vpop.f32.mrb[0].mxu0
          %1609 = vmatprep.mubr.f32.mxu0 0.0
          %v1610 = vand.u32 %v508, 4294901760
          %1611 = vmatmul.mubr.f32.gmra.mrb[0].mxu0 %v1610
          %v1612 = vpop.f32.mrb[0].mxu0
          %v1613 = vadd.f32 %v1394, %v1612
          %v1614 = vpop.f32.mrb[0].mxu0
          %1615 = vmatprep.mubr.f32.mxu0 0.0
          %v1616 = vand.u32 %v509, 4294901760
          %1617 = vmatmul.mubr.f32.gmra.mrb[0].mxu0 %v1616
          %v1618 = vpop.f32.mrb[0].mxu0
          %v1619 = vadd.f32 %v1402, %v1618
          %v1620 = vpop.f32.mrb[0].mxu0
          %1621 = vmatprep.mubr.f32.mxu0 0.0
          %v1622 = vand.u32 %v510, 4294901760
          %1623 = vmatmul.mubr.f32.gmra.mrb[0].mxu0 %v1622
          %v1624 = vpop.f32.mrb[0].mxu0
          %v1625 = vadd.f32 %v1410, %v1624
          %v1626 = vpop.f32.mrb[0].mxu0
          %1627 = vmatprep.mubr.f32.mxu0 0.0
          %v1628 = vand.u32 %v511, 4294901760
          %1629 = vmatmul.mubr.f32.gmra.mrb[0].mxu0 %v1628
          %v1630 = vpop.f32.mrb[0].mxu0
          %v1631 = vadd.f32 %v1418, %v1630
          %v1632 = vpop.f32.mrb[0].mxu0
          %1633 = vmatprep.mubr.f32.mxu0 0.0
          %v1634 = vand.u32 %v512, 4294901760
          %1635 = vmatmul.mubr.f32.gmra.mrb[0].mxu0 %v1634
          %v1636 = vpop.f32.mrb[0].mxu0
          %v1637 = vadd.f32 %v1426, %v1636
          %v1638 = vpop.f32.mrb[0].mxu0
          %1639 = vmatprep.mubr.f32.mxu0 0.0
          %v1640 = vand.u32 %v513, 4294901760
          %1641 = vmatmul.mubr.f32.gmra.mrb[0].mxu0 %v1640
          %v1642 = vpop.f32.mrb[0].mxu0
          %v1643 = vadd.f32 %v1434, %v1642
          %v1644 = vpop.f32.mrb[0].mxu0
          %1645 = vdwg.mxu0
          %1646 = vmatprep.subr.mxu0 0.0
          %v1647 = vand.u32 %v514, 4294901760
          %1648 = vmatpush1.msra.mxu0 %v1647
          %1649 = vmatprep.subr.mxu0 0.0
          %v1650 = vand.u32 %v515, 4294901760
          %1651 = vmatpush1.msra.mxu0 %v1650
          %1652 = vmatprep.subr.mxu0 0.0
          %v1653 = vand.u32 %v516, 4294901760
          %1654 = vmatpush1.msra.mxu0 %v1653
          %1655 = vmatprep.subr.mxu0 0.0
          %v1656 = vand.u32 %v517, 4294901760
          %1657 = vmatpush1.msra.mxu0 %v1656
          %1658 = vmatprep.subr.mxu0 0.0
          %v1659 = vand.u32 %v518, 4294901760
          %1660 = vmatpush1.msra.mxu0 %v1659
          %1661 = vmatprep.subr.mxu0 0.0
          %v1662 = vand.u32 %v519, 4294901760
          %1663 = vmatpush1.msra.mxu0 %v1662
          %1664 = vmatprep.subr.mxu0 0.0
          %v1665 = vand.u32 %v520, 4294901760
          %1666 = vmatpush1.msra.mxu0 %v1665
          %1667 = vmatprep.subr.mxu0 0.0
          %v1668 = vand.u32 %v521, 4294901760
          %1669 = vmatpush1.msra.mxu0 %v1668
          %1670 = vmatprep.subr.mxu0 0.0
          %v1671 = vand.u32 %v522, 4294901760
          %1672 = vmatpush1.msra.mxu0 %v1671
          %1673 = vmatprep.subr.mxu0 0.0
          %v1674 = vand.u32 %v523, 4294901760
          %1675 = vmatpush1.msra.mxu0 %v1674
          %1676 = vmatprep.subr.mxu0 0.0
          %v1677 = vand.u32 %v524, 4294901760
          %1678 = vmatpush1.msra.mxu0 %v1677
          %1679 = vmatprep.subr.mxu0 0.0
          %v1680 = vand.u32 %v525, 4294901760
          %1681 = vmatpush1.msra.mxu0 %v1680
          %1682 = vmatprep.subr.mxu0 0.0
          %v1683 = vand.u32 %v526, 4294901760
          %1684 = vmatpush1.msra.mxu0 %v1683
          %1685 = vmatprep.subr.mxu0 0.0
          %v1686 = vand.u32 %v527, 4294901760
          %1687 = vmatpush1.msra.mxu0 %v1686
          %1688 = vmatprep.subr.mxu0 0.0
          %v1689 = vand.u32 %v528, 4294901760
          %1690 = vmatpush1.msra.mxu0 %v1689
          %1691 = vmatprep.subr.mxu0 0.0
          %v1692 = vand.u32 %v529, 4294901760
          %1693 = vmatpush1.msra.mxu0 %v1692
          %1694 = vmatprep.subr.mxu0 0.0
          %1695 = vmatpush1.msra.mxu0 0.0
          %1696 = vmatprep.subr.mxu0 0.0
          %1697 = vmatpush1.msra.mxu0 0.0
          %1698 = vmatprep.subr.mxu0 0.0
          %1699 = vmatpush1.msra.mxu0 0.0
          %1700 = vmatprep.subr.mxu0 0.0
          %1701 = vmatpush1.msra.mxu0 0.0
          %1702 = vmatprep.subr.mxu0 0.0
          %1703 = vmatpush1.msra.mxu0 0.0
          %1704 = vmatprep.subr.mxu0 0.0
          %1705 = vmatpush1.msra.mxu0 0.0
          %1706 = vmatprep.subr.mxu0 0.0
          %1707 = vmatpush1.msra.mxu0 0.0
          %1708 = vmatprep.subr.mxu0 0.0
          %1709 = vmatpush1.msra.mxu0 0.0
          %1710 = vmatprep.subr.mxu0 0.0
          %1711 = vmatpush1.msra.mxu0 0.0
          %1712 = vmatprep.subr.mxu0 0.0
          %1713 = vmatpush1.msra.mxu0 0.0
          %1714 = vmatprep.subr.mxu0 0.0
          %1715 = vmatpush1.msra.mxu0 0.0
          %1716 = vmatprep.subr.mxu0 0.0
          %1717 = vmatpush1.msra.mxu0 0.0
          %1718 = vmatprep.subr.mxu0 0.0
          %1719 = vmatpush1.msra.mxu0 0.0
          %1720 = vmatprep.subr.mxu0 0.0
          %1721 = vmatpush1.msra.mxu0 0.0
          %1722 = vmatprep.subr.mxu0 0.0
          %1723 = vmatpush1.msra.mxu0 0.0
          %1724 = vmatprep.subr.mxu0 0.0
          %1725 = vmatpush1.msra.mxu0 0.0
          %1726 = vmatprep.mubr.f32.mxu0 0.0
          %v1727 = vand.u32 %v498, 4294901760
          %1728 = vmatmul.mubr.f32.gmra.mrb[0].mxu0 %v1727
          %v1729 = vpop.f32.mrb[0].mxu0
          %v1730 = vadd.f32 %v1553, %v1729
          %v1731 = vpop.f32.mrb[0].mxu0
          %1732 = vmatprep.mubr.f32.mxu0 0.0
          %v1733 = vand.u32 %v499, 4294901760
          %1734 = vmatmul.mubr.f32.gmra.mrb[0].mxu0 %v1733
          %v1735 = vpop.f32.mrb[0].mxu0
          %v1736 = vadd.f32 %v1559, %v1735
          %v1737 = vpop.f32.mrb[0].mxu0
          %1738 = vmatprep.mubr.f32.mxu0 0.0
          %v1739 = vand.u32 %v500, 4294901760
          %1740 = vmatmul.mubr.f32.gmra.mrb[0].mxu0 %v1739
          %v1741 = vpop.f32.mrb[0].mxu0
          %v1742 = vadd.f32 %v1565, %v1741
          %v1743 = vpop.f32.mrb[0].mxu0
          %1744 = vmatprep.mubr.f32.mxu0 0.0
          %v1745 = vand.u32 %v501, 4294901760
          %1746 = vmatmul.mubr.f32.gmra.mrb[0].mxu0 %v1745
          %v1747 = vpop.f32.mrb[0].mxu0
          %v1748 = vadd.f32 %v1571, %v1747
          %v1749 = vpop.f32.mrb[0].mxu0
          %1750 = vmatprep.mubr.f32.mxu0 0.0
          %v1751 = vand.u32 %v502, 4294901760
          %1752 = vmatmul.mubr.f32.gmra.mrb[0].mxu0 %v1751
          %v1753 = vpop.f32.mrb[0].mxu0
          %v1754 = vadd.f32 %v1577, %v1753
          %v1755 = vpop.f32.mrb[0].mxu0
          %1756 = vmatprep.mubr.f32.mxu0 0.0
          %v1757 = vand.u32 %v503, 4294901760
          %1758 = vmatmul.mubr.f32.gmra.mrb[0].mxu0 %v1757
          %v1759 = vpop.f32.mrb[0].mxu0
          %v1760 = vadd.f32 %v1583, %v1759
          %v1761 = vpop.f32.mrb[0].mxu0
          %1762 = vmatprep.mubr.f32.mxu0 0.0
          %v1763 = vand.u32 %v504, 4294901760
          %1764 = vmatmul.mubr.f32.gmra.mrb[0].mxu0 %v1763
          %v1765 = vpop.f32.mrb[0].mxu0
          %v1766 = vadd.f32 %v1589, %v1765
          %v1767 = vpop.f32.mrb[0].mxu0
          %1768 = vmatprep.mubr.f32.mxu0 0.0
          %v1769 = vand.u32 %v505, 4294901760
          %1770 = vmatmul.mubr.f32.gmra.mrb[0].mxu0 %v1769
          %v1771 = vpop.f32.mrb[0].mxu0
          %v1772 = vadd.f32 %v1595, %v1771
          %v1773 = vpop.f32.mrb[0].mxu0
          %1774 = vmatprep.mubr.f32.mxu0 0.0
          %v1775 = vand.u32 %v506, 4294901760
          %1776 = vmatmul.mubr.f32.gmra.mrb[0].mxu0 %v1775
          %v1777 = vpop.f32.mrb[0].mxu0
          %v1778 = vadd.f32 %v1601, %v1777
          %v1779 = vpop.f32.mrb[0].mxu0
          %1780 = vmatprep.mubr.f32.mxu0 0.0
          %v1781 = vand.u32 %v507, 4294901760
          %1782 = vmatmul.mubr.f32.gmra.mrb[0].mxu0 %v1781
          %v1783 = vpop.f32.mrb[0].mxu0
          %v1784 = vadd.f32 %v1607, %v1783
          %v1785 = vpop.f32.mrb[0].mxu0
          %1786 = vmatprep.mubr.f32.mxu0 0.0
          %v1787 = vand.u32 %v508, 4294901760
          %1788 = vmatmul.mubr.f32.gmra.mrb[0].mxu0 %v1787
          %v1789 = vpop.f32.mrb[0].mxu0
          %v1790 = vadd.f32 %v1613, %v1789
          %v1791 = vpop.f32.mrb[0].mxu0
          %1792 = vmatprep.mubr.f32.mxu0 0.0
          %v1793 = vand.u32 %v509, 4294901760
          %1794 = vmatmul.mubr.f32.gmra.mrb[0].mxu0 %v1793
          %v1795 = vpop.f32.mrb[0].mxu0
          %v1796 = vadd.f32 %v1619, %v1795
          %v1797 = vpop.f32.mrb[0].mxu0
          %1798 = vmatprep.mubr.f32.mxu0 0.0
          %v1799 = vand.u32 %v510, 4294901760
          %1800 = vmatmul.mubr.f32.gmra.mrb[0].mxu0 %v1799
          %v1801 = vpop.f32.mrb[0].mxu0
          %v1802 = vadd.f32 %v1625, %v1801
          %v1803 = vpop.f32.mrb[0].mxu0
          %1804 = vmatprep.mubr.f32.mxu0 0.0
          %v1805 = vand.u32 %v511, 4294901760
          %1806 = vmatmul.mubr.f32.gmra.mrb[0].mxu0 %v1805
          %v1807 = vpop.f32.mrb[0].mxu0
          %v1808 = vadd.f32 %v1631, %v1807
          %v1809 = vpop.f32.mrb[0].mxu0
          %1810 = vmatprep.mubr.f32.mxu0 0.0
          %v1811 = vand.u32 %v512, 4294901760
          %1812 = vmatmul.mubr.f32.gmra.mrb[0].mxu0 %v1811
          %v1813 = vpop.f32.mrb[0].mxu0
          %v1814 = vadd.f32 %v1637, %v1813
          %v1815 = vpop.f32.mrb[0].mxu0
          %1816 = vmatprep.mubr.f32.mxu0 0.0
          %v1817 = vand.u32 %v513, 4294901760
          %1818 = vmatmul.mubr.f32.gmra.mrb[0].mxu0 %v1817
          %v1819 = vpop.f32.mrb[0].mxu0
          %v1820 = vadd.f32 %v1643, %v1819
          %v1821 = vpop.f32.mrb[0].mxu0
          %1822 = vdwg.mxu0
          %v1823 = vmax.f32 %v1730, 0.0
          %v1824 = vmax.f32 %v1736, 0.0
          %v1825 = vmax.f32 %v1742, 0.0
          %v1826 = vmax.f32 %v1748, 0.0
          %v1827 = vmax.f32 %v1754, 0.0
          %v1828 = vmax.f32 %v1760, 0.0
          %v1829 = vmax.f32 %v1766, 0.0
          %v1830 = vmax.f32 %v1772, 0.0
          %v1831 = vmax.f32 %v1778, 0.0
          %v1832 = vmax.f32 %v1784, 0.0
          %v1833 = vmax.f32 %v1790, 0.0
          %v1834 = vmax.f32 %v1796, 0.0
          %v1835 = vmax.f32 %v1802, 0.0
          %v1836 = vmax.f32 %v1808, 0.0
          %v1837 = vmax.f32 %v1814, 0.0
          %v1838 = vmax.f32 %v1820, 0.0
          %v1839 = vld [vmem:[#allocation11] sm:$0xff]
          %v1840 = vld [vmem:[#allocation11 + $0x8] sm:$0xff]
          %v1841 = vld [vmem:[#allocation11 + $0x10] sm:$0xff]
          %v1842 = vld [vmem:[#allocation11 + $0x18] sm:$0xff]
          %v1843 = vld [vmem:[#allocation11 + $0x20] sm:$0xff]
          %v1844 = vld [vmem:[#allocation11 + $0x28] sm:$0xff]
          %v1845 = vld [vmem:[#allocation11 + $0x30] sm:$0xff]
          %v1846 = vld [vmem:[#allocation11 + $0x38] sm:$0xff]
          %v1847 = vld [vmem:[#allocation11 + $0x40] sm:$0xff]
          %v1848 = vld [vmem:[#allocation11 + $0x48] sm:$0xff]
          %v1849 = vld [vmem:[#allocation11 + $0x50] sm:$0xff]
          %v1850 = vld [vmem:[#allocation11 + $0x58] sm:$0xff]
          %v1851 = vld [vmem:[#allocation11 + $0x60] sm:$0xff]
          %v1852 = vld [vmem:[#allocation11 + $0x68] sm:$0xff]
          %v1853 = vld [vmem:[#allocation11 + $0x70] sm:$0xff]
          %v1854 = vld [vmem:[#allocation11 + $0x78] sm:$0xff]
          %v1855 = vld [vmem:[%s4] sm:$0x1]
          %v1857 = vlaneseq
          %v1858 = vshrl.u32 %v1857, 7
          %v1859 = vsub.s32 0, %v1858
          %v1860 = vrot.slane %v1855, %v1859
          %1862 = vmatprep.subr.mxu0 0.0
          %v1863 = vand.u32 %v1839, 4294901760
          %1864 = vmatpush1.msra.mxu0 %v1863
          %1865 = vmatprep.subr.mxu0 0.0
          %v1866 = vand.u32 %v1840, 4294901760
          %1867 = vmatpush1.msra.mxu0 %v1866
          %1868 = vmatprep.subr.mxu0 0.0
          %v1869 = vand.u32 %v1841, 4294901760
          %1870 = vmatpush1.msra.mxu0 %v1869
          %1871 = vmatprep.subr.mxu0 0.0
          %v1872 = vand.u32 %v1842, 4294901760
          %1873 = vmatpush1.msra.mxu0 %v1872
          %1874 = vmatprep.subr.mxu0 0.0
          %v1875 = vand.u32 %v1843, 4294901760
          %1876 = vmatpush1.msra.mxu0 %v1875
          %1877 = vmatprep.subr.mxu0 0.0
          %v1878 = vand.u32 %v1844, 4294901760
          %1879 = vmatpush1.msra.mxu0 %v1878
          %1880 = vmatprep.subr.mxu0 0.0
          %v1881 = vand.u32 %v1845, 4294901760
          %1882 = vmatpush1.msra.mxu0 %v1881
          %1883 = vmatprep.subr.mxu0 0.0
          %v1884 = vand.u32 %v1846, 4294901760
          %1885 = vmatpush1.msra.mxu0 %v1884
          %1886 = vmatprep.subr.mxu0 0.0
          %v1887 = vand.u32 %v1847, 4294901760
          %1888 = vmatpush1.msra.mxu0 %v1887
          %1889 = vmatprep.subr.mxu0 0.0
          %v1890 = vand.u32 %v1848, 4294901760
          %1891 = vmatpush1.msra.mxu0 %v1890
          %1892 = vmatprep.subr.mxu0 0.0
          %v1893 = vand.u32 %v1849, 4294901760
          %1894 = vmatpush1.msra.mxu0 %v1893
          %1895 = vmatprep.subr.mxu0 0.0
          %v1896 = vand.u32 %v1850, 4294901760
          %1897 = vmatpush1.msra.mxu0 %v1896
          %1898 = vmatprep.subr.mxu0 0.0
          %v1899 = vand.u32 %v1851, 4294901760
          %1900 = vmatpush1.msra.mxu0 %v1899
          %1901 = vmatprep.subr.mxu0 0.0
          %v1902 = vand.u32 %v1852, 4294901760
          %1903 = vmatpush1.msra.mxu0 %v1902
          %1904 = vmatprep.subr.mxu0 0.0
          %v1905 = vand.u32 %v1853, 4294901760
          %1906 = vmatpush1.msra.mxu0 %v1905
          %1907 = vmatprep.subr.mxu0 0.0
          %v1908 = vand.u32 %v1854, 4294901760
          %1909 = vmatpush1.msra.mxu0 %v1908
          %1910 = vmatprep.subr.mxu0 0.0
          %1911 = vmatpush1.msra.mxu0 0.0
          %1912 = vmatprep.subr.mxu0 0.0
          %1913 = vmatpush1.msra.mxu0 0.0
          %1914 = vmatprep.subr.mxu0 0.0
          %1915 = vmatpush1.msra.mxu0 0.0
          %1916 = vmatprep.subr.mxu0 0.0
          %1917 = vmatpush1.msra.mxu0 0.0
          %1918 = vmatprep.subr.mxu0 0.0
          %1919 = vmatpush1.msra.mxu0 0.0
          %1920 = vmatprep.subr.mxu0 0.0
          %1921 = vmatpush1.msra.mxu0 0.0
          %1922 = vmatprep.subr.mxu0 0.0
          %1923 = vmatpush1.msra.mxu0 0.0
          %1924 = vmatprep.subr.mxu0 0.0
          %1925 = vmatpush1.msra.mxu0 0.0
          %1926 = vmatprep.subr.mxu0 0.0
          %1927 = vmatpush1.msra.mxu0 0.0
          %1928 = vmatprep.subr.mxu0 0.0
          %1929 = vmatpush1.msra.mxu0 0.0
          %1930 = vmatprep.subr.mxu0 0.0
          %1931 = vmatpush1.msra.mxu0 0.0
          %1932 = vmatprep.subr.mxu0 0.0
          %1933 = vmatpush1.msra.mxu0 0.0
          %1934 = vmatprep.subr.mxu0 0.0
          %1935 = vmatpush1.msra.mxu0 0.0
          %1936 = vmatprep.subr.mxu0 0.0
          %1937 = vmatpush1.msra.mxu0 0.0
          %1938 = vmatprep.subr.mxu0 0.0
          %1939 = vmatpush1.msra.mxu0 0.0
          %1940 = vmatprep.subr.mxu0 0.0
          %1941 = vmatpush1.msra.mxu0 0.0
          %1942 = vmatprep.mubr.f32.mxu0 0.0
          %v1943 = vand.u32 %v1823, 4294901760
          %v1944 = vsub.f32 %v1823, %v1943
          %v1945 = vand.u32 %v1944, 4294901760
          %v1946 = vsub.f32 %v1944, %v1945
          %v1947 = vand.u32 %v1946, 4294901760
          %1948 = vmatmul.mubr.f32.gmra.mrb[0].mxu0 %v1947
          %v1949 = vpop.f32.mrb[0].mxu0
          %v1950 = vadd.f32 %v1860, %v1949
          %v1951 = vpop.f32.mrb[0].mxu0
          %1952 = vmatprep.mubr.f32.mxu0 0.0
          %v1953 = vand.u32 %v1824, 4294901760
          %v1954 = vsub.f32 %v1824, %v1953
          %v1955 = vand.u32 %v1954, 4294901760
          %v1956 = vsub.f32 %v1954, %v1955
          %v1957 = vand.u32 %v1956, 4294901760
          %1958 = vmatmul.mubr.f32.gmra.mrb[0].mxu0 %v1957
          %v1959 = vpop.f32.mrb[0].mxu0
          %v1960 = vadd.f32 %v1860, %v1959
          %v1961 = vpop.f32.mrb[0].mxu0
          %1962 = vmatprep.mubr.f32.mxu0 0.0
          %v1963 = vand.u32 %v1825, 4294901760
          %v1964 = vsub.f32 %v1825, %v1963
          %v1965 = vand.u32 %v1964, 4294901760
          %v1966 = vsub.f32 %v1964, %v1965
          %v1967 = vand.u32 %v1966, 4294901760
          %1968 = vmatmul.mubr.f32.gmra.mrb[0].mxu0 %v1967
          %v1969 = vpop.f32.mrb[0].mxu0
          %v1970 = vadd.f32 %v1860, %v1969
          %v1971 = vpop.f32.mrb[0].mxu0
          %1972 = vmatprep.mubr.f32.mxu0 0.0
          %v1973 = vand.u32 %v1826, 4294901760
          %v1974 = vsub.f32 %v1826, %v1973
          %v1975 = vand.u32 %v1974, 4294901760
          %v1976 = vsub.f32 %v1974, %v1975
          %v1977 = vand.u32 %v1976, 4294901760
          %1978 = vmatmul.mubr.f32.gmra.mrb[0].mxu0 %v1977
          %v1979 = vpop.f32.mrb[0].mxu0
          %v1980 = vadd.f32 %v1860, %v1979
          %v1981 = vpop.f32.mrb[0].mxu0
          %1982 = vmatprep.mubr.f32.mxu0 0.0
          %v1983 = vand.u32 %v1827, 4294901760
          %v1984 = vsub.f32 %v1827, %v1983
          %v1985 = vand.u32 %v1984, 4294901760
          %v1986 = vsub.f32 %v1984, %v1985
          %v1987 = vand.u32 %v1986, 4294901760
          %1988 = vmatmul.mubr.f32.gmra.mrb[0].mxu0 %v1987
          %v1989 = vpop.f32.mrb[0].mxu0
          %v1990 = vadd.f32 %v1860, %v1989
          %v1991 = vpop.f32.mrb[0].mxu0
          %1992 = vmatprep.mubr.f32.mxu0 0.0
          %v1993 = vand.u32 %v1828, 4294901760
          %v1994 = vsub.f32 %v1828, %v1993
          %v1995 = vand.u32 %v1994, 4294901760
          %v1996 = vsub.f32 %v1994, %v1995
          %v1997 = vand.u32 %v1996, 4294901760
          %1998 = vmatmul.mubr.f32.gmra.mrb[0].mxu0 %v1997
          %v1999 = vpop.f32.mrb[0].mxu0
          %v2000 = vadd.f32 %v1860, %v1999
          %v2001 = vpop.f32.mrb[0].mxu0
          %2002 = vmatprep.mubr.f32.mxu0 0.0
          %v2003 = vand.u32 %v1829, 4294901760
          %v2004 = vsub.f32 %v1829, %v2003
          %v2005 = vand.u32 %v2004, 4294901760
          %v2006 = vsub.f32 %v2004, %v2005
          %v2007 = vand.u32 %v2006, 4294901760
          %2008 = vmatmul.mubr.f32.gmra.mrb[0].mxu0 %v2007
          %v2009 = vpop.f32.mrb[0].mxu0
          %v2010 = vadd.f32 %v1860, %v2009
          %v2011 = vpop.f32.mrb[0].mxu0
          %2012 = vmatprep.mubr.f32.mxu0 0.0
          %v2013 = vand.u32 %v1830, 4294901760
          %v2014 = vsub.f32 %v1830, %v2013
          %v2015 = vand.u32 %v2014, 4294901760
          %v2016 = vsub.f32 %v2014, %v2015
          %v2017 = vand.u32 %v2016, 4294901760
          %2018 = vmatmul.mubr.f32.gmra.mrb[0].mxu0 %v2017
          %v2019 = vpop.f32.mrb[0].mxu0
          %v2020 = vadd.f32 %v1860, %v2019
          %v2021 = vpop.f32.mrb[0].mxu0
          %2022 = vmatprep.mubr.f32.mxu0 0.0
          %v2023 = vand.u32 %v1831, 4294901760
          %v2024 = vsub.f32 %v1831, %v2023
          %v2025 = vand.u32 %v2024, 4294901760
          %v2026 = vsub.f32 %v2024, %v2025
          %v2027 = vand.u32 %v2026, 4294901760
          %2028 = vmatmul.mubr.f32.gmra.mrb[0].mxu0 %v2027
          %v2029 = vpop.f32.mrb[0].mxu0
          %v2030 = vadd.f32 %v1860, %v2029
          %v2031 = vpop.f32.mrb[0].mxu0
          %2032 = vmatprep.mubr.f32.mxu0 0.0
          %v2033 = vand.u32 %v1832, 4294901760
          %v2034 = vsub.f32 %v1832, %v2033
          %v2035 = vand.u32 %v2034, 4294901760
          %v2036 = vsub.f32 %v2034, %v2035
          %v2037 = vand.u32 %v2036, 4294901760
          %2038 = vmatmul.mubr.f32.gmra.mrb[0].mxu0 %v2037
          %v2039 = vpop.f32.mrb[0].mxu0
          %v2040 = vadd.f32 %v1860, %v2039
          %v2041 = vpop.f32.mrb[0].mxu0
          %2042 = vmatprep.mubr.f32.mxu0 0.0
          %v2043 = vand.u32 %v1833, 4294901760
          %v2044 = vsub.f32 %v1833, %v2043
          %v2045 = vand.u32 %v2044, 4294901760
          %v2046 = vsub.f32 %v2044, %v2045
          %v2047 = vand.u32 %v2046, 4294901760
          %2048 = vmatmul.mubr.f32.gmra.mrb[0].mxu0 %v2047
          %v2049 = vpop.f32.mrb[0].mxu0
          %v2050 = vadd.f32 %v1860, %v2049
          %v2051 = vpop.f32.mrb[0].mxu0
          %2052 = vmatprep.mubr.f32.mxu0 0.0
          %v2053 = vand.u32 %v1834, 4294901760
          %v2054 = vsub.f32 %v1834, %v2053
          %v2055 = vand.u32 %v2054, 4294901760
          %v2056 = vsub.f32 %v2054, %v2055
          %v2057 = vand.u32 %v2056, 4294901760
          %2058 = vmatmul.mubr.f32.gmra.mrb[0].mxu0 %v2057
          %v2059 = vpop.f32.mrb[0].mxu0
          %v2060 = vadd.f32 %v1860, %v2059
          %v2061 = vpop.f32.mrb[0].mxu0
          %2062 = vmatprep.mubr.f32.mxu0 0.0
          %v2063 = vand.u32 %v1835, 4294901760
          %v2064 = vsub.f32 %v1835, %v2063
          %v2065 = vand.u32 %v2064, 4294901760
          %v2066 = vsub.f32 %v2064, %v2065
          %v2067 = vand.u32 %v2066, 4294901760
          %2068 = vmatmul.mubr.f32.gmra.mrb[0].mxu0 %v2067
          %v2069 = vpop.f32.mrb[0].mxu0
          %v2070 = vadd.f32 %v1860, %v2069
          %v2071 = vpop.f32.mrb[0].mxu0
          %2072 = vmatprep.mubr.f32.mxu0 0.0
          %v2073 = vand.u32 %v1836, 4294901760
          %v2074 = vsub.f32 %v1836, %v2073
          %v2075 = vand.u32 %v2074, 4294901760
          %v2076 = vsub.f32 %v2074, %v2075
          %v2077 = vand.u32 %v2076, 4294901760
          %2078 = vmatmul.mubr.f32.gmra.mrb[0].mxu0 %v2077
          %v2079 = vpop.f32.mrb[0].mxu0
          %v2080 = vadd.f32 %v1860, %v2079
          %v2081 = vpop.f32.mrb[0].mxu0
          %2082 = vmatprep.mubr.f32.mxu0 0.0
          %v2083 = vand.u32 %v1837, 4294901760
          %v2084 = vsub.f32 %v1837, %v2083
          %v2085 = vand.u32 %v2084, 4294901760
          %v2086 = vsub.f32 %v2084, %v2085
          %v2087 = vand.u32 %v2086, 4294901760
          %2088 = vmatmul.mubr.f32.gmra.mrb[0].mxu0 %v2087
          %v2089 = vpop.f32.mrb[0].mxu0
          %v2090 = vadd.f32 %v1860, %v2089
          %v2091 = vpop.f32.mrb[0].mxu0
          %2092 = vmatprep.mubr.f32.mxu0 0.0
          %v2093 = vand.u32 %v1838, 4294901760
          %v2094 = vsub.f32 %v1838, %v2093
          %v2095 = vand.u32 %v2094, 4294901760
          %v2096 = vsub.f32 %v2094, %v2095
          %v2097 = vand.u32 %v2096, 4294901760
          %2098 = vmatmul.mubr.f32.gmra.mrb[0].mxu0 %v2097
          %v2099 = vpop.f32.mrb[0].mxu0
          %v2100 = vadd.f32 %v1860, %v2099
          %v2101 = vpop.f32.mrb[0].mxu0
          %2102 = vdwg.mxu0
          %2103 = vmatprep.subr.mxu0 0.0
          %v2104 = vand.u32 %v1839, 4294901760
          %v2105 = vsub.f32 %v1839, %v2104
          %v2106 = vand.u32 %v2105, 4294901760
          %v2107 = vsub.f32 %v2105, %v2106
          %v2108 = vand.u32 %v2107, 4294901760
          %2109 = vmatpush1.msra.mxu0 %v2108
          %2110 = vmatprep.subr.mxu0 0.0
          %v2111 = vand.u32 %v1840, 4294901760
          %v2112 = vsub.f32 %v1840, %v2111
          %v2113 = vand.u32 %v2112, 4294901760
          %v2114 = vsub.f32 %v2112, %v2113
          %v2115 = vand.u32 %v2114, 4294901760
          %2116 = vmatpush1.msra.mxu0 %v2115
          %2117 = vmatprep.subr.mxu0 0.0
          %v2118 = vand.u32 %v1841, 4294901760
          %v2119 = vsub.f32 %v1841, %v2118
          %v2120 = vand.u32 %v2119, 4294901760
          %v2121 = vsub.f32 %v2119, %v2120
          %v2122 = vand.u32 %v2121, 4294901760
          %2123 = vmatpush1.msra.mxu0 %v2122
          %2124 = vmatprep.subr.mxu0 0.0
          %v2125 = vand.u32 %v1842, 4294901760
          %v2126 = vsub.f32 %v1842, %v2125
          %v2127 = vand.u32 %v2126, 4294901760
          %v2128 = vsub.f32 %v2126, %v2127
          %v2129 = vand.u32 %v2128, 4294901760
          %2130 = vmatpush1.msra.mxu0 %v2129
          %2131 = vmatprep.subr.mxu0 0.0
          %v2132 = vand.u32 %v1843, 4294901760
          %v2133 = vsub.f32 %v1843, %v2132
          %v2134 = vand.u32 %v2133, 4294901760
          %v2135 = vsub.f32 %v2133, %v2134
          %v2136 = vand.u32 %v2135, 4294901760
          %2137 = vmatpush1.msra.mxu0 %v2136
          %2138 = vmatprep.subr.mxu0 0.0
          %v2139 = vand.u32 %v1844, 4294901760
          %v2140 = vsub.f32 %v1844, %v2139
          %v2141 = vand.u32 %v2140, 4294901760
          %v2142 = vsub.f32 %v2140, %v2141
          %v2143 = vand.u32 %v2142, 4294901760
          %2144 = vmatpush1.msra.mxu0 %v2143
          %2145 = vmatprep.subr.mxu0 0.0
          %v2146 = vand.u32 %v1845, 4294901760
          %v2147 = vsub.f32 %v1845, %v2146
          %v2148 = vand.u32 %v2147, 4294901760
          %v2149 = vsub.f32 %v2147, %v2148
          %v2150 = vand.u32 %v2149, 4294901760
          %2151 = vmatpush1.msra.mxu0 %v2150
          %2152 = vmatprep.subr.mxu0 0.0
          %v2153 = vand.u32 %v1846, 4294901760
          %v2154 = vsub.f32 %v1846, %v2153
          %v2155 = vand.u32 %v2154, 4294901760
          %v2156 = vsub.f32 %v2154, %v2155
          %v2157 = vand.u32 %v2156, 4294901760
          %2158 = vmatpush1.msra.mxu0 %v2157
          %2159 = vmatprep.subr.mxu0 0.0
          %v2160 = vand.u32 %v1847, 4294901760
          %v2161 = vsub.f32 %v1847, %v2160
          %v2162 = vand.u32 %v2161, 4294901760
          %v2163 = vsub.f32 %v2161, %v2162
          %v2164 = vand.u32 %v2163, 4294901760
          %2165 = vmatpush1.msra.mxu0 %v2164
          %2166 = vmatprep.subr.mxu0 0.0
          %v2167 = vand.u32 %v1848, 4294901760
          %v2168 = vsub.f32 %v1848, %v2167
          %v2169 = vand.u32 %v2168, 4294901760
          %v2170 = vsub.f32 %v2168, %v2169
          %v2171 = vand.u32 %v2170, 4294901760
          %2172 = vmatpush1.msra.mxu0 %v2171
          %2173 = vmatprep.subr.mxu0 0.0
          %v2174 = vand.u32 %v1849, 4294901760
          %v2175 = vsub.f32 %v1849, %v2174
          %v2176 = vand.u32 %v2175, 4294901760
          %v2177 = vsub.f32 %v2175, %v2176
          %v2178 = vand.u32 %v2177, 4294901760
          %2179 = vmatpush1.msra.mxu0 %v2178
          %2180 = vmatprep.subr.mxu0 0.0
          %v2181 = vand.u32 %v1850, 4294901760
          %v2182 = vsub.f32 %v1850, %v2181
          %v2183 = vand.u32 %v2182, 4294901760
          %v2184 = vsub.f32 %v2182, %v2183
          %v2185 = vand.u32 %v2184, 4294901760
          %2186 = vmatpush1.msra.mxu0 %v2185
          %2187 = vmatprep.subr.mxu0 0.0
          %v2188 = vand.u32 %v1851, 4294901760
          %v2189 = vsub.f32 %v1851, %v2188
          %v2190 = vand.u32 %v2189, 4294901760
          %v2191 = vsub.f32 %v2189, %v2190
          %v2192 = vand.u32 %v2191, 4294901760
          %2193 = vmatpush1.msra.mxu0 %v2192
          %2194 = vmatprep.subr.mxu0 0.0
          %v2195 = vand.u32 %v1852, 4294901760
          %v2196 = vsub.f32 %v1852, %v2195
          %v2197 = vand.u32 %v2196, 4294901760
          %v2198 = vsub.f32 %v2196, %v2197
          %v2199 = vand.u32 %v2198, 4294901760
          %2200 = vmatpush1.msra.mxu0 %v2199
          %2201 = vmatprep.subr.mxu0 0.0
          %v2202 = vand.u32 %v1853, 4294901760
          %v2203 = vsub.f32 %v1853, %v2202
          %v2204 = vand.u32 %v2203, 4294901760
          %v2205 = vsub.f32 %v2203, %v2204
          %v2206 = vand.u32 %v2205, 4294901760
          %2207 = vmatpush1.msra.mxu0 %v2206
          %2208 = vmatprep.subr.mxu0 0.0
          %v2209 = vand.u32 %v1854, 4294901760
          %v2210 = vsub.f32 %v1854, %v2209
          %v2211 = vand.u32 %v2210, 4294901760
          %v2212 = vsub.f32 %v2210, %v2211
          %v2213 = vand.u32 %v2212, 4294901760
          %2214 = vmatpush1.msra.mxu0 %v2213
          %2215 = vmatprep.subr.mxu0 0.0
          %2216 = vmatpush1.msra.mxu0 0.0
          %2217 = vmatprep.subr.mxu0 0.0
          %2218 = vmatpush1.msra.mxu0 0.0
          %2219 = vmatprep.subr.mxu0 0.0
          %2220 = vmatpush1.msra.mxu0 0.0
          %2221 = vmatprep.subr.mxu0 0.0
          %2222 = vmatpush1.msra.mxu0 0.0
          %2223 = vmatprep.subr.mxu0 0.0
          %2224 = vmatpush1.msra.mxu0 0.0
          %2225 = vmatprep.subr.mxu0 0.0
          %2226 = vmatpush1.msra.mxu0 0.0
          %2227 = vmatprep.subr.mxu0 0.0
          %2228 = vmatpush1.msra.mxu0 0.0
          %2229 = vmatprep.subr.mxu0 0.0
          %2230 = vmatpush1.msra.mxu0 0.0
          %2231 = vmatprep.subr.mxu0 0.0
          %2232 = vmatpush1.msra.mxu0 0.0
          %2233 = vmatprep.subr.mxu0 0.0
          %2234 = vmatpush1.msra.mxu0 0.0
          %2235 = vmatprep.subr.mxu0 0.0
          %2236 = vmatpush1.msra.mxu0 0.0
          %2237 = vmatprep.subr.mxu0 0.0
          %2238 = vmatpush1.msra.mxu0 0.0
          %2239 = vmatprep.subr.mxu0 0.0
          %2240 = vmatpush1.msra.mxu0 0.0
          %2241 = vmatprep.subr.mxu0 0.0
          %2242 = vmatpush1.msra.mxu0 0.0
          %2243 = vmatprep.subr.mxu0 0.0
          %2244 = vmatpush1.msra.mxu0 0.0
          %2245 = vmatprep.subr.mxu0 0.0
          %2246 = vmatpush1.msra.mxu0 0.0
          %2247 = vmatprep.mubr.f32.mxu0 0.0
          %v2248 = vand.u32 %v1823, 4294901760
          %2249 = vmatmul.mubr.f32.gmra.mrb[0].mxu0 %v2248
          %v2250 = vpop.f32.mrb[0].mxu0
          %v2251 = vadd.f32 %v1950, %v2250
          %v2252 = vpop.f32.mrb[0].mxu0
          %2253 = vmatprep.mubr.f32.mxu0 0.0
          %v2254 = vand.u32 %v1824, 4294901760
          %2255 = vmatmul.mubr.f32.gmra.mrb[0].mxu0 %v2254
          %v2256 = vpop.f32.mrb[0].mxu0
          %v2257 = vadd.f32 %v1960, %v2256
          %v2258 = vpop.f32.mrb[0].mxu0
          %2259 = vmatprep.mubr.f32.mxu0 0.0
          %v2260 = vand.u32 %v1825, 4294901760
          %2261 = vmatmul.mubr.f32.gmra.mrb[0].mxu0 %v2260
          %v2262 = vpop.f32.mrb[0].mxu0
          %v2263 = vadd.f32 %v1970, %v2262
          %v2264 = vpop.f32.mrb[0].mxu0
          %2265 = vmatprep.mubr.f32.mxu0 0.0
          %v2266 = vand.u32 %v1826, 4294901760
          %2267 = vmatmul.mubr.f32.gmra.mrb[0].mxu0 %v2266
          %v2268 = vpop.f32.mrb[0].mxu0
          %v2269 = vadd.f32 %v1980, %v2268
          %v2270 = vpop.f32.mrb[0].mxu0
          %2271 = vmatprep.mubr.f32.mxu0 0.0
          %v2272 = vand.u32 %v1827, 4294901760
          %2273 = vmatmul.mubr.f32.gmra.mrb[0].mxu0 %v2272
          %v2274 = vpop.f32.mrb[0].mxu0
          %v2275 = vadd.f32 %v1990, %v2274
          %v2276 = vpop.f32.mrb[0].mxu0
          %2277 = vmatprep.mubr.f32.mxu0 0.0
          %v2278 = vand.u32 %v1828, 4294901760
          %2279 = vmatmul.mubr.f32.gmra.mrb[0].mxu0 %v2278
          %v2280 = vpop.f32.mrb[0].mxu0
          %v2281 = vadd.f32 %v2000, %v2280
          %v2282 = vpop.f32.mrb[0].mxu0
          %2283 = vmatprep.mubr.f32.mxu0 0.0
          %v2284 = vand.u32 %v1829, 4294901760
          %2285 = vmatmul.mubr.f32.gmra.mrb[0].mxu0 %v2284
          %v2286 = vpop.f32.mrb[0].mxu0
          %v2287 = vadd.f32 %v2010, %v2286
          %v2288 = vpop.f32.mrb[0].mxu0
          %2289 = vmatprep.mubr.f32.mxu0 0.0
          %v2290 = vand.u32 %v1830, 4294901760
          %2291 = vmatmul.mubr.f32.gmra.mrb[0].mxu0 %v2290
          %v2292 = vpop.f32.mrb[0].mxu0
          %v2293 = vadd.f32 %v2020, %v2292
          %v2294 = vpop.f32.mrb[0].mxu0
          %2295 = vmatprep.mubr.f32.mxu0 0.0
          %v2296 = vand.u32 %v1831, 4294901760
          %2297 = vmatmul.mubr.f32.gmra.mrb[0].mxu0 %v2296
          %v2298 = vpop.f32.mrb[0].mxu0
          %v2299 = vadd.f32 %v2030, %v2298
          %v2300 = vpop.f32.mrb[0].mxu0
          %2301 = vmatprep.mubr.f32.mxu0 0.0
          %v2302 = vand.u32 %v1832, 4294901760
          %2303 = vmatmul.mubr.f32.gmra.mrb[0].mxu0 %v2302
          %v2304 = vpop.f32.mrb[0].mxu0
          %v2305 = vadd.f32 %v2040, %v2304
          %v2306 = vpop.f32.mrb[0].mxu0
          %2307 = vmatprep.mubr.f32.mxu0 0.0
          %v2308 = vand.u32 %v1833, 4294901760
          %2309 = vmatmul.mubr.f32.gmra.mrb[0].mxu0 %v2308
          %v2310 = vpop.f32.mrb[0].mxu0
          %v2311 = vadd.f32 %v2050, %v2310
          %v2312 = vpop.f32.mrb[0].mxu0
          %2313 = vmatprep.mubr.f32.mxu0 0.0
          %v2314 = vand.u32 %v1834, 4294901760
          %2315 = vmatmul.mubr.f32.gmra.mrb[0].mxu0 %v2314
          %v2316 = vpop.f32.mrb[0].mxu0
          %v2317 = vadd.f32 %v2060, %v2316
          %v2318 = vpop.f32.mrb[0].mxu0
          %2319 = vmatprep.mubr.f32.mxu0 0.0
          %v2320 = vand.u32 %v1835, 4294901760
          %2321 = vmatmul.mubr.f32.gmra.mrb[0].mxu0 %v2320
          %v2322 = vpop.f32.mrb[0].mxu0
          %v2323 = vadd.f32 %v2070, %v2322
          %v2324 = vpop.f32.mrb[0].mxu0
          %2325 = vmatprep.mubr.f32.mxu0 0.0
          %v2326 = vand.u32 %v1836, 4294901760
          %2327 = vmatmul.mubr.f32.gmra.mrb[0].mxu0 %v2326
          %v2328 = vpop.f32.mrb[0].mxu0
          %v2329 = vadd.f32 %v2080, %v2328
          %v2330 = vpop.f32.mrb[0].mxu0
          %2331 = vmatprep.mubr.f32.mxu0 0.0
          %v2332 = vand.u32 %v1837, 4294901760
          %2333 = vmatmul.mubr.f32.gmra.mrb[0].mxu0 %v2332
          %v2334 = vpop.f32.mrb[0].mxu0
          %v2335 = vadd.f32 %v2090, %v2334
          %v2336 = vpop.f32.mrb[0].mxu0
          %2337 = vmatprep.mubr.f32.mxu0 0.0
          %v2338 = vand.u32 %v1838, 4294901760
          %2339 = vmatmul.mubr.f32.gmra.mrb[0].mxu0 %v2338
          %v2340 = vpop.f32.mrb[0].mxu0
          %v2341 = vadd.f32 %v2100, %v2340
          %v2342 = vpop.f32.mrb[0].mxu0
          %2343 = vdwg.mxu0
          %2344 = vmatprep.subr.mxu0 0.0
          %v2345 = vand.u32 %v1839, 4294901760
          %v2346 = vsub.f32 %v1839, %v2345
          %2347 = vmatpush1.msra.mxu0 %v2346
          %2348 = vmatprep.subr.mxu0 0.0
          %v2349 = vand.u32 %v1840, 4294901760
          %v2350 = vsub.f32 %v1840, %v2349
          %2351 = vmatpush1.msra.mxu0 %v2350
          %2352 = vmatprep.subr.mxu0 0.0
          %v2353 = vand.u32 %v1841, 4294901760
          %v2354 = vsub.f32 %v1841, %v2353
          %2355 = vmatpush1.msra.mxu0 %v2354
          %2356 = vmatprep.subr.mxu0 0.0
          %v2357 = vand.u32 %v1842, 4294901760
          %v2358 = vsub.f32 %v1842, %v2357
          %2359 = vmatpush1.msra.mxu0 %v2358
          %2360 = vmatprep.subr.mxu0 0.0
          %v2361 = vand.u32 %v1843, 4294901760
          %v2362 = vsub.f32 %v1843, %v2361
          %2363 = vmatpush1.msra.mxu0 %v2362
          %2364 = vmatprep.subr.mxu0 0.0
          %v2365 = vand.u32 %v1844, 4294901760
          %v2366 = vsub.f32 %v1844, %v2365
          %2367 = vmatpush1.msra.mxu0 %v2366
          %2368 = vmatprep.subr.mxu0 0.0
          %v2369 = vand.u32 %v1845, 4294901760
          %v2370 = vsub.f32 %v1845, %v2369
          %2371 = vmatpush1.msra.mxu0 %v2370
          %2372 = vmatprep.subr.mxu0 0.0
          %v2373 = vand.u32 %v1846, 4294901760
          %v2374 = vsub.f32 %v1846, %v2373
          %2375 = vmatpush1.msra.mxu0 %v2374
          %2376 = vmatprep.subr.mxu0 0.0
          %v2377 = vand.u32 %v1847, 4294901760
          %v2378 = vsub.f32 %v1847, %v2377
          %2379 = vmatpush1.msra.mxu0 %v2378
          %2380 = vmatprep.subr.mxu0 0.0
          %v2381 = vand.u32 %v1848, 4294901760
          %v2382 = vsub.f32 %v1848, %v2381
          %2383 = vmatpush1.msra.mxu0 %v2382
          %2384 = vmatprep.subr.mxu0 0.0
          %v2385 = vand.u32 %v1849, 4294901760
          %v2386 = vsub.f32 %v1849, %v2385
          %2387 = vmatpush1.msra.mxu0 %v2386
          %2388 = vmatprep.subr.mxu0 0.0
          %v2389 = vand.u32 %v1850, 4294901760
          %v2390 = vsub.f32 %v1850, %v2389
          %2391 = vmatpush1.msra.mxu0 %v2390
          %2392 = vmatprep.subr.mxu0 0.0
          %v2393 = vand.u32 %v1851, 4294901760
          %v2394 = vsub.f32 %v1851, %v2393
          %2395 = vmatpush1.msra.mxu0 %v2394
          %2396 = vmatprep.subr.mxu0 0.0
          %v2397 = vand.u32 %v1852, 4294901760
          %v2398 = vsub.f32 %v1852, %v2397
          %2399 = vmatpush1.msra.mxu0 %v2398
          %2400 = vmatprep.subr.mxu0 0.0
          %v2401 = vand.u32 %v1853, 4294901760
          %v2402 = vsub.f32 %v1853, %v2401
          %2403 = vmatpush1.msra.mxu0 %v2402
          %2404 = vmatprep.subr.mxu0 0.0
          %v2405 = vand.u32 %v1854, 4294901760
          %v2406 = vsub.f32 %v1854, %v2405
          %2407 = vmatpush1.msra.mxu0 %v2406
          %2408 = vmatprep.subr.mxu0 0.0
          %2409 = vmatpush1.msra.mxu0 0.0
          %2410 = vmatprep.subr.mxu0 0.0
          %2411 = vmatpush1.msra.mxu0 0.0
          %2412 = vmatprep.subr.mxu0 0.0
          %2413 = vmatpush1.msra.mxu0 0.0
          %2414 = vmatprep.subr.mxu0 0.0
          %2415 = vmatpush1.msra.mxu0 0.0
          %2416 = vmatprep.subr.mxu0 0.0
          %2417 = vmatpush1.msra.mxu0 0.0
          %2418 = vmatprep.subr.mxu0 0.0
          %2419 = vmatpush1.msra.mxu0 0.0
          %2420 = vmatprep.subr.mxu0 0.0
          %2421 = vmatpush1.msra.mxu0 0.0
          %2422 = vmatprep.subr.mxu0 0.0
          %2423 = vmatpush1.msra.mxu0 0.0
          %2424 = vmatprep.subr.mxu0 0.0
          %2425 = vmatpush1.msra.mxu0 0.0
          %2426 = vmatprep.subr.mxu0 0.0
          %2427 = vmatpush1.msra.mxu0 0.0
          %2428 = vmatprep.subr.mxu0 0.0
          %2429 = vmatpush1.msra.mxu0 0.0
          %2430 = vmatprep.subr.mxu0 0.0
          %2431 = vmatpush1.msra.mxu0 0.0
          %2432 = vmatprep.subr.mxu0 0.0
          %2433 = vmatpush1.msra.mxu0 0.0
          %2434 = vmatprep.subr.mxu0 0.0
          %2435 = vmatpush1.msra.mxu0 0.0
          %2436 = vmatprep.subr.mxu0 0.0
          %2437 = vmatpush1.msra.mxu0 0.0
          %2438 = vmatprep.subr.mxu0 0.0
          %2439 = vmatpush1.msra.mxu0 0.0
          %2440 = vmatprep.mubr.f32.mxu0 0.0
          %v2441 = vand.u32 %v1823, 4294901760
          %v2442 = vsub.f32 %v1823, %v2441
          %2443 = vmatmul.mubr.f32.gmra.mrb[0].mxu0 %v2442
          %v2444 = vpop.f32.mrb[0].mxu0
          %v2445 = vadd.f32 %v2251, %v2444
          %v2446 = vpop.f32.mrb[0].mxu0
          %2447 = vmatprep.mubr.f32.mxu0 0.0
          %v2448 = vand.u32 %v1824, 4294901760
          %v2449 = vsub.f32 %v1824, %v2448
          %2450 = vmatmul.mubr.f32.gmra.mrb[0].mxu0 %v2449
          %v2451 = vpop.f32.mrb[0].mxu0
          %v2452 = vadd.f32 %v2257, %v2451
          %v2453 = vpop.f32.mrb[0].mxu0
          %2454 = vmatprep.mubr.f32.mxu0 0.0
          %v2455 = vand.u32 %v1825, 4294901760
          %v2456 = vsub.f32 %v1825, %v2455
          %2457 = vmatmul.mubr.f32.gmra.mrb[0].mxu0 %v2456
          %v2458 = vpop.f32.mrb[0].mxu0
          %v2459 = vadd.f32 %v2263, %v2458
          %v2460 = vpop.f32.mrb[0].mxu0
          %2461 = vmatprep.mubr.f32.mxu0 0.0
          %v2462 = vand.u32 %v1826, 4294901760
          %v2463 = vsub.f32 %v1826, %v2462
          %2464 = vmatmul.mubr.f32.gmra.mrb[0].mxu0 %v2463
          %v2465 = vpop.f32.mrb[0].mxu0
          %v2466 = vadd.f32 %v2269, %v2465
          %v2467 = vpop.f32.mrb[0].mxu0
          %2468 = vmatprep.mubr.f32.mxu0 0.0
          %v2469 = vand.u32 %v1827, 4294901760
          %v2470 = vsub.f32 %v1827, %v2469
          %2471 = vmatmul.mubr.f32.gmra.mrb[0].mxu0 %v2470
          %v2472 = vpop.f32.mrb[0].mxu0
          %v2473 = vadd.f32 %v2275, %v2472
          %v2474 = vpop.f32.mrb[0].mxu0
          %2475 = vmatprep.mubr.f32.mxu0 0.0
          %v2476 = vand.u32 %v1828, 4294901760
          %v2477 = vsub.f32 %v1828, %v2476
          %2478 = vmatmul.mubr.f32.gmra.mrb[0].mxu0 %v2477
          %v2479 = vpop.f32.mrb[0].mxu0
          %v2480 = vadd.f32 %v2281, %v2479
          %v2481 = vpop.f32.mrb[0].mxu0
          %2482 = vmatprep.mubr.f32.mxu0 0.0
          %v2483 = vand.u32 %v1829, 4294901760
          %v2484 = vsub.f32 %v1829, %v2483
          %2485 = vmatmul.mubr.f32.gmra.mrb[0].mxu0 %v2484
          %v2486 = vpop.f32.mrb[0].mxu0
          %v2487 = vadd.f32 %v2287, %v2486
          %v2488 = vpop.f32.mrb[0].mxu0
          %2489 = vmatprep.mubr.f32.mxu0 0.0
          %v2490 = vand.u32 %v1830, 4294901760
          %v2491 = vsub.f32 %v1830, %v2490
          %2492 = vmatmul.mubr.f32.gmra.mrb[0].mxu0 %v2491
          %v2493 = vpop.f32.mrb[0].mxu0
          %v2494 = vadd.f32 %v2293, %v2493
          %v2495 = vpop.f32.mrb[0].mxu0
          %2496 = vmatprep.mubr.f32.mxu0 0.0
          %v2497 = vand.u32 %v1831, 4294901760
          %v2498 = vsub.f32 %v1831, %v2497
          %2499 = vmatmul.mubr.f32.gmra.mrb[0].mxu0 %v2498
          %v2500 = vpop.f32.mrb[0].mxu0
          %v2501 = vadd.f32 %v2299, %v2500
          %v2502 = vpop.f32.mrb[0].mxu0
          %2503 = vmatprep.mubr.f32.mxu0 0.0
          %v2504 = vand.u32 %v1832, 4294901760
          %v2505 = vsub.f32 %v1832, %v2504
          %2506 = vmatmul.mubr.f32.gmra.mrb[0].mxu0 %v2505
          %v2507 = vpop.f32.mrb[0].mxu0
          %v2508 = vadd.f32 %v2305, %v2507
          %v2509 = vpop.f32.mrb[0].mxu0
          %2510 = vmatprep.mubr.f32.mxu0 0.0
          %v2511 = vand.u32 %v1833, 4294901760
          %v2512 = vsub.f32 %v1833, %v2511
          %2513 = vmatmul.mubr.f32.gmra.mrb[0].mxu0 %v2512
          %v2514 = vpop.f32.mrb[0].mxu0
          %v2515 = vadd.f32 %v2311, %v2514
          %v2516 = vpop.f32.mrb[0].mxu0
          %2517 = vmatprep.mubr.f32.mxu0 0.0
          %v2518 = vand.u32 %v1834, 4294901760
          %v2519 = vsub.f32 %v1834, %v2518
          %2520 = vmatmul.mubr.f32.gmra.mrb[0].mxu0 %v2519
          %v2521 = vpop.f32.mrb[0].mxu0
          %v2522 = vadd.f32 %v2317, %v2521
          %v2523 = vpop.f32.mrb[0].mxu0
          %2524 = vmatprep.mubr.f32.mxu0 0.0
          %v2525 = vand.u32 %v1835, 4294901760
          %v2526 = vsub.f32 %v1835, %v2525
          %2527 = vmatmul.mubr.f32.gmra.mrb[0].mxu0 %v2526
          %v2528 = vpop.f32.mrb[0].mxu0
          %v2529 = vadd.f32 %v2323, %v2528
          %v2530 = vpop.f32.mrb[0].mxu0
          %2531 = vmatprep.mubr.f32.mxu0 0.0
          %v2532 = vand.u32 %v1836, 4294901760
          %v2533 = vsub.f32 %v1836, %v2532
          %2534 = vmatmul.mubr.f32.gmra.mrb[0].mxu0 %v2533
          %v2535 = vpop.f32.mrb[0].mxu0
          %v2536 = vadd.f32 %v2329, %v2535
          %v2537 = vpop.f32.mrb[0].mxu0
          %2538 = vmatprep.mubr.f32.mxu0 0.0
          %v2539 = vand.u32 %v1837, 4294901760
          %v2540 = vsub.f32 %v1837, %v2539
          %2541 = vmatmul.mubr.f32.gmra.mrb[0].mxu0 %v2540
          %v2542 = vpop.f32.mrb[0].mxu0
          %v2543 = vadd.f32 %v2335, %v2542
          %v2544 = vpop.f32.mrb[0].mxu0
          %2545 = vmatprep.mubr.f32.mxu0 0.0
          %v2546 = vand.u32 %v1838, 4294901760
          %v2547 = vsub.f32 %v1838, %v2546
          %2548 = vmatmul.mubr.f32.gmra.mrb[0].mxu0 %v2547
          %v2549 = vpop.f32.mrb[0].mxu0
          %v2550 = vadd.f32 %v2341, %v2549
          %v2551 = vpop.f32.mrb[0].mxu0
          %2552 = vdwg.mxu0
          %2553 = vmatprep.subr.mxu0 0.0
          %v2554 = vand.u32 %v1839, 4294901760
          %2555 = vmatpush1.msra.mxu0 %v2554
          %2556 = vmatprep.subr.mxu0 0.0
          %v2557 = vand.u32 %v1840, 4294901760
          %2558 = vmatpush1.msra.mxu0 %v2557
          %2559 = vmatprep.subr.mxu0 0.0
          %v2560 = vand.u32 %v1841, 4294901760
          %2561 = vmatpush1.msra.mxu0 %v2560
          %2562 = vmatprep.subr.mxu0 0.0
          %v2563 = vand.u32 %v1842, 4294901760
          %2564 = vmatpush1.msra.mxu0 %v2563
          %2565 = vmatprep.subr.mxu0 0.0
          %v2566 = vand.u32 %v1843, 4294901760
          %2567 = vmatpush1.msra.mxu0 %v2566
          %2568 = vmatprep.subr.mxu0 0.0
          %v2569 = vand.u32 %v1844, 4294901760
          %2570 = vmatpush1.msra.mxu0 %v2569
          %2571 = vmatprep.subr.mxu0 0.0
          %v2572 = vand.u32 %v1845, 4294901760
          %2573 = vmatpush1.msra.mxu0 %v2572
          %2574 = vmatprep.subr.mxu0 0.0
          %v2575 = vand.u32 %v1846, 4294901760
          %2576 = vmatpush1.msra.mxu0 %v2575
          %2577 = vmatprep.subr.mxu0 0.0
          %v2578 = vand.u32 %v1847, 4294901760
          %2579 = vmatpush1.msra.mxu0 %v2578
          %2580 = vmatprep.subr.mxu0 0.0
          %v2581 = vand.u32 %v1848, 4294901760
          %2582 = vmatpush1.msra.mxu0 %v2581
          %2583 = vmatprep.subr.mxu0 0.0
          %v2584 = vand.u32 %v1849, 4294901760
          %2585 = vmatpush1.msra.mxu0 %v2584
          %2586 = vmatprep.subr.mxu0 0.0
          %v2587 = vand.u32 %v1850, 4294901760
          %2588 = vmatpush1.msra.mxu0 %v2587
          %2589 = vmatprep.subr.mxu0 0.0
          %v2590 = vand.u32 %v1851, 4294901760
          %2591 = vmatpush1.msra.mxu0 %v2590
          %2592 = vmatprep.subr.mxu0 0.0
          %v2593 = vand.u32 %v1852, 4294901760
          %2594 = vmatpush1.msra.mxu0 %v2593
          %2595 = vmatprep.subr.mxu0 0.0
          %v2596 = vand.u32 %v1853, 4294901760
          %2597 = vmatpush1.msra.mxu0 %v2596
          %2598 = vmatprep.subr.mxu0 0.0
          %v2599 = vand.u32 %v1854, 4294901760
          %2600 = vmatpush1.msra.mxu0 %v2599
          %2601 = vmatprep.subr.mxu0 0.0
          %2602 = vmatpush1.msra.mxu0 0.0
          %2603 = vmatprep.subr.mxu0 0.0
          %2604 = vmatpush1.msra.mxu0 0.0
          %2605 = vmatprep.subr.mxu0 0.0
          %2606 = vmatpush1.msra.mxu0 0.0
          %2607 = vmatprep.subr.mxu0 0.0
          %2608 = vmatpush1.msra.mxu0 0.0
          %2609 = vmatprep.subr.mxu0 0.0
          %2610 = vmatpush1.msra.mxu0 0.0
          %2611 = vmatprep.subr.mxu0 0.0
          %2612 = vmatpush1.msra.mxu0 0.0
          %2613 = vmatprep.subr.mxu0 0.0
          %2614 = vmatpush1.msra.mxu0 0.0
          %2615 = vmatprep.subr.mxu0 0.0
          %2616 = vmatpush1.msra.mxu0 0.0
          %2617 = vmatprep.subr.mxu0 0.0
          %2618 = vmatpush1.msra.mxu0 0.0
          %2619 = vmatprep.subr.mxu0 0.0
          %2620 = vmatpush1.msra.mxu0 0.0
          %2621 = vmatprep.subr.mxu0 0.0
          %2622 = vmatpush1.msra.mxu0 0.0
          %2623 = vmatprep.subr.mxu0 0.0
          %2624 = vmatpush1.msra.mxu0 0.0
          %2625 = vmatprep.subr.mxu0 0.0
          %2626 = vmatpush1.msra.mxu0 0.0
          %2627 = vmatprep.subr.mxu0 0.0
          %2628 = vmatpush1.msra.mxu0 0.0
          %2629 = vmatprep.subr.mxu0 0.0
          %2630 = vmatpush1.msra.mxu0 0.0
          %2631 = vmatprep.subr.mxu0 0.0
          %2632 = vmatpush1.msra.mxu0 0.0
          %2633 = vmatprep.mubr.f32.mxu0 0.0
          %v2634 = vand.u32 %v1823, 4294901760
          %v2635 = vsub.f32 %v1823, %v2634
          %v2636 = vand.u32 %v2635, 4294901760
          %2637 = vmatmul.mubr.f32.gmra.mrb[0].mxu0 %v2636
          %v2638 = vpop.f32.mrb[0].mxu0
          %v2639 = vadd.f32 %v2445, %v2638
          %v2640 = vpop.f32.mrb[0].mxu0
          %2641 = vmatprep.mubr.f32.mxu0 0.0
          %v2642 = vand.u32 %v1824, 4294901760
          %v2643 = vsub.f32 %v1824, %v2642
          %v2644 = vand.u32 %v2643, 4294901760
          %2645 = vmatmul.mubr.f32.gmra.mrb[0].mxu0 %v2644
          %v2646 = vpop.f32.mrb[0].mxu0
          %v2647 = vadd.f32 %v2452, %v2646
          %v2648 = vpop.f32.mrb[0].mxu0
          %2649 = vmatprep.mubr.f32.mxu0 0.0
          %v2650 = vand.u32 %v1825, 4294901760
          %v2651 = vsub.f32 %v1825, %v2650
          %v2652 = vand.u32 %v2651, 4294901760
          %2653 = vmatmul.mubr.f32.gmra.mrb[0].mxu0 %v2652
          %v2654 = vpop.f32.mrb[0].mxu0
          %v2655 = vadd.f32 %v2459, %v2654
          %v2656 = vpop.f32.mrb[0].mxu0
          %2657 = vmatprep.mubr.f32.mxu0 0.0
          %v2658 = vand.u32 %v1826, 4294901760
          %v2659 = vsub.f32 %v1826, %v2658
          %v2660 = vand.u32 %v2659, 4294901760
          %2661 = vmatmul.mubr.f32.gmra.mrb[0].mxu0 %v2660
          %v2662 = vpop.f32.mrb[0].mxu0
          %v2663 = vadd.f32 %v2466, %v2662
          %v2664 = vpop.f32.mrb[0].mxu0
          %2665 = vmatprep.mubr.f32.mxu0 0.0
          %v2666 = vand.u32 %v1827, 4294901760
          %v2667 = vsub.f32 %v1827, %v2666
          %v2668 = vand.u32 %v2667, 4294901760
          %2669 = vmatmul.mubr.f32.gmra.mrb[0].mxu0 %v2668
          %v2670 = vpop.f32.mrb[0].mxu0
          %v2671 = vadd.f32 %v2473, %v2670
          %v2672 = vpop.f32.mrb[0].mxu0
          %2673 = vmatprep.mubr.f32.mxu0 0.0
          %v2674 = vand.u32 %v1828, 4294901760
          %v2675 = vsub.f32 %v1828, %v2674
          %v2676 = vand.u32 %v2675, 4294901760
          %2677 = vmatmul.mubr.f32.gmra.mrb[0].mxu0 %v2676
          %v2678 = vpop.f32.mrb[0].mxu0
          %v2679 = vadd.f32 %v2480, %v2678
          %v2680 = vpop.f32.mrb[0].mxu0
          %2681 = vmatprep.mubr.f32.mxu0 0.0
          %v2682 = vand.u32 %v1829, 4294901760
          %v2683 = vsub.f32 %v1829, %v2682
          %v2684 = vand.u32 %v2683, 4294901760
          %2685 = vmatmul.mubr.f32.gmra.mrb[0].mxu0 %v2684
          %v2686 = vpop.f32.mrb[0].mxu0
          %v2687 = vadd.f32 %v2487, %v2686
          %v2688 = vpop.f32.mrb[0].mxu0
          %2689 = vmatprep.mubr.f32.mxu0 0.0
          %v2690 = vand.u32 %v1830, 4294901760
          %v2691 = vsub.f32 %v1830, %v2690
          %v2692 = vand.u32 %v2691, 4294901760
          %2693 = vmatmul.mubr.f32.gmra.mrb[0].mxu0 %v2692
          %v2694 = vpop.f32.mrb[0].mxu0
          %v2695 = vadd.f32 %v2494, %v2694
          %v2696 = vpop.f32.mrb[0].mxu0
          %2697 = vmatprep.mubr.f32.mxu0 0.0
          %v2698 = vand.u32 %v1831, 4294901760
          %v2699 = vsub.f32 %v1831, %v2698
          %v2700 = vand.u32 %v2699, 4294901760
          %2701 = vmatmul.mubr.f32.gmra.mrb[0].mxu0 %v2700
          %v2702 = vpop.f32.mrb[0].mxu0
          %v2703 = vadd.f32 %v2501, %v2702
          %v2704 = vpop.f32.mrb[0].mxu0
          %2705 = vmatprep.mubr.f32.mxu0 0.0
          %v2706 = vand.u32 %v1832, 4294901760
          %v2707 = vsub.f32 %v1832, %v2706
          %v2708 = vand.u32 %v2707, 4294901760
          %2709 = vmatmul.mubr.f32.gmra.mrb[0].mxu0 %v2708
          %v2710 = vpop.f32.mrb[0].mxu0
          %v2711 = vadd.f32 %v2508, %v2710
          %v2712 = vpop.f32.mrb[0].mxu0
          %2713 = vmatprep.mubr.f32.mxu0 0.0
          %v2714 = vand.u32 %v1833, 4294901760
          %v2715 = vsub.f32 %v1833, %v2714
          %v2716 = vand.u32 %v2715, 4294901760
          %2717 = vmatmul.mubr.f32.gmra.mrb[0].mxu0 %v2716
          %v2718 = vpop.f32.mrb[0].mxu0
          %v2719 = vadd.f32 %v2515, %v2718
          %v2720 = vpop.f32.mrb[0].mxu0
          %2721 = vmatprep.mubr.f32.mxu0 0.0
          %v2722 = vand.u32 %v1834, 4294901760
          %v2723 = vsub.f32 %v1834, %v2722
          %v2724 = vand.u32 %v2723, 4294901760
          %2725 = vmatmul.mubr.f32.gmra.mrb[0].mxu0 %v2724
          %v2726 = vpop.f32.mrb[0].mxu0
          %v2727 = vadd.f32 %v2522, %v2726
          %v2728 = vpop.f32.mrb[0].mxu0
          %2729 = vmatprep.mubr.f32.mxu0 0.0
          %v2730 = vand.u32 %v1835, 4294901760
          %v2731 = vsub.f32 %v1835, %v2730
          %v2732 = vand.u32 %v2731, 4294901760
          %2733 = vmatmul.mubr.f32.gmra.mrb[0].mxu0 %v2732
          %v2734 = vpop.f32.mrb[0].mxu0
          %v2735 = vadd.f32 %v2529, %v2734
          %v2736 = vpop.f32.mrb[0].mxu0
          %2737 = vmatprep.mubr.f32.mxu0 0.0
          %v2738 = vand.u32 %v1836, 4294901760
          %v2739 = vsub.f32 %v1836, %v2738
          %v2740 = vand.u32 %v2739, 4294901760
          %2741 = vmatmul.mubr.f32.gmra.mrb[0].mxu0 %v2740
          %v2742 = vpop.f32.mrb[0].mxu0
          %v2743 = vadd.f32 %v2536, %v2742
          %v2744 = vpop.f32.mrb[0].mxu0
          %2745 = vmatprep.mubr.f32.mxu0 0.0
          %v2746 = vand.u32 %v1837, 4294901760
          %v2747 = vsub.f32 %v1837, %v2746
          %v2748 = vand.u32 %v2747, 4294901760
          %2749 = vmatmul.mubr.f32.gmra.mrb[0].mxu0 %v2748
          %v2750 = vpop.f32.mrb[0].mxu0
          %v2751 = vadd.f32 %v2543, %v2750
          %v2752 = vpop.f32.mrb[0].mxu0
          %2753 = vmatprep.mubr.f32.mxu0 0.0
          %v2754 = vand.u32 %v1838, 4294901760
          %v2755 = vsub.f32 %v1838, %v2754
          %v2756 = vand.u32 %v2755, 4294901760
          %2757 = vmatmul.mubr.f32.gmra.mrb[0].mxu0 %v2756
          %v2758 = vpop.f32.mrb[0].mxu0
          %v2759 = vadd.f32 %v2550, %v2758
          %v2760 = vpop.f32.mrb[0].mxu0
          %2761 = vdwg.mxu0
          %2762 = vmatprep.subr.mxu0 0.0
          %v2763 = vand.u32 %v1839, 4294901760
          %v2764 = vsub.f32 %v1839, %v2763
          %v2765 = vand.u32 %v2764, 4294901760
          %2766 = vmatpush1.msra.mxu0 %v2765
          %2767 = vmatprep.subr.mxu0 0.0
          %v2768 = vand.u32 %v1840, 4294901760
          %v2769 = vsub.f32 %v1840, %v2768
          %v2770 = vand.u32 %v2769, 4294901760
          %2771 = vmatpush1.msra.mxu0 %v2770
          %2772 = vmatprep.subr.mxu0 0.0
          %v2773 = vand.u32 %v1841, 4294901760
          %v2774 = vsub.f32 %v1841, %v2773
          %v2775 = vand.u32 %v2774, 4294901760
          %2776 = vmatpush1.msra.mxu0 %v2775
          %2777 = vmatprep.subr.mxu0 0.0
          %v2778 = vand.u32 %v1842, 4294901760
          %v2779 = vsub.f32 %v1842, %v2778
          %v2780 = vand.u32 %v2779, 4294901760
          %2781 = vmatpush1.msra.mxu0 %v2780
          %2782 = vmatprep.subr.mxu0 0.0
          %v2783 = vand.u32 %v1843, 4294901760
          %v2784 = vsub.f32 %v1843, %v2783
          %v2785 = vand.u32 %v2784, 4294901760
          %2786 = vmatpush1.msra.mxu0 %v2785
          %2787 = vmatprep.subr.mxu0 0.0
          %v2788 = vand.u32 %v1844, 4294901760
          %v2789 = vsub.f32 %v1844, %v2788
          %v2790 = vand.u32 %v2789, 4294901760
          %2791 = vmatpush1.msra.mxu0 %v2790
          %2792 = vmatprep.subr.mxu0 0.0
          %v2793 = vand.u32 %v1845, 4294901760
          %v2794 = vsub.f32 %v1845, %v2793
          %v2795 = vand.u32 %v2794, 4294901760
          %2796 = vmatpush1.msra.mxu0 %v2795
          %2797 = vmatprep.subr.mxu0 0.0
          %v2798 = vand.u32 %v1846, 4294901760
          %v2799 = vsub.f32 %v1846, %v2798
          %v2800 = vand.u32 %v2799, 4294901760
          %2801 = vmatpush1.msra.mxu0 %v2800
          %2802 = vmatprep.subr.mxu0 0.0
          %v2803 = vand.u32 %v1847, 4294901760
          %v2804 = vsub.f32 %v1847, %v2803
          %v2805 = vand.u32 %v2804, 4294901760
          %2806 = vmatpush1.msra.mxu0 %v2805
          %2807 = vmatprep.subr.mxu0 0.0
          %v2808 = vand.u32 %v1848, 4294901760
          %v2809 = vsub.f32 %v1848, %v2808
          %v2810 = vand.u32 %v2809, 4294901760
          %2811 = vmatpush1.msra.mxu0 %v2810
          %2812 = vmatprep.subr.mxu0 0.0
          %v2813 = vand.u32 %v1849, 4294901760
          %v2814 = vsub.f32 %v1849, %v2813
          %v2815 = vand.u32 %v2814, 4294901760
          %2816 = vmatpush1.msra.mxu0 %v2815
          %2817 = vmatprep.subr.mxu0 0.0
          %v2818 = vand.u32 %v1850, 4294901760
          %v2819 = vsub.f32 %v1850, %v2818
          %v2820 = vand.u32 %v2819, 4294901760
          %2821 = vmatpush1.msra.mxu0 %v2820
          %2822 = vmatprep.subr.mxu0 0.0
          %v2823 = vand.u32 %v1851, 4294901760
          %v2824 = vsub.f32 %v1851, %v2823
          %v2825 = vand.u32 %v2824, 4294901760
          %2826 = vmatpush1.msra.mxu0 %v2825
          %2827 = vmatprep.subr.mxu0 0.0
          %v2828 = vand.u32 %v1852, 4294901760
          %v2829 = vsub.f32 %v1852, %v2828
          %v2830 = vand.u32 %v2829, 4294901760
          %2831 = vmatpush1.msra.mxu0 %v2830
          %2832 = vmatprep.subr.mxu0 0.0
          %v2833 = vand.u32 %v1853, 4294901760
          %v2834 = vsub.f32 %v1853, %v2833
          %v2835 = vand.u32 %v2834, 4294901760
          %2836 = vmatpush1.msra.mxu0 %v2835
          %2837 = vmatprep.subr.mxu0 0.0
          %v2838 = vand.u32 %v1854, 4294901760
          %v2839 = vsub.f32 %v1854, %v2838
          %v2840 = vand.u32 %v2839, 4294901760
          %2841 = vmatpush1.msra.mxu0 %v2840
          %2842 = vmatprep.subr.mxu0 0.0
          %2843 = vmatpush1.msra.mxu0 0.0
          %2844 = vmatprep.subr.mxu0 0.0
          %2845 = vmatpush1.msra.mxu0 0.0
          %2846 = vmatprep.subr.mxu0 0.0
          %2847 = vmatpush1.msra.mxu0 0.0
          %2848 = vmatprep.subr.mxu0 0.0
          %2849 = vmatpush1.msra.mxu0 0.0
          %2850 = vmatprep.subr.mxu0 0.0
          %2851 = vmatpush1.msra.mxu0 0.0
          %2852 = vmatprep.subr.mxu0 0.0
          %2853 = vmatpush1.msra.mxu0 0.0
          %2854 = vmatprep.subr.mxu0 0.0
          %2855 = vmatpush1.msra.mxu0 0.0
          %2856 = vmatprep.subr.mxu0 0.0
          %2857 = vmatpush1.msra.mxu0 0.0
          %2858 = vmatprep.subr.mxu0 0.0
          %2859 = vmatpush1.msra.mxu0 0.0
          %2860 = vmatprep.subr.mxu0 0.0
          %2861 = vmatpush1.msra.mxu0 0.0
          %2862 = vmatprep.subr.mxu0 0.0
          %2863 = vmatpush1.msra.mxu0 0.0
          %2864 = vmatprep.subr.mxu0 0.0
          %2865 = vmatpush1.msra.mxu0 0.0
          %2866 = vmatprep.subr.mxu0 0.0
          %2867 = vmatpush1.msra.mxu0 0.0
          %2868 = vmatprep.subr.mxu0 0.0
          %2869 = vmatpush1.msra.mxu0 0.0
          %2870 = vmatprep.subr.mxu0 0.0
          %2871 = vmatpush1.msra.mxu0 0.0
          %2872 = vmatprep.subr.mxu0 0.0
          %2873 = vmatpush1.msra.mxu0 0.0
          %2874 = vmatprep.mubr.f32.mxu0 0.0
          %v2875 = vand.u32 %v1823, 4294901760
          %2876 = vmatmul.mubr.f32.gmra.mrb[0].mxu0 %v2875
          %v2877 = vpop.f32.mrb[0].mxu0
          %v2878 = vadd.f32 %v2639, %v2877
          %v2879 = vpop.f32.mrb[0].mxu0
          %2880 = vmatprep.mubr.f32.mxu0 0.0
          %v2881 = vand.u32 %v1824, 4294901760
          %2882 = vmatmul.mubr.f32.gmra.mrb[0].mxu0 %v2881
          %v2883 = vpop.f32.mrb[0].mxu0
          %v2884 = vadd.f32 %v2647, %v2883
          %v2885 = vpop.f32.mrb[0].mxu0
          %2886 = vmatprep.mubr.f32.mxu0 0.0
          %v2887 = vand.u32 %v1825, 4294901760
          %2888 = vmatmul.mubr.f32.gmra.mrb[0].mxu0 %v2887
          %v2889 = vpop.f32.mrb[0].mxu0
          %v2890 = vadd.f32 %v2655, %v2889
          %v2891 = vpop.f32.mrb[0].mxu0
          %2892 = vmatprep.mubr.f32.mxu0 0.0
          %v2893 = vand.u32 %v1826, 4294901760
          %2894 = vmatmul.mubr.f32.gmra.mrb[0].mxu0 %v2893
          %v2895 = vpop.f32.mrb[0].mxu0
          %v2896 = vadd.f32 %v2663, %v2895
          %v2897 = vpop.f32.mrb[0].mxu0
          %2898 = vmatprep.mubr.f32.mxu0 0.0
          %v2899 = vand.u32 %v1827, 4294901760
          %2900 = vmatmul.mubr.f32.gmra.mrb[0].mxu0 %v2899
          %v2901 = vpop.f32.mrb[0].mxu0
          %v2902 = vadd.f32 %v2671, %v2901
          %v2903 = vpop.f32.mrb[0].mxu0
          %2904 = vmatprep.mubr.f32.mxu0 0.0
          %v2905 = vand.u32 %v1828, 4294901760
          %2906 = vmatmul.mubr.f32.gmra.mrb[0].mxu0 %v2905
          %v2907 = vpop.f32.mrb[0].mxu0
          %v2908 = vadd.f32 %v2679, %v2907
          %v2909 = vpop.f32.mrb[0].mxu0
          %2910 = vmatprep.mubr.f32.mxu0 0.0
          %v2911 = vand.u32 %v1829, 4294901760
          %2912 = vmatmul.mubr.f32.gmra.mrb[0].mxu0 %v2911
          %v2913 = vpop.f32.mrb[0].mxu0
          %v2914 = vadd.f32 %v2687, %v2913
          %v2915 = vpop.f32.mrb[0].mxu0
          %2916 = vmatprep.mubr.f32.mxu0 0.0
          %v2917 = vand.u32 %v1830, 4294901760
          %2918 = vmatmul.mubr.f32.gmra.mrb[0].mxu0 %v2917
          %v2919 = vpop.f32.mrb[0].mxu0
          %v2920 = vadd.f32 %v2695, %v2919
          %v2921 = vpop.f32.mrb[0].mxu0
          %2922 = vmatprep.mubr.f32.mxu0 0.0
          %v2923 = vand.u32 %v1831, 4294901760
          %2924 = vmatmul.mubr.f32.gmra.mrb[0].mxu0 %v2923
          %v2925 = vpop.f32.mrb[0].mxu0
          %v2926 = vadd.f32 %v2703, %v2925
          %v2927 = vpop.f32.mrb[0].mxu0
          %2928 = vmatprep.mubr.f32.mxu0 0.0
          %v2929 = vand.u32 %v1832, 4294901760
          %2930 = vmatmul.mubr.f32.gmra.mrb[0].mxu0 %v2929
          %v2931 = vpop.f32.mrb[0].mxu0
          %v2932 = vadd.f32 %v2711, %v2931
          %v2933 = vpop.f32.mrb[0].mxu0
          %2934 = vmatprep.mubr.f32.mxu0 0.0
          %v2935 = vand.u32 %v1833, 4294901760
          %2936 = vmatmul.mubr.f32.gmra.mrb[0].mxu0 %v2935
          %v2937 = vpop.f32.mrb[0].mxu0
          %v2938 = vadd.f32 %v2719, %v2937
          %v2939 = vpop.f32.mrb[0].mxu0
          %2940 = vmatprep.mubr.f32.mxu0 0.0
          %v2941 = vand.u32 %v1834, 4294901760
          %2942 = vmatmul.mubr.f32.gmra.mrb[0].mxu0 %v2941
          %v2943 = vpop.f32.mrb[0].mxu0
          %v2944 = vadd.f32 %v2727, %v2943
          %v2945 = vpop.f32.mrb[0].mxu0
          %2946 = vmatprep.mubr.f32.mxu0 0.0
          %v2947 = vand.u32 %v1835, 4294901760
          %2948 = vmatmul.mubr.f32.gmra.mrb[0].mxu0 %v2947
          %v2949 = vpop.f32.mrb[0].mxu0
          %v2950 = vadd.f32 %v2735, %v2949
          %v2951 = vpop.f32.mrb[0].mxu0
          %2952 = vmatprep.mubr.f32.mxu0 0.0
          %v2953 = vand.u32 %v1836, 4294901760
          %2954 = vmatmul.mubr.f32.gmra.mrb[0].mxu0 %v2953
          %v2955 = vpop.f32.mrb[0].mxu0
          %v2956 = vadd.f32 %v2743, %v2955
          %v2957 = vpop.f32.mrb[0].mxu0
          %2958 = vmatprep.mubr.f32.mxu0 0.0
          %v2959 = vand.u32 %v1837, 4294901760
          %2960 = vmatmul.mubr.f32.gmra.mrb[0].mxu0 %v2959
          %v2961 = vpop.f32.mrb[0].mxu0
          %v2962 = vadd.f32 %v2751, %v2961
          %v2963 = vpop.f32.mrb[0].mxu0
          %2964 = vmatprep.mubr.f32.mxu0 0.0
          %v2965 = vand.u32 %v1838, 4294901760
          %2966 = vmatmul.mubr.f32.gmra.mrb[0].mxu0 %v2965
          %v2967 = vpop.f32.mrb[0].mxu0
          %v2968 = vadd.f32 %v2759, %v2967
          %v2969 = vpop.f32.mrb[0].mxu0
          %2970 = vdwg.mxu0
          %2971 = vmatprep.subr.mxu0 0.0
          %v2972 = vand.u32 %v1839, 4294901760
          %2973 = vmatpush1.msra.mxu0 %v2972
          %2974 = vmatprep.subr.mxu0 0.0
          %v2975 = vand.u32 %v1840, 4294901760
          %2976 = vmatpush1.msra.mxu0 %v2975
          %2977 = vmatprep.subr.mxu0 0.0
          %v2978 = vand.u32 %v1841, 4294901760
          %2979 = vmatpush1.msra.mxu0 %v2978
          %2980 = vmatprep.subr.mxu0 0.0
          %v2981 = vand.u32 %v1842, 4294901760
          %2982 = vmatpush1.msra.mxu0 %v2981
          %2983 = vmatprep.subr.mxu0 0.0
          %v2984 = vand.u32 %v1843, 4294901760
          %2985 = vmatpush1.msra.mxu0 %v2984
          %2986 = vmatprep.subr.mxu0 0.0
          %v2987 = vand.u32 %v1844, 4294901760
          %2988 = vmatpush1.msra.mxu0 %v2987
          %2989 = vmatprep.subr.mxu0 0.0
          %v2990 = vand.u32 %v1845, 4294901760
          %2991 = vmatpush1.msra.mxu0 %v2990
          %2992 = vmatprep.subr.mxu0 0.0
          %v2993 = vand.u32 %v1846, 4294901760
          %2994 = vmatpush1.msra.mxu0 %v2993
          %2995 = vmatprep.subr.mxu0 0.0
          %v2996 = vand.u32 %v1847, 4294901760
          %2997 = vmatpush1.msra.mxu0 %v2996
          %2998 = vmatprep.subr.mxu0 0.0
          %v2999 = vand.u32 %v1848, 4294901760
          %3000 = vmatpush1.msra.mxu0 %v2999
          %3001 = vmatprep.subr.mxu0 0.0
          %v3002 = vand.u32 %v1849, 4294901760
          %3003 = vmatpush1.msra.mxu0 %v3002
          %3004 = vmatprep.subr.mxu0 0.0
          %v3005 = vand.u32 %v1850, 4294901760
          %3006 = vmatpush1.msra.mxu0 %v3005
          %3007 = vmatprep.subr.mxu0 0.0
          %v3008 = vand.u32 %v1851, 4294901760
          %3009 = vmatpush1.msra.mxu0 %v3008
          %3010 = vmatprep.subr.mxu0 0.0
          %v3011 = vand.u32 %v1852, 4294901760
          %3012 = vmatpush1.msra.mxu0 %v3011
          %3013 = vmatprep.subr.mxu0 0.0
          %v3014 = vand.u32 %v1853, 4294901760
          %3015 = vmatpush1.msra.mxu0 %v3014
          %3016 = vmatprep.subr.mxu0 0.0
          %v3017 = vand.u32 %v1854, 4294901760
          %3018 = vmatpush1.msra.mxu0 %v3017
          %3019 = vmatprep.subr.mxu0 0.0
          %3020 = vmatpush1.msra.mxu0 0.0
          %3021 = vmatprep.subr.mxu0 0.0
          %3022 = vmatpush1.msra.mxu0 0.0
          %3023 = vmatprep.subr.mxu0 0.0
          %3024 = vmatpush1.msra.mxu0 0.0
          %3025 = vmatprep.subr.mxu0 0.0
          %3026 = vmatpush1.msra.mxu0 0.0
          %3027 = vmatprep.subr.mxu0 0.0
          %3028 = vmatpush1.msra.mxu0 0.0
          %3029 = vmatprep.subr.mxu0 0.0
          %3030 = vmatpush1.msra.mxu0 0.0
          %3031 = vmatprep.subr.mxu0 0.0
          %3032 = vmatpush1.msra.mxu0 0.0
          %3033 = vmatprep.subr.mxu0 0.0
          %3034 = vmatpush1.msra.mxu0 0.0
          %3035 = vmatprep.subr.mxu0 0.0
          %3036 = vmatpush1.msra.mxu0 0.0
          %3037 = vmatprep.subr.mxu0 0.0
          %3038 = vmatpush1.msra.mxu0 0.0
          %3039 = vmatprep.subr.mxu0 0.0
          %3040 = vmatpush1.msra.mxu0 0.0
          %3041 = vmatprep.subr.mxu0 0.0
          %3042 = vmatpush1.msra.mxu0 0.0
          %3043 = vmatprep.subr.mxu0 0.0
          %3044 = vmatpush1.msra.mxu0 0.0
          %3045 = vmatprep.subr.mxu0 0.0
          %3046 = vmatpush1.msra.mxu0 0.0
          %3047 = vmatprep.subr.mxu0 0.0
          %3048 = vmatpush1.msra.mxu0 0.0
          %3049 = vmatprep.subr.mxu0 0.0
          %3050 = vmatpush1.msra.mxu0 0.0
          %3051 = vmatprep.mubr.f32.mxu0 0.0
          %v3052 = vand.u32 %v1823, 4294901760
          %3053 = vmatmul.mubr.f32.gmra.mrb[0].mxu0 %v3052
          %v3054 = vpop.f32.mrb[0].mxu0
          %v3055 = vadd.f32 %v2878, %v3054
          %v3056 = vpop.f32.mrb[0].mxu0
          %3057 = vmatprep.mubr.f32.mxu0 0.0
          %v3058 = vand.u32 %v1824, 4294901760
          %3059 = vmatmul.mubr.f32.gmra.mrb[0].mxu0 %v3058
          %v3060 = vpop.f32.mrb[0].mxu0
          %v3061 = vadd.f32 %v2884, %v3060
          %v3062 = vpop.f32.mrb[0].mxu0
          %3063 = vmatprep.mubr.f32.mxu0 0.0
          %v3064 = vand.u32 %v1825, 4294901760
          %3065 = vmatmul.mubr.f32.gmra.mrb[0].mxu0 %v3064
          %v3066 = vpop.f32.mrb[0].mxu0
          %v3067 = vadd.f32 %v2890, %v3066
          %v3068 = vpop.f32.mrb[0].mxu0
          %3069 = vmatprep.mubr.f32.mxu0 0.0
          %v3070 = vand.u32 %v1826, 4294901760
          %3071 = vmatmul.mubr.f32.gmra.mrb[0].mxu0 %v3070
          %v3072 = vpop.f32.mrb[0].mxu0
          %v3073 = vadd.f32 %v2896, %v3072
          %v3074 = vpop.f32.mrb[0].mxu0
          %3075 = vmatprep.mubr.f32.mxu0 0.0
          %v3076 = vand.u32 %v1827, 4294901760
          %3077 = vmatmul.mubr.f32.gmra.mrb[0].mxu0 %v3076
          %v3078 = vpop.f32.mrb[0].mxu0
          %v3079 = vadd.f32 %v2902, %v3078
          %v3080 = vpop.f32.mrb[0].mxu0
          %3081 = vmatprep.mubr.f32.mxu0 0.0
          %v3082 = vand.u32 %v1828, 4294901760
          %3083 = vmatmul.mubr.f32.gmra.mrb[0].mxu0 %v3082
          %v3084 = vpop.f32.mrb[0].mxu0
          %v3085 = vadd.f32 %v2908, %v3084
          %v3086 = vpop.f32.mrb[0].mxu0
          %3087 = vmatprep.mubr.f32.mxu0 0.0
          %v3088 = vand.u32 %v1829, 4294901760
          %3089 = vmatmul.mubr.f32.gmra.mrb[0].mxu0 %v3088
          %v3090 = vpop.f32.mrb[0].mxu0
          %v3091 = vadd.f32 %v2914, %v3090
          %v3092 = vpop.f32.mrb[0].mxu0
          %3093 = vmatprep.mubr.f32.mxu0 0.0
          %v3094 = vand.u32 %v1830, 4294901760
          %3095 = vmatmul.mubr.f32.gmra.mrb[0].mxu0 %v3094
          %v3096 = vpop.f32.mrb[0].mxu0
          %v3097 = vadd.f32 %v2920, %v3096
          %v3098 = vpop.f32.mrb[0].mxu0
          %3099 = vmatprep.mubr.f32.mxu0 0.0
          %v3100 = vand.u32 %v1831, 4294901760
          %3101 = vmatmul.mubr.f32.gmra.mrb[0].mxu0 %v3100
          %v3102 = vpop.f32.mrb[0].mxu0
          %v3103 = vadd.f32 %v2926, %v3102
          %v3104 = vpop.f32.mrb[0].mxu0
          %3105 = vmatprep.mubr.f32.mxu0 0.0
          %v3106 = vand.u32 %v1832, 4294901760
          %3107 = vmatmul.mubr.f32.gmra.mrb[0].mxu0 %v3106
          %v3108 = vpop.f32.mrb[0].mxu0
          %v3109 = vadd.f32 %v2932, %v3108
          %v3110 = vpop.f32.mrb[0].mxu0
          %3111 = vmatprep.mubr.f32.mxu0 0.0
          %v3112 = vand.u32 %v1833, 4294901760
          %3113 = vmatmul.mubr.f32.gmra.mrb[0].mxu0 %v3112
          %v3114 = vpop.f32.mrb[0].mxu0
          %v3115 = vadd.f32 %v2938, %v3114
          %v3116 = vpop.f32.mrb[0].mxu0
          %3117 = vmatprep.mubr.f32.mxu0 0.0
          %v3118 = vand.u32 %v1834, 4294901760
          %3119 = vmatmul.mubr.f32.gmra.mrb[0].mxu0 %v3118
          %v3120 = vpop.f32.mrb[0].mxu0
          %v3121 = vadd.f32 %v2944, %v3120
          %v3122 = vpop.f32.mrb[0].mxu0
          %3123 = vmatprep.mubr.f32.mxu0 0.0
          %v3124 = vand.u32 %v1835, 4294901760
          %3125 = vmatmul.mubr.f32.gmra.mrb[0].mxu0 %v3124
          %v3126 = vpop.f32.mrb[0].mxu0
          %v3127 = vadd.f32 %v2950, %v3126
          %v3128 = vpop.f32.mrb[0].mxu0
          %3129 = vmatprep.mubr.f32.mxu0 0.0
          %v3130 = vand.u32 %v1836, 4294901760
          %3131 = vmatmul.mubr.f32.gmra.mrb[0].mxu0 %v3130
          %v3132 = vpop.f32.mrb[0].mxu0
          %v3133 = vadd.f32 %v2956, %v3132
          %v3134 = vpop.f32.mrb[0].mxu0
          %3135 = vmatprep.mubr.f32.mxu0 0.0
          %v3136 = vand.u32 %v1837, 4294901760
          %3137 = vmatmul.mubr.f32.gmra.mrb[0].mxu0 %v3136
          %v3138 = vpop.f32.mrb[0].mxu0
          %v3139 = vadd.f32 %v2962, %v3138
          %v3140 = vpop.f32.mrb[0].mxu0
          %3141 = vmatprep.mubr.f32.mxu0 0.0
          %v3142 = vand.u32 %v1838, 4294901760
          %3143 = vmatmul.mubr.f32.gmra.mrb[0].mxu0 %v3142
          %v3144 = vpop.f32.mrb[0].mxu0
          %v3145 = vadd.f32 %v2968, %v3144
          %v3146 = vpop.f32.mrb[0].mxu0
          %3147 = vdwg.mxu0
          %s3148 = scalar_lea.vmem [#allocation2], %s491
          %3149 = vst [vmem:[%s3148] sm:$0xff] %v3055
          %3150 = vst [vmem:[%s3148 + $0x8] sm:$0xff] %v3061
          %3151 = vst [vmem:[%s3148 + $0x10] sm:$0xff] %v3067
          %3152 = vst [vmem:[%s3148 + $0x18] sm:$0xff] %v3073
          %3153 = vst [vmem:[%s3148 + $0x20] sm:$0xff] %v3079
          %3154 = vst [vmem:[%s3148 + $0x28] sm:$0xff] %v3085
          %3155 = vst [vmem:[%s3148 + $0x30] sm:$0xff] %v3091
          %3156 = vst [vmem:[%s3148 + $0x38] sm:$0xff] %v3097
          %3157 = vst [vmem:[%s3148 + $0x40] sm:$0xff] %v3103
          %3158 = vst [vmem:[%s3148 + $0x48] sm:$0xff] %v3109
          %3159 = vst [vmem:[%s3148 + $0x50] sm:$0xff] %v3115
          %3160 = vst [vmem:[%s3148 + $0x58] sm:$0xff] %v3121
          %3161 = vst [vmem:[%s3148 + $0x60] sm:$0xff] %v3127
          %3162 = vst [vmem:[%s3148 + $0x68] sm:$0xff] %v3133
          %3163 = vst [vmem:[%s3148 + $0x70] sm:$0xff] %v3139
          %3164 = vst [vmem:[%s3148 + $0x78] sm:$0xff] %v3145
          %v3166 = vlaneseq
          %v3167 = vshrl.u32 %v3166, 7
          %v3168 = vsub.s32 0, %v3167
          %v3169 = vrot.slane %v492, %v3168
          %v3171 = vmul.f32 %v3055, %v3169
          %v3172 = vmul.f32 %v3061, %v3169
          %v3173 = vmul.f32 %v3067, %v3169
          %v3174 = vmul.f32 %v3073, %v3169
          %v3175 = vmul.f32 %v3079, %v3169
          %v3176 = vmul.f32 %v3085, %v3169
          %v3177 = vmul.f32 %v3091, %v3169
          %v3178 = vmul.f32 %v3097, %v3169
          %v3179 = vmul.f32 %v3103, %v3169
          %v3180 = vmul.f32 %v3109, %v3169
          %v3181 = vmul.f32 %v3115, %v3169
          %v3182 = vmul.f32 %v3121, %v3169
          %v3183 = vmul.f32 %v3127, %v3169
          %v3184 = vmul.f32 %v3133, %v3169
          %v3185 = vmul.f32 %v3139, %v3169
          %v3186 = vmul.f32 %v3145, %v3169
          %3187 = vadd.xlane.f32.xlu0 %v3171
          %v3188 = vpop.xlane.xlu0 %3187
          %3189 = vadd.xlane.f32.xlu0 %v3172
          %v3190 = vpop.xlane.xlu0 %3189
          %3191 = vadd.xlane.f32.xlu0 %v3173
          %v3192 = vpop.xlane.xlu0 %3191
          %3193 = vadd.xlane.f32.xlu0 %v3174
          %v3194 = vpop.xlane.xlu0 %3193
          %3195 = vadd.xlane.f32.xlu0 %v3175
          %v3196 = vpop.xlane.xlu0 %3195
          %3197 = vadd.xlane.f32.xlu0 %v3176
          %v3198 = vpop.xlane.xlu0 %3197
          %3199 = vadd.xlane.f32.xlu0 %v3177
          %v3200 = vpop.xlane.xlu0 %3199
          %3201 = vadd.xlane.f32.xlu0 %v3178
          %v3202 = vpop.xlane.xlu0 %3201
          %3203 = vadd.xlane.f32.xlu0 %v3179
          %v3204 = vpop.xlane.xlu0 %3203
          %3205 = vadd.xlane.f32.xlu0 %v3180
          %v3206 = vpop.xlane.xlu0 %3205
          %3207 = vadd.xlane.f32.xlu0 %v3181
          %v3208 = vpop.xlane.xlu0 %3207
          %3209 = vadd.xlane.f32.xlu0 %v3182
          %v3210 = vpop.xlane.xlu0 %3209
          %3211 = vadd.xlane.f32.xlu0 %v3183
          %v3212 = vpop.xlane.xlu0 %3211
          %3213 = vadd.xlane.f32.xlu0 %v3184
          %v3214 = vpop.xlane.xlu0 %3213
          %3215 = vadd.xlane.f32.xlu0 %v3185
          %v3216 = vpop.xlane.xlu0 %3215
          %3217 = vadd.xlane.f32.xlu0 %v3186
          %v3218 = vpop.xlane.xlu0 %3217
          %v3219 = vstv %s493
          %v3220 = vadd.f32 %v3188, %v3219
          %v3221 = vadd.f32 %v3190, %v3219
          %v3222 = vadd.f32 %v3192, %v3219
          %v3223 = vadd.f32 %v3194, %v3219
          %v3224 = vadd.f32 %v3196, %v3219
          %v3225 = vadd.f32 %v3198, %v3219
          %v3226 = vadd.f32 %v3200, %v3219
          %v3227 = vadd.f32 %v3202, %v3219
          %v3228 = vadd.f32 %v3204, %v3219
          %v3229 = vadd.f32 %v3206, %v3219
          %v3230 = vadd.f32 %v3208, %v3219
          %v3231 = vadd.f32 %v3210, %v3219
          %v3232 = vadd.f32 %v3212, %v3219
          %v3233 = vadd.f32 %v3214, %v3219
          %v3234 = vadd.f32 %v3216, %v3219
          %v3235 = vadd.f32 %v3218, %v3219
          %v3236 = vxor.u32 %v3220, 2147483648
          %v3237 = vxor.u32 %v3221, 2147483648
          %v3238 = vxor.u32 %v3222, 2147483648
          %v3239 = vxor.u32 %v3223, 2147483648
          %v3240 = vxor.u32 %v3224, 2147483648
          %v3241 = vxor.u32 %v3225, 2147483648
          %v3242 = vxor.u32 %v3226, 2147483648
          %v3243 = vxor.u32 %v3227, 2147483648
          %v3244 = vxor.u32 %v3228, 2147483648
          %v3245 = vxor.u32 %v3229, 2147483648
          %v3246 = vxor.u32 %v3230, 2147483648
          %v3247 = vxor.u32 %v3231, 2147483648
          %v3248 = vxor.u32 %v3232, 2147483648
          %v3249 = vxor.u32 %v3233, 2147483648
          %v3250 = vxor.u32 %v3234, 2147483648
          %v3251 = vxor.u32 %v3235, 2147483648
          %v3252 = vmul.f32 %v3236, 1.442695
          %v3253 = vpow.pop %v3252
          %v3254 = vmul.f32 %v3237, 1.442695
          %v3255 = vpow.pop %v3254
          %v3256 = vmul.f32 %v3238, 1.442695
          %v3257 = vpow.pop %v3256
          %v3258 = vmul.f32 %v3239, 1.442695
          %v3259 = vpow.pop %v3258
          %v3260 = vmul.f32 %v3240, 1.442695
          %v3261 = vpow.pop %v3260
          %v3262 = vmul.f32 %v3241, 1.442695
          %v3263 = vpow.pop %v3262
          %v3264 = vmul.f32 %v3242, 1.442695
          %v3265 = vpow.pop %v3264
          %v3266 = vmul.f32 %v3243, 1.442695
          %v3267 = vpow.pop %v3266
          %v3268 = vmul.f32 %v3244, 1.442695
          %v3269 = vpow.pop %v3268
          %v3270 = vmul.f32 %v3245, 1.442695
          %v3271 = vpow.pop %v3270
          %v3272 = vmul.f32 %v3246, 1.442695
          %v3273 = vpow.pop %v3272
          %v3274 = vmul.f32 %v3247, 1.442695
          %v3275 = vpow.pop %v3274
          %v3276 = vmul.f32 %v3248, 1.442695
          %v3277 = vpow.pop %v3276
          %v3278 = vmul.f32 %v3249, 1.442695
          %v3279 = vpow.pop %v3278
          %v3280 = vmul.f32 %v3250, 1.442695
          %v3281 = vpow.pop %v3280
          %v3282 = vmul.f32 %v3251, 1.442695
          %v3283 = vpow.pop %v3282
          %v3284 = vadd.f32 %v3253, 1.0
          %v3285 = vadd.f32 %v3255, 1.0
          %v3286 = vadd.f32 %v3257, 1.0
          %v3287 = vadd.f32 %v3259, 1.0
          %v3288 = vadd.f32 %v3261, 1.0
          %v3289 = vadd.f32 %v3263, 1.0
          %v3290 = vadd.f32 %v3265, 1.0
          %v3291 = vadd.f32 %v3267, 1.0
          %v3292 = vadd.f32 %v3269, 1.0
          %v3293 = vadd.f32 %v3271, 1.0
          %v3294 = vadd.f32 %v3273, 1.0
          %v3295 = vadd.f32 %v3275, 1.0
          %v3296 = vadd.f32 %v3277, 1.0
          %v3297 = vadd.f32 %v3279, 1.0
          %v3298 = vadd.f32 %v3281, 1.0
          %v3299 = vadd.f32 %v3283, 1.0
          %v3300 = vrcp.pop %v3284
          %v3301 = vmul.f32 1.0, %v3300
          %v3302 = vrcp.pop %v3285
          %v3303 = vmul.f32 1.0, %v3302
          %v3304 = vrcp.pop %v3286
          %v3305 = vmul.f32 1.0, %v3304
          %v3306 = vrcp.pop %v3287
          %v3307 = vmul.f32 1.0, %v3306
          %v3308 = vrcp.pop %v3288
          %v3309 = vmul.f32 1.0, %v3308
          %v3310 = vrcp.pop %v3289
          %v3311 = vmul.f32 1.0, %v3310
          %v3312 = vrcp.pop %v3290
          %v3313 = vmul.f32 1.0, %v3312
          %v3314 = vrcp.pop %v3291
          %v3315 = vmul.f32 1.0, %v3314
          %v3316 = vrcp.pop %v3292
          %v3317 = vmul.f32 1.0, %v3316
          %v3318 = vrcp.pop %v3293
          %v3319 = vmul.f32 1.0, %v3318
          %v3320 = vrcp.pop %v3294
          %v3321 = vmul.f32 1.0, %v3320
          %v3322 = vrcp.pop %v3295
          %v3323 = vmul.f32 1.0, %v3322
          %v3324 = vrcp.pop %v3296
          %v3325 = vmul.f32 1.0, %v3324
          %v3326 = vrcp.pop %v3297
          %v3327 = vmul.f32 1.0, %v3326
          %v3328 = vrcp.pop %v3298
          %v3329 = vmul.f32 1.0, %v3328
          %v3330 = vrcp.pop %v3299
          %v3331 = vmul.f32 1.0, %v3330
          %v3332 = vmul.f32 %v3301, %v3055
          %v3333 = vmul.f32 %v3303, %v3061
          %v3334 = vmul.f32 %v3305, %v3067
          %v3335 = vmul.f32 %v3307, %v3073
          %v3336 = vmul.f32 %v3309, %v3079
          %v3337 = vmul.f32 %v3311, %v3085
          %v3338 = vmul.f32 %v3313, %v3091
          %v3339 = vmul.f32 %v3315, %v3097
          %v3340 = vmul.f32 %v3317, %v3103
          %v3341 = vmul.f32 %v3319, %v3109
          %v3342 = vmul.f32 %v3321, %v3115
          %v3343 = vmul.f32 %v3323, %v3121
          %v3344 = vmul.f32 %v3325, %v3127
          %v3345 = vmul.f32 %v3327, %v3133
          %v3346 = vmul.f32 %v3329, %v3139
          %v3347 = vmul.f32 %v3331, %v3145
          %s3348 = scalar_lea.vmem [#allocation4], %s491
          %3349 = vst [vmem:[%s3348] sm:$0xff] %v3332
          %3350 = vst [vmem:[%s3348 + $0x8] sm:$0xff] %v3333
          %3351 = vst [vmem:[%s3348 + $0x10] sm:$0xff] %v3334
          %3352 = vst [vmem:[%s3348 + $0x18] sm:$0xff] %v3335
          %3353 = vst [vmem:[%s3348 + $0x20] sm:$0xff] %v3336
          %3354 = vst [vmem:[%s3348 + $0x28] sm:$0xff] %v3337
          %3355 = vst [vmem:[%s3348 + $0x30] sm:$0xff] %v3338
          %3356 = vst [vmem:[%s3348 + $0x38] sm:$0xff] %v3339
          %3357 = vst [vmem:[%s3348 + $0x40] sm:$0xff] %v3340
          %3358 = vst [vmem:[%s3348 + $0x48] sm:$0xff] %v3341
          %3359 = vst [vmem:[%s3348 + $0x50] sm:$0xff] %v3342
          %3360 = vst [vmem:[%s3348 + $0x58] sm:$0xff] %v3343
          %3361 = vst [vmem:[%s3348 + $0x60] sm:$0xff] %v3344
          %3362 = vst [vmem:[%s3348 + $0x68] sm:$0xff] %v3345
          %3363 = vst [vmem:[%s3348 + $0x70] sm:$0xff] %v3346
          %3364 = vst [vmem:[%s3348 + $0x78] sm:$0xff] %v3347
        $region72: #{tpu_custom_call.1} parent=51 // pred_fallthru
          _
        %p3365 = scmp.gt.s32.totalorder %s39, 0
        // Predicated region
        $region73: #{tpu_custom_call.1} parent=51 // pred_check
          %p3366 = pneg %p3365
        $region74: #{tpu_custom_call.1} parent=51 // pred_check_branch
          %3368 = sbr.rel (%p3366) target = $region76
        $region75: #{tpu_custom_call.1} parent=51 // pred_region
          %p3369 = scmp.lt.s32.totalorder %s39, 0
          %s3370 = ssub.s32 0, %s39
          %s3371 = scalar_select %p3369, %s3370, %s39
          %s3372 = sand.u32 %s3371, 1
          %s3373 = ssub.s32 0, %s3372
          %s3374 = scalar_select %p3369, %s3373, %s3372
          %p3375 = scmp.ne.s32.totalorder %s3374, 0
          %p3376 = scmp.lt.s32.totalorder %s3374, 0
          %p3377 = pnand %p3376, %p3375
          %p3378 = pneg %p3377
          %s3379 = sadd.s32 %s3374, 2
          %s3380 = scalar_select %p3378, %s3379, %s3374
          %p3381 = scmp.eq.s32.totalorder %s3380, 1
          // Predicated region
          $region77: #{tpu_custom_call.1} parent=75 // pred_check
            %p3382 = pneg %p3381
          $region78: #{tpu_custom_call.1} parent=75 // pred_check_branch
            %3384 = sbr.rel (%p3382) target = $region80
          $region79: #{tpu_custom_call.1} parent=75 // pred_region
            %v3385 = vld [vmem:[%s430] sm:$0xff]
            %v3386 = vld [vmem:[%s430 + $0x8] sm:$0xff]
            %v3387 = vld [vmem:[%s430 + $0x10] sm:$0xff]
            %v3388 = vld [vmem:[%s430 + $0x18] sm:$0xff]
            %v3389 = vld [vmem:[%s430 + $0x20] sm:$0xff]
            %v3390 = vld [vmem:[%s430 + $0x28] sm:$0xff]
            %v3391 = vld [vmem:[%s430 + $0x30] sm:$0xff]
            %v3392 = vld [vmem:[%s430 + $0x38] sm:$0xff]
            %v3393 = vld [vmem:[%s430 + $0x40] sm:$0xff]
            %v3394 = vld [vmem:[%s430 + $0x48] sm:$0xff]
            %v3395 = vld [vmem:[%s430 + $0x50] sm:$0xff]
            %v3396 = vld [vmem:[%s430 + $0x58] sm:$0xff]
            %v3397 = vld [vmem:[%s430 + $0x60] sm:$0xff]
            %v3398 = vld [vmem:[%s430 + $0x68] sm:$0xff]
            %v3399 = vld [vmem:[%s430 + $0x70] sm:$0xff]
            %v3400 = vld [vmem:[%s430 + $0x78] sm:$0xff]
            %v3401 = vld [vmem:[%s430 + $0x80] sm:$0xff]
            %v3402 = vld [vmem:[%s430 + $0x88] sm:$0xff]
            %v3403 = vld [vmem:[%s430 + $0x90] sm:$0xff]
            %v3404 = vld [vmem:[%s430 + $0x98] sm:$0xff]
            %v3405 = vld [vmem:[%s430 + $0xa0] sm:$0xff]
            %v3406 = vld [vmem:[%s430 + $0xa8] sm:$0xff]
            %v3407 = vld [vmem:[%s430 + $0xb0] sm:$0xff]
            %v3408 = vld [vmem:[%s430 + $0xb8] sm:$0xff]
            %v3409 = vld [vmem:[%s430 + $0xc0] sm:$0xff]
            %v3410 = vld [vmem:[%s430 + $0xc8] sm:$0xff]
            %v3411 = vld [vmem:[%s430 + $0xd0] sm:$0xff]
            %v3412 = vld [vmem:[%s430 + $0xd8] sm:$0xff]
            %v3413 = vld [vmem:[%s430 + $0xe0] sm:$0xff]
            %v3414 = vld [vmem:[%s430 + $0xe8] sm:$0xff]
            %v3415 = vld [vmem:[%s430 + $0xf0] sm:$0xff]
            %v3416 = vld [vmem:[%s430 + $0xf8] sm:$0xff]
            %v3417 = vld [vmem:[#allocation2] sm:$0xff]
            %v3418 = vld [vmem:[#allocation2 + $0x8] sm:$0xff]
            %v3419 = vld [vmem:[#allocation2 + $0x10] sm:$0xff]
            %v3420 = vld [vmem:[#allocation2 + $0x18] sm:$0xff]
            %v3421 = vld [vmem:[#allocation2 + $0x20] sm:$0xff]
            %v3422 = vld [vmem:[#allocation2 + $0x28] sm:$0xff]
            %v3423 = vld [vmem:[#allocation2 + $0x30] sm:$0xff]
            %v3424 = vld [vmem:[#allocation2 + $0x38] sm:$0xff]
            %v3425 = vld [vmem:[#allocation2 + $0x40] sm:$0xff]
            %v3426 = vld [vmem:[#allocation2 + $0x48] sm:$0xff]
            %v3427 = vld [vmem:[#allocation2 + $0x50] sm:$0xff]
            %v3428 = vld [vmem:[#allocation2 + $0x58] sm:$0xff]
            %v3429 = vld [vmem:[#allocation2 + $0x60] sm:$0xff]
            %v3430 = vld [vmem:[#allocation2 + $0x68] sm:$0xff]
            %v3431 = vld [vmem:[#allocation2 + $0x70] sm:$0xff]
            %v3432 = vld [vmem:[#allocation2 + $0x78] sm:$0xff]
            %v3433 = vld [vmem:[#allocation2 + $0x80] sm:$0xff]
            %v3434 = vld [vmem:[#allocation2 + $0x88] sm:$0xff]
            %v3435 = vld [vmem:[#allocation2 + $0x90] sm:$0xff]
            %v3436 = vld [vmem:[#allocation2 + $0x98] sm:$0xff]
            %v3437 = vld [vmem:[#allocation2 + $0xa0] sm:$0xff]
            %v3438 = vld [vmem:[#allocation2 + $0xa8] sm:$0xff]
            %v3439 = vld [vmem:[#allocation2 + $0xb0] sm:$0xff]
            %v3440 = vld [vmem:[#allocation2 + $0xb8] sm:$0xff]
            %v3441 = vld [vmem:[#allocation2 + $0xc0] sm:$0xff]
            %v3442 = vld [vmem:[#allocation2 + $0xc8] sm:$0xff]
            %v3443 = vld [vmem:[#allocation2 + $0xd0] sm:$0xff]
            %v3444 = vld [vmem:[#allocation2 + $0xd8] sm:$0xff]
            %v3445 = vld [vmem:[#allocation2 + $0xe0] sm:$0xff]
            %v3446 = vld [vmem:[#allocation2 + $0xe8] sm:$0xff]
            %v3447 = vld [vmem:[#allocation2 + $0xf0] sm:$0xff]
            %v3448 = vld [vmem:[#allocation2 + $0xf8] sm:$0xff]
            %3449 = vmatprep.subr.mxu0 0.0
            %v3450 = vand.u32 %v3417, 4294901760
            %3451 = vmatpush1.msra.mxu0 %v3450
            %3452 = vmatprep.subr.mxu0 0.0
            %v3453 = vand.u32 %v3418, 4294901760
            %3454 = vmatpush1.msra.mxu0 %v3453
            %3455 = vmatprep.subr.mxu0 0.0
            %v3456 = vand.u32 %v3419, 4294901760
            %3457 = vmatpush1.msra.mxu0 %v3456
            %3458 = vmatprep.subr.mxu0 0.0
            %v3459 = vand.u32 %v3420, 4294901760
            %3460 = vmatpush1.msra.mxu0 %v3459
            %3461 = vmatprep.subr.mxu0 0.0
            %v3462 = vand.u32 %v3421, 4294901760
            %3463 = vmatpush1.msra.mxu0 %v3462
            %3464 = vmatprep.subr.mxu0 0.0
            %v3465 = vand.u32 %v3422, 4294901760
            %3466 = vmatpush1.msra.mxu0 %v3465
            %3467 = vmatprep.subr.mxu0 0.0
            %v3468 = vand.u32 %v3423, 4294901760
            %3469 = vmatpush1.msra.mxu0 %v3468
            %3470 = vmatprep.subr.mxu0 0.0
            %v3471 = vand.u32 %v3424, 4294901760
            %3472 = vmatpush1.msra.mxu0 %v3471
            %3473 = vmatprep.subr.mxu0 0.0
            %v3474 = vand.u32 %v3425, 4294901760
            %3475 = vmatpush1.msra.mxu0 %v3474
            %3476 = vmatprep.subr.mxu0 0.0
            %v3477 = vand.u32 %v3426, 4294901760
            %3478 = vmatpush1.msra.mxu0 %v3477
            %3479 = vmatprep.subr.mxu0 0.0
            %v3480 = vand.u32 %v3427, 4294901760
            %3481 = vmatpush1.msra.mxu0 %v3480
            %3482 = vmatprep.subr.mxu0 0.0
            %v3483 = vand.u32 %v3428, 4294901760
            %3484 = vmatpush1.msra.mxu0 %v3483
            %3485 = vmatprep.subr.mxu0 0.0
            %v3486 = vand.u32 %v3429, 4294901760
            %3487 = vmatpush1.msra.mxu0 %v3486
            %3488 = vmatprep.subr.mxu0 0.0
            %v3489 = vand.u32 %v3430, 4294901760
            %3490 = vmatpush1.msra.mxu0 %v3489
            %3491 = vmatprep.subr.mxu0 0.0
            %v3492 = vand.u32 %v3431, 4294901760
            %3493 = vmatpush1.msra.mxu0 %v3492
            %3494 = vmatprep.subr.mxu0 0.0
            %v3495 = vand.u32 %v3432, 4294901760
            %3496 = vmatpush1.msra.mxu0 %v3495
            %3497 = vmatprep.subr.mxu0 0.0
            %v3498 = vand.u32 %v3433, 4294901760
            %3499 = vmatpush1.msra.mxu0 %v3498
            %3500 = vmatprep.subr.mxu0 0.0
            %v3501 = vand.u32 %v3434, 4294901760
            %3502 = vmatpush1.msra.mxu0 %v3501
            %3503 = vmatprep.subr.mxu0 0.0
            %v3504 = vand.u32 %v3435, 4294901760
            %3505 = vmatpush1.msra.mxu0 %v3504
            %3506 = vmatprep.subr.mxu0 0.0
            %v3507 = vand.u32 %v3436, 4294901760
            %3508 = vmatpush1.msra.mxu0 %v3507
            %3509 = vmatprep.subr.mxu0 0.0
            %v3510 = vand.u32 %v3437, 4294901760
            %3511 = vmatpush1.msra.mxu0 %v3510
            %3512 = vmatprep.subr.mxu0 0.0
            %v3513 = vand.u32 %v3438, 4294901760
            %3514 = vmatpush1.msra.mxu0 %v3513
            %3515 = vmatprep.subr.mxu0 0.0
            %v3516 = vand.u32 %v3439, 4294901760
            %3517 = vmatpush1.msra.mxu0 %v3516
            %3518 = vmatprep.subr.mxu0 0.0
            %v3519 = vand.u32 %v3440, 4294901760
            %3520 = vmatpush1.msra.mxu0 %v3519
            %3521 = vmatprep.subr.mxu0 0.0
            %v3522 = vand.u32 %v3441, 4294901760
            %3523 = vmatpush1.msra.mxu0 %v3522
            %3524 = vmatprep.subr.mxu0 0.0
            %v3525 = vand.u32 %v3442, 4294901760
            %3526 = vmatpush1.msra.mxu0 %v3525
            %3527 = vmatprep.subr.mxu0 0.0
            %v3528 = vand.u32 %v3443, 4294901760
            %3529 = vmatpush1.msra.mxu0 %v3528
            %3530 = vmatprep.subr.mxu0 0.0
            %v3531 = vand.u32 %v3444, 4294901760
            %3532 = vmatpush1.msra.mxu0 %v3531
            %3533 = vmatprep.subr.mxu0 0.0
            %v3534 = vand.u32 %v3445, 4294901760
            %3535 = vmatpush1.msra.mxu0 %v3534
            %3536 = vmatprep.subr.mxu0 0.0
            %v3537 = vand.u32 %v3446, 4294901760
            %3538 = vmatpush1.msra.mxu0 %v3537
            %3539 = vmatprep.subr.mxu0 0.0
            %v3540 = vand.u32 %v3447, 4294901760
            %3541 = vmatpush1.msra.mxu0 %v3540
            %3542 = vmatprep.subr.mxu0 0.0
            %v3543 = vand.u32 %v3448, 4294901760
            %3544 = vmatpush1.msra.mxu0 %v3543
            %v3545 = vand.u32 %v3386, 4294901760
            %v3546 = vsub.f32 %v3386, %v3545
            %v3547 = vand.u32 %v3546, 4294901760
            %v3548 = vsub.f32 %v3546, %v3547
            %v3549 = vand.u32 %v3548, 4294901760
            %3550 = vmatprep.mubr.f32.mxu0 %v3549
            %v3551 = vand.u32 %v3385, 4294901760
            %v3552 = vsub.f32 %v3385, %v3551
            %v3553 = vand.u32 %v3552, 4294901760
            %v3554 = vsub.f32 %v3552, %v3553
            %v3555 = vand.u32 %v3554, 4294901760
            %3556 = vmatmul.mubr.f32.gmra.mrb[0].mxu0 %v3555
            %v3557 = vpop.f32.mrb[0].mxu0
            %v3558 = vadd.f32 0.0, %v3557
            %v3559 = vpop.f32.mrb[0].mxu0
            %v3560 = vand.u32 %v3388, 4294901760
            %v3561 = vsub.f32 %v3388, %v3560
            %v3562 = vand.u32 %v3561, 4294901760
            %v3563 = vsub.f32 %v3561, %v3562
            %v3564 = vand.u32 %v3563, 4294901760
            %3565 = vmatprep.mubr.f32.mxu0 %v3564
            %v3566 = vand.u32 %v3387, 4294901760
            %v3567 = vsub.f32 %v3387, %v3566
            %v3568 = vand.u32 %v3567, 4294901760
            %v3569 = vsub.f32 %v3567, %v3568
            %v3570 = vand.u32 %v3569, 4294901760
            %3571 = vmatmul.mubr.f32.gmra.mrb[0].mxu0 %v3570
            %v3572 = vpop.f32.mrb[0].mxu0
            %v3573 = vadd.f32 0.0, %v3572
            %v3574 = vpop.f32.mrb[0].mxu0
            %v3575 = vand.u32 %v3390, 4294901760
            %v3576 = vsub.f32 %v3390, %v3575
            %v3577 = vand.u32 %v3576, 4294901760
            %v3578 = vsub.f32 %v3576, %v3577
            %v3579 = vand.u32 %v3578, 4294901760
            %3580 = vmatprep.mubr.f32.mxu0 %v3579
            %v3581 = vand.u32 %v3389, 4294901760
            %v3582 = vsub.f32 %v3389, %v3581
            %v3583 = vand.u32 %v3582, 4294901760
            %v3584 = vsub.f32 %v3582, %v3583
            %v3585 = vand.u32 %v3584, 4294901760
            %3586 = vmatmul.mubr.f32.gmra.mrb[0].mxu0 %v3585
            %v3587 = vpop.f32.mrb[0].mxu0
            %v3588 = vadd.f32 0.0, %v3587
            %v3589 = vpop.f32.mrb[0].mxu0
            %v3590 = vand.u32 %v3392, 4294901760
            %v3591 = vsub.f32 %v3392, %v3590
            %v3592 = vand.u32 %v3591, 4294901760
            %v3593 = vsub.f32 %v3591, %v3592
            %v3594 = vand.u32 %v3593, 4294901760
            %3595 = vmatprep.mubr.f32.mxu0 %v3594
            %v3596 = vand.u32 %v3391, 4294901760
            %v3597 = vsub.f32 %v3391, %v3596
            %v3598 = vand.u32 %v3597, 4294901760
            %v3599 = vsub.f32 %v3597, %v3598
            %v3600 = vand.u32 %v3599, 4294901760
            %3601 = vmatmul.mubr.f32.gmra.mrb[0].mxu0 %v3600
            %v3602 = vpop.f32.mrb[0].mxu0
            %v3603 = vadd.f32 0.0, %v3602
            %v3604 = vpop.f32.mrb[0].mxu0
            %v3605 = vand.u32 %v3394, 4294901760
            %v3606 = vsub.f32 %v3394, %v3605
            %v3607 = vand.u32 %v3606, 4294901760
            %v3608 = vsub.f32 %v3606, %v3607
            %v3609 = vand.u32 %v3608, 4294901760
            %3610 = vmatprep.mubr.f32.mxu0 %v3609
            %v3611 = vand.u32 %v3393, 4294901760
            %v3612 = vsub.f32 %v3393, %v3611
            %v3613 = vand.u32 %v3612, 4294901760
            %v3614 = vsub.f32 %v3612, %v3613
            %v3615 = vand.u32 %v3614, 4294901760
            %3616 = vmatmul.mubr.f32.gmra.mrb[0].mxu0 %v3615
            %v3617 = vpop.f32.mrb[0].mxu0
            %v3618 = vadd.f32 0.0, %v3617
            %v3619 = vpop.f32.mrb[0].mxu0
            %v3620 = vand.u32 %v3396, 4294901760
            %v3621 = vsub.f32 %v3396, %v3620
            %v3622 = vand.u32 %v3621, 4294901760
            %v3623 = vsub.f32 %v3621, %v3622
            %v3624 = vand.u32 %v3623, 4294901760
            %3625 = vmatprep.mubr.f32.mxu0 %v3624
            %v3626 = vand.u32 %v3395, 4294901760
            %v3627 = vsub.f32 %v3395, %v3626
            %v3628 = vand.u32 %v3627, 4294901760
            %v3629 = vsub.f32 %v3627, %v3628
            %v3630 = vand.u32 %v3629, 4294901760
            %3631 = vmatmul.mubr.f32.gmra.mrb[0].mxu0 %v3630
            %v3632 = vpop.f32.mrb[0].mxu0
            %v3633 = vadd.f32 0.0, %v3632
            %v3634 = vpop.f32.mrb[0].mxu0
            %v3635 = vand.u32 %v3398, 4294901760
            %v3636 = vsub.f32 %v3398, %v3635
            %v3637 = vand.u32 %v3636, 4294901760
            %v3638 = vsub.f32 %v3636, %v3637
            %v3639 = vand.u32 %v3638, 4294901760
            %3640 = vmatprep.mubr.f32.mxu0 %v3639
            %v3641 = vand.u32 %v3397, 4294901760
            %v3642 = vsub.f32 %v3397, %v3641
            %v3643 = vand.u32 %v3642, 4294901760
            %v3644 = vsub.f32 %v3642, %v3643
            %v3645 = vand.u32 %v3644, 4294901760
            %3646 = vmatmul.mubr.f32.gmra.mrb[0].mxu0 %v3645
            %v3647 = vpop.f32.mrb[0].mxu0
            %v3648 = vadd.f32 0.0, %v3647
            %v3649 = vpop.f32.mrb[0].mxu0
            %v3650 = vand.u32 %v3400, 4294901760
            %v3651 = vsub.f32 %v3400, %v3650
            %v3652 = vand.u32 %v3651, 4294901760
            %v3653 = vsub.f32 %v3651, %v3652
            %v3654 = vand.u32 %v3653, 4294901760
            %3655 = vmatprep.mubr.f32.mxu0 %v3654
            %v3656 = vand.u32 %v3399, 4294901760
            %v3657 = vsub.f32 %v3399, %v3656
            %v3658 = vand.u32 %v3657, 4294901760
            %v3659 = vsub.f32 %v3657, %v3658
            %v3660 = vand.u32 %v3659, 4294901760
            %3661 = vmatmul.mubr.f32.gmra.mrb[0].mxu0 %v3660
            %v3662 = vpop.f32.mrb[0].mxu0
            %v3663 = vadd.f32 0.0, %v3662
            %v3664 = vpop.f32.mrb[0].mxu0
            %v3665 = vand.u32 %v3402, 4294901760
            %v3666 = vsub.f32 %v3402, %v3665
            %v3667 = vand.u32 %v3666, 4294901760
            %v3668 = vsub.f32 %v3666, %v3667
            %v3669 = vand.u32 %v3668, 4294901760
            %3670 = vmatprep.mubr.f32.mxu0 %v3669
            %v3671 = vand.u32 %v3401, 4294901760
            %v3672 = vsub.f32 %v3401, %v3671
            %v3673 = vand.u32 %v3672, 4294901760
            %v3674 = vsub.f32 %v3672, %v3673
            %v3675 = vand.u32 %v3674, 4294901760
            %3676 = vmatmul.mubr.f32.gmra.mrb[0].mxu0 %v3675
            %v3677 = vpop.f32.mrb[0].mxu0
            %v3678 = vadd.f32 0.0, %v3677
            %v3679 = vpop.f32.mrb[0].mxu0
            %v3680 = vand.u32 %v3404, 4294901760
            %v3681 = vsub.f32 %v3404, %v3680
            %v3682 = vand.u32 %v3681, 4294901760
            %v3683 = vsub.f32 %v3681, %v3682
            %v3684 = vand.u32 %v3683, 4294901760
            %3685 = vmatprep.mubr.f32.mxu0 %v3684
            %v3686 = vand.u32 %v3403, 4294901760
            %v3687 = vsub.f32 %v3403, %v3686
            %v3688 = vand.u32 %v3687, 4294901760
            %v3689 = vsub.f32 %v3687, %v3688
            %v3690 = vand.u32 %v3689, 4294901760
            %3691 = vmatmul.mubr.f32.gmra.mrb[0].mxu0 %v3690
            %v3692 = vpop.f32.mrb[0].mxu0
            %v3693 = vadd.f32 0.0, %v3692
            %v3694 = vpop.f32.mrb[0].mxu0
            %v3695 = vand.u32 %v3406, 4294901760
            %v3696 = vsub.f32 %v3406, %v3695
            %v3697 = vand.u32 %v3696, 4294901760
            %v3698 = vsub.f32 %v3696, %v3697
            %v3699 = vand.u32 %v3698, 4294901760
            %3700 = vmatprep.mubr.f32.mxu0 %v3699
            %v3701 = vand.u32 %v3405, 4294901760
            %v3702 = vsub.f32 %v3405, %v3701
            %v3703 = vand.u32 %v3702, 4294901760
            %v3704 = vsub.f32 %v3702, %v3703
            %v3705 = vand.u32 %v3704, 4294901760
            %3706 = vmatmul.mubr.f32.gmra.mrb[0].mxu0 %v3705
            %v3707 = vpop.f32.mrb[0].mxu0
            %v3708 = vadd.f32 0.0, %v3707
            %v3709 = vpop.f32.mrb[0].mxu0
            %v3710 = vand.u32 %v3408, 4294901760
            %v3711 = vsub.f32 %v3408, %v3710
            %v3712 = vand.u32 %v3711, 4294901760
            %v3713 = vsub.f32 %v3711, %v3712
            %v3714 = vand.u32 %v3713, 4294901760
            %3715 = vmatprep.mubr.f32.mxu0 %v3714
            %v3716 = vand.u32 %v3407, 4294901760
            %v3717 = vsub.f32 %v3407, %v3716
            %v3718 = vand.u32 %v3717, 4294901760
            %v3719 = vsub.f32 %v3717, %v3718
            %v3720 = vand.u32 %v3719, 4294901760
            %3721 = vmatmul.mubr.f32.gmra.mrb[0].mxu0 %v3720
            %v3722 = vpop.f32.mrb[0].mxu0
            %v3723 = vadd.f32 0.0, %v3722
            %v3724 = vpop.f32.mrb[0].mxu0
            %v3725 = vand.u32 %v3410, 4294901760
            %v3726 = vsub.f32 %v3410, %v3725
            %v3727 = vand.u32 %v3726, 4294901760
            %v3728 = vsub.f32 %v3726, %v3727
            %v3729 = vand.u32 %v3728, 4294901760
            %3730 = vmatprep.mubr.f32.mxu0 %v3729
            %v3731 = vand.u32 %v3409, 4294901760
            %v3732 = vsub.f32 %v3409, %v3731
            %v3733 = vand.u32 %v3732, 4294901760
            %v3734 = vsub.f32 %v3732, %v3733
            %v3735 = vand.u32 %v3734, 4294901760
            %3736 = vmatmul.mubr.f32.gmra.mrb[0].mxu0 %v3735
            %v3737 = vpop.f32.mrb[0].mxu0
            %v3738 = vadd.f32 0.0, %v3737
            %v3739 = vpop.f32.mrb[0].mxu0
            %v3740 = vand.u32 %v3412, 4294901760
            %v3741 = vsub.f32 %v3412, %v3740
            %v3742 = vand.u32 %v3741, 4294901760
            %v3743 = vsub.f32 %v3741, %v3742
            %v3744 = vand.u32 %v3743, 4294901760
            %3745 = vmatprep.mubr.f32.mxu0 %v3744
            %v3746 = vand.u32 %v3411, 4294901760
            %v3747 = vsub.f32 %v3411, %v3746
            %v3748 = vand.u32 %v3747, 4294901760
            %v3749 = vsub.f32 %v3747, %v3748
            %v3750 = vand.u32 %v3749, 4294901760
            %3751 = vmatmul.mubr.f32.gmra.mrb[0].mxu0 %v3750
            %v3752 = vpop.f32.mrb[0].mxu0
            %v3753 = vadd.f32 0.0, %v3752
            %v3754 = vpop.f32.mrb[0].mxu0
            %v3755 = vand.u32 %v3414, 4294901760
            %v3756 = vsub.f32 %v3414, %v3755
            %v3757 = vand.u32 %v3756, 4294901760
            %v3758 = vsub.f32 %v3756, %v3757
            %v3759 = vand.u32 %v3758, 4294901760
            %3760 = vmatprep.mubr.f32.mxu0 %v3759
            %v3761 = vand.u32 %v3413, 4294901760
            %v3762 = vsub.f32 %v3413, %v3761
            %v3763 = vand.u32 %v3762, 4294901760
            %v3764 = vsub.f32 %v3762, %v3763
            %v3765 = vand.u32 %v3764, 4294901760
            %3766 = vmatmul.mubr.f32.gmra.mrb[0].mxu0 %v3765
            %v3767 = vpop.f32.mrb[0].mxu0
            %v3768 = vadd.f32 0.0, %v3767
            %v3769 = vpop.f32.mrb[0].mxu0
            %v3770 = vand.u32 %v3416, 4294901760
            %v3771 = vsub.f32 %v3416, %v3770
            %v3772 = vand.u32 %v3771, 4294901760
            %v3773 = vsub.f32 %v3771, %v3772
            %v3774 = vand.u32 %v3773, 4294901760
            %3775 = vmatprep.mubr.f32.mxu0 %v3774
            %v3776 = vand.u32 %v3415, 4294901760
            %v3777 = vsub.f32 %v3415, %v3776
            %v3778 = vand.u32 %v3777, 4294901760
            %v3779 = vsub.f32 %v3777, %v3778
            %v3780 = vand.u32 %v3779, 4294901760
            %3781 = vmatmul.mubr.f32.gmra.mrb[0].mxu0 %v3780
            %v3782 = vpop.f32.mrb[0].mxu0
            %v3783 = vadd.f32 0.0, %v3782
            %v3784 = vpop.f32.mrb[0].mxu0
            %3785 = vdwg.mxu0
            %3786 = vmatprep.subr.mxu0 0.0
            %v3787 = vand.u32 %v3417, 4294901760
            %v3788 = vsub.f32 %v3417, %v3787
            %v3789 = vand.u32 %v3788, 4294901760
            %v3790 = vsub.f32 %v3788, %v3789
            %v3791 = vand.u32 %v3790, 4294901760
            %3792 = vmatpush1.msra.mxu0 %v3791
            %3793 = vmatprep.subr.mxu0 0.0
            %v3794 = vand.u32 %v3418, 4294901760
            %v3795 = vsub.f32 %v3418, %v3794
            %v3796 = vand.u32 %v3795, 4294901760
            %v3797 = vsub.f32 %v3795, %v3796
            %v3798 = vand.u32 %v3797, 4294901760
            %3799 = vmatpush1.msra.mxu0 %v3798
            %3800 = vmatprep.subr.mxu0 0.0
            %v3801 = vand.u32 %v3419, 4294901760
            %v3802 = vsub.f32 %v3419, %v3801
            %v3803 = vand.u32 %v3802, 4294901760
            %v3804 = vsub.f32 %v3802, %v3803
            %v3805 = vand.u32 %v3804, 4294901760
            %3806 = vmatpush1.msra.mxu0 %v3805
            %3807 = vmatprep.subr.mxu0 0.0
            %v3808 = vand.u32 %v3420, 4294901760
            %v3809 = vsub.f32 %v3420, %v3808
            %v3810 = vand.u32 %v3809, 4294901760
            %v3811 = vsub.f32 %v3809, %v3810
            %v3812 = vand.u32 %v3811, 4294901760
            %3813 = vmatpush1.msra.mxu0 %v3812
            %3814 = vmatprep.subr.mxu0 0.0
            %v3815 = vand.u32 %v3421, 4294901760
            %v3816 = vsub.f32 %v3421, %v3815
            %v3817 = vand.u32 %v3816, 4294901760
            %v3818 = vsub.f32 %v3816, %v3817
            %v3819 = vand.u32 %v3818, 4294901760
            %3820 = vmatpush1.msra.mxu0 %v3819
            %3821 = vmatprep.subr.mxu0 0.0
            %v3822 = vand.u32 %v3422, 4294901760
            %v3823 = vsub.f32 %v3422, %v3822
            %v3824 = vand.u32 %v3823, 4294901760
            %v3825 = vsub.f32 %v3823, %v3824
            %v3826 = vand.u32 %v3825, 4294901760
            %3827 = vmatpush1.msra.mxu0 %v3826
            %3828 = vmatprep.subr.mxu0 0.0
            %v3829 = vand.u32 %v3423, 4294901760
            %v3830 = vsub.f32 %v3423, %v3829
            %v3831 = vand.u32 %v3830, 4294901760
            %v3832 = vsub.f32 %v3830, %v3831
            %v3833 = vand.u32 %v3832, 4294901760
            %3834 = vmatpush1.msra.mxu0 %v3833
            %3835 = vmatprep.subr.mxu0 0.0
            %v3836 = vand.u32 %v3424, 4294901760
            %v3837 = vsub.f32 %v3424, %v3836
            %v3838 = vand.u32 %v3837, 4294901760
            %v3839 = vsub.f32 %v3837, %v3838
            %v3840 = vand.u32 %v3839, 4294901760
            %3841 = vmatpush1.msra.mxu0 %v3840
            %3842 = vmatprep.subr.mxu0 0.0
            %v3843 = vand.u32 %v3425, 4294901760
            %v3844 = vsub.f32 %v3425, %v3843
            %v3845 = vand.u32 %v3844, 4294901760
            %v3846 = vsub.f32 %v3844, %v3845
            %v3847 = vand.u32 %v3846, 4294901760
            %3848 = vmatpush1.msra.mxu0 %v3847
            %3849 = vmatprep.subr.mxu0 0.0
            %v3850 = vand.u32 %v3426, 4294901760
            %v3851 = vsub.f32 %v3426, %v3850
            %v3852 = vand.u32 %v3851, 4294901760
            %v3853 = vsub.f32 %v3851, %v3852
            %v3854 = vand.u32 %v3853, 4294901760
            %3855 = vmatpush1.msra.mxu0 %v3854
            %3856 = vmatprep.subr.mxu0 0.0
            %v3857 = vand.u32 %v3427, 4294901760
            %v3858 = vsub.f32 %v3427, %v3857
            %v3859 = vand.u32 %v3858, 4294901760
            %v3860 = vsub.f32 %v3858, %v3859
            %v3861 = vand.u32 %v3860, 4294901760
            %3862 = vmatpush1.msra.mxu0 %v3861
            %3863 = vmatprep.subr.mxu0 0.0
            %v3864 = vand.u32 %v3428, 4294901760
            %v3865 = vsub.f32 %v3428, %v3864
            %v3866 = vand.u32 %v3865, 4294901760
            %v3867 = vsub.f32 %v3865, %v3866
            %v3868 = vand.u32 %v3867, 4294901760
            %3869 = vmatpush1.msra.mxu0 %v3868
            %3870 = vmatprep.subr.mxu0 0.0
            %v3871 = vand.u32 %v3429, 4294901760
            %v3872 = vsub.f32 %v3429, %v3871
            %v3873 = vand.u32 %v3872, 4294901760
            %v3874 = vsub.f32 %v3872, %v3873
            %v3875 = vand.u32 %v3874, 4294901760
            %3876 = vmatpush1.msra.mxu0 %v3875
            %3877 = vmatprep.subr.mxu0 0.0
            %v3878 = vand.u32 %v3430, 4294901760
            %v3879 = vsub.f32 %v3430, %v3878
            %v3880 = vand.u32 %v3879, 4294901760
            %v3881 = vsub.f32 %v3879, %v3880
            %v3882 = vand.u32 %v3881, 4294901760
            %3883 = vmatpush1.msra.mxu0 %v3882
            %3884 = vmatprep.subr.mxu0 0.0
            %v3885 = vand.u32 %v3431, 4294901760
            %v3886 = vsub.f32 %v3431, %v3885
            %v3887 = vand.u32 %v3886, 4294901760
            %v3888 = vsub.f32 %v3886, %v3887
            %v3889 = vand.u32 %v3888, 4294901760
            %3890 = vmatpush1.msra.mxu0 %v3889
            %3891 = vmatprep.subr.mxu0 0.0
            %v3892 = vand.u32 %v3432, 4294901760
            %v3893 = vsub.f32 %v3432, %v3892
            %v3894 = vand.u32 %v3893, 4294901760
            %v3895 = vsub.f32 %v3893, %v3894
            %v3896 = vand.u32 %v3895, 4294901760
            %3897 = vmatpush1.msra.mxu0 %v3896
            %3898 = vmatprep.subr.mxu0 0.0
            %v3899 = vand.u32 %v3433, 4294901760
            %v3900 = vsub.f32 %v3433, %v3899
            %v3901 = vand.u32 %v3900, 4294901760
            %v3902 = vsub.f32 %v3900, %v3901
            %v3903 = vand.u32 %v3902, 4294901760
            %3904 = vmatpush1.msra.mxu0 %v3903
            %3905 = vmatprep.subr.mxu0 0.0
            %v3906 = vand.u32 %v3434, 4294901760
            %v3907 = vsub.f32 %v3434, %v3906
            %v3908 = vand.u32 %v3907, 4294901760
            %v3909 = vsub.f32 %v3907, %v3908
            %v3910 = vand.u32 %v3909, 4294901760
            %3911 = vmatpush1.msra.mxu0 %v3910
            %3912 = vmatprep.subr.mxu0 0.0
            %v3913 = vand.u32 %v3435, 4294901760
            %v3914 = vsub.f32 %v3435, %v3913
            %v3915 = vand.u32 %v3914, 4294901760
            %v3916 = vsub.f32 %v3914, %v3915
            %v3917 = vand.u32 %v3916, 4294901760
            %3918 = vmatpush1.msra.mxu0 %v3917
            %3919 = vmatprep.subr.mxu0 0.0
            %v3920 = vand.u32 %v3436, 4294901760
            %v3921 = vsub.f32 %v3436, %v3920
            %v3922 = vand.u32 %v3921, 4294901760
            %v3923 = vsub.f32 %v3921, %v3922
            %v3924 = vand.u32 %v3923, 4294901760
            %3925 = vmatpush1.msra.mxu0 %v3924
            %3926 = vmatprep.subr.mxu0 0.0
            %v3927 = vand.u32 %v3437, 4294901760
            %v3928 = vsub.f32 %v3437, %v3927
            %v3929 = vand.u32 %v3928, 4294901760
            %v3930 = vsub.f32 %v3928, %v3929
            %v3931 = vand.u32 %v3930, 4294901760
            %3932 = vmatpush1.msra.mxu0 %v3931
            %3933 = vmatprep.subr.mxu0 0.0
            %v3934 = vand.u32 %v3438, 4294901760
            %v3935 = vsub.f32 %v3438, %v3934
            %v3936 = vand.u32 %v3935, 4294901760
            %v3937 = vsub.f32 %v3935, %v3936
            %v3938 = vand.u32 %v3937, 4294901760
            %3939 = vmatpush1.msra.mxu0 %v3938
            %3940 = vmatprep.subr.mxu0 0.0
            %v3941 = vand.u32 %v3439, 4294901760
            %v3942 = vsub.f32 %v3439, %v3941
            %v3943 = vand.u32 %v3942, 4294901760
            %v3944 = vsub.f32 %v3942, %v3943
            %v3945 = vand.u32 %v3944, 4294901760
            %3946 = vmatpush1.msra.mxu0 %v3945
            %3947 = vmatprep.subr.mxu0 0.0
            %v3948 = vand.u32 %v3440, 4294901760
            %v3949 = vsub.f32 %v3440, %v3948
            %v3950 = vand.u32 %v3949, 4294901760
            %v3951 = vsub.f32 %v3949, %v3950
            %v3952 = vand.u32 %v3951, 4294901760
            %3953 = vmatpush1.msra.mxu0 %v3952
            %3954 = vmatprep.subr.mxu0 0.0
            %v3955 = vand.u32 %v3441, 4294901760
            %v3956 = vsub.f32 %v3441, %v3955
            %v3957 = vand.u32 %v3956, 4294901760
            %v3958 = vsub.f32 %v3956, %v3957
            %v3959 = vand.u32 %v3958, 4294901760
            %3960 = vmatpush1.msra.mxu0 %v3959
            %3961 = vmatprep.subr.mxu0 0.0
            %v3962 = vand.u32 %v3442, 4294901760
            %v3963 = vsub.f32 %v3442, %v3962
            %v3964 = vand.u32 %v3963, 4294901760
            %v3965 = vsub.f32 %v3963, %v3964
            %v3966 = vand.u32 %v3965, 4294901760
            %3967 = vmatpush1.msra.mxu0 %v3966
            %3968 = vmatprep.subr.mxu0 0.0
            %v3969 = vand.u32 %v3443, 4294901760
            %v3970 = vsub.f32 %v3443, %v3969
            %v3971 = vand.u32 %v3970, 4294901760
            %v3972 = vsub.f32 %v3970, %v3971
            %v3973 = vand.u32 %v3972, 4294901760
            %3974 = vmatpush1.msra.mxu0 %v3973
            %3975 = vmatprep.subr.mxu0 0.0
            %v3976 = vand.u32 %v3444, 4294901760
            %v3977 = vsub.f32 %v3444, %v3976
            %v3978 = vand.u32 %v3977, 4294901760
            %v3979 = vsub.f32 %v3977, %v3978
            %v3980 = vand.u32 %v3979, 4294901760
            %3981 = vmatpush1.msra.mxu0 %v3980
            %3982 = vmatprep.subr.mxu0 0.0
            %v3983 = vand.u32 %v3445, 4294901760
            %v3984 = vsub.f32 %v3445, %v3983
            %v3985 = vand.u32 %v3984, 4294901760
            %v3986 = vsub.f32 %v3984, %v3985
            %v3987 = vand.u32 %v3986, 4294901760
            %3988 = vmatpush1.msra.mxu0 %v3987
            %3989 = vmatprep.subr.mxu0 0.0
            %v3990 = vand.u32 %v3446, 4294901760
            %v3991 = vsub.f32 %v3446, %v3990
            %v3992 = vand.u32 %v3991, 4294901760
            %v3993 = vsub.f32 %v3991, %v3992
            %v3994 = vand.u32 %v3993, 4294901760
            %3995 = vmatpush1.msra.mxu0 %v3994
            %3996 = vmatprep.subr.mxu0 0.0
            %v3997 = vand.u32 %v3447, 4294901760
            %v3998 = vsub.f32 %v3447, %v3997
            %v3999 = vand.u32 %v3998, 4294901760
            %v4000 = vsub.f32 %v3998, %v3999
            %v4001 = vand.u32 %v4000, 4294901760
            %4002 = vmatpush1.msra.mxu0 %v4001
            %4003 = vmatprep.subr.mxu0 0.0
            %v4004 = vand.u32 %v3448, 4294901760
            %v4005 = vsub.f32 %v3448, %v4004
            %v4006 = vand.u32 %v4005, 4294901760
            %v4007 = vsub.f32 %v4005, %v4006
            %v4008 = vand.u32 %v4007, 4294901760
            %4009 = vmatpush1.msra.mxu0 %v4008
            %v4010 = vand.u32 %v3386, 4294901760
            %4011 = vmatprep.mubr.f32.mxu0 %v4010
            %v4012 = vand.u32 %v3385, 4294901760
            %4013 = vmatmul.mubr.f32.gmra.mrb[0].mxu0 %v4012
            %v4014 = vpop.f32.mrb[0].mxu0
            %v4015 = vadd.f32 %v3558, %v4014
            %v4016 = vpop.f32.mrb[0].mxu0
            %v4017 = vand.u32 %v3388, 4294901760
            %4018 = vmatprep.mubr.f32.mxu0 %v4017
            %v4019 = vand.u32 %v3387, 4294901760
            %4020 = vmatmul.mubr.f32.gmra.mrb[0].mxu0 %v4019
            %v4021 = vpop.f32.mrb[0].mxu0
            %v4022 = vadd.f32 %v3573, %v4021
            %v4023 = vpop.f32.mrb[0].mxu0
            %v4024 = vand.u32 %v3390, 4294901760
            %4025 = vmatprep.mubr.f32.mxu0 %v4024
            %v4026 = vand.u32 %v3389, 4294901760
            %4027 = vmatmul.mubr.f32.gmra.mrb[0].mxu0 %v4026
            %v4028 = vpop.f32.mrb[0].mxu0
            %v4029 = vadd.f32 %v3588, %v4028
            %v4030 = vpop.f32.mrb[0].mxu0
            %v4031 = vand.u32 %v3392, 4294901760
            %4032 = vmatprep.mubr.f32.mxu0 %v4031
            %v4033 = vand.u32 %v3391, 4294901760
            %4034 = vmatmul.mubr.f32.gmra.mrb[0].mxu0 %v4033
            %v4035 = vpop.f32.mrb[0].mxu0
            %v4036 = vadd.f32 %v3603, %v4035
            %v4037 = vpop.f32.mrb[0].mxu0
            %v4038 = vand.u32 %v3394, 4294901760
            %4039 = vmatprep.mubr.f32.mxu0 %v4038
            %v4040 = vand.u32 %v3393, 4294901760
            %4041 = vmatmul.mubr.f32.gmra.mrb[0].mxu0 %v4040
            %v4042 = vpop.f32.mrb[0].mxu0
            %v4043 = vadd.f32 %v3618, %v4042
            %v4044 = vpop.f32.mrb[0].mxu0
            %v4045 = vand.u32 %v3396, 4294901760
            %4046 = vmatprep.mubr.f32.mxu0 %v4045
            %v4047 = vand.u32 %v3395, 4294901760
            %4048 = vmatmul.mubr.f32.gmra.mrb[0].mxu0 %v4047
            %v4049 = vpop.f32.mrb[0].mxu0
            %v4050 = vadd.f32 %v3633, %v4049
            %v4051 = vpop.f32.mrb[0].mxu0
            %v4052 = vand.u32 %v3398, 4294901760
            %4053 = vmatprep.mubr.f32.mxu0 %v4052
            %v4054 = vand.u32 %v3397, 4294901760
            %4055 = vmatmul.mubr.f32.gmra.mrb[0].mxu0 %v4054
            %v4056 = vpop.f32.mrb[0].mxu0
            %v4057 = vadd.f32 %v3648, %v4056
            %v4058 = vpop.f32.mrb[0].mxu0
            %v4059 = vand.u32 %v3400, 4294901760
            %4060 = vmatprep.mubr.f32.mxu0 %v4059
            %v4061 = vand.u32 %v3399, 4294901760
            %4062 = vmatmul.mubr.f32.gmra.mrb[0].mxu0 %v4061
            %v4063 = vpop.f32.mrb[0].mxu0
            %v4064 = vadd.f32 %v3663, %v4063
            %v4065 = vpop.f32.mrb[0].mxu0
            %v4066 = vand.u32 %v3402, 4294901760
            %4067 = vmatprep.mubr.f32.mxu0 %v4066
            %v4068 = vand.u32 %v3401, 4294901760
            %4069 = vmatmul.mubr.f32.gmra.mrb[0].mxu0 %v4068
            %v4070 = vpop.f32.mrb[0].mxu0
            %v4071 = vadd.f32 %v3678, %v4070
            %v4072 = vpop.f32.mrb[0].mxu0
            %v4073 = vand.u32 %v3404, 4294901760
            %4074 = vmatprep.mubr.f32.mxu0 %v4073
            %v4075 = vand.u32 %v3403, 4294901760
            %4076 = vmatmul.mubr.f32.gmra.mrb[0].mxu0 %v4075
            %v4077 = vpop.f32.mrb[0].mxu0
            %v4078 = vadd.f32 %v3693, %v4077
            %v4079 = vpop.f32.mrb[0].mxu0
            %v4080 = vand.u32 %v3406, 4294901760
            %4081 = vmatprep.mubr.f32.mxu0 %v4080
            %v4082 = vand.u32 %v3405, 4294901760
            %4083 = vmatmul.mubr.f32.gmra.mrb[0].mxu0 %v4082
            %v4084 = vpop.f32.mrb[0].mxu0
            %v4085 = vadd.f32 %v3708, %v4084
            %v4086 = vpop.f32.mrb[0].mxu0
            %v4087 = vand.u32 %v3408, 4294901760
            %4088 = vmatprep.mubr.f32.mxu0 %v4087
            %v4089 = vand.u32 %v3407, 4294901760
            %4090 = vmatmul.mubr.f32.gmra.mrb[0].mxu0 %v4089
            %v4091 = vpop.f32.mrb[0].mxu0
            %v4092 = vadd.f32 %v3723, %v4091
            %v4093 = vpop.f32.mrb[0].mxu0
            %v4094 = vand.u32 %v3410, 4294901760
            %4095 = vmatprep.mubr.f32.mxu0 %v4094
            %v4096 = vand.u32 %v3409, 4294901760
            %4097 = vmatmul.mubr.f32.gmra.mrb[0].mxu0 %v4096
            %v4098 = vpop.f32.mrb[0].mxu0
            %v4099 = vadd.f32 %v3738, %v4098
            %v4100 = vpop.f32.mrb[0].mxu0
            %v4101 = vand.u32 %v3412, 4294901760
            %4102 = vmatprep.mubr.f32.mxu0 %v4101
            %v4103 = vand.u32 %v3411, 4294901760
            %4104 = vmatmul.mubr.f32.gmra.mrb[0].mxu0 %v4103
            %v4105 = vpop.f32.mrb[0].mxu0
            %v4106 = vadd.f32 %v3753, %v4105
            %v4107 = vpop.f32.mrb[0].mxu0
            %v4108 = vand.u32 %v3414, 4294901760
            %4109 = vmatprep.mubr.f32.mxu0 %v4108
            %v4110 = vand.u32 %v3413, 4294901760
            %4111 = vmatmul.mubr.f32.gmra.mrb[0].mxu0 %v4110
            %v4112 = vpop.f32.mrb[0].mxu0
            %v4113 = vadd.f32 %v3768, %v4112
            %v4114 = vpop.f32.mrb[0].mxu0
            %v4115 = vand.u32 %v3416, 4294901760
            %4116 = vmatprep.mubr.f32.mxu0 %v4115
            %v4117 = vand.u32 %v3415, 4294901760
            %4118 = vmatmul.mubr.f32.gmra.mrb[0].mxu0 %v4117
            %v4119 = vpop.f32.mrb[0].mxu0
            %v4120 = vadd.f32 %v3783, %v4119
            %v4121 = vpop.f32.mrb[0].mxu0
            %4122 = vdwg.mxu0
            %4123 = vmatprep.subr.mxu0 0.0
            %v4124 = vand.u32 %v3417, 4294901760
            %v4125 = vsub.f32 %v3417, %v4124
            %4126 = vmatpush1.msra.mxu0 %v4125
            %4127 = vmatprep.subr.mxu0 0.0
            %v4128 = vand.u32 %v3418, 4294901760
            %v4129 = vsub.f32 %v3418, %v4128
            %4130 = vmatpush1.msra.mxu0 %v4129
            %4131 = vmatprep.subr.mxu0 0.0
            %v4132 = vand.u32 %v3419, 4294901760
            %v4133 = vsub.f32 %v3419, %v4132
            %4134 = vmatpush1.msra.mxu0 %v4133
            %4135 = vmatprep.subr.mxu0 0.0
            %v4136 = vand.u32 %v3420, 4294901760
            %v4137 = vsub.f32 %v3420, %v4136
            %4138 = vmatpush1.msra.mxu0 %v4137
            %4139 = vmatprep.subr.mxu0 0.0
            %v4140 = vand.u32 %v3421, 4294901760
            %v4141 = vsub.f32 %v3421, %v4140
            %4142 = vmatpush1.msra.mxu0 %v4141
            %4143 = vmatprep.subr.mxu0 0.0
            %v4144 = vand.u32 %v3422, 4294901760
            %v4145 = vsub.f32 %v3422, %v4144
            %4146 = vmatpush1.msra.mxu0 %v4145
            %4147 = vmatprep.subr.mxu0 0.0
            %v4148 = vand.u32 %v3423, 4294901760
            %v4149 = vsub.f32 %v3423, %v4148
            %4150 = vmatpush1.msra.mxu0 %v4149
            %4151 = vmatprep.subr.mxu0 0.0
            %v4152 = vand.u32 %v3424, 4294901760
            %v4153 = vsub.f32 %v3424, %v4152
            %4154 = vmatpush1.msra.mxu0 %v4153
            %4155 = vmatprep.subr.mxu0 0.0
            %v4156 = vand.u32 %v3425, 4294901760
            %v4157 = vsub.f32 %v3425, %v4156
            %4158 = vmatpush1.msra.mxu0 %v4157
            %4159 = vmatprep.subr.mxu0 0.0
            %v4160 = vand.u32 %v3426, 4294901760
            %v4161 = vsub.f32 %v3426, %v4160
            %4162 = vmatpush1.msra.mxu0 %v4161
            %4163 = vmatprep.subr.mxu0 0.0
            %v4164 = vand.u32 %v3427, 4294901760
            %v4165 = vsub.f32 %v3427, %v4164
            %4166 = vmatpush1.msra.mxu0 %v4165
            %4167 = vmatprep.subr.mxu0 0.0
            %v4168 = vand.u32 %v3428, 4294901760
            %v4169 = vsub.f32 %v3428, %v4168
            %4170 = vmatpush1.msra.mxu0 %v4169
            %4171 = vmatprep.subr.mxu0 0.0
            %v4172 = vand.u32 %v3429, 4294901760
            %v4173 = vsub.f32 %v3429, %v4172
            %4174 = vmatpush1.msra.mxu0 %v4173
            %4175 = vmatprep.subr.mxu0 0.0
            %v4176 = vand.u32 %v3430, 4294901760
            %v4177 = vsub.f32 %v3430, %v4176
            %4178 = vmatpush1.msra.mxu0 %v4177
            %4179 = vmatprep.subr.mxu0 0.0
            %v4180 = vand.u32 %v3431, 4294901760
            %v4181 = vsub.f32 %v3431, %v4180
            %4182 = vmatpush1.msra.mxu0 %v4181
            %4183 = vmatprep.subr.mxu0 0.0
            %v4184 = vand.u32 %v3432, 4294901760
            %v4185 = vsub.f32 %v3432, %v4184
            %4186 = vmatpush1.msra.mxu0 %v4185
            %4187 = vmatprep.subr.mxu0 0.0
            %v4188 = vand.u32 %v3433, 4294901760
            %v4189 = vsub.f32 %v3433, %v4188
            %4190 = vmatpush1.msra.mxu0 %v4189
            %4191 = vmatprep.subr.mxu0 0.0
            %v4192 = vand.u32 %v3434, 4294901760
            %v4193 = vsub.f32 %v3434, %v4192
            %4194 = vmatpush1.msra.mxu0 %v4193
            %4195 = vmatprep.subr.mxu0 0.0
            %v4196 = vand.u32 %v3435, 4294901760
            %v4197 = vsub.f32 %v3435, %v4196
            %4198 = vmatpush1.msra.mxu0 %v4197
            %4199 = vmatprep.subr.mxu0 0.0
            %v4200 = vand.u32 %v3436, 4294901760
            %v4201 = vsub.f32 %v3436, %v4200
            %4202 = vmatpush1.msra.mxu0 %v4201
            %4203 = vmatprep.subr.mxu0 0.0
            %v4204 = vand.u32 %v3437, 4294901760
            %v4205 = vsub.f32 %v3437, %v4204
            %4206 = vmatpush1.msra.mxu0 %v4205
            %4207 = vmatprep.subr.mxu0 0.0
            %v4208 = vand.u32 %v3438, 4294901760
            %v4209 = vsub.f32 %v3438, %v4208
            %4210 = vmatpush1.msra.mxu0 %v4209
            %4211 = vmatprep.subr.mxu0 0.0
            %v4212 = vand.u32 %v3439, 4294901760
            %v4213 = vsub.f32 %v3439, %v4212
            %4214 = vmatpush1.msra.mxu0 %v4213
            %4215 = vmatprep.subr.mxu0 0.0
            %v4216 = vand.u32 %v3440, 4294901760
            %v4217 = vsub.f32 %v3440, %v4216
            %4218 = vmatpush1.msra.mxu0 %v4217
            %4219 = vmatprep.subr.mxu0 0.0
            %v4220 = vand.u32 %v3441, 4294901760
            %v4221 = vsub.f32 %v3441, %v4220
            %4222 = vmatpush1.msra.mxu0 %v4221
            %4223 = vmatprep.subr.mxu0 0.0
            %v4224 = vand.u32 %v3442, 4294901760
            %v4225 = vsub.f32 %v3442, %v4224
            %4226 = vmatpush1.msra.mxu0 %v4225
            %4227 = vmatprep.subr.mxu0 0.0
            %v4228 = vand.u32 %v3443, 4294901760
            %v4229 = vsub.f32 %v3443, %v4228
            %4230 = vmatpush1.msra.mxu0 %v4229
            %4231 = vmatprep.subr.mxu0 0.0
            %v4232 = vand.u32 %v3444, 4294901760
            %v4233 = vsub.f32 %v3444, %v4232
            %4234 = vmatpush1.msra.mxu0 %v4233
            %4235 = vmatprep.subr.mxu0 0.0
            %v4236 = vand.u32 %v3445, 4294901760
            %v4237 = vsub.f32 %v3445, %v4236
            %4238 = vmatpush1.msra.mxu0 %v4237
            %4239 = vmatprep.subr.mxu0 0.0
            %v4240 = vand.u32 %v3446, 4294901760
            %v4241 = vsub.f32 %v3446, %v4240
            %4242 = vmatpush1.msra.mxu0 %v4241
            %4243 = vmatprep.subr.mxu0 0.0
            %v4244 = vand.u32 %v3447, 4294901760
            %v4245 = vsub.f32 %v3447, %v4244
            %4246 = vmatpush1.msra.mxu0 %v4245
            %4247 = vmatprep.subr.mxu0 0.0
            %v4248 = vand.u32 %v3448, 4294901760
            %v4249 = vsub.f32 %v3448, %v4248
            %4250 = vmatpush1.msra.mxu0 %v4249
            %v4251 = vand.u32 %v3386, 4294901760
            %v4252 = vsub.f32 %v3386, %v4251
            %4253 = vmatprep.mubr.f32.mxu0 %v4252
            %v4254 = vand.u32 %v3385, 4294901760
            %v4255 = vsub.f32 %v3385, %v4254
            %4256 = vmatmul.mubr.f32.gmra.mrb[0].mxu0 %v4255
            %v4257 = vpop.f32.mrb[0].mxu0
            %v4258 = vadd.f32 %v4015, %v4257
            %v4259 = vpop.f32.mrb[0].mxu0
            %v4260 = vand.u32 %v3388, 4294901760
            %v4261 = vsub.f32 %v3388, %v4260
            %4262 = vmatprep.mubr.f32.mxu0 %v4261
            %v4263 = vand.u32 %v3387, 4294901760
            %v4264 = vsub.f32 %v3387, %v4263
            %4265 = vmatmul.mubr.f32.gmra.mrb[0].mxu0 %v4264
            %v4266 = vpop.f32.mrb[0].mxu0
            %v4267 = vadd.f32 %v4022, %v4266
            %v4268 = vpop.f32.mrb[0].mxu0
            %v4269 = vand.u32 %v3390, 4294901760
            %v4270 = vsub.f32 %v3390, %v4269
            %4271 = vmatprep.mubr.f32.mxu0 %v4270
            %v4272 = vand.u32 %v3389, 4294901760
            %v4273 = vsub.f32 %v3389, %v4272
            %4274 = vmatmul.mubr.f32.gmra.mrb[0].mxu0 %v4273
            %v4275 = vpop.f32.mrb[0].mxu0
            %v4276 = vadd.f32 %v4029, %v4275
            %v4277 = vpop.f32.mrb[0].mxu0
            %v4278 = vand.u32 %v3392, 4294901760
            %v4279 = vsub.f32 %v3392, %v4278
            %4280 = vmatprep.mubr.f32.mxu0 %v4279
            %v4281 = vand.u32 %v3391, 4294901760
            %v4282 = vsub.f32 %v3391, %v4281
            %4283 = vmatmul.mubr.f32.gmra.mrb[0].mxu0 %v4282
            %v4284 = vpop.f32.mrb[0].mxu0
            %v4285 = vadd.f32 %v4036, %v4284
            %v4286 = vpop.f32.mrb[0].mxu0
            %v4287 = vand.u32 %v3394, 4294901760
            %v4288 = vsub.f32 %v3394, %v4287
            %4289 = vmatprep.mubr.f32.mxu0 %v4288
            %v4290 = vand.u32 %v3393, 4294901760
            %v4291 = vsub.f32 %v3393, %v4290
            %4292 = vmatmul.mubr.f32.gmra.mrb[0].mxu0 %v4291
            %v4293 = vpop.f32.mrb[0].mxu0
            %v4294 = vadd.f32 %v4043, %v4293
            %v4295 = vpop.f32.mrb[0].mxu0
            %v4296 = vand.u32 %v3396, 4294901760
            %v4297 = vsub.f32 %v3396, %v4296
            %4298 = vmatprep.mubr.f32.mxu0 %v4297
            %v4299 = vand.u32 %v3395, 4294901760
            %v4300 = vsub.f32 %v3395, %v4299
            %4301 = vmatmul.mubr.f32.gmra.mrb[0].mxu0 %v4300
            %v4302 = vpop.f32.mrb[0].mxu0
            %v4303 = vadd.f32 %v4050, %v4302
            %v4304 = vpop.f32.mrb[0].mxu0
            %v4305 = vand.u32 %v3398, 4294901760
            %v4306 = vsub.f32 %v3398, %v4305
            %4307 = vmatprep.mubr.f32.mxu0 %v4306
            %v4308 = vand.u32 %v3397, 4294901760
            %v4309 = vsub.f32 %v3397, %v4308
            %4310 = vmatmul.mubr.f32.gmra.mrb[0].mxu0 %v4309
            %v4311 = vpop.f32.mrb[0].mxu0
            %v4312 = vadd.f32 %v4057, %v4311
            %v4313 = vpop.f32.mrb[0].mxu0
            %v4314 = vand.u32 %v3400, 4294901760
            %v4315 = vsub.f32 %v3400, %v4314
            %4316 = vmatprep.mubr.f32.mxu0 %v4315
            %v4317 = vand.u32 %v3399, 4294901760
            %v4318 = vsub.f32 %v3399, %v4317
            %4319 = vmatmul.mubr.f32.gmra.mrb[0].mxu0 %v4318
            %v4320 = vpop.f32.mrb[0].mxu0
            %v4321 = vadd.f32 %v4064, %v4320
            %v4322 = vpop.f32.mrb[0].mxu0
            %v4323 = vand.u32 %v3402, 4294901760
            %v4324 = vsub.f32 %v3402, %v4323
            %4325 = vmatprep.mubr.f32.mxu0 %v4324
            %v4326 = vand.u32 %v3401, 4294901760
            %v4327 = vsub.f32 %v3401, %v4326
            %4328 = vmatmul.mubr.f32.gmra.mrb[0].mxu0 %v4327
            %v4329 = vpop.f32.mrb[0].mxu0
            %v4330 = vadd.f32 %v4071, %v4329
            %v4331 = vpop.f32.mrb[0].mxu0
            %v4332 = vand.u32 %v3404, 4294901760
            %v4333 = vsub.f32 %v3404, %v4332
            %4334 = vmatprep.mubr.f32.mxu0 %v4333
            %v4335 = vand.u32 %v3403, 4294901760
            %v4336 = vsub.f32 %v3403, %v4335
            %4337 = vmatmul.mubr.f32.gmra.mrb[0].mxu0 %v4336
            %v4338 = vpop.f32.mrb[0].mxu0
            %v4339 = vadd.f32 %v4078, %v4338
            %v4340 = vpop.f32.mrb[0].mxu0
            %v4341 = vand.u32 %v3406, 4294901760
            %v4342 = vsub.f32 %v3406, %v4341
            %4343 = vmatprep.mubr.f32.mxu0 %v4342
            %v4344 = vand.u32 %v3405, 4294901760
            %v4345 = vsub.f32 %v3405, %v4344
            %4346 = vmatmul.mubr.f32.gmra.mrb[0].mxu0 %v4345
            %v4347 = vpop.f32.mrb[0].mxu0
            %v4348 = vadd.f32 %v4085, %v4347
            %v4349 = vpop.f32.mrb[0].mxu0
            %v4350 = vand.u32 %v3408, 4294901760
            %v4351 = vsub.f32 %v3408, %v4350
            %4352 = vmatprep.mubr.f32.mxu0 %v4351
            %v4353 = vand.u32 %v3407, 4294901760
            %v4354 = vsub.f32 %v3407, %v4353
            %4355 = vmatmul.mubr.f32.gmra.mrb[0].mxu0 %v4354
            %v4356 = vpop.f32.mrb[0].mxu0
            %v4357 = vadd.f32 %v4092, %v4356
            %v4358 = vpop.f32.mrb[0].mxu0
            %v4359 = vand.u32 %v3410, 4294901760
            %v4360 = vsub.f32 %v3410, %v4359
            %4361 = vmatprep.mubr.f32.mxu0 %v4360
            %v4362 = vand.u32 %v3409, 4294901760
            %v4363 = vsub.f32 %v3409, %v4362
            %4364 = vmatmul.mubr.f32.gmra.mrb[0].mxu0 %v4363
            %v4365 = vpop.f32.mrb[0].mxu0
            %v4366 = vadd.f32 %v4099, %v4365
            %v4367 = vpop.f32.mrb[0].mxu0
            %v4368 = vand.u32 %v3412, 4294901760
            %v4369 = vsub.f32 %v3412, %v4368
            %4370 = vmatprep.mubr.f32.mxu0 %v4369
            %v4371 = vand.u32 %v3411, 4294901760
            %v4372 = vsub.f32 %v3411, %v4371
            %4373 = vmatmul.mubr.f32.gmra.mrb[0].mxu0 %v4372
            %v4374 = vpop.f32.mrb[0].mxu0
            %v4375 = vadd.f32 %v4106, %v4374
            %v4376 = vpop.f32.mrb[0].mxu0
            %v4377 = vand.u32 %v3414, 4294901760
            %v4378 = vsub.f32 %v3414, %v4377
            %4379 = vmatprep.mubr.f32.mxu0 %v4378
            %v4380 = vand.u32 %v3413, 4294901760
            %v4381 = vsub.f32 %v3413, %v4380
            %4382 = vmatmul.mubr.f32.gmra.mrb[0].mxu0 %v4381
            %v4383 = vpop.f32.mrb[0].mxu0
            %v4384 = vadd.f32 %v4113, %v4383
            %v4385 = vpop.f32.mrb[0].mxu0
            %v4386 = vand.u32 %v3416, 4294901760
            %v4387 = vsub.f32 %v3416, %v4386
            %4388 = vmatprep.mubr.f32.mxu0 %v4387
            %v4389 = vand.u32 %v3415, 4294901760
            %v4390 = vsub.f32 %v3415, %v4389
            %4391 = vmatmul.mubr.f32.gmra.mrb[0].mxu0 %v4390
            %v4392 = vpop.f32.mrb[0].mxu0
            %v4393 = vadd.f32 %v4120, %v4392
            %v4394 = vpop.f32.mrb[0].mxu0
            %4395 = vdwg.mxu0
            %4396 = vmatprep.subr.mxu0 0.0
            %v4397 = vand.u32 %v3417, 4294901760
            %4398 = vmatpush1.msra.mxu0 %v4397
            %4399 = vmatprep.subr.mxu0 0.0
            %v4400 = vand.u32 %v3418, 4294901760
            %4401 = vmatpush1.msra.mxu0 %v4400
            %4402 = vmatprep.subr.mxu0 0.0
            %v4403 = vand.u32 %v3419, 4294901760
            %4404 = vmatpush1.msra.mxu0 %v4403
            %4405 = vmatprep.subr.mxu0 0.0
            %v4406 = vand.u32 %v3420, 4294901760
            %4407 = vmatpush1.msra.mxu0 %v4406
            %4408 = vmatprep.subr.mxu0 0.0
            %v4409 = vand.u32 %v3421, 4294901760
            %4410 = vmatpush1.msra.mxu0 %v4409
            %4411 = vmatprep.subr.mxu0 0.0
            %v4412 = vand.u32 %v3422, 4294901760
            %4413 = vmatpush1.msra.mxu0 %v4412
            %4414 = vmatprep.subr.mxu0 0.0
            %v4415 = vand.u32 %v3423, 4294901760
            %4416 = vmatpush1.msra.mxu0 %v4415
            %4417 = vmatprep.subr.mxu0 0.0
            %v4418 = vand.u32 %v3424, 4294901760
            %4419 = vmatpush1.msra.mxu0 %v4418
            %4420 = vmatprep.subr.mxu0 0.0
            %v4421 = vand.u32 %v3425, 4294901760
            %4422 = vmatpush1.msra.mxu0 %v4421
            %4423 = vmatprep.subr.mxu0 0.0
            %v4424 = vand.u32 %v3426, 4294901760
            %4425 = vmatpush1.msra.mxu0 %v4424
            %4426 = vmatprep.subr.mxu0 0.0
            %v4427 = vand.u32 %v3427, 4294901760
            %4428 = vmatpush1.msra.mxu0 %v4427
            %4429 = vmatprep.subr.mxu0 0.0
            %v4430 = vand.u32 %v3428, 4294901760
            %4431 = vmatpush1.msra.mxu0 %v4430
            %4432 = vmatprep.subr.mxu0 0.0
            %v4433 = vand.u32 %v3429, 4294901760
            %4434 = vmatpush1.msra.mxu0 %v4433
            %4435 = vmatprep.subr.mxu0 0.0
            %v4436 = vand.u32 %v3430, 4294901760
            %4437 = vmatpush1.msra.mxu0 %v4436
            %4438 = vmatprep.subr.mxu0 0.0
            %v4439 = vand.u32 %v3431, 4294901760
            %4440 = vmatpush1.msra.mxu0 %v4439
            %4441 = vmatprep.subr.mxu0 0.0
            %v4442 = vand.u32 %v3432, 4294901760
            %4443 = vmatpush1.msra.mxu0 %v4442
            %4444 = vmatprep.subr.mxu0 0.0
            %v4445 = vand.u32 %v3433, 4294901760
            %4446 = vmatpush1.msra.mxu0 %v4445
            %4447 = vmatprep.subr.mxu0 0.0
            %v4448 = vand.u32 %v3434, 4294901760
            %4449 = vmatpush1.msra.mxu0 %v4448
            %4450 = vmatprep.subr.mxu0 0.0
            %v4451 = vand.u32 %v3435, 4294901760
            %4452 = vmatpush1.msra.mxu0 %v4451
            %4453 = vmatprep.subr.mxu0 0.0
            %v4454 = vand.u32 %v3436, 4294901760
            %4455 = vmatpush1.msra.mxu0 %v4454
            %4456 = vmatprep.subr.mxu0 0.0
            %v4457 = vand.u32 %v3437, 4294901760
            %4458 = vmatpush1.msra.mxu0 %v4457
            %4459 = vmatprep.subr.mxu0 0.0
            %v4460 = vand.u32 %v3438, 4294901760
            %4461 = vmatpush1.msra.mxu0 %v4460
            %4462 = vmatprep.subr.mxu0 0.0
            %v4463 = vand.u32 %v3439, 4294901760
            %4464 = vmatpush1.msra.mxu0 %v4463
            %4465 = vmatprep.subr.mxu0 0.0
            %v4466 = vand.u32 %v3440, 4294901760
            %4467 = vmatpush1.msra.mxu0 %v4466
            %4468 = vmatprep.subr.mxu0 0.0
            %v4469 = vand.u32 %v3441, 4294901760
            %4470 = vmatpush1.msra.mxu0 %v4469
            %4471 = vmatprep.subr.mxu0 0.0
            %v4472 = vand.u32 %v3442, 4294901760
            %4473 = vmatpush1.msra.mxu0 %v4472
            %4474 = vmatprep.subr.mxu0 0.0
            %v4475 = vand.u32 %v3443, 4294901760
            %4476 = vmatpush1.msra.mxu0 %v4475
            %4477 = vmatprep.subr.mxu0 0.0
            %v4478 = vand.u32 %v3444, 4294901760
            %4479 = vmatpush1.msra.mxu0 %v4478
            %4480 = vmatprep.subr.mxu0 0.0
            %v4481 = vand.u32 %v3445, 4294901760
            %4482 = vmatpush1.msra.mxu0 %v4481
            %4483 = vmatprep.subr.mxu0 0.0
            %v4484 = vand.u32 %v3446, 4294901760
            %4485 = vmatpush1.msra.mxu0 %v4484
            %4486 = vmatprep.subr.mxu0 0.0
            %v4487 = vand.u32 %v3447, 4294901760
            %4488 = vmatpush1.msra.mxu0 %v4487
            %4489 = vmatprep.subr.mxu0 0.0
            %v4490 = vand.u32 %v3448, 4294901760
            %4491 = vmatpush1.msra.mxu0 %v4490
            %v4492 = vand.u32 %v3386, 4294901760
            %v4493 = vsub.f32 %v3386, %v4492
            %v4494 = vand.u32 %v4493, 4294901760
            %4495 = vmatprep.mubr.f32.mxu0 %v4494
            %v4496 = vand.u32 %v3385, 4294901760
            %v4497 = vsub.f32 %v3385, %v4496
            %v4498 = vand.u32 %v4497, 4294901760
            %4499 = vmatmul.mubr.f32.gmra.mrb[0].mxu0 %v4498
            %v4500 = vpop.f32.mrb[0].mxu0
            %v4501 = vadd.f32 %v4258, %v4500
            %v4502 = vpop.f32.mrb[0].mxu0
            %v4503 = vand.u32 %v3388, 4294901760
            %v4504 = vsub.f32 %v3388, %v4503
            %v4505 = vand.u32 %v4504, 4294901760
            %4506 = vmatprep.mubr.f32.mxu0 %v4505
            %v4507 = vand.u32 %v3387, 4294901760
            %v4508 = vsub.f32 %v3387, %v4507
            %v4509 = vand.u32 %v4508, 4294901760
            %4510 = vmatmul.mubr.f32.gmra.mrb[0].mxu0 %v4509
            %v4511 = vpop.f32.mrb[0].mxu0
            %v4512 = vadd.f32 %v4267, %v4511
            %v4513 = vpop.f32.mrb[0].mxu0
            %v4514 = vand.u32 %v3390, 4294901760
            %v4515 = vsub.f32 %v3390, %v4514
            %v4516 = vand.u32 %v4515, 4294901760
            %4517 = vmatprep.mubr.f32.mxu0 %v4516
            %v4518 = vand.u32 %v3389, 4294901760
            %v4519 = vsub.f32 %v3389, %v4518
            %v4520 = vand.u32 %v4519, 4294901760
            %4521 = vmatmul.mubr.f32.gmra.mrb[0].mxu0 %v4520
            %v4522 = vpop.f32.mrb[0].mxu0
            %v4523 = vadd.f32 %v4276, %v4522
            %v4524 = vpop.f32.mrb[0].mxu0
            %v4525 = vand.u32 %v3392, 4294901760
            %v4526 = vsub.f32 %v3392, %v4525
            %v4527 = vand.u32 %v4526, 4294901760
            %4528 = vmatprep.mubr.f32.mxu0 %v4527
            %v4529 = vand.u32 %v3391, 4294901760
            %v4530 = vsub.f32 %v3391, %v4529
            %v4531 = vand.u32 %v4530, 4294901760
            %4532 = vmatmul.mubr.f32.gmra.mrb[0].mxu0 %v4531
            %v4533 = vpop.f32.mrb[0].mxu0
            %v4534 = vadd.f32 %v4285, %v4533
            %v4535 = vpop.f32.mrb[0].mxu0
            %v4536 = vand.u32 %v3394, 4294901760
            %v4537 = vsub.f32 %v3394, %v4536
            %v4538 = vand.u32 %v4537, 4294901760
            %4539 = vmatprep.mubr.f32.mxu0 %v4538
            %v4540 = vand.u32 %v3393, 4294901760
            %v4541 = vsub.f32 %v3393, %v4540
            %v4542 = vand.u32 %v4541, 4294901760
            %4543 = vmatmul.mubr.f32.gmra.mrb[0].mxu0 %v4542
            %v4544 = vpop.f32.mrb[0].mxu0
            %v4545 = vadd.f32 %v4294, %v4544
            %v4546 = vpop.f32.mrb[0].mxu0
            %v4547 = vand.u32 %v3396, 4294901760
            %v4548 = vsub.f32 %v3396, %v4547
            %v4549 = vand.u32 %v4548, 4294901760
            %4550 = vmatprep.mubr.f32.mxu0 %v4549
            %v4551 = vand.u32 %v3395, 4294901760
            %v4552 = vsub.f32 %v3395, %v4551
            %v4553 = vand.u32 %v4552, 4294901760
            %4554 = vmatmul.mubr.f32.gmra.mrb[0].mxu0 %v4553
            %v4555 = vpop.f32.mrb[0].mxu0
            %v4556 = vadd.f32 %v4303, %v4555
            %v4557 = vpop.f32.mrb[0].mxu0
            %v4558 = vand.u32 %v3398, 4294901760
            %v4559 = vsub.f32 %v3398, %v4558
            %v4560 = vand.u32 %v4559, 4294901760
            %4561 = vmatprep.mubr.f32.mxu0 %v4560
            %v4562 = vand.u32 %v3397, 4294901760
            %v4563 = vsub.f32 %v3397, %v4562
            %v4564 = vand.u32 %v4563, 4294901760
            %4565 = vmatmul.mubr.f32.gmra.mrb[0].mxu0 %v4564
            %v4566 = vpop.f32.mrb[0].mxu0
            %v4567 = vadd.f32 %v4312, %v4566
            %v4568 = vpop.f32.mrb[0].mxu0
            %v4569 = vand.u32 %v3400, 4294901760
            %v4570 = vsub.f32 %v3400, %v4569
            %v4571 = vand.u32 %v4570, 4294901760
            %4572 = vmatprep.mubr.f32.mxu0 %v4571
            %v4573 = vand.u32 %v3399, 4294901760
            %v4574 = vsub.f32 %v3399, %v4573
            %v4575 = vand.u32 %v4574, 4294901760
            %4576 = vmatmul.mubr.f32.gmra.mrb[0].mxu0 %v4575
            %v4577 = vpop.f32.mrb[0].mxu0
            %v4578 = vadd.f32 %v4321, %v4577
            %v4579 = vpop.f32.mrb[0].mxu0
            %v4580 = vand.u32 %v3402, 4294901760
            %v4581 = vsub.f32 %v3402, %v4580
            %v4582 = vand.u32 %v4581, 4294901760
            %4583 = vmatprep.mubr.f32.mxu0 %v4582
            %v4584 = vand.u32 %v3401, 4294901760
            %v4585 = vsub.f32 %v3401, %v4584
            %v4586 = vand.u32 %v4585, 4294901760
            %4587 = vmatmul.mubr.f32.gmra.mrb[0].mxu0 %v4586
            %v4588 = vpop.f32.mrb[0].mxu0
            %v4589 = vadd.f32 %v4330, %v4588
            %v4590 = vpop.f32.mrb[0].mxu0
            %v4591 = vand.u32 %v3404, 4294901760
            %v4592 = vsub.f32 %v3404, %v4591
            %v4593 = vand.u32 %v4592, 4294901760
            %4594 = vmatprep.mubr.f32.mxu0 %v4593
            %v4595 = vand.u32 %v3403, 4294901760
            %v4596 = vsub.f32 %v3403, %v4595
            %v4597 = vand.u32 %v4596, 4294901760
            %4598 = vmatmul.mubr.f32.gmra.mrb[0].mxu0 %v4597
            %v4599 = vpop.f32.mrb[0].mxu0
            %v4600 = vadd.f32 %v4339, %v4599
            %v4601 = vpop.f32.mrb[0].mxu0
            %v4602 = vand.u32 %v3406, 4294901760
            %v4603 = vsub.f32 %v3406, %v4602
            %v4604 = vand.u32 %v4603, 4294901760
            %4605 = vmatprep.mubr.f32.mxu0 %v4604
            %v4606 = vand.u32 %v3405, 4294901760
            %v4607 = vsub.f32 %v3405, %v4606
            %v4608 = vand.u32 %v4607, 4294901760
            %4609 = vmatmul.mubr.f32.gmra.mrb[0].mxu0 %v4608
            %v4610 = vpop.f32.mrb[0].mxu0
            %v4611 = vadd.f32 %v4348, %v4610
            %v4612 = vpop.f32.mrb[0].mxu0
            %v4613 = vand.u32 %v3408, 4294901760
            %v4614 = vsub.f32 %v3408, %v4613
            %v4615 = vand.u32 %v4614, 4294901760
            %4616 = vmatprep.mubr.f32.mxu0 %v4615
            %v4617 = vand.u32 %v3407, 4294901760
            %v4618 = vsub.f32 %v3407, %v4617
            %v4619 = vand.u32 %v4618, 4294901760
            %4620 = vmatmul.mubr.f32.gmra.mrb[0].mxu0 %v4619
            %v4621 = vpop.f32.mrb[0].mxu0
            %v4622 = vadd.f32 %v4357, %v4621
            %v4623 = vpop.f32.mrb[0].mxu0
            %v4624 = vand.u32 %v3410, 4294901760
            %v4625 = vsub.f32 %v3410, %v4624
            %v4626 = vand.u32 %v4625, 4294901760
            %4627 = vmatprep.mubr.f32.mxu0 %v4626
            %v4628 = vand.u32 %v3409, 4294901760
            %v4629 = vsub.f32 %v3409, %v4628
            %v4630 = vand.u32 %v4629, 4294901760
            %4631 = vmatmul.mubr.f32.gmra.mrb[0].mxu0 %v4630
            %v4632 = vpop.f32.mrb[0].mxu0
            %v4633 = vadd.f32 %v4366, %v4632
            %v4634 = vpop.f32.mrb[0].mxu0
            %v4635 = vand.u32 %v3412, 4294901760
            %v4636 = vsub.f32 %v3412, %v4635
            %v4637 = vand.u32 %v4636, 4294901760
            %4638 = vmatprep.mubr.f32.mxu0 %v4637
            %v4639 = vand.u32 %v3411, 4294901760
            %v4640 = vsub.f32 %v3411, %v4639
            %v4641 = vand.u32 %v4640, 4294901760
            %4642 = vmatmul.mubr.f32.gmra.mrb[0].mxu0 %v4641
            %v4643 = vpop.f32.mrb[0].mxu0
            %v4644 = vadd.f32 %v4375, %v4643
            %v4645 = vpop.f32.mrb[0].mxu0
            %v4646 = vand.u32 %v3414, 4294901760
            %v4647 = vsub.f32 %v3414, %v4646
            %v4648 = vand.u32 %v4647, 4294901760
            %4649 = vmatprep.mubr.f32.mxu0 %v4648
            %v4650 = vand.u32 %v3413, 4294901760
            %v4651 = vsub.f32 %v3413, %v4650
            %v4652 = vand.u32 %v4651, 4294901760
            %4653 = vmatmul.mubr.f32.gmra.mrb[0].mxu0 %v4652
            %v4654 = vpop.f32.mrb[0].mxu0
            %v4655 = vadd.f32 %v4384, %v4654
            %v4656 = vpop.f32.mrb[0].mxu0
            %v4657 = vand.u32 %v3416, 4294901760
            %v4658 = vsub.f32 %v3416, %v4657
            %v4659 = vand.u32 %v4658, 4294901760
            %4660 = vmatprep.mubr.f32.mxu0 %v4659
            %v4661 = vand.u32 %v3415, 4294901760
            %v4662 = vsub.f32 %v3415, %v4661
            %v4663 = vand.u32 %v4662, 4294901760
            %4664 = vmatmul.mubr.f32.gmra.mrb[0].mxu0 %v4663
            %v4665 = vpop.f32.mrb[0].mxu0
            %v4666 = vadd.f32 %v4393, %v4665
            %v4667 = vpop.f32.mrb[0].mxu0
            %4668 = vdwg.mxu0
            %4669 = vmatprep.subr.mxu0 0.0
            %v4670 = vand.u32 %v3417, 4294901760
            %v4671 = vsub.f32 %v3417, %v4670
            %v4672 = vand.u32 %v4671, 4294901760
            %4673 = vmatpush1.msra.mxu0 %v4672
            %4674 = vmatprep.subr.mxu0 0.0
            %v4675 = vand.u32 %v3418, 4294901760
            %v4676 = vsub.f32 %v3418, %v4675
            %v4677 = vand.u32 %v4676, 4294901760
            %4678 = vmatpush1.msra.mxu0 %v4677
            %4679 = vmatprep.subr.mxu0 0.0
            %v4680 = vand.u32 %v3419, 4294901760
            %v4681 = vsub.f32 %v3419, %v4680
            %v4682 = vand.u32 %v4681, 4294901760
            %4683 = vmatpush1.msra.mxu0 %v4682
            %4684 = vmatprep.subr.mxu0 0.0
            %v4685 = vand.u32 %v3420, 4294901760
            %v4686 = vsub.f32 %v3420, %v4685
            %v4687 = vand.u32 %v4686, 4294901760
            %4688 = vmatpush1.msra.mxu0 %v4687
            %4689 = vmatprep.subr.mxu0 0.0
            %v4690 = vand.u32 %v3421, 4294901760
            %v4691 = vsub.f32 %v3421, %v4690
            %v4692 = vand.u32 %v4691, 4294901760
            %4693 = vmatpush1.msra.mxu0 %v4692
            %4694 = vmatprep.subr.mxu0 0.0
            %v4695 = vand.u32 %v3422, 4294901760
            %v4696 = vsub.f32 %v3422, %v4695
            %v4697 = vand.u32 %v4696, 4294901760
            %4698 = vmatpush1.msra.mxu0 %v4697
            %4699 = vmatprep.subr.mxu0 0.0
            %v4700 = vand.u32 %v3423, 4294901760
            %v4701 = vsub.f32 %v3423, %v4700
            %v4702 = vand.u32 %v4701, 4294901760
            %4703 = vmatpush1.msra.mxu0 %v4702
            %4704 = vmatprep.subr.mxu0 0.0
            %v4705 = vand.u32 %v3424, 4294901760
            %v4706 = vsub.f32 %v3424, %v4705
            %v4707 = vand.u32 %v4706, 4294901760
            %4708 = vmatpush1.msra.mxu0 %v4707
            %4709 = vmatprep.subr.mxu0 0.0
            %v4710 = vand.u32 %v3425, 4294901760
            %v4711 = vsub.f32 %v3425, %v4710
            %v4712 = vand.u32 %v4711, 4294901760
            %4713 = vmatpush1.msra.mxu0 %v4712
            %4714 = vmatprep.subr.mxu0 0.0
            %v4715 = vand.u32 %v3426, 4294901760
            %v4716 = vsub.f32 %v3426, %v4715
            %v4717 = vand.u32 %v4716, 4294901760
            %4718 = vmatpush1.msra.mxu0 %v4717
            %4719 = vmatprep.subr.mxu0 0.0
            %v4720 = vand.u32 %v3427, 4294901760
            %v4721 = vsub.f32 %v3427, %v4720
            %v4722 = vand.u32 %v4721, 4294901760
            %4723 = vmatpush1.msra.mxu0 %v4722
            %4724 = vmatprep.subr.mxu0 0.0
            %v4725 = vand.u32 %v3428, 4294901760
            %v4726 = vsub.f32 %v3428, %v4725
            %v4727 = vand.u32 %v4726, 4294901760
            %4728 = vmatpush1.msra.mxu0 %v4727
            %4729 = vmatprep.subr.mxu0 0.0
            %v4730 = vand.u32 %v3429, 4294901760
            %v4731 = vsub.f32 %v3429, %v4730
            %v4732 = vand.u32 %v4731, 4294901760
            %4733 = vmatpush1.msra.mxu0 %v4732
            %4734 = vmatprep.subr.mxu0 0.0
            %v4735 = vand.u32 %v3430, 4294901760
            %v4736 = vsub.f32 %v3430, %v4735
            %v4737 = vand.u32 %v4736, 4294901760
            %4738 = vmatpush1.msra.mxu0 %v4737
            %4739 = vmatprep.subr.mxu0 0.0
            %v4740 = vand.u32 %v3431, 4294901760
            %v4741 = vsub.f32 %v3431, %v4740
            %v4742 = vand.u32 %v4741, 4294901760
            %4743 = vmatpush1.msra.mxu0 %v4742
            %4744 = vmatprep.subr.mxu0 0.0
            %v4745 = vand.u32 %v3432, 4294901760
            %v4746 = vsub.f32 %v3432, %v4745
            %v4747 = vand.u32 %v4746, 4294901760
            %4748 = vmatpush1.msra.mxu0 %v4747
            %4749 = vmatprep.subr.mxu0 0.0
            %v4750 = vand.u32 %v3433, 4294901760
            %v4751 = vsub.f32 %v3433, %v4750
            %v4752 = vand.u32 %v4751, 4294901760
            %4753 = vmatpush1.msra.mxu0 %v4752
            %4754 = vmatprep.subr.mxu0 0.0
            %v4755 = vand.u32 %v3434, 4294901760
            %v4756 = vsub.f32 %v3434, %v4755
            %v4757 = vand.u32 %v4756, 4294901760
            %4758 = vmatpush1.msra.mxu0 %v4757
            %4759 = vmatprep.subr.mxu0 0.0
            %v4760 = vand.u32 %v3435, 4294901760
            %v4761 = vsub.f32 %v3435, %v4760
            %v4762 = vand.u32 %v4761, 4294901760
            %4763 = vmatpush1.msra.mxu0 %v4762
            %4764 = vmatprep.subr.mxu0 0.0
            %v4765 = vand.u32 %v3436, 4294901760
            %v4766 = vsub.f32 %v3436, %v4765
            %v4767 = vand.u32 %v4766, 4294901760
            %4768 = vmatpush1.msra.mxu0 %v4767
            %4769 = vmatprep.subr.mxu0 0.0
            %v4770 = vand.u32 %v3437, 4294901760
            %v4771 = vsub.f32 %v3437, %v4770
            %v4772 = vand.u32 %v4771, 4294901760
            %4773 = vmatpush1.msra.mxu0 %v4772
            %4774 = vmatprep.subr.mxu0 0.0
            %v4775 = vand.u32 %v3438, 4294901760
            %v4776 = vsub.f32 %v3438, %v4775
            %v4777 = vand.u32 %v4776, 4294901760
            %4778 = vmatpush1.msra.mxu0 %v4777
            %4779 = vmatprep.subr.mxu0 0.0
            %v4780 = vand.u32 %v3439, 4294901760
            %v4781 = vsub.f32 %v3439, %v4780
            %v4782 = vand.u32 %v4781, 4294901760
            %4783 = vmatpush1.msra.mxu0 %v4782
            %4784 = vmatprep.subr.mxu0 0.0
            %v4785 = vand.u32 %v3440, 4294901760
            %v4786 = vsub.f32 %v3440, %v4785
            %v4787 = vand.u32 %v4786, 4294901760
            %4788 = vmatpush1.msra.mxu0 %v4787
            %4789 = vmatprep.subr.mxu0 0.0
            %v4790 = vand.u32 %v3441, 4294901760
            %v4791 = vsub.f32 %v3441, %v4790
            %v4792 = vand.u32 %v4791, 4294901760
            %4793 = vmatpush1.msra.mxu0 %v4792
            %4794 = vmatprep.subr.mxu0 0.0
            %v4795 = vand.u32 %v3442, 4294901760
            %v4796 = vsub.f32 %v3442, %v4795
            %v4797 = vand.u32 %v4796, 4294901760
            %4798 = vmatpush1.msra.mxu0 %v4797
            %4799 = vmatprep.subr.mxu0 0.0
            %v4800 = vand.u32 %v3443, 4294901760
            %v4801 = vsub.f32 %v3443, %v4800
            %v4802 = vand.u32 %v4801, 4294901760
            %4803 = vmatpush1.msra.mxu0 %v4802
            %4804 = vmatprep.subr.mxu0 0.0
            %v4805 = vand.u32 %v3444, 4294901760
            %v4806 = vsub.f32 %v3444, %v4805
            %v4807 = vand.u32 %v4806, 4294901760
            %4808 = vmatpush1.msra.mxu0 %v4807
            %4809 = vmatprep.subr.mxu0 0.0
            %v4810 = vand.u32 %v3445, 4294901760
            %v4811 = vsub.f32 %v3445, %v4810
            %v4812 = vand.u32 %v4811, 4294901760
            %4813 = vmatpush1.msra.mxu0 %v4812
            %4814 = vmatprep.subr.mxu0 0.0
            %v4815 = vand.u32 %v3446, 4294901760
            %v4816 = vsub.f32 %v3446, %v4815
            %v4817 = vand.u32 %v4816, 4294901760
            %4818 = vmatpush1.msra.mxu0 %v4817
            %4819 = vmatprep.subr.mxu0 0.0
            %v4820 = vand.u32 %v3447, 4294901760
            %v4821 = vsub.f32 %v3447, %v4820
            %v4822 = vand.u32 %v4821, 4294901760
            %4823 = vmatpush1.msra.mxu0 %v4822
            %4824 = vmatprep.subr.mxu0 0.0
            %v4825 = vand.u32 %v3448, 4294901760
            %v4826 = vsub.f32 %v3448, %v4825
            %v4827 = vand.u32 %v4826, 4294901760
            %4828 = vmatpush1.msra.mxu0 %v4827
            %v4829 = vand.u32 %v3386, 4294901760
            %4830 = vmatprep.mubr.f32.mxu0 %v4829
            %v4831 = vand.u32 %v3385, 4294901760
            %4832 = vmatmul.mubr.f32.gmra.mrb[0].mxu0 %v4831
            %v4833 = vpop.f32.mrb[0].mxu0
            %v4834 = vadd.f32 %v4501, %v4833
            %v4835 = vpop.f32.mrb[0].mxu0
            %v4836 = vand.u32 %v3388, 4294901760
            %4837 = vmatprep.mubr.f32.mxu0 %v4836
            %v4838 = vand.u32 %v3387, 4294901760
            %4839 = vmatmul.mubr.f32.gmra.mrb[0].mxu0 %v4838
            %v4840 = vpop.f32.mrb[0].mxu0
            %v4841 = vadd.f32 %v4512, %v4840
            %v4842 = vpop.f32.mrb[0].mxu0
            %v4843 = vand.u32 %v3390, 4294901760
            %4844 = vmatprep.mubr.f32.mxu0 %v4843
            %v4845 = vand.u32 %v3389, 4294901760
            %4846 = vmatmul.mubr.f32.gmra.mrb[0].mxu0 %v4845
            %v4847 = vpop.f32.mrb[0].mxu0
            %v4848 = vadd.f32 %v4523, %v4847
            %v4849 = vpop.f32.mrb[0].mxu0
            %v4850 = vand.u32 %v3392, 4294901760
            %4851 = vmatprep.mubr.f32.mxu0 %v4850
            %v4852 = vand.u32 %v3391, 4294901760
            %4853 = vmatmul.mubr.f32.gmra.mrb[0].mxu0 %v4852
            %v4854 = vpop.f32.mrb[0].mxu0
            %v4855 = vadd.f32 %v4534, %v4854
            %v4856 = vpop.f32.mrb[0].mxu0
            %v4857 = vand.u32 %v3394, 4294901760
            %4858 = vmatprep.mubr.f32.mxu0 %v4857
            %v4859 = vand.u32 %v3393, 4294901760
            %4860 = vmatmul.mubr.f32.gmra.mrb[0].mxu0 %v4859
            %v4861 = vpop.f32.mrb[0].mxu0
            %v4862 = vadd.f32 %v4545, %v4861
            %v4863 = vpop.f32.mrb[0].mxu0
            %v4864 = vand.u32 %v3396, 4294901760
            %4865 = vmatprep.mubr.f32.mxu0 %v4864
            %v4866 = vand.u32 %v3395, 4294901760
            %4867 = vmatmul.mubr.f32.gmra.mrb[0].mxu0 %v4866
            %v4868 = vpop.f32.mrb[0].mxu0
            %v4869 = vadd.f32 %v4556, %v4868
            %v4870 = vpop.f32.mrb[0].mxu0
            %v4871 = vand.u32 %v3398, 4294901760
            %4872 = vmatprep.mubr.f32.mxu0 %v4871
            %v4873 = vand.u32 %v3397, 4294901760
            %4874 = vmatmul.mubr.f32.gmra.mrb[0].mxu0 %v4873
            %v4875 = vpop.f32.mrb[0].mxu0
            %v4876 = vadd.f32 %v4567, %v4875
            %v4877 = vpop.f32.mrb[0].mxu0
            %v4878 = vand.u32 %v3400, 4294901760
            %4879 = vmatprep.mubr.f32.mxu0 %v4878
            %v4880 = vand.u32 %v3399, 4294901760
            %4881 = vmatmul.mubr.f32.gmra.mrb[0].mxu0 %v4880
            %v4882 = vpop.f32.mrb[0].mxu0
            %v4883 = vadd.f32 %v4578, %v4882
            %v4884 = vpop.f32.mrb[0].mxu0
            %v4885 = vand.u32 %v3402, 4294901760
            %4886 = vmatprep.mubr.f32.mxu0 %v4885
            %v4887 = vand.u32 %v3401, 4294901760
            %4888 = vmatmul.mubr.f32.gmra.mrb[0].mxu0 %v4887
            %v4889 = vpop.f32.mrb[0].mxu0
            %v4890 = vadd.f32 %v4589, %v4889
            %v4891 = vpop.f32.mrb[0].mxu0
            %v4892 = vand.u32 %v3404, 4294901760
            %4893 = vmatprep.mubr.f32.mxu0 %v4892
            %v4894 = vand.u32 %v3403, 4294901760
            %4895 = vmatmul.mubr.f32.gmra.mrb[0].mxu0 %v4894
            %v4896 = vpop.f32.mrb[0].mxu0
            %v4897 = vadd.f32 %v4600, %v4896
            %v4898 = vpop.f32.mrb[0].mxu0
            %v4899 = vand.u32 %v3406, 4294901760
            %4900 = vmatprep.mubr.f32.mxu0 %v4899
            %v4901 = vand.u32 %v3405, 4294901760
            %4902 = vmatmul.mubr.f32.gmra.mrb[0].mxu0 %v4901
            %v4903 = vpop.f32.mrb[0].mxu0
            %v4904 = vadd.f32 %v4611, %v4903
            %v4905 = vpop.f32.mrb[0].mxu0
            %v4906 = vand.u32 %v3408, 4294901760
            %4907 = vmatprep.mubr.f32.mxu0 %v4906
            %v4908 = vand.u32 %v3407, 4294901760
            %4909 = vmatmul.mubr.f32.gmra.mrb[0].mxu0 %v4908
            %v4910 = vpop.f32.mrb[0].mxu0
            %v4911 = vadd.f32 %v4622, %v4910
            %v4912 = vpop.f32.mrb[0].mxu0
            %v4913 = vand.u32 %v3410, 4294901760
            %4914 = vmatprep.mubr.f32.mxu0 %v4913
            %v4915 = vand.u32 %v3409, 4294901760
            %4916 = vmatmul.mubr.f32.gmra.mrb[0].mxu0 %v4915
            %v4917 = vpop.f32.mrb[0].mxu0
            %v4918 = vadd.f32 %v4633, %v4917
            %v4919 = vpop.f32.mrb[0].mxu0
            %v4920 = vand.u32 %v3412, 4294901760
            %4921 = vmatprep.mubr.f32.mxu0 %v4920
            %v4922 = vand.u32 %v3411, 4294901760
            %4923 = vmatmul.mubr.f32.gmra.mrb[0].mxu0 %v4922
            %v4924 = vpop.f32.mrb[0].mxu0
            %v4925 = vadd.f32 %v4644, %v4924
            %v4926 = vpop.f32.mrb[0].mxu0
            %v4927 = vand.u32 %v3414, 4294901760
            %4928 = vmatprep.mubr.f32.mxu0 %v4927
            %v4929 = vand.u32 %v3413, 4294901760
            %4930 = vmatmul.mubr.f32.gmra.mrb[0].mxu0 %v4929
            %v4931 = vpop.f32.mrb[0].mxu0
            %v4932 = vadd.f32 %v4655, %v4931
            %v4933 = vpop.f32.mrb[0].mxu0
            %v4934 = vand.u32 %v3416, 4294901760
            %4935 = vmatprep.mubr.f32.mxu0 %v4934
            %v4936 = vand.u32 %v3415, 4294901760
            %4937 = vmatmul.mubr.f32.gmra.mrb[0].mxu0 %v4936
            %v4938 = vpop.f32.mrb[0].mxu0
            %v4939 = vadd.f32 %v4666, %v4938
            %v4940 = vpop.f32.mrb[0].mxu0
            %4941 = vdwg.mxu0
            %4942 = vmatprep.subr.mxu0 0.0
            %v4943 = vand.u32 %v3417, 4294901760
            %4944 = vmatpush1.msra.mxu0 %v4943
            %4945 = vmatprep.subr.mxu0 0.0
            %v4946 = vand.u32 %v3418, 4294901760
            %4947 = vmatpush1.msra.mxu0 %v4946
            %4948 = vmatprep.subr.mxu0 0.0
            %v4949 = vand.u32 %v3419, 4294901760
            %4950 = vmatpush1.msra.mxu0 %v4949
            %4951 = vmatprep.subr.mxu0 0.0
            %v4952 = vand.u32 %v3420, 4294901760
            %4953 = vmatpush1.msra.mxu0 %v4952
            %4954 = vmatprep.subr.mxu0 0.0
            %v4955 = vand.u32 %v3421, 4294901760
            %4956 = vmatpush1.msra.mxu0 %v4955
            %4957 = vmatprep.subr.mxu0 0.0
            %v4958 = vand.u32 %v3422, 4294901760
            %4959 = vmatpush1.msra.mxu0 %v4958
            %4960 = vmatprep.subr.mxu0 0.0
            %v4961 = vand.u32 %v3423, 4294901760
            %4962 = vmatpush1.msra.mxu0 %v4961
            %4963 = vmatprep.subr.mxu0 0.0
            %v4964 = vand.u32 %v3424, 4294901760
            %4965 = vmatpush1.msra.mxu0 %v4964
            %4966 = vmatprep.subr.mxu0 0.0
            %v4967 = vand.u32 %v3425, 4294901760
            %4968 = vmatpush1.msra.mxu0 %v4967
            %4969 = vmatprep.subr.mxu0 0.0
            %v4970 = vand.u32 %v3426, 4294901760
            %4971 = vmatpush1.msra.mxu0 %v4970
            %4972 = vmatprep.subr.mxu0 0.0
            %v4973 = vand.u32 %v3427, 4294901760
            %4974 = vmatpush1.msra.mxu0 %v4973
            %4975 = vmatprep.subr.mxu0 0.0
            %v4976 = vand.u32 %v3428, 4294901760
            %4977 = vmatpush1.msra.mxu0 %v4976
            %4978 = vmatprep.subr.mxu0 0.0
            %v4979 = vand.u32 %v3429, 4294901760
            %4980 = vmatpush1.msra.mxu0 %v4979
            %4981 = vmatprep.subr.mxu0 0.0
            %v4982 = vand.u32 %v3430, 4294901760
            %4983 = vmatpush1.msra.mxu0 %v4982
            %4984 = vmatprep.subr.mxu0 0.0
            %v4985 = vand.u32 %v3431, 4294901760
            %4986 = vmatpush1.msra.mxu0 %v4985
            %4987 = vmatprep.subr.mxu0 0.0
            %v4988 = vand.u32 %v3432, 4294901760
            %4989 = vmatpush1.msra.mxu0 %v4988
            %4990 = vmatprep.subr.mxu0 0.0
            %v4991 = vand.u32 %v3433, 4294901760
            %4992 = vmatpush1.msra.mxu0 %v4991
            %4993 = vmatprep.subr.mxu0 0.0
            %v4994 = vand.u32 %v3434, 4294901760
            %4995 = vmatpush1.msra.mxu0 %v4994
            %4996 = vmatprep.subr.mxu0 0.0
            %v4997 = vand.u32 %v3435, 4294901760
            %4998 = vmatpush1.msra.mxu0 %v4997
            %4999 = vmatprep.subr.mxu0 0.0
            %v5000 = vand.u32 %v3436, 4294901760
            %5001 = vmatpush1.msra.mxu0 %v5000
            %5002 = vmatprep.subr.mxu0 0.0
            %v5003 = vand.u32 %v3437, 4294901760
            %5004 = vmatpush1.msra.mxu0 %v5003
            %5005 = vmatprep.subr.mxu0 0.0
            %v5006 = vand.u32 %v3438, 4294901760
            %5007 = vmatpush1.msra.mxu0 %v5006
            %5008 = vmatprep.subr.mxu0 0.0
            %v5009 = vand.u32 %v3439, 4294901760
            %5010 = vmatpush1.msra.mxu0 %v5009
            %5011 = vmatprep.subr.mxu0 0.0
            %v5012 = vand.u32 %v3440, 4294901760
            %5013 = vmatpush1.msra.mxu0 %v5012
            %5014 = vmatprep.subr.mxu0 0.0
            %v5015 = vand.u32 %v3441, 4294901760
            %5016 = vmatpush1.msra.mxu0 %v5015
            %5017 = vmatprep.subr.mxu0 0.0
            %v5018 = vand.u32 %v3442, 4294901760
            %5019 = vmatpush1.msra.mxu0 %v5018
            %5020 = vmatprep.subr.mxu0 0.0
            %v5021 = vand.u32 %v3443, 4294901760
            %5022 = vmatpush1.msra.mxu0 %v5021
            %5023 = vmatprep.subr.mxu0 0.0
            %v5024 = vand.u32 %v3444, 4294901760
            %5025 = vmatpush1.msra.mxu0 %v5024
            %5026 = vmatprep.subr.mxu0 0.0
            %v5027 = vand.u32 %v3445, 4294901760
            %5028 = vmatpush1.msra.mxu0 %v5027
            %5029 = vmatprep.subr.mxu0 0.0
            %v5030 = vand.u32 %v3446, 4294901760
            %5031 = vmatpush1.msra.mxu0 %v5030
            %5032 = vmatprep.subr.mxu0 0.0
            %v5033 = vand.u32 %v3447, 4294901760
            %5034 = vmatpush1.msra.mxu0 %v5033
            %5035 = vmatprep.subr.mxu0 0.0
            %v5036 = vand.u32 %v3448, 4294901760
            %5037 = vmatpush1.msra.mxu0 %v5036
            %v5038 = vand.u32 %v3386, 4294901760
            %5039 = vmatprep.mubr.f32.mxu0 %v5038
            %v5040 = vand.u32 %v3385, 4294901760
            %5041 = vmatmul.mubr.f32.gmra.mrb[0].mxu0 %v5040
            %v5042 = vpop.f32.mrb[0].mxu0
            %v5043 = vadd.f32 %v4834, %v5042
            %v5044 = vpop.f32.mrb[0].mxu0
            %v5045 = vand.u32 %v3388, 4294901760
            %5046 = vmatprep.mubr.f32.mxu0 %v5045
            %v5047 = vand.u32 %v3387, 4294901760
            %5048 = vmatmul.mubr.f32.gmra.mrb[0].mxu0 %v5047
            %v5049 = vpop.f32.mrb[0].mxu0
            %v5050 = vadd.f32 %v4841, %v5049
            %v5051 = vpop.f32.mrb[0].mxu0
            %v5052 = vand.u32 %v3390, 4294901760
            %5053 = vmatprep.mubr.f32.mxu0 %v5052
            %v5054 = vand.u32 %v3389, 4294901760
            %5055 = vmatmul.mubr.f32.gmra.mrb[0].mxu0 %v5054
            %v5056 = vpop.f32.mrb[0].mxu0
            %v5057 = vadd.f32 %v4848, %v5056
            %v5058 = vpop.f32.mrb[0].mxu0
            %v5059 = vand.u32 %v3392, 4294901760
            %5060 = vmatprep.mubr.f32.mxu0 %v5059
            %v5061 = vand.u32 %v3391, 4294901760
            %5062 = vmatmul.mubr.f32.gmra.mrb[0].mxu0 %v5061
            %v5063 = vpop.f32.mrb[0].mxu0
            %v5064 = vadd.f32 %v4855, %v5063
            %v5065 = vpop.f32.mrb[0].mxu0
            %v5066 = vand.u32 %v3394, 4294901760
            %5067 = vmatprep.mubr.f32.mxu0 %v5066
            %v5068 = vand.u32 %v3393, 4294901760
            %5069 = vmatmul.mubr.f32.gmra.mrb[0].mxu0 %v5068
            %v5070 = vpop.f32.mrb[0].mxu0
            %v5071 = vadd.f32 %v4862, %v5070
            %v5072 = vpop.f32.mrb[0].mxu0
            %v5073 = vand.u32 %v3396, 4294901760
            %5074 = vmatprep.mubr.f32.mxu0 %v5073
            %v5075 = vand.u32 %v3395, 4294901760
            %5076 = vmatmul.mubr.f32.gmra.mrb[0].mxu0 %v5075
            %v5077 = vpop.f32.mrb[0].mxu0
            %v5078 = vadd.f32 %v4869, %v5077
            %v5079 = vpop.f32.mrb[0].mxu0
            %v5080 = vand.u32 %v3398, 4294901760
            %5081 = vmatprep.mubr.f32.mxu0 %v5080
            %v5082 = vand.u32 %v3397, 4294901760
            %5083 = vmatmul.mubr.f32.gmra.mrb[0].mxu0 %v5082
            %v5084 = vpop.f32.mrb[0].mxu0
            %v5085 = vadd.f32 %v4876, %v5084
            %v5086 = vpop.f32.mrb[0].mxu0
            %v5087 = vand.u32 %v3400, 4294901760
            %5088 = vmatprep.mubr.f32.mxu0 %v5087
            %v5089 = vand.u32 %v3399, 4294901760
            %5090 = vmatmul.mubr.f32.gmra.mrb[0].mxu0 %v5089
            %v5091 = vpop.f32.mrb[0].mxu0
            %v5092 = vadd.f32 %v4883, %v5091
            %v5093 = vpop.f32.mrb[0].mxu0
            %v5094 = vand.u32 %v3402, 4294901760
            %5095 = vmatprep.mubr.f32.mxu0 %v5094
            %v5096 = vand.u32 %v3401, 4294901760
            %5097 = vmatmul.mubr.f32.gmra.mrb[0].mxu0 %v5096
            %v5098 = vpop.f32.mrb[0].mxu0
            %v5099 = vadd.f32 %v4890, %v5098
            %v5100 = vpop.f32.mrb[0].mxu0
            %v5101 = vand.u32 %v3404, 4294901760
            %5102 = vmatprep.mubr.f32.mxu0 %v5101
            %v5103 = vand.u32 %v3403, 4294901760
            %5104 = vmatmul.mubr.f32.gmra.mrb[0].mxu0 %v5103
            %v5105 = vpop.f32.mrb[0].mxu0
            %v5106 = vadd.f32 %v4897, %v5105
            %v5107 = vpop.f32.mrb[0].mxu0
            %v5108 = vand.u32 %v3406, 4294901760
            %5109 = vmatprep.mubr.f32.mxu0 %v5108
            %v5110 = vand.u32 %v3405, 4294901760
            %5111 = vmatmul.mubr.f32.gmra.mrb[0].mxu0 %v5110
            %v5112 = vpop.f32.mrb[0].mxu0
            %v5113 = vadd.f32 %v4904, %v5112
            %v5114 = vpop.f32.mrb[0].mxu0
            %v5115 = vand.u32 %v3408, 4294901760
            %5116 = vmatprep.mubr.f32.mxu0 %v5115
            %v5117 = vand.u32 %v3407, 4294901760
            %5118 = vmatmul.mubr.f32.gmra.mrb[0].mxu0 %v5117
            %v5119 = vpop.f32.mrb[0].mxu0
            %v5120 = vadd.f32 %v4911, %v5119
            %v5121 = vpop.f32.mrb[0].mxu0
            %v5122 = vand.u32 %v3410, 4294901760
            %5123 = vmatprep.mubr.f32.mxu0 %v5122
            %v5124 = vand.u32 %v3409, 4294901760
            %5125 = vmatmul.mubr.f32.gmra.mrb[0].mxu0 %v5124
            %v5126 = vpop.f32.mrb[0].mxu0
            %v5127 = vadd.f32 %v4918, %v5126
            %v5128 = vpop.f32.mrb[0].mxu0
            %v5129 = vand.u32 %v3412, 4294901760
            %5130 = vmatprep.mubr.f32.mxu0 %v5129
            %v5131 = vand.u32 %v3411, 4294901760
            %5132 = vmatmul.mubr.f32.gmra.mrb[0].mxu0 %v5131
            %v5133 = vpop.f32.mrb[0].mxu0
            %v5134 = vadd.f32 %v4925, %v5133
            %v5135 = vpop.f32.mrb[0].mxu0
            %v5136 = vand.u32 %v3414, 4294901760
            %5137 = vmatprep.mubr.f32.mxu0 %v5136
            %v5138 = vand.u32 %v3413, 4294901760
            %5139 = vmatmul.mubr.f32.gmra.mrb[0].mxu0 %v5138
            %v5140 = vpop.f32.mrb[0].mxu0
            %v5141 = vadd.f32 %v4932, %v5140
            %v5142 = vpop.f32.mrb[0].mxu0
            %v5143 = vand.u32 %v3416, 4294901760
            %5144 = vmatprep.mubr.f32.mxu0 %v5143
            %v5145 = vand.u32 %v3415, 4294901760
            %5146 = vmatmul.mubr.f32.gmra.mrb[0].mxu0 %v5145
            %v5147 = vpop.f32.mrb[0].mxu0
            %v5148 = vadd.f32 %v4939, %v5147
            %v5149 = vpop.f32.mrb[0].mxu0
            %5150 = vdwg.mxu0
            %p5151 = scmp.lt.s32.totalorder %s39, 3
            // Predicated region
            $region81: #{tpu_custom_call.1} parent=79 // pred_check
              %p5152 = pneg %p5151
            $region82: #{tpu_custom_call.1} parent=79 // pred_check_branch
              %5154 = sbr.rel (%p5152) target = $region84
            $region83: #{tpu_custom_call.1} parent=79 // pred_region
              %s5155 = scalar_lea.vmem [#allocation3], %s491
              %5156 = vst [vmem:[%s5155] sm:$0xff] %v5043
              %5157 = vst [vmem:[%s5155 + $0x8] sm:$0xff] %v5050
              %5158 = vst [vmem:[%s5155 + $0x10] sm:$0xff] %v5057
              %5159 = vst [vmem:[%s5155 + $0x18] sm:$0xff] %v5064
              %5160 = vst [vmem:[%s5155 + $0x20] sm:$0xff] %v5071
              %5161 = vst [vmem:[%s5155 + $0x28] sm:$0xff] %v5078
              %5162 = vst [vmem:[%s5155 + $0x30] sm:$0xff] %v5085
              %5163 = vst [vmem:[%s5155 + $0x38] sm:$0xff] %v5092
              %5164 = vst [vmem:[%s5155 + $0x40] sm:$0xff] %v5099
              %5165 = vst [vmem:[%s5155 + $0x48] sm:$0xff] %v5106
              %5166 = vst [vmem:[%s5155 + $0x50] sm:$0xff] %v5113
              %5167 = vst [vmem:[%s5155 + $0x58] sm:$0xff] %v5120
              %5168 = vst [vmem:[%s5155 + $0x60] sm:$0xff] %v5127
              %5169 = vst [vmem:[%s5155 + $0x68] sm:$0xff] %v5134
              %5170 = vst [vmem:[%s5155 + $0x70] sm:$0xff] %v5141
              %5171 = vst [vmem:[%s5155 + $0x78] sm:$0xff] %v5148
            $region84: #{tpu_custom_call.1} parent=79 // pred_fallthru
              _
            %s5172 = scalar_lea.vmem [#allocation4], %s491
            %v5173 = vld [vmem:[%s5172] sm:$0xff]
            %v5174 = vld [vmem:[%s5172 + $0x8] sm:$0xff]
            %v5175 = vld [vmem:[%s5172 + $0x10] sm:$0xff]
            %v5176 = vld [vmem:[%s5172 + $0x18] sm:$0xff]
            %v5177 = vld [vmem:[%s5172 + $0x20] sm:$0xff]
            %v5178 = vld [vmem:[%s5172 + $0x28] sm:$0xff]
            %v5179 = vld [vmem:[%s5172 + $0x30] sm:$0xff]
            %v5180 = vld [vmem:[%s5172 + $0x38] sm:$0xff]
            %v5181 = vld [vmem:[%s5172 + $0x40] sm:$0xff]
            %v5182 = vld [vmem:[%s5172 + $0x48] sm:$0xff]
            %v5183 = vld [vmem:[%s5172 + $0x50] sm:$0xff]
            %v5184 = vld [vmem:[%s5172 + $0x58] sm:$0xff]
            %v5185 = vld [vmem:[%s5172 + $0x60] sm:$0xff]
            %v5186 = vld [vmem:[%s5172 + $0x68] sm:$0xff]
            %v5187 = vld [vmem:[%s5172 + $0x70] sm:$0xff]
            %v5188 = vld [vmem:[%s5172 + $0x78] sm:$0xff]
            %v5190 = vlaneseq
            %v5191 = vshrl.u32 %v5190, 7
            %v5192 = vsub.s32 0, %v5191
            %v5193 = vrot.slane %v492, %v5192
            %v5195 = vmul.f32 %v5043, %v5193
            %v5196 = vmul.f32 %v5050, %v5193
            %v5197 = vmul.f32 %v5057, %v5193
            %v5198 = vmul.f32 %v5064, %v5193
            %v5199 = vmul.f32 %v5071, %v5193
            %v5200 = vmul.f32 %v5078, %v5193
            %v5201 = vmul.f32 %v5085, %v5193
            %v5202 = vmul.f32 %v5092, %v5193
            %v5203 = vmul.f32 %v5099, %v5193
            %v5204 = vmul.f32 %v5106, %v5193
            %v5205 = vmul.f32 %v5113, %v5193
            %v5206 = vmul.f32 %v5120, %v5193
            %v5207 = vmul.f32 %v5127, %v5193
            %v5208 = vmul.f32 %v5134, %v5193
            %v5209 = vmul.f32 %v5141, %v5193
            %v5210 = vmul.f32 %v5148, %v5193
            %5211 = vadd.xlane.f32.xlu0 %v5195
            %v5212 = vpop.xlane.xlu0 %5211
            %5213 = vadd.xlane.f32.xlu0 %v5196
            %v5214 = vpop.xlane.xlu0 %5213
            %5215 = vadd.xlane.f32.xlu0 %v5197
            %v5216 = vpop.xlane.xlu0 %5215
            %5217 = vadd.xlane.f32.xlu0 %v5198
            %v5218 = vpop.xlane.xlu0 %5217
            %5219 = vadd.xlane.f32.xlu0 %v5199
            %v5220 = vpop.xlane.xlu0 %5219
            %5221 = vadd.xlane.f32.xlu0 %v5200
            %v5222 = vpop.xlane.xlu0 %5221
            %5223 = vadd.xlane.f32.xlu0 %v5201
            %v5224 = vpop.xlane.xlu0 %5223
            %5225 = vadd.xlane.f32.xlu0 %v5202
            %v5226 = vpop.xlane.xlu0 %5225
            %5227 = vadd.xlane.f32.xlu0 %v5203
            %v5228 = vpop.xlane.xlu0 %5227
            %5229 = vadd.xlane.f32.xlu0 %v5204
            %v5230 = vpop.xlane.xlu0 %5229
            %5231 = vadd.xlane.f32.xlu0 %v5205
            %v5232 = vpop.xlane.xlu0 %5231
            %5233 = vadd.xlane.f32.xlu0 %v5206
            %v5234 = vpop.xlane.xlu0 %5233
            %5235 = vadd.xlane.f32.xlu0 %v5207
            %v5236 = vpop.xlane.xlu0 %5235
            %5237 = vadd.xlane.f32.xlu0 %v5208
            %v5238 = vpop.xlane.xlu0 %5237
            %5239 = vadd.xlane.f32.xlu0 %v5209
            %v5240 = vpop.xlane.xlu0 %5239
            %5241 = vadd.xlane.f32.xlu0 %v5210
            %v5242 = vpop.xlane.xlu0 %5241
            %v5243 = vstv %s493
            %v5244 = vadd.f32 %v5212, %v5243
            %v5245 = vadd.f32 %v5214, %v5243
            %v5246 = vadd.f32 %v5216, %v5243
            %v5247 = vadd.f32 %v5218, %v5243
            %v5248 = vadd.f32 %v5220, %v5243
            %v5249 = vadd.f32 %v5222, %v5243
            %v5250 = vadd.f32 %v5224, %v5243
            %v5251 = vadd.f32 %v5226, %v5243
            %v5252 = vadd.f32 %v5228, %v5243
            %v5253 = vadd.f32 %v5230, %v5243
            %v5254 = vadd.f32 %v5232, %v5243
            %v5255 = vadd.f32 %v5234, %v5243
            %v5256 = vadd.f32 %v5236, %v5243
            %v5257 = vadd.f32 %v5238, %v5243
            %v5258 = vadd.f32 %v5240, %v5243
            %v5259 = vadd.f32 %v5242, %v5243
            %v5260 = vxor.u32 %v5244, 2147483648
            %v5261 = vxor.u32 %v5245, 2147483648
            %v5262 = vxor.u32 %v5246, 2147483648
            %v5263 = vxor.u32 %v5247, 2147483648
            %v5264 = vxor.u32 %v5248, 2147483648
            %v5265 = vxor.u32 %v5249, 2147483648
            %v5266 = vxor.u32 %v5250, 2147483648
            %v5267 = vxor.u32 %v5251, 2147483648
            %v5268 = vxor.u32 %v5252, 2147483648
            %v5269 = vxor.u32 %v5253, 2147483648
            %v5270 = vxor.u32 %v5254, 2147483648
            %v5271 = vxor.u32 %v5255, 2147483648
            %v5272 = vxor.u32 %v5256, 2147483648
            %v5273 = vxor.u32 %v5257, 2147483648
            %v5274 = vxor.u32 %v5258, 2147483648
            %v5275 = vxor.u32 %v5259, 2147483648
            %v5276 = vmul.f32 %v5260, 1.442695
            %v5277 = vpow.pop %v5276
            %v5278 = vmul.f32 %v5261, 1.442695
            %v5279 = vpow.pop %v5278
            %v5280 = vmul.f32 %v5262, 1.442695
            %v5281 = vpow.pop %v5280
            %v5282 = vmul.f32 %v5263, 1.442695
            %v5283 = vpow.pop %v5282
            %v5284 = vmul.f32 %v5264, 1.442695
            %v5285 = vpow.pop %v5284
            %v5286 = vmul.f32 %v5265, 1.442695
            %v5287 = vpow.pop %v5286
            %v5288 = vmul.f32 %v5266, 1.442695
            %v5289 = vpow.pop %v5288
            %v5290 = vmul.f32 %v5267, 1.442695
            %v5291 = vpow.pop %v5290
            %v5292 = vmul.f32 %v5268, 1.442695
            %v5293 = vpow.pop %v5292
            %v5294 = vmul.f32 %v5269, 1.442695
            %v5295 = vpow.pop %v5294
            %v5296 = vmul.f32 %v5270, 1.442695
            %v5297 = vpow.pop %v5296
            %v5298 = vmul.f32 %v5271, 1.442695
            %v5299 = vpow.pop %v5298
            %v5300 = vmul.f32 %v5272, 1.442695
            %v5301 = vpow.pop %v5300
            %v5302 = vmul.f32 %v5273, 1.442695
            %v5303 = vpow.pop %v5302
            %v5304 = vmul.f32 %v5274, 1.442695
            %v5305 = vpow.pop %v5304
            %v5306 = vmul.f32 %v5275, 1.442695
            %v5307 = vpow.pop %v5306
            %v5308 = vadd.f32 %v5277, 1.0
            %v5309 = vadd.f32 %v5279, 1.0
            %v5310 = vadd.f32 %v5281, 1.0
            %v5311 = vadd.f32 %v5283, 1.0
            %v5312 = vadd.f32 %v5285, 1.0
            %v5313 = vadd.f32 %v5287, 1.0
            %v5314 = vadd.f32 %v5289, 1.0
            %v5315 = vadd.f32 %v5291, 1.0
            %v5316 = vadd.f32 %v5293, 1.0
            %v5317 = vadd.f32 %v5295, 1.0
            %v5318 = vadd.f32 %v5297, 1.0
            %v5319 = vadd.f32 %v5299, 1.0
            %v5320 = vadd.f32 %v5301, 1.0
            %v5321 = vadd.f32 %v5303, 1.0
            %v5322 = vadd.f32 %v5305, 1.0
            %v5323 = vadd.f32 %v5307, 1.0
            %v5324 = vrcp.pop %v5308
            %v5325 = vmul.f32 1.0, %v5324
            %v5326 = vrcp.pop %v5309
            %v5327 = vmul.f32 1.0, %v5326
            %v5328 = vrcp.pop %v5310
            %v5329 = vmul.f32 1.0, %v5328
            %v5330 = vrcp.pop %v5311
            %v5331 = vmul.f32 1.0, %v5330
            %v5332 = vrcp.pop %v5312
            %v5333 = vmul.f32 1.0, %v5332
            %v5334 = vrcp.pop %v5313
            %v5335 = vmul.f32 1.0, %v5334
            %v5336 = vrcp.pop %v5314
            %v5337 = vmul.f32 1.0, %v5336
            %v5338 = vrcp.pop %v5315
            %v5339 = vmul.f32 1.0, %v5338
            %v5340 = vrcp.pop %v5316
            %v5341 = vmul.f32 1.0, %v5340
            %v5342 = vrcp.pop %v5317
            %v5343 = vmul.f32 1.0, %v5342
            %v5344 = vrcp.pop %v5318
            %v5345 = vmul.f32 1.0, %v5344
            %v5346 = vrcp.pop %v5319
            %v5347 = vmul.f32 1.0, %v5346
            %v5348 = vrcp.pop %v5320
            %v5349 = vmul.f32 1.0, %v5348
            %v5350 = vrcp.pop %v5321
            %v5351 = vmul.f32 1.0, %v5350
            %v5352 = vrcp.pop %v5322
            %v5353 = vmul.f32 1.0, %v5352
            %v5354 = vrcp.pop %v5323
            %v5355 = vmul.f32 1.0, %v5354
            %v5356 = vmul.f32 %v5325, %v5043
            %v5357 = vmul.f32 %v5327, %v5050
            %v5358 = vmul.f32 %v5329, %v5057
            %v5359 = vmul.f32 %v5331, %v5064
            %v5360 = vmul.f32 %v5333, %v5071
            %v5361 = vmul.f32 %v5335, %v5078
            %v5362 = vmul.f32 %v5337, %v5085
            %v5363 = vmul.f32 %v5339, %v5092
            %v5364 = vmul.f32 %v5341, %v5099
            %v5365 = vmul.f32 %v5343, %v5106
            %v5366 = vmul.f32 %v5345, %v5113
            %v5367 = vmul.f32 %v5347, %v5120
            %v5368 = vmul.f32 %v5349, %v5127
            %v5369 = vmul.f32 %v5351, %v5134
            %v5370 = vmul.f32 %v5353, %v5141
            %v5371 = vmul.f32 %v5355, %v5148
            %v5372 = vadd.f32 %v5173, %v5356
            %v5373 = vadd.f32 %v5174, %v5357
            %v5374 = vadd.f32 %v5175, %v5358
            %v5375 = vadd.f32 %v5176, %v5359
            %v5376 = vadd.f32 %v5177, %v5360
            %v5377 = vadd.f32 %v5178, %v5361
            %v5378 = vadd.f32 %v5179, %v5362
            %v5379 = vadd.f32 %v5180, %v5363
            %v5380 = vadd.f32 %v5181, %v5364
            %v5381 = vadd.f32 %v5182, %v5365
            %v5382 = vadd.f32 %v5183, %v5366
            %v5383 = vadd.f32 %v5184, %v5367
            %v5384 = vadd.f32 %v5185, %v5368
            %v5385 = vadd.f32 %v5186, %v5369
            %v5386 = vadd.f32 %v5187, %v5370
            %v5387 = vadd.f32 %v5188, %v5371
            %5388 = vst [vmem:[%s5172] sm:$0xff] %v5372
            %5389 = vst [vmem:[%s5172 + $0x8] sm:$0xff] %v5373
            %5390 = vst [vmem:[%s5172 + $0x10] sm:$0xff] %v5374
            %5391 = vst [vmem:[%s5172 + $0x18] sm:$0xff] %v5375
            %5392 = vst [vmem:[%s5172 + $0x20] sm:$0xff] %v5376
            %5393 = vst [vmem:[%s5172 + $0x28] sm:$0xff] %v5377
            %5394 = vst [vmem:[%s5172 + $0x30] sm:$0xff] %v5378
            %5395 = vst [vmem:[%s5172 + $0x38] sm:$0xff] %v5379
            %5396 = vst [vmem:[%s5172 + $0x40] sm:$0xff] %v5380
            %5397 = vst [vmem:[%s5172 + $0x48] sm:$0xff] %v5381
            %5398 = vst [vmem:[%s5172 + $0x50] sm:$0xff] %v5382
            %5399 = vst [vmem:[%s5172 + $0x58] sm:$0xff] %v5383
            %5400 = vst [vmem:[%s5172 + $0x60] sm:$0xff] %v5384
            %5401 = vst [vmem:[%s5172 + $0x68] sm:$0xff] %v5385
            %5402 = vst [vmem:[%s5172 + $0x70] sm:$0xff] %v5386
            %5403 = vst [vmem:[%s5172 + $0x78] sm:$0xff] %v5387
          $region80: #{tpu_custom_call.1} parent=75 // pred_fallthru
            _
          %p5404 = scmp.ne.s32.totalorder %s3380, 1
          // Predicated region
          $region85: #{tpu_custom_call.1} parent=75 // pred_check
            %p5405 = pneg %p5404
          $region86: #{tpu_custom_call.1} parent=75 // pred_check_branch
            %5407 = sbr.rel (%p5405) target = $region88
          $region87: #{tpu_custom_call.1} parent=75 // pred_region
            %v5408 = vld [vmem:[%s430] sm:$0xff]
            %v5409 = vld [vmem:[%s430 + $0x8] sm:$0xff]
            %v5410 = vld [vmem:[%s430 + $0x10] sm:$0xff]
            %v5411 = vld [vmem:[%s430 + $0x18] sm:$0xff]
            %v5412 = vld [vmem:[%s430 + $0x20] sm:$0xff]
            %v5413 = vld [vmem:[%s430 + $0x28] sm:$0xff]
            %v5414 = vld [vmem:[%s430 + $0x30] sm:$0xff]
            %v5415 = vld [vmem:[%s430 + $0x38] sm:$0xff]
            %v5416 = vld [vmem:[%s430 + $0x40] sm:$0xff]
            %v5417 = vld [vmem:[%s430 + $0x48] sm:$0xff]
            %v5418 = vld [vmem:[%s430 + $0x50] sm:$0xff]
            %v5419 = vld [vmem:[%s430 + $0x58] sm:$0xff]
            %v5420 = vld [vmem:[%s430 + $0x60] sm:$0xff]
            %v5421 = vld [vmem:[%s430 + $0x68] sm:$0xff]
            %v5422 = vld [vmem:[%s430 + $0x70] sm:$0xff]
            %v5423 = vld [vmem:[%s430 + $0x78] sm:$0xff]
            %v5424 = vld [vmem:[%s430 + $0x80] sm:$0xff]
            %v5425 = vld [vmem:[%s430 + $0x88] sm:$0xff]
            %v5426 = vld [vmem:[%s430 + $0x90] sm:$0xff]
            %v5427 = vld [vmem:[%s430 + $0x98] sm:$0xff]
            %v5428 = vld [vmem:[%s430 + $0xa0] sm:$0xff]
            %v5429 = vld [vmem:[%s430 + $0xa8] sm:$0xff]
            %v5430 = vld [vmem:[%s430 + $0xb0] sm:$0xff]
            %v5431 = vld [vmem:[%s430 + $0xb8] sm:$0xff]
            %v5432 = vld [vmem:[%s430 + $0xc0] sm:$0xff]
            %v5433 = vld [vmem:[%s430 + $0xc8] sm:$0xff]
            %v5434 = vld [vmem:[%s430 + $0xd0] sm:$0xff]
            %v5435 = vld [vmem:[%s430 + $0xd8] sm:$0xff]
            %v5436 = vld [vmem:[%s430 + $0xe0] sm:$0xff]
            %v5437 = vld [vmem:[%s430 + $0xe8] sm:$0xff]
            %v5438 = vld [vmem:[%s430 + $0xf0] sm:$0xff]
            %v5439 = vld [vmem:[%s430 + $0xf8] sm:$0xff]
            %v5440 = vld [vmem:[#allocation3] sm:$0xff]
            %v5441 = vld [vmem:[#allocation3 + $0x8] sm:$0xff]
            %v5442 = vld [vmem:[#allocation3 + $0x10] sm:$0xff]
            %v5443 = vld [vmem:[#allocation3 + $0x18] sm:$0xff]
            %v5444 = vld [vmem:[#allocation3 + $0x20] sm:$0xff]
            %v5445 = vld [vmem:[#allocation3 + $0x28] sm:$0xff]
            %v5446 = vld [vmem:[#allocation3 + $0x30] sm:$0xff]
            %v5447 = vld [vmem:[#allocation3 + $0x38] sm:$0xff]
            %v5448 = vld [vmem:[#allocation3 + $0x40] sm:$0xff]
            %v5449 = vld [vmem:[#allocation3 + $0x48] sm:$0xff]
            %v5450 = vld [vmem:[#allocation3 + $0x50] sm:$0xff]
            %v5451 = vld [vmem:[#allocation3 + $0x58] sm:$0xff]
            %v5452 = vld [vmem:[#allocation3 + $0x60] sm:$0xff]
            %v5453 = vld [vmem:[#allocation3 + $0x68] sm:$0xff]
            %v5454 = vld [vmem:[#allocation3 + $0x70] sm:$0xff]
            %v5455 = vld [vmem:[#allocation3 + $0x78] sm:$0xff]
            %v5456 = vld [vmem:[#allocation3 + $0x80] sm:$0xff]
            %v5457 = vld [vmem:[#allocation3 + $0x88] sm:$0xff]
            %v5458 = vld [vmem:[#allocation3 + $0x90] sm:$0xff]
            %v5459 = vld [vmem:[#allocation3 + $0x98] sm:$0xff]
            %v5460 = vld [vmem:[#allocation3 + $0xa0] sm:$0xff]
            %v5461 = vld [vmem:[#allocation3 + $0xa8] sm:$0xff]
            %v5462 = vld [vmem:[#allocation3 + $0xb0] sm:$0xff]
            %v5463 = vld [vmem:[#allocation3 + $0xb8] sm:$0xff]
            %v5464 = vld [vmem:[#allocation3 + $0xc0] sm:$0xff]
            %v5465 = vld [vmem:[#allocation3 + $0xc8] sm:$0xff]
            %v5466 = vld [vmem:[#allocation3 + $0xd0] sm:$0xff]
            %v5467 = vld [vmem:[#allocation3 + $0xd8] sm:$0xff]
            %v5468 = vld [vmem:[#allocation3 + $0xe0] sm:$0xff]
            %v5469 = vld [vmem:[#allocation3 + $0xe8] sm:$0xff]
            %v5470 = vld [vmem:[#allocation3 + $0xf0] sm:$0xff]
            %v5471 = vld [vmem:[#allocation3 + $0xf8] sm:$0xff]
            %5472 = vmatprep.subr.mxu0 0.0
            %v5473 = vand.u32 %v5440, 4294901760
            %5474 = vmatpush1.msra.mxu0 %v5473
            %5475 = vmatprep.subr.mxu0 0.0
            %v5476 = vand.u32 %v5441, 4294901760
            %5477 = vmatpush1.msra.mxu0 %v5476
            %5478 = vmatprep.subr.mxu0 0.0
            %v5479 = vand.u32 %v5442, 4294901760
            %5480 = vmatpush1.msra.mxu0 %v5479
            %5481 = vmatprep.subr.mxu0 0.0
            %v5482 = vand.u32 %v5443, 4294901760
            %5483 = vmatpush1.msra.mxu0 %v5482
            %5484 = vmatprep.subr.mxu0 0.0
            %v5485 = vand.u32 %v5444, 4294901760
            %5486 = vmatpush1.msra.mxu0 %v5485
            %5487 = vmatprep.subr.mxu0 0.0
            %v5488 = vand.u32 %v5445, 4294901760
            %5489 = vmatpush1.msra.mxu0 %v5488
            %5490 = vmatprep.subr.mxu0 0.0
            %v5491 = vand.u32 %v5446, 4294901760
            %5492 = vmatpush1.msra.mxu0 %v5491
            %5493 = vmatprep.subr.mxu0 0.0
            %v5494 = vand.u32 %v5447, 4294901760
            %5495 = vmatpush1.msra.mxu0 %v5494
            %5496 = vmatprep.subr.mxu0 0.0
            %v5497 = vand.u32 %v5448, 4294901760
            %5498 = vmatpush1.msra.mxu0 %v5497
            %5499 = vmatprep.subr.mxu0 0.0
            %v5500 = vand.u32 %v5449, 4294901760
            %5501 = vmatpush1.msra.mxu0 %v5500
            %5502 = vmatprep.subr.mxu0 0.0
            %v5503 = vand.u32 %v5450, 4294901760
            %5504 = vmatpush1.msra.mxu0 %v5503
            %5505 = vmatprep.subr.mxu0 0.0
            %v5506 = vand.u32 %v5451, 4294901760
            %5507 = vmatpush1.msra.mxu0 %v5506
            %5508 = vmatprep.subr.mxu0 0.0
            %v5509 = vand.u32 %v5452, 4294901760
            %5510 = vmatpush1.msra.mxu0 %v5509
            %5511 = vmatprep.subr.mxu0 0.0
            %v5512 = vand.u32 %v5453, 4294901760
            %5513 = vmatpush1.msra.mxu0 %v5512
            %5514 = vmatprep.subr.mxu0 0.0
            %v5515 = vand.u32 %v5454, 4294901760
            %5516 = vmatpush1.msra.mxu0 %v5515
            %5517 = vmatprep.subr.mxu0 0.0
            %v5518 = vand.u32 %v5455, 4294901760
            %5519 = vmatpush1.msra.mxu0 %v5518
            %5520 = vmatprep.subr.mxu0 0.0
            %v5521 = vand.u32 %v5456, 4294901760
            %5522 = vmatpush1.msra.mxu0 %v5521
            %5523 = vmatprep.subr.mxu0 0.0
            %v5524 = vand.u32 %v5457, 4294901760
            %5525 = vmatpush1.msra.mxu0 %v5524
            %5526 = vmatprep.subr.mxu0 0.0
            %v5527 = vand.u32 %v5458, 4294901760
            %5528 = vmatpush1.msra.mxu0 %v5527
            %5529 = vmatprep.subr.mxu0 0.0
            %v5530 = vand.u32 %v5459, 4294901760
            %5531 = vmatpush1.msra.mxu0 %v5530
            %5532 = vmatprep.subr.mxu0 0.0
            %v5533 = vand.u32 %v5460, 4294901760
            %5534 = vmatpush1.msra.mxu0 %v5533
            %5535 = vmatprep.subr.mxu0 0.0
            %v5536 = vand.u32 %v5461, 4294901760
            %5537 = vmatpush1.msra.mxu0 %v5536
            %5538 = vmatprep.subr.mxu0 0.0
            %v5539 = vand.u32 %v5462, 4294901760
            %5540 = vmatpush1.msra.mxu0 %v5539
            %5541 = vmatprep.subr.mxu0 0.0
            %v5542 = vand.u32 %v5463, 4294901760
            %5543 = vmatpush1.msra.mxu0 %v5542
            %5544 = vmatprep.subr.mxu0 0.0
            %v5545 = vand.u32 %v5464, 4294901760
            %5546 = vmatpush1.msra.mxu0 %v5545
            %5547 = vmatprep.subr.mxu0 0.0
            %v5548 = vand.u32 %v5465, 4294901760
            %5549 = vmatpush1.msra.mxu0 %v5548
            %5550 = vmatprep.subr.mxu0 0.0
            %v5551 = vand.u32 %v5466, 4294901760
            %5552 = vmatpush1.msra.mxu0 %v5551
            %5553 = vmatprep.subr.mxu0 0.0
            %v5554 = vand.u32 %v5467, 4294901760
            %5555 = vmatpush1.msra.mxu0 %v5554
            %5556 = vmatprep.subr.mxu0 0.0
            %v5557 = vand.u32 %v5468, 4294901760
            %5558 = vmatpush1.msra.mxu0 %v5557
            %5559 = vmatprep.subr.mxu0 0.0
            %v5560 = vand.u32 %v5469, 4294901760
            %5561 = vmatpush1.msra.mxu0 %v5560
            %5562 = vmatprep.subr.mxu0 0.0
            %v5563 = vand.u32 %v5470, 4294901760
            %5564 = vmatpush1.msra.mxu0 %v5563
            %5565 = vmatprep.subr.mxu0 0.0
            %v5566 = vand.u32 %v5471, 4294901760
            %5567 = vmatpush1.msra.mxu0 %v5566
            %v5568 = vand.u32 %v5409, 4294901760
            %v5569 = vsub.f32 %v5409, %v5568
            %v5570 = vand.u32 %v5569, 4294901760
            %v5571 = vsub.f32 %v5569, %v5570
            %v5572 = vand.u32 %v5571, 4294901760
            %5573 = vmatprep.mubr.f32.mxu0 %v5572
            %v5574 = vand.u32 %v5408, 4294901760
            %v5575 = vsub.f32 %v5408, %v5574
            %v5576 = vand.u32 %v5575, 4294901760
            %v5577 = vsub.f32 %v5575, %v5576
            %v5578 = vand.u32 %v5577, 4294901760
            %5579 = vmatmul.mubr.f32.gmra.mrb[0].mxu0 %v5578
            %v5580 = vpop.f32.mrb[0].mxu0
            %v5581 = vadd.f32 0.0, %v5580
            %v5582 = vpop.f32.mrb[0].mxu0
            %v5583 = vand.u32 %v5411, 4294901760
            %v5584 = vsub.f32 %v5411, %v5583
            %v5585 = vand.u32 %v5584, 4294901760
            %v5586 = vsub.f32 %v5584, %v5585
            %v5587 = vand.u32 %v5586, 4294901760
            %5588 = vmatprep.mubr.f32.mxu0 %v5587
            %v5589 = vand.u32 %v5410, 4294901760
            %v5590 = vsub.f32 %v5410, %v5589
            %v5591 = vand.u32 %v5590, 4294901760
            %v5592 = vsub.f32 %v5590, %v5591
            %v5593 = vand.u32 %v5592, 4294901760
            %5594 = vmatmul.mubr.f32.gmra.mrb[0].mxu0 %v5593
            %v5595 = vpop.f32.mrb[0].mxu0
            %v5596 = vadd.f32 0.0, %v5595
            %v5597 = vpop.f32.mrb[0].mxu0
            %v5598 = vand.u32 %v5413, 4294901760
            %v5599 = vsub.f32 %v5413, %v5598
            %v5600 = vand.u32 %v5599, 4294901760
            %v5601 = vsub.f32 %v5599, %v5600
            %v5602 = vand.u32 %v5601, 4294901760
            %5603 = vmatprep.mubr.f32.mxu0 %v5602
            %v5604 = vand.u32 %v5412, 4294901760
            %v5605 = vsub.f32 %v5412, %v5604
            %v5606 = vand.u32 %v5605, 4294901760
            %v5607 = vsub.f32 %v5605, %v5606
            %v5608 = vand.u32 %v5607, 4294901760
            %5609 = vmatmul.mubr.f32.gmra.mrb[0].mxu0 %v5608
            %v5610 = vpop.f32.mrb[0].mxu0
            %v5611 = vadd.f32 0.0, %v5610
            %v5612 = vpop.f32.mrb[0].mxu0
            %v5613 = vand.u32 %v5415, 4294901760
            %v5614 = vsub.f32 %v5415, %v5613
            %v5615 = vand.u32 %v5614, 4294901760
            %v5616 = vsub.f32 %v5614, %v5615
            %v5617 = vand.u32 %v5616, 4294901760
            %5618 = vmatprep.mubr.f32.mxu0 %v5617
            %v5619 = vand.u32 %v5414, 4294901760
            %v5620 = vsub.f32 %v5414, %v5619
            %v5621 = vand.u32 %v5620, 4294901760
            %v5622 = vsub.f32 %v5620, %v5621
            %v5623 = vand.u32 %v5622, 4294901760
            %5624 = vmatmul.mubr.f32.gmra.mrb[0].mxu0 %v5623
            %v5625 = vpop.f32.mrb[0].mxu0
            %v5626 = vadd.f32 0.0, %v5625
            %v5627 = vpop.f32.mrb[0].mxu0
            %v5628 = vand.u32 %v5417, 4294901760
            %v5629 = vsub.f32 %v5417, %v5628
            %v5630 = vand.u32 %v5629, 4294901760
            %v5631 = vsub.f32 %v5629, %v5630
            %v5632 = vand.u32 %v5631, 4294901760
            %5633 = vmatprep.mubr.f32.mxu0 %v5632
            %v5634 = vand.u32 %v5416, 4294901760
            %v5635 = vsub.f32 %v5416, %v5634
            %v5636 = vand.u32 %v5635, 4294901760
            %v5637 = vsub.f32 %v5635, %v5636
            %v5638 = vand.u32 %v5637, 4294901760
            %5639 = vmatmul.mubr.f32.gmra.mrb[0].mxu0 %v5638
            %v5640 = vpop.f32.mrb[0].mxu0
            %v5641 = vadd.f32 0.0, %v5640
            %v5642 = vpop.f32.mrb[0].mxu0
            %v5643 = vand.u32 %v5419, 4294901760
            %v5644 = vsub.f32 %v5419, %v5643
            %v5645 = vand.u32 %v5644, 4294901760
            %v5646 = vsub.f32 %v5644, %v5645
            %v5647 = vand.u32 %v5646, 4294901760
            %5648 = vmatprep.mubr.f32.mxu0 %v5647
            %v5649 = vand.u32 %v5418, 4294901760
            %v5650 = vsub.f32 %v5418, %v5649
            %v5651 = vand.u32 %v5650, 4294901760
            %v5652 = vsub.f32 %v5650, %v5651
            %v5653 = vand.u32 %v5652, 4294901760
            %5654 = vmatmul.mubr.f32.gmra.mrb[0].mxu0 %v5653
            %v5655 = vpop.f32.mrb[0].mxu0
            %v5656 = vadd.f32 0.0, %v5655
            %v5657 = vpop.f32.mrb[0].mxu0
            %v5658 = vand.u32 %v5421, 4294901760
            %v5659 = vsub.f32 %v5421, %v5658
            %v5660 = vand.u32 %v5659, 4294901760
            %v5661 = vsub.f32 %v5659, %v5660
            %v5662 = vand.u32 %v5661, 4294901760
            %5663 = vmatprep.mubr.f32.mxu0 %v5662
            %v5664 = vand.u32 %v5420, 4294901760
            %v5665 = vsub.f32 %v5420, %v5664
            %v5666 = vand.u32 %v5665, 4294901760
            %v5667 = vsub.f32 %v5665, %v5666
            %v5668 = vand.u32 %v5667, 4294901760
            %5669 = vmatmul.mubr.f32.gmra.mrb[0].mxu0 %v5668
            %v5670 = vpop.f32.mrb[0].mxu0
            %v5671 = vadd.f32 0.0, %v5670
            %v5672 = vpop.f32.mrb[0].mxu0
            %v5673 = vand.u32 %v5423, 4294901760
            %v5674 = vsub.f32 %v5423, %v5673
            %v5675 = vand.u32 %v5674, 4294901760
            %v5676 = vsub.f32 %v5674, %v5675
            %v5677 = vand.u32 %v5676, 4294901760
            %5678 = vmatprep.mubr.f32.mxu0 %v5677
            %v5679 = vand.u32 %v5422, 4294901760
            %v5680 = vsub.f32 %v5422, %v5679
            %v5681 = vand.u32 %v5680, 4294901760
            %v5682 = vsub.f32 %v5680, %v5681
            %v5683 = vand.u32 %v5682, 4294901760
            %5684 = vmatmul.mubr.f32.gmra.mrb[0].mxu0 %v5683
            %v5685 = vpop.f32.mrb[0].mxu0
            %v5686 = vadd.f32 0.0, %v5685
            %v5687 = vpop.f32.mrb[0].mxu0
            %v5688 = vand.u32 %v5425, 4294901760
            %v5689 = vsub.f32 %v5425, %v5688
            %v5690 = vand.u32 %v5689, 4294901760
            %v5691 = vsub.f32 %v5689, %v5690
            %v5692 = vand.u32 %v5691, 4294901760
            %5693 = vmatprep.mubr.f32.mxu0 %v5692
            %v5694 = vand.u32 %v5424, 4294901760
            %v5695 = vsub.f32 %v5424, %v5694
            %v5696 = vand.u32 %v5695, 4294901760
            %v5697 = vsub.f32 %v5695, %v5696
            %v5698 = vand.u32 %v5697, 4294901760
            %5699 = vmatmul.mubr.f32.gmra.mrb[0].mxu0 %v5698
            %v5700 = vpop.f32.mrb[0].mxu0
            %v5701 = vadd.f32 0.0, %v5700
            %v5702 = vpop.f32.mrb[0].mxu0
            %v5703 = vand.u32 %v5427, 4294901760
            %v5704 = vsub.f32 %v5427, %v5703
            %v5705 = vand.u32 %v5704, 4294901760
            %v5706 = vsub.f32 %v5704, %v5705
            %v5707 = vand.u32 %v5706, 4294901760
            %5708 = vmatprep.mubr.f32.mxu0 %v5707
            %v5709 = vand.u32 %v5426, 4294901760
            %v5710 = vsub.f32 %v5426, %v5709
            %v5711 = vand.u32 %v5710, 4294901760
            %v5712 = vsub.f32 %v5710, %v5711
            %v5713 = vand.u32 %v5712, 4294901760
            %5714 = vmatmul.mubr.f32.gmra.mrb[0].mxu0 %v5713
            %v5715 = vpop.f32.mrb[0].mxu0
            %v5716 = vadd.f32 0.0, %v5715
            %v5717 = vpop.f32.mrb[0].mxu0
            %v5718 = vand.u32 %v5429, 4294901760
            %v5719 = vsub.f32 %v5429, %v5718
            %v5720 = vand.u32 %v5719, 4294901760
            %v5721 = vsub.f32 %v5719, %v5720
            %v5722 = vand.u32 %v5721, 4294901760
            %5723 = vmatprep.mubr.f32.mxu0 %v5722
            %v5724 = vand.u32 %v5428, 4294901760
            %v5725 = vsub.f32 %v5428, %v5724
            %v5726 = vand.u32 %v5725, 4294901760
            %v5727 = vsub.f32 %v5725, %v5726
            %v5728 = vand.u32 %v5727, 4294901760
            %5729 = vmatmul.mubr.f32.gmra.mrb[0].mxu0 %v5728
            %v5730 = vpop.f32.mrb[0].mxu0
            %v5731 = vadd.f32 0.0, %v5730
            %v5732 = vpop.f32.mrb[0].mxu0
            %v5733 = vand.u32 %v5431, 4294901760
            %v5734 = vsub.f32 %v5431, %v5733
            %v5735 = vand.u32 %v5734, 4294901760
            %v5736 = vsub.f32 %v5734, %v5735
            %v5737 = vand.u32 %v5736, 4294901760
            %5738 = vmatprep.mubr.f32.mxu0 %v5737
            %v5739 = vand.u32 %v5430, 4294901760
            %v5740 = vsub.f32 %v5430, %v5739
            %v5741 = vand.u32 %v5740, 4294901760
            %v5742 = vsub.f32 %v5740, %v5741
            %v5743 = vand.u32 %v5742, 4294901760
            %5744 = vmatmul.mubr.f32.gmra.mrb[0].mxu0 %v5743
            %v5745 = vpop.f32.mrb[0].mxu0
            %v5746 = vadd.f32 0.0, %v5745
            %v5747 = vpop.f32.mrb[0].mxu0
            %v5748 = vand.u32 %v5433, 4294901760
            %v5749 = vsub.f32 %v5433, %v5748
            %v5750 = vand.u32 %v5749, 4294901760
            %v5751 = vsub.f32 %v5749, %v5750
            %v5752 = vand.u32 %v5751, 4294901760
            %5753 = vmatprep.mubr.f32.mxu0 %v5752
            %v5754 = vand.u32 %v5432, 4294901760
            %v5755 = vsub.f32 %v5432, %v5754
            %v5756 = vand.u32 %v5755, 4294901760
            %v5757 = vsub.f32 %v5755, %v5756
            %v5758 = vand.u32 %v5757, 4294901760
            %5759 = vmatmul.mubr.f32.gmra.mrb[0].mxu0 %v5758
            %v5760 = vpop.f32.mrb[0].mxu0
            %v5761 = vadd.f32 0.0, %v5760
            %v5762 = vpop.f32.mrb[0].mxu0
            %v5763 = vand.u32 %v5435, 4294901760
            %v5764 = vsub.f32 %v5435, %v5763
            %v5765 = vand.u32 %v5764, 4294901760
            %v5766 = vsub.f32 %v5764, %v5765
            %v5767 = vand.u32 %v5766, 4294901760
            %5768 = vmatprep.mubr.f32.mxu0 %v5767
            %v5769 = vand.u32 %v5434, 4294901760
            %v5770 = vsub.f32 %v5434, %v5769
            %v5771 = vand.u32 %v5770, 4294901760
            %v5772 = vsub.f32 %v5770, %v5771
            %v5773 = vand.u32 %v5772, 4294901760
            %5774 = vmatmul.mubr.f32.gmra.mrb[0].mxu0 %v5773
            %v5775 = vpop.f32.mrb[0].mxu0
            %v5776 = vadd.f32 0.0, %v5775
            %v5777 = vpop.f32.mrb[0].mxu0
            %v5778 = vand.u32 %v5437, 4294901760
            %v5779 = vsub.f32 %v5437, %v5778
            %v5780 = vand.u32 %v5779, 4294901760
            %v5781 = vsub.f32 %v5779, %v5780
            %v5782 = vand.u32 %v5781, 4294901760
            %5783 = vmatprep.mubr.f32.mxu0 %v5782
            %v5784 = vand.u32 %v5436, 4294901760
            %v5785 = vsub.f32 %v5436, %v5784
            %v5786 = vand.u32 %v5785, 4294901760
            %v5787 = vsub.f32 %v5785, %v5786
            %v5788 = vand.u32 %v5787, 4294901760
            %5789 = vmatmul.mubr.f32.gmra.mrb[0].mxu0 %v5788
            %v5790 = vpop.f32.mrb[0].mxu0
            %v5791 = vadd.f32 0.0, %v5790
            %v5792 = vpop.f32.mrb[0].mxu0
            %v5793 = vand.u32 %v5439, 4294901760
            %v5794 = vsub.f32 %v5439, %v5793
            %v5795 = vand.u32 %v5794, 4294901760
            %v5796 = vsub.f32 %v5794, %v5795
            %v5797 = vand.u32 %v5796, 4294901760
            %5798 = vmatprep.mubr.f32.mxu0 %v5797
            %v5799 = vand.u32 %v5438, 4294901760
            %v5800 = vsub.f32 %v5438, %v5799
            %v5801 = vand.u32 %v5800, 4294901760
            %v5802 = vsub.f32 %v5800, %v5801
            %v5803 = vand.u32 %v5802, 4294901760
            %5804 = vmatmul.mubr.f32.gmra.mrb[0].mxu0 %v5803
            %v5805 = vpop.f32.mrb[0].mxu0
            %v5806 = vadd.f32 0.0, %v5805
            %v5807 = vpop.f32.mrb[0].mxu0
            %5808 = vdwg.mxu0
            %5809 = vmatprep.subr.mxu0 0.0
            %v5810 = vand.u32 %v5440, 4294901760
            %v5811 = vsub.f32 %v5440, %v5810
            %v5812 = vand.u32 %v5811, 4294901760
            %v5813 = vsub.f32 %v5811, %v5812
            %v5814 = vand.u32 %v5813, 4294901760
            %5815 = vmatpush1.msra.mxu0 %v5814
            %5816 = vmatprep.subr.mxu0 0.0
            %v5817 = vand.u32 %v5441, 4294901760
            %v5818 = vsub.f32 %v5441, %v5817
            %v5819 = vand.u32 %v5818, 4294901760
            %v5820 = vsub.f32 %v5818, %v5819
            %v5821 = vand.u32 %v5820, 4294901760
            %5822 = vmatpush1.msra.mxu0 %v5821
            %5823 = vmatprep.subr.mxu0 0.0
            %v5824 = vand.u32 %v5442, 4294901760
            %v5825 = vsub.f32 %v5442, %v5824
            %v5826 = vand.u32 %v5825, 4294901760
            %v5827 = vsub.f32 %v5825, %v5826
            %v5828 = vand.u32 %v5827, 4294901760
            %5829 = vmatpush1.msra.mxu0 %v5828
            %5830 = vmatprep.subr.mxu0 0.0
            %v5831 = vand.u32 %v5443, 4294901760
            %v5832 = vsub.f32 %v5443, %v5831
            %v5833 = vand.u32 %v5832, 4294901760
            %v5834 = vsub.f32 %v5832, %v5833
            %v5835 = vand.u32 %v5834, 4294901760
            %5836 = vmatpush1.msra.mxu0 %v5835
            %5837 = vmatprep.subr.mxu0 0.0
            %v5838 = vand.u32 %v5444, 4294901760
            %v5839 = vsub.f32 %v5444, %v5838
            %v5840 = vand.u32 %v5839, 4294901760
            %v5841 = vsub.f32 %v5839, %v5840
            %v5842 = vand.u32 %v5841, 4294901760
            %5843 = vmatpush1.msra.mxu0 %v5842
            %5844 = vmatprep.subr.mxu0 0.0
            %v5845 = vand.u32 %v5445, 4294901760
            %v5846 = vsub.f32 %v5445, %v5845
            %v5847 = vand.u32 %v5846, 4294901760
            %v5848 = vsub.f32 %v5846, %v5847
            %v5849 = vand.u32 %v5848, 4294901760
            %5850 = vmatpush1.msra.mxu0 %v5849
            %5851 = vmatprep.subr.mxu0 0.0
            %v5852 = vand.u32 %v5446, 4294901760
            %v5853 = vsub.f32 %v5446, %v5852
            %v5854 = vand.u32 %v5853, 4294901760
            %v5855 = vsub.f32 %v5853, %v5854
            %v5856 = vand.u32 %v5855, 4294901760
            %5857 = vmatpush1.msra.mxu0 %v5856
            %5858 = vmatprep.subr.mxu0 0.0
            %v5859 = vand.u32 %v5447, 4294901760
            %v5860 = vsub.f32 %v5447, %v5859
            %v5861 = vand.u32 %v5860, 4294901760
            %v5862 = vsub.f32 %v5860, %v5861
            %v5863 = vand.u32 %v5862, 4294901760
            %5864 = vmatpush1.msra.mxu0 %v5863
            %5865 = vmatprep.subr.mxu0 0.0
            %v5866 = vand.u32 %v5448, 4294901760
            %v5867 = vsub.f32 %v5448, %v5866
            %v5868 = vand.u32 %v5867, 4294901760
            %v5869 = vsub.f32 %v5867, %v5868
            %v5870 = vand.u32 %v5869, 4294901760
            %5871 = vmatpush1.msra.mxu0 %v5870
            %5872 = vmatprep.subr.mxu0 0.0
            %v5873 = vand.u32 %v5449, 4294901760
            %v5874 = vsub.f32 %v5449, %v5873
            %v5875 = vand.u32 %v5874, 4294901760
            %v5876 = vsub.f32 %v5874, %v5875
            %v5877 = vand.u32 %v5876, 4294901760
            %5878 = vmatpush1.msra.mxu0 %v5877
            %5879 = vmatprep.subr.mxu0 0.0
            %v5880 = vand.u32 %v5450, 4294901760
            %v5881 = vsub.f32 %v5450, %v5880
            %v5882 = vand.u32 %v5881, 4294901760
            %v5883 = vsub.f32 %v5881, %v5882
            %v5884 = vand.u32 %v5883, 4294901760
            %5885 = vmatpush1.msra.mxu0 %v5884
            %5886 = vmatprep.subr.mxu0 0.0
            %v5887 = vand.u32 %v5451, 4294901760
            %v5888 = vsub.f32 %v5451, %v5887
            %v5889 = vand.u32 %v5888, 4294901760
            %v5890 = vsub.f32 %v5888, %v5889
            %v5891 = vand.u32 %v5890, 4294901760
            %5892 = vmatpush1.msra.mxu0 %v5891
            %5893 = vmatprep.subr.mxu0 0.0
            %v5894 = vand.u32 %v5452, 4294901760
            %v5895 = vsub.f32 %v5452, %v5894
            %v5896 = vand.u32 %v5895, 4294901760
            %v5897 = vsub.f32 %v5895, %v5896
            %v5898 = vand.u32 %v5897, 4294901760
            %5899 = vmatpush1.msra.mxu0 %v5898
            %5900 = vmatprep.subr.mxu0 0.0
            %v5901 = vand.u32 %v5453, 4294901760
            %v5902 = vsub.f32 %v5453, %v5901
            %v5903 = vand.u32 %v5902, 4294901760
            %v5904 = vsub.f32 %v5902, %v5903
            %v5905 = vand.u32 %v5904, 4294901760
            %5906 = vmatpush1.msra.mxu0 %v5905
            %5907 = vmatprep.subr.mxu0 0.0
            %v5908 = vand.u32 %v5454, 4294901760
            %v5909 = vsub.f32 %v5454, %v5908
            %v5910 = vand.u32 %v5909, 4294901760
            %v5911 = vsub.f32 %v5909, %v5910
            %v5912 = vand.u32 %v5911, 4294901760
            %5913 = vmatpush1.msra.mxu0 %v5912
            %5914 = vmatprep.subr.mxu0 0.0
            %v5915 = vand.u32 %v5455, 4294901760
            %v5916 = vsub.f32 %v5455, %v5915
            %v5917 = vand.u32 %v5916, 4294901760
            %v5918 = vsub.f32 %v5916, %v5917
            %v5919 = vand.u32 %v5918, 4294901760
            %5920 = vmatpush1.msra.mxu0 %v5919
            %5921 = vmatprep.subr.mxu0 0.0
            %v5922 = vand.u32 %v5456, 4294901760
            %v5923 = vsub.f32 %v5456, %v5922
            %v5924 = vand.u32 %v5923, 4294901760
            %v5925 = vsub.f32 %v5923, %v5924
            %v5926 = vand.u32 %v5925, 4294901760
            %5927 = vmatpush1.msra.mxu0 %v5926
            %5928 = vmatprep.subr.mxu0 0.0
            %v5929 = vand.u32 %v5457, 4294901760
            %v5930 = vsub.f32 %v5457, %v5929
            %v5931 = vand.u32 %v5930, 4294901760
            %v5932 = vsub.f32 %v5930, %v5931
            %v5933 = vand.u32 %v5932, 4294901760
            %5934 = vmatpush1.msra.mxu0 %v5933
            %5935 = vmatprep.subr.mxu0 0.0
            %v5936 = vand.u32 %v5458, 4294901760
            %v5937 = vsub.f32 %v5458, %v5936
            %v5938 = vand.u32 %v5937, 4294901760
            %v5939 = vsub.f32 %v5937, %v5938
            %v5940 = vand.u32 %v5939, 4294901760
            %5941 = vmatpush1.msra.mxu0 %v5940
            %5942 = vmatprep.subr.mxu0 0.0
            %v5943 = vand.u32 %v5459, 4294901760
            %v5944 = vsub.f32 %v5459, %v5943
            %v5945 = vand.u32 %v5944, 4294901760
            %v5946 = vsub.f32 %v5944, %v5945
            %v5947 = vand.u32 %v5946, 4294901760
            %5948 = vmatpush1.msra.mxu0 %v5947
            %5949 = vmatprep.subr.mxu0 0.0
            %v5950 = vand.u32 %v5460, 4294901760
            %v5951 = vsub.f32 %v5460, %v5950
            %v5952 = vand.u32 %v5951, 4294901760
            %v5953 = vsub.f32 %v5951, %v5952
            %v5954 = vand.u32 %v5953, 4294901760
            %5955 = vmatpush1.msra.mxu0 %v5954
            %5956 = vmatprep.subr.mxu0 0.0
            %v5957 = vand.u32 %v5461, 4294901760
            %v5958 = vsub.f32 %v5461, %v5957
            %v5959 = vand.u32 %v5958, 4294901760
            %v5960 = vsub.f32 %v5958, %v5959
            %v5961 = vand.u32 %v5960, 4294901760
            %5962 = vmatpush1.msra.mxu0 %v5961
            %5963 = vmatprep.subr.mxu0 0.0
            %v5964 = vand.u32 %v5462, 4294901760
            %v5965 = vsub.f32 %v5462, %v5964
            %v5966 = vand.u32 %v5965, 4294901760
            %v5967 = vsub.f32 %v5965, %v5966
            %v5968 = vand.u32 %v5967, 4294901760
            %5969 = vmatpush1.msra.mxu0 %v5968
            %5970 = vmatprep.subr.mxu0 0.0
            %v5971 = vand.u32 %v5463, 4294901760
            %v5972 = vsub.f32 %v5463, %v5971
            %v5973 = vand.u32 %v5972, 4294901760
            %v5974 = vsub.f32 %v5972, %v5973
            %v5975 = vand.u32 %v5974, 4294901760
            %5976 = vmatpush1.msra.mxu0 %v5975
            %5977 = vmatprep.subr.mxu0 0.0
            %v5978 = vand.u32 %v5464, 4294901760
            %v5979 = vsub.f32 %v5464, %v5978
            %v5980 = vand.u32 %v5979, 4294901760
            %v5981 = vsub.f32 %v5979, %v5980
            %v5982 = vand.u32 %v5981, 4294901760
            %5983 = vmatpush1.msra.mxu0 %v5982
            %5984 = vmatprep.subr.mxu0 0.0
            %v5985 = vand.u32 %v5465, 4294901760
            %v5986 = vsub.f32 %v5465, %v5985
            %v5987 = vand.u32 %v5986, 4294901760
            %v5988 = vsub.f32 %v5986, %v5987
            %v5989 = vand.u32 %v5988, 4294901760
            %5990 = vmatpush1.msra.mxu0 %v5989
            %5991 = vmatprep.subr.mxu0 0.0
            %v5992 = vand.u32 %v5466, 4294901760
            %v5993 = vsub.f32 %v5466, %v5992
            %v5994 = vand.u32 %v5993, 4294901760
            %v5995 = vsub.f32 %v5993, %v5994
            %v5996 = vand.u32 %v5995, 4294901760
            %5997 = vmatpush1.msra.mxu0 %v5996
            %5998 = vmatprep.subr.mxu0 0.0
            %v5999 = vand.u32 %v5467, 4294901760
            %v6000 = vsub.f32 %v5467, %v5999
            %v6001 = vand.u32 %v6000, 4294901760
            %v6002 = vsub.f32 %v6000, %v6001
            %v6003 = vand.u32 %v6002, 4294901760
            %6004 = vmatpush1.msra.mxu0 %v6003
            %6005 = vmatprep.subr.mxu0 0.0
            %v6006 = vand.u32 %v5468, 4294901760
            %v6007 = vsub.f32 %v5468, %v6006
            %v6008 = vand.u32 %v6007, 4294901760
            %v6009 = vsub.f32 %v6007, %v6008
            %v6010 = vand.u32 %v6009, 4294901760
            %6011 = vmatpush1.msra.mxu0 %v6010
            %6012 = vmatprep.subr.mxu0 0.0
            %v6013 = vand.u32 %v5469, 4294901760
            %v6014 = vsub.f32 %v5469, %v6013
            %v6015 = vand.u32 %v6014, 4294901760
            %v6016 = vsub.f32 %v6014, %v6015
            %v6017 = vand.u32 %v6016, 4294901760
            %6018 = vmatpush1.msra.mxu0 %v6017
            %6019 = vmatprep.subr.mxu0 0.0
            %v6020 = vand.u32 %v5470, 4294901760
            %v6021 = vsub.f32 %v5470, %v6020
            %v6022 = vand.u32 %v6021, 4294901760
            %v6023 = vsub.f32 %v6021, %v6022
            %v6024 = vand.u32 %v6023, 4294901760
            %6025 = vmatpush1.msra.mxu0 %v6024
            %6026 = vmatprep.subr.mxu0 0.0
            %v6027 = vand.u32 %v5471, 4294901760
            %v6028 = vsub.f32 %v5471, %v6027
            %v6029 = vand.u32 %v6028, 4294901760
            %v6030 = vsub.f32 %v6028, %v6029
            %v6031 = vand.u32 %v6030, 4294901760
            %6032 = vmatpush1.msra.mxu0 %v6031
            %v6033 = vand.u32 %v5409, 4294901760
            %6034 = vmatprep.mubr.f32.mxu0 %v6033
            %v6035 = vand.u32 %v5408, 4294901760
            %6036 = vmatmul.mubr.f32.gmra.mrb[0].mxu0 %v6035
            %v6037 = vpop.f32.mrb[0].mxu0
            %v6038 = vadd.f32 %v5581, %v6037
            %v6039 = vpop.f32.mrb[0].mxu0
            %v6040 = vand.u32 %v5411, 4294901760
            %6041 = vmatprep.mubr.f32.mxu0 %v6040
            %v6042 = vand.u32 %v5410, 4294901760
            %6043 = vmatmul.mubr.f32.gmra.mrb[0].mxu0 %v6042
            %v6044 = vpop.f32.mrb[0].mxu0
            %v6045 = vadd.f32 %v5596, %v6044
            %v6046 = vpop.f32.mrb[0].mxu0
            %v6047 = vand.u32 %v5413, 4294901760
            %6048 = vmatprep.mubr.f32.mxu0 %v6047
            %v6049 = vand.u32 %v5412, 4294901760
            %6050 = vmatmul.mubr.f32.gmra.mrb[0].mxu0 %v6049
            %v6051 = vpop.f32.mrb[0].mxu0
            %v6052 = vadd.f32 %v5611, %v6051
            %v6053 = vpop.f32.mrb[0].mxu0
            %v6054 = vand.u32 %v5415, 4294901760
            %6055 = vmatprep.mubr.f32.mxu0 %v6054
            %v6056 = vand.u32 %v5414, 4294901760
            %6057 = vmatmul.mubr.f32.gmra.mrb[0].mxu0 %v6056
            %v6058 = vpop.f32.mrb[0].mxu0
            %v6059 = vadd.f32 %v5626, %v6058
            %v6060 = vpop.f32.mrb[0].mxu0
            %v6061 = vand.u32 %v5417, 4294901760
            %6062 = vmatprep.mubr.f32.mxu0 %v6061
            %v6063 = vand.u32 %v5416, 4294901760
            %6064 = vmatmul.mubr.f32.gmra.mrb[0].mxu0 %v6063
            %v6065 = vpop.f32.mrb[0].mxu0
            %v6066 = vadd.f32 %v5641, %v6065
            %v6067 = vpop.f32.mrb[0].mxu0
            %v6068 = vand.u32 %v5419, 4294901760
            %6069 = vmatprep.mubr.f32.mxu0 %v6068
            %v6070 = vand.u32 %v5418, 4294901760
            %6071 = vmatmul.mubr.f32.gmra.mrb[0].mxu0 %v6070
            %v6072 = vpop.f32.mrb[0].mxu0
            %v6073 = vadd.f32 %v5656, %v6072
            %v6074 = vpop.f32.mrb[0].mxu0
            %v6075 = vand.u32 %v5421, 4294901760
            %6076 = vmatprep.mubr.f32.mxu0 %v6075
            %v6077 = vand.u32 %v5420, 4294901760
            %6078 = vmatmul.mubr.f32.gmra.mrb[0].mxu0 %v6077
            %v6079 = vpop.f32.mrb[0].mxu0
            %v6080 = vadd.f32 %v5671, %v6079
            %v6081 = vpop.f32.mrb[0].mxu0
            %v6082 = vand.u32 %v5423, 4294901760
            %6083 = vmatprep.mubr.f32.mxu0 %v6082
            %v6084 = vand.u32 %v5422, 4294901760
            %6085 = vmatmul.mubr.f32.gmra.mrb[0].mxu0 %v6084
            %v6086 = vpop.f32.mrb[0].mxu0
            %v6087 = vadd.f32 %v5686, %v6086
            %v6088 = vpop.f32.mrb[0].mxu0
            %v6089 = vand.u32 %v5425, 4294901760
            %6090 = vmatprep.mubr.f32.mxu0 %v6089
            %v6091 = vand.u32 %v5424, 4294901760
            %6092 = vmatmul.mubr.f32.gmra.mrb[0].mxu0 %v6091
            %v6093 = vpop.f32.mrb[0].mxu0
            %v6094 = vadd.f32 %v5701, %v6093
            %v6095 = vpop.f32.mrb[0].mxu0
            %v6096 = vand.u32 %v5427, 4294901760
            %6097 = vmatprep.mubr.f32.mxu0 %v6096
            %v6098 = vand.u32 %v5426, 4294901760
            %6099 = vmatmul.mubr.f32.gmra.mrb[0].mxu0 %v6098
            %v6100 = vpop.f32.mrb[0].mxu0
            %v6101 = vadd.f32 %v5716, %v6100
            %v6102 = vpop.f32.mrb[0].mxu0
            %v6103 = vand.u32 %v5429, 4294901760
            %6104 = vmatprep.mubr.f32.mxu0 %v6103
            %v6105 = vand.u32 %v5428, 4294901760
            %6106 = vmatmul.mubr.f32.gmra.mrb[0].mxu0 %v6105
            %v6107 = vpop.f32.mrb[0].mxu0
            %v6108 = vadd.f32 %v5731, %v6107
            %v6109 = vpop.f32.mrb[0].mxu0
            %v6110 = vand.u32 %v5431, 4294901760
            %6111 = vmatprep.mubr.f32.mxu0 %v6110
            %v6112 = vand.u32 %v5430, 4294901760
            %6113 = vmatmul.mubr.f32.gmra.mrb[0].mxu0 %v6112
            %v6114 = vpop.f32.mrb[0].mxu0
            %v6115 = vadd.f32 %v5746, %v6114
            %v6116 = vpop.f32.mrb[0].mxu0
            %v6117 = vand.u32 %v5433, 4294901760
            %6118 = vmatprep.mubr.f32.mxu0 %v6117
            %v6119 = vand.u32 %v5432, 4294901760
            %6120 = vmatmul.mubr.f32.gmra.mrb[0].mxu0 %v6119
            %v6121 = vpop.f32.mrb[0].mxu0
            %v6122 = vadd.f32 %v5761, %v6121
            %v6123 = vpop.f32.mrb[0].mxu0
            %v6124 = vand.u32 %v5435, 4294901760
            %6125 = vmatprep.mubr.f32.mxu0 %v6124
            %v6126 = vand.u32 %v5434, 4294901760
            %6127 = vmatmul.mubr.f32.gmra.mrb[0].mxu0 %v6126
            %v6128 = vpop.f32.mrb[0].mxu0
            %v6129 = vadd.f32 %v5776, %v6128
            %v6130 = vpop.f32.mrb[0].mxu0
            %v6131 = vand.u32 %v5437, 4294901760
            %6132 = vmatprep.mubr.f32.mxu0 %v6131
            %v6133 = vand.u32 %v5436, 4294901760
            %6134 = vmatmul.mubr.f32.gmra.mrb[0].mxu0 %v6133
            %v6135 = vpop.f32.mrb[0].mxu0
            %v6136 = vadd.f32 %v5791, %v6135
            %v6137 = vpop.f32.mrb[0].mxu0
            %v6138 = vand.u32 %v5439, 4294901760
            %6139 = vmatprep.mubr.f32.mxu0 %v6138
            %v6140 = vand.u32 %v5438, 4294901760
            %6141 = vmatmul.mubr.f32.gmra.mrb[0].mxu0 %v6140
            %v6142 = vpop.f32.mrb[0].mxu0
            %v6143 = vadd.f32 %v5806, %v6142
            %v6144 = vpop.f32.mrb[0].mxu0
            %6145 = vdwg.mxu0
            %6146 = vmatprep.subr.mxu0 0.0
            %v6147 = vand.u32 %v5440, 4294901760
            %v6148 = vsub.f32 %v5440, %v6147
            %6149 = vmatpush1.msra.mxu0 %v6148
            %6150 = vmatprep.subr.mxu0 0.0
            %v6151 = vand.u32 %v5441, 4294901760
            %v6152 = vsub.f32 %v5441, %v6151
            %6153 = vmatpush1.msra.mxu0 %v6152
            %6154 = vmatprep.subr.mxu0 0.0
            %v6155 = vand.u32 %v5442, 4294901760
            %v6156 = vsub.f32 %v5442, %v6155
            %6157 = vmatpush1.msra.mxu0 %v6156
            %6158 = vmatprep.subr.mxu0 0.0
            %v6159 = vand.u32 %v5443, 4294901760
            %v6160 = vsub.f32 %v5443, %v6159
            %6161 = vmatpush1.msra.mxu0 %v6160
            %6162 = vmatprep.subr.mxu0 0.0
            %v6163 = vand.u32 %v5444, 4294901760
            %v6164 = vsub.f32 %v5444, %v6163
            %6165 = vmatpush1.msra.mxu0 %v6164
            %6166 = vmatprep.subr.mxu0 0.0
            %v6167 = vand.u32 %v5445, 4294901760
            %v6168 = vsub.f32 %v5445, %v6167
            %6169 = vmatpush1.msra.mxu0 %v6168
            %6170 = vmatprep.subr.mxu0 0.0
            %v6171 = vand.u32 %v5446, 4294901760
            %v6172 = vsub.f32 %v5446, %v6171
            %6173 = vmatpush1.msra.mxu0 %v6172
            %6174 = vmatprep.subr.mxu0 0.0
            %v6175 = vand.u32 %v5447, 4294901760
            %v6176 = vsub.f32 %v5447, %v6175
            %6177 = vmatpush1.msra.mxu0 %v6176
            %6178 = vmatprep.subr.mxu0 0.0
            %v6179 = vand.u32 %v5448, 4294901760
            %v6180 = vsub.f32 %v5448, %v6179
            %6181 = vmatpush1.msra.mxu0 %v6180
            %6182 = vmatprep.subr.mxu0 0.0
            %v6183 = vand.u32 %v5449, 4294901760
            %v6184 = vsub.f32 %v5449, %v6183
            %6185 = vmatpush1.msra.mxu0 %v6184
            %6186 = vmatprep.subr.mxu0 0.0
            %v6187 = vand.u32 %v5450, 4294901760
            %v6188 = vsub.f32 %v5450, %v6187
            %6189 = vmatpush1.msra.mxu0 %v6188
            %6190 = vmatprep.subr.mxu0 0.0
            %v6191 = vand.u32 %v5451, 4294901760
            %v6192 = vsub.f32 %v5451, %v6191
            %6193 = vmatpush1.msra.mxu0 %v6192
            %6194 = vmatprep.subr.mxu0 0.0
            %v6195 = vand.u32 %v5452, 4294901760
            %v6196 = vsub.f32 %v5452, %v6195
            %6197 = vmatpush1.msra.mxu0 %v6196
            %6198 = vmatprep.subr.mxu0 0.0
            %v6199 = vand.u32 %v5453, 4294901760
            %v6200 = vsub.f32 %v5453, %v6199
            %6201 = vmatpush1.msra.mxu0 %v6200
            %6202 = vmatprep.subr.mxu0 0.0
            %v6203 = vand.u32 %v5454, 4294901760
            %v6204 = vsub.f32 %v5454, %v6203
            %6205 = vmatpush1.msra.mxu0 %v6204
            %6206 = vmatprep.subr.mxu0 0.0
            %v6207 = vand.u32 %v5455, 4294901760
            %v6208 = vsub.f32 %v5455, %v6207
            %6209 = vmatpush1.msra.mxu0 %v6208
            %6210 = vmatprep.subr.mxu0 0.0
            %v6211 = vand.u32 %v5456, 4294901760
            %v6212 = vsub.f32 %v5456, %v6211
            %6213 = vmatpush1.msra.mxu0 %v6212
            %6214 = vmatprep.subr.mxu0 0.0
            %v6215 = vand.u32 %v5457, 4294901760
            %v6216 = vsub.f32 %v5457, %v6215
            %6217 = vmatpush1.msra.mxu0 %v6216
            %6218 = vmatprep.subr.mxu0 0.0
            %v6219 = vand.u32 %v5458, 4294901760
            %v6220 = vsub.f32 %v5458, %v6219
            %6221 = vmatpush1.msra.mxu0 %v6220
            %6222 = vmatprep.subr.mxu0 0.0
            %v6223 = vand.u32 %v5459, 4294901760
            %v6224 = vsub.f32 %v5459, %v6223
            %6225 = vmatpush1.msra.mxu0 %v6224
            %6226 = vmatprep.subr.mxu0 0.0
            %v6227 = vand.u32 %v5460, 4294901760
            %v6228 = vsub.f32 %v5460, %v6227
            %6229 = vmatpush1.msra.mxu0 %v6228
            %6230 = vmatprep.subr.mxu0 0.0
            %v6231 = vand.u32 %v5461, 4294901760
            %v6232 = vsub.f32 %v5461, %v6231
            %6233 = vmatpush1.msra.mxu0 %v6232
            %6234 = vmatprep.subr.mxu0 0.0
            %v6235 = vand.u32 %v5462, 4294901760
            %v6236 = vsub.f32 %v5462, %v6235
            %6237 = vmatpush1.msra.mxu0 %v6236
            %6238 = vmatprep.subr.mxu0 0.0
            %v6239 = vand.u32 %v5463, 4294901760
            %v6240 = vsub.f32 %v5463, %v6239
            %6241 = vmatpush1.msra.mxu0 %v6240
            %6242 = vmatprep.subr.mxu0 0.0
            %v6243 = vand.u32 %v5464, 4294901760
            %v6244 = vsub.f32 %v5464, %v6243
            %6245 = vmatpush1.msra.mxu0 %v6244
            %6246 = vmatprep.subr.mxu0 0.0
            %v6247 = vand.u32 %v5465, 4294901760
            %v6248 = vsub.f32 %v5465, %v6247
            %6249 = vmatpush1.msra.mxu0 %v6248
            %6250 = vmatprep.subr.mxu0 0.0
            %v6251 = vand.u32 %v5466, 4294901760
            %v6252 = vsub.f32 %v5466, %v6251
            %6253 = vmatpush1.msra.mxu0 %v6252
            %6254 = vmatprep.subr.mxu0 0.0
            %v6255 = vand.u32 %v5467, 4294901760
            %v6256 = vsub.f32 %v5467, %v6255
            %6257 = vmatpush1.msra.mxu0 %v6256
            %6258 = vmatprep.subr.mxu0 0.0
            %v6259 = vand.u32 %v5468, 4294901760
            %v6260 = vsub.f32 %v5468, %v6259
            %6261 = vmatpush1.msra.mxu0 %v6260
            %6262 = vmatprep.subr.mxu0 0.0
            %v6263 = vand.u32 %v5469, 4294901760
            %v6264 = vsub.f32 %v5469, %v6263
            %6265 = vmatpush1.msra.mxu0 %v6264
            %6266 = vmatprep.subr.mxu0 0.0
            %v6267 = vand.u32 %v5470, 4294901760
            %v6268 = vsub.f32 %v5470, %v6267
            %6269 = vmatpush1.msra.mxu0 %v6268
            %6270 = vmatprep.subr.mxu0 0.0
            %v6271 = vand.u32 %v5471, 4294901760
            %v6272 = vsub.f32 %v5471, %v6271
            %6273 = vmatpush1.msra.mxu0 %v6272
            %v6274 = vand.u32 %v5409, 4294901760
            %v6275 = vsub.f32 %v5409, %v6274
            %6276 = vmatprep.mubr.f32.mxu0 %v6275
            %v6277 = vand.u32 %v5408, 4294901760
            %v6278 = vsub.f32 %v5408, %v6277
            %6279 = vmatmul.mubr.f32.gmra.mrb[0].mxu0 %v6278
            %v6280 = vpop.f32.mrb[0].mxu0
            %v6281 = vadd.f32 %v6038, %v6280
            %v6282 = vpop.f32.mrb[0].mxu0
            %v6283 = vand.u32 %v5411, 4294901760
            %v6284 = vsub.f32 %v5411, %v6283
            %6285 = vmatprep.mubr.f32.mxu0 %v6284
            %v6286 = vand.u32 %v5410, 4294901760
            %v6287 = vsub.f32 %v5410, %v6286
            %6288 = vmatmul.mubr.f32.gmra.mrb[0].mxu0 %v6287
            %v6289 = vpop.f32.mrb[0].mxu0
            %v6290 = vadd.f32 %v6045, %v6289
            %v6291 = vpop.f32.mrb[0].mxu0
            %v6292 = vand.u32 %v5413, 4294901760
            %v6293 = vsub.f32 %v5413, %v6292
            %6294 = vmatprep.mubr.f32.mxu0 %v6293
            %v6295 = vand.u32 %v5412, 4294901760
            %v6296 = vsub.f32 %v5412, %v6295
            %6297 = vmatmul.mubr.f32.gmra.mrb[0].mxu0 %v6296
            %v6298 = vpop.f32.mrb[0].mxu0
            %v6299 = vadd.f32 %v6052, %v6298
            %v6300 = vpop.f32.mrb[0].mxu0
            %v6301 = vand.u32 %v5415, 4294901760
            %v6302 = vsub.f32 %v5415, %v6301
            %6303 = vmatprep.mubr.f32.mxu0 %v6302
            %v6304 = vand.u32 %v5414, 4294901760
            %v6305 = vsub.f32 %v5414, %v6304
            %6306 = vmatmul.mubr.f32.gmra.mrb[0].mxu0 %v6305
            %v6307 = vpop.f32.mrb[0].mxu0
            %v6308 = vadd.f32 %v6059, %v6307
            %v6309 = vpop.f32.mrb[0].mxu0
            %v6310 = vand.u32 %v5417, 4294901760
            %v6311 = vsub.f32 %v5417, %v6310
            %6312 = vmatprep.mubr.f32.mxu0 %v6311
            %v6313 = vand.u32 %v5416, 4294901760
            %v6314 = vsub.f32 %v5416, %v6313
            %6315 = vmatmul.mubr.f32.gmra.mrb[0].mxu0 %v6314
            %v6316 = vpop.f32.mrb[0].mxu0
            %v6317 = vadd.f32 %v6066, %v6316
            %v6318 = vpop.f32.mrb[0].mxu0
            %v6319 = vand.u32 %v5419, 4294901760
            %v6320 = vsub.f32 %v5419, %v6319
            %6321 = vmatprep.mubr.f32.mxu0 %v6320
            %v6322 = vand.u32 %v5418, 4294901760
            %v6323 = vsub.f32 %v5418, %v6322
            %6324 = vmatmul.mubr.f32.gmra.mrb[0].mxu0 %v6323
            %v6325 = vpop.f32.mrb[0].mxu0
            %v6326 = vadd.f32 %v6073, %v6325
            %v6327 = vpop.f32.mrb[0].mxu0
            %v6328 = vand.u32 %v5421, 4294901760
            %v6329 = vsub.f32 %v5421, %v6328
            %6330 = vmatprep.mubr.f32.mxu0 %v6329
            %v6331 = vand.u32 %v5420, 4294901760
            %v6332 = vsub.f32 %v5420, %v6331
            %6333 = vmatmul.mubr.f32.gmra.mrb[0].mxu0 %v6332
            %v6334 = vpop.f32.mrb[0].mxu0
            %v6335 = vadd.f32 %v6080, %v6334
            %v6336 = vpop.f32.mrb[0].mxu0
            %v6337 = vand.u32 %v5423, 4294901760
            %v6338 = vsub.f32 %v5423, %v6337
            %6339 = vmatprep.mubr.f32.mxu0 %v6338
            %v6340 = vand.u32 %v5422, 4294901760
            %v6341 = vsub.f32 %v5422, %v6340
            %6342 = vmatmul.mubr.f32.gmra.mrb[0].mxu0 %v6341
            %v6343 = vpop.f32.mrb[0].mxu0
            %v6344 = vadd.f32 %v6087, %v6343
            %v6345 = vpop.f32.mrb[0].mxu0
            %v6346 = vand.u32 %v5425, 4294901760
            %v6347 = vsub.f32 %v5425, %v6346
            %6348 = vmatprep.mubr.f32.mxu0 %v6347
            %v6349 = vand.u32 %v5424, 4294901760
            %v6350 = vsub.f32 %v5424, %v6349
            %6351 = vmatmul.mubr.f32.gmra.mrb[0].mxu0 %v6350
            %v6352 = vpop.f32.mrb[0].mxu0
            %v6353 = vadd.f32 %v6094, %v6352
            %v6354 = vpop.f32.mrb[0].mxu0
            %v6355 = vand.u32 %v5427, 4294901760
            %v6356 = vsub.f32 %v5427, %v6355
            %6357 = vmatprep.mubr.f32.mxu0 %v6356
            %v6358 = vand.u32 %v5426, 4294901760
            %v6359 = vsub.f32 %v5426, %v6358
            %6360 = vmatmul.mubr.f32.gmra.mrb[0].mxu0 %v6359
            %v6361 = vpop.f32.mrb[0].mxu0
            %v6362 = vadd.f32 %v6101, %v6361
            %v6363 = vpop.f32.mrb[0].mxu0
            %v6364 = vand.u32 %v5429, 4294901760
            %v6365 = vsub.f32 %v5429, %v6364
            %6366 = vmatprep.mubr.f32.mxu0 %v6365
            %v6367 = vand.u32 %v5428, 4294901760
            %v6368 = vsub.f32 %v5428, %v6367
            %6369 = vmatmul.mubr.f32.gmra.mrb[0].mxu0 %v6368
            %v6370 = vpop.f32.mrb[0].mxu0
            %v6371 = vadd.f32 %v6108, %v6370
            %v6372 = vpop.f32.mrb[0].mxu0
            %v6373 = vand.u32 %v5431, 4294901760
            %v6374 = vsub.f32 %v5431, %v6373
            %6375 = vmatprep.mubr.f32.mxu0 %v6374
            %v6376 = vand.u32 %v5430, 4294901760
            %v6377 = vsub.f32 %v5430, %v6376
            %6378 = vmatmul.mubr.f32.gmra.mrb[0].mxu0 %v6377
            %v6379 = vpop.f32.mrb[0].mxu0
            %v6380 = vadd.f32 %v6115, %v6379
            %v6381 = vpop.f32.mrb[0].mxu0
            %v6382 = vand.u32 %v5433, 4294901760
            %v6383 = vsub.f32 %v5433, %v6382
            %6384 = vmatprep.mubr.f32.mxu0 %v6383
            %v6385 = vand.u32 %v5432, 4294901760
            %v6386 = vsub.f32 %v5432, %v6385
            %6387 = vmatmul.mubr.f32.gmra.mrb[0].mxu0 %v6386
            %v6388 = vpop.f32.mrb[0].mxu0
            %v6389 = vadd.f32 %v6122, %v6388
            %v6390 = vpop.f32.mrb[0].mxu0
            %v6391 = vand.u32 %v5435, 4294901760
            %v6392 = vsub.f32 %v5435, %v6391
            %6393 = vmatprep.mubr.f32.mxu0 %v6392
            %v6394 = vand.u32 %v5434, 4294901760
            %v6395 = vsub.f32 %v5434, %v6394
            %6396 = vmatmul.mubr.f32.gmra.mrb[0].mxu0 %v6395
            %v6397 = vpop.f32.mrb[0].mxu0
            %v6398 = vadd.f32 %v6129, %v6397
            %v6399 = vpop.f32.mrb[0].mxu0
            %v6400 = vand.u32 %v5437, 4294901760
            %v6401 = vsub.f32 %v5437, %v6400
            %6402 = vmatprep.mubr.f32.mxu0 %v6401
            %v6403 = vand.u32 %v5436, 4294901760
            %v6404 = vsub.f32 %v5436, %v6403
            %6405 = vmatmul.mubr.f32.gmra.mrb[0].mxu0 %v6404
            %v6406 = vpop.f32.mrb[0].mxu0
            %v6407 = vadd.f32 %v6136, %v6406
            %v6408 = vpop.f32.mrb[0].mxu0
            %v6409 = vand.u32 %v5439, 4294901760
            %v6410 = vsub.f32 %v5439, %v6409
            %6411 = vmatprep.mubr.f32.mxu0 %v6410
            %v6412 = vand.u32 %v5438, 4294901760
            %v6413 = vsub.f32 %v5438, %v6412
            %6414 = vmatmul.mubr.f32.gmra.mrb[0].mxu0 %v6413
            %v6415 = vpop.f32.mrb[0].mxu0
            %v6416 = vadd.f32 %v6143, %v6415
            %v6417 = vpop.f32.mrb[0].mxu0
            %6418 = vdwg.mxu0
            %6419 = vmatprep.subr.mxu0 0.0
            %v6420 = vand.u32 %v5440, 4294901760
            %6421 = vmatpush1.msra.mxu0 %v6420
            %6422 = vmatprep.subr.mxu0 0.0
            %v6423 = vand.u32 %v5441, 4294901760
            %6424 = vmatpush1.msra.mxu0 %v6423
            %6425 = vmatprep.subr.mxu0 0.0
            %v6426 = vand.u32 %v5442, 4294901760
            %6427 = vmatpush1.msra.mxu0 %v6426
            %6428 = vmatprep.subr.mxu0 0.0
            %v6429 = vand.u32 %v5443, 4294901760
            %6430 = vmatpush1.msra.mxu0 %v6429
            %6431 = vmatprep.subr.mxu0 0.0
            %v6432 = vand.u32 %v5444, 4294901760
            %6433 = vmatpush1.msra.mxu0 %v6432
            %6434 = vmatprep.subr.mxu0 0.0
            %v6435 = vand.u32 %v5445, 4294901760
            %6436 = vmatpush1.msra.mxu0 %v6435
            %6437 = vmatprep.subr.mxu0 0.0
            %v6438 = vand.u32 %v5446, 4294901760
            %6439 = vmatpush1.msra.mxu0 %v6438
            %6440 = vmatprep.subr.mxu0 0.0
            %v6441 = vand.u32 %v5447, 4294901760
            %6442 = vmatpush1.msra.mxu0 %v6441
            %6443 = vmatprep.subr.mxu0 0.0
            %v6444 = vand.u32 %v5448, 4294901760
            %6445 = vmatpush1.msra.mxu0 %v6444
            %6446 = vmatprep.subr.mxu0 0.0
            %v6447 = vand.u32 %v5449, 4294901760
            %6448 = vmatpush1.msra.mxu0 %v6447
            %6449 = vmatprep.subr.mxu0 0.0
            %v6450 = vand.u32 %v5450, 4294901760
            %6451 = vmatpush1.msra.mxu0 %v6450
            %6452 = vmatprep.subr.mxu0 0.0
            %v6453 = vand.u32 %v5451, 4294901760
            %6454 = vmatpush1.msra.mxu0 %v6453
            %6455 = vmatprep.subr.mxu0 0.0
            %v6456 = vand.u32 %v5452, 4294901760
            %6457 = vmatpush1.msra.mxu0 %v6456
            %6458 = vmatprep.subr.mxu0 0.0
            %v6459 = vand.u32 %v5453, 4294901760
            %6460 = vmatpush1.msra.mxu0 %v6459
            %6461 = vmatprep.subr.mxu0 0.0
            %v6462 = vand.u32 %v5454, 4294901760
            %6463 = vmatpush1.msra.mxu0 %v6462
            %6464 = vmatprep.subr.mxu0 0.0
            %v6465 = vand.u32 %v5455, 4294901760
            %6466 = vmatpush1.msra.mxu0 %v6465
            %6467 = vmatprep.subr.mxu0 0.0
            %v6468 = vand.u32 %v5456, 4294901760
            %6469 = vmatpush1.msra.mxu0 %v6468
            %6470 = vmatprep.subr.mxu0 0.0
            %v6471 = vand.u32 %v5457, 4294901760
            %6472 = vmatpush1.msra.mxu0 %v6471
            %6473 = vmatprep.subr.mxu0 0.0
            %v6474 = vand.u32 %v5458, 4294901760
            %6475 = vmatpush1.msra.mxu0 %v6474
            %6476 = vmatprep.subr.mxu0 0.0
            %v6477 = vand.u32 %v5459, 4294901760
            %6478 = vmatpush1.msra.mxu0 %v6477
            %6479 = vmatprep.subr.mxu0 0.0
            %v6480 = vand.u32 %v5460, 4294901760
            %6481 = vmatpush1.msra.mxu0 %v6480
            %6482 = vmatprep.subr.mxu0 0.0
            %v6483 = vand.u32 %v5461, 4294901760
            %6484 = vmatpush1.msra.mxu0 %v6483
            %6485 = vmatprep.subr.mxu0 0.0
            %v6486 = vand.u32 %v5462, 4294901760
            %6487 = vmatpush1.msra.mxu0 %v6486
            %6488 = vmatprep.subr.mxu0 0.0
            %v6489 = vand.u32 %v5463, 4294901760
            %6490 = vmatpush1.msra.mxu0 %v6489
            %6491 = vmatprep.subr.mxu0 0.0
            %v6492 = vand.u32 %v5464, 4294901760
            %6493 = vmatpush1.msra.mxu0 %v6492
            %6494 = vmatprep.subr.mxu0 0.0
            %v6495 = vand.u32 %v5465, 4294901760
            %6496 = vmatpush1.msra.mxu0 %v6495
            %6497 = vmatprep.subr.mxu0 0.0
            %v6498 = vand.u32 %v5466, 4294901760
            %6499 = vmatpush1.msra.mxu0 %v6498
            %6500 = vmatprep.subr.mxu0 0.0
            %v6501 = vand.u32 %v5467, 4294901760
            %6502 = vmatpush1.msra.mxu0 %v6501
            %6503 = vmatprep.subr.mxu0 0.0
            %v6504 = vand.u32 %v5468, 4294901760
            %6505 = vmatpush1.msra.mxu0 %v6504
            %6506 = vmatprep.subr.mxu0 0.0
            %v6507 = vand.u32 %v5469, 4294901760
            %6508 = vmatpush1.msra.mxu0 %v6507
            %6509 = vmatprep.subr.mxu0 0.0
            %v6510 = vand.u32 %v5470, 4294901760
            %6511 = vmatpush1.msra.mxu0 %v6510
            %6512 = vmatprep.subr.mxu0 0.0
            %v6513 = vand.u32 %v5471, 4294901760
            %6514 = vmatpush1.msra.mxu0 %v6513
            %v6515 = vand.u32 %v5409, 4294901760
            %v6516 = vsub.f32 %v5409, %v6515
            %v6517 = vand.u32 %v6516, 4294901760
            %6518 = vmatprep.mubr.f32.mxu0 %v6517
            %v6519 = vand.u32 %v5408, 4294901760
            %v6520 = vsub.f32 %v5408, %v6519
            %v6521 = vand.u32 %v6520, 4294901760
            %6522 = vmatmul.mubr.f32.gmra.mrb[0].mxu0 %v6521
            %v6523 = vpop.f32.mrb[0].mxu0
            %v6524 = vadd.f32 %v6281, %v6523
            %v6525 = vpop.f32.mrb[0].mxu0
            %v6526 = vand.u32 %v5411, 4294901760
            %v6527 = vsub.f32 %v5411, %v6526
            %v6528 = vand.u32 %v6527, 4294901760
            %6529 = vmatprep.mubr.f32.mxu0 %v6528
            %v6530 = vand.u32 %v5410, 4294901760
            %v6531 = vsub.f32 %v5410, %v6530
            %v6532 = vand.u32 %v6531, 4294901760
            %6533 = vmatmul.mubr.f32.gmra.mrb[0].mxu0 %v6532
            %v6534 = vpop.f32.mrb[0].mxu0
            %v6535 = vadd.f32 %v6290, %v6534
            %v6536 = vpop.f32.mrb[0].mxu0
            %v6537 = vand.u32 %v5413, 4294901760
            %v6538 = vsub.f32 %v5413, %v6537
            %v6539 = vand.u32 %v6538, 4294901760
            %6540 = vmatprep.mubr.f32.mxu0 %v6539
            %v6541 = vand.u32 %v5412, 4294901760
            %v6542 = vsub.f32 %v5412, %v6541
            %v6543 = vand.u32 %v6542, 4294901760
            %6544 = vmatmul.mubr.f32.gmra.mrb[0].mxu0 %v6543
            %v6545 = vpop.f32.mrb[0].mxu0
            %v6546 = vadd.f32 %v6299, %v6545
            %v6547 = vpop.f32.mrb[0].mxu0
            %v6548 = vand.u32 %v5415, 4294901760
            %v6549 = vsub.f32 %v5415, %v6548
            %v6550 = vand.u32 %v6549, 4294901760
            %6551 = vmatprep.mubr.f32.mxu0 %v6550
            %v6552 = vand.u32 %v5414, 4294901760
            %v6553 = vsub.f32 %v5414, %v6552
            %v6554 = vand.u32 %v6553, 4294901760
            %6555 = vmatmul.mubr.f32.gmra.mrb[0].mxu0 %v6554
            %v6556 = vpop.f32.mrb[0].mxu0
            %v6557 = vadd.f32 %v6308, %v6556
            %v6558 = vpop.f32.mrb[0].mxu0
            %v6559 = vand.u32 %v5417, 4294901760
            %v6560 = vsub.f32 %v5417, %v6559
            %v6561 = vand.u32 %v6560, 4294901760
            %6562 = vmatprep.mubr.f32.mxu0 %v6561
            %v6563 = vand.u32 %v5416, 4294901760
            %v6564 = vsub.f32 %v5416, %v6563
            %v6565 = vand.u32 %v6564, 4294901760
            %6566 = vmatmul.mubr.f32.gmra.mrb[0].mxu0 %v6565
            %v6567 = vpop.f32.mrb[0].mxu0
            %v6568 = vadd.f32 %v6317, %v6567
            %v6569 = vpop.f32.mrb[0].mxu0
            %v6570 = vand.u32 %v5419, 4294901760
            %v6571 = vsub.f32 %v5419, %v6570
            %v6572 = vand.u32 %v6571, 4294901760
            %6573 = vmatprep.mubr.f32.mxu0 %v6572
            %v6574 = vand.u32 %v5418, 4294901760
            %v6575 = vsub.f32 %v5418, %v6574
            %v6576 = vand.u32 %v6575, 4294901760
            %6577 = vmatmul.mubr.f32.gmra.mrb[0].mxu0 %v6576
            %v6578 = vpop.f32.mrb[0].mxu0
            %v6579 = vadd.f32 %v6326, %v6578
            %v6580 = vpop.f32.mrb[0].mxu0
            %v6581 = vand.u32 %v5421, 4294901760
            %v6582 = vsub.f32 %v5421, %v6581
            %v6583 = vand.u32 %v6582, 4294901760
            %6584 = vmatprep.mubr.f32.mxu0 %v6583
            %v6585 = vand.u32 %v5420, 4294901760
            %v6586 = vsub.f32 %v5420, %v6585
            %v6587 = vand.u32 %v6586, 4294901760
            %6588 = vmatmul.mubr.f32.gmra.mrb[0].mxu0 %v6587
            %v6589 = vpop.f32.mrb[0].mxu0
            %v6590 = vadd.f32 %v6335, %v6589
            %v6591 = vpop.f32.mrb[0].mxu0
            %v6592 = vand.u32 %v5423, 4294901760
            %v6593 = vsub.f32 %v5423, %v6592
            %v6594 = vand.u32 %v6593, 4294901760
            %6595 = vmatprep.mubr.f32.mxu0 %v6594
            %v6596 = vand.u32 %v5422, 4294901760
            %v6597 = vsub.f32 %v5422, %v6596
            %v6598 = vand.u32 %v6597, 4294901760
            %6599 = vmatmul.mubr.f32.gmra.mrb[0].mxu0 %v6598
            %v6600 = vpop.f32.mrb[0].mxu0
            %v6601 = vadd.f32 %v6344, %v6600
            %v6602 = vpop.f32.mrb[0].mxu0
            %v6603 = vand.u32 %v5425, 4294901760
            %v6604 = vsub.f32 %v5425, %v6603
            %v6605 = vand.u32 %v6604, 4294901760
            %6606 = vmatprep.mubr.f32.mxu0 %v6605
            %v6607 = vand.u32 %v5424, 4294901760
            %v6608 = vsub.f32 %v5424, %v6607
            %v6609 = vand.u32 %v6608, 4294901760
            %6610 = vmatmul.mubr.f32.gmra.mrb[0].mxu0 %v6609
            %v6611 = vpop.f32.mrb[0].mxu0
            %v6612 = vadd.f32 %v6353, %v6611
            %v6613 = vpop.f32.mrb[0].mxu0
            %v6614 = vand.u32 %v5427, 4294901760
            %v6615 = vsub.f32 %v5427, %v6614
            %v6616 = vand.u32 %v6615, 4294901760
            %6617 = vmatprep.mubr.f32.mxu0 %v6616
            %v6618 = vand.u32 %v5426, 4294901760
            %v6619 = vsub.f32 %v5426, %v6618
            %v6620 = vand.u32 %v6619, 4294901760
            %6621 = vmatmul.mubr.f32.gmra.mrb[0].mxu0 %v6620
            %v6622 = vpop.f32.mrb[0].mxu0
            %v6623 = vadd.f32 %v6362, %v6622
            %v6624 = vpop.f32.mrb[0].mxu0
            %v6625 = vand.u32 %v5429, 4294901760
            %v6626 = vsub.f32 %v5429, %v6625
            %v6627 = vand.u32 %v6626, 4294901760
            %6628 = vmatprep.mubr.f32.mxu0 %v6627
            %v6629 = vand.u32 %v5428, 4294901760
            %v6630 = vsub.f32 %v5428, %v6629
            %v6631 = vand.u32 %v6630, 4294901760
            %6632 = vmatmul.mubr.f32.gmra.mrb[0].mxu0 %v6631
            %v6633 = vpop.f32.mrb[0].mxu0
            %v6634 = vadd.f32 %v6371, %v6633
            %v6635 = vpop.f32.mrb[0].mxu0
            %v6636 = vand.u32 %v5431, 4294901760
            %v6637 = vsub.f32 %v5431, %v6636
            %v6638 = vand.u32 %v6637, 4294901760
            %6639 = vmatprep.mubr.f32.mxu0 %v6638
            %v6640 = vand.u32 %v5430, 4294901760
            %v6641 = vsub.f32 %v5430, %v6640
            %v6642 = vand.u32 %v6641, 4294901760
            %6643 = vmatmul.mubr.f32.gmra.mrb[0].mxu0 %v6642
            %v6644 = vpop.f32.mrb[0].mxu0
            %v6645 = vadd.f32 %v6380, %v6644
            %v6646 = vpop.f32.mrb[0].mxu0
            %v6647 = vand.u32 %v5433, 4294901760
            %v6648 = vsub.f32 %v5433, %v6647
            %v6649 = vand.u32 %v6648, 4294901760
            %6650 = vmatprep.mubr.f32.mxu0 %v6649
            %v6651 = vand.u32 %v5432, 4294901760
            %v6652 = vsub.f32 %v5432, %v6651
            %v6653 = vand.u32 %v6652, 4294901760
            %6654 = vmatmul.mubr.f32.gmra.mrb[0].mxu0 %v6653
            %v6655 = vpop.f32.mrb[0].mxu0
            %v6656 = vadd.f32 %v6389, %v6655
            %v6657 = vpop.f32.mrb[0].mxu0
            %v6658 = vand.u32 %v5435, 4294901760
            %v6659 = vsub.f32 %v5435, %v6658
            %v6660 = vand.u32 %v6659, 4294901760
            %6661 = vmatprep.mubr.f32.mxu0 %v6660
            %v6662 = vand.u32 %v5434, 4294901760
            %v6663 = vsub.f32 %v5434, %v6662
            %v6664 = vand.u32 %v6663, 4294901760
            %6665 = vmatmul.mubr.f32.gmra.mrb[0].mxu0 %v6664
            %v6666 = vpop.f32.mrb[0].mxu0
            %v6667 = vadd.f32 %v6398, %v6666
            %v6668 = vpop.f32.mrb[0].mxu0
            %v6669 = vand.u32 %v5437, 4294901760
            %v6670 = vsub.f32 %v5437, %v6669
            %v6671 = vand.u32 %v6670, 4294901760
            %6672 = vmatprep.mubr.f32.mxu0 %v6671
            %v6673 = vand.u32 %v5436, 4294901760
            %v6674 = vsub.f32 %v5436, %v6673
            %v6675 = vand.u32 %v6674, 4294901760
            %6676 = vmatmul.mubr.f32.gmra.mrb[0].mxu0 %v6675
            %v6677 = vpop.f32.mrb[0].mxu0
            %v6678 = vadd.f32 %v6407, %v6677
            %v6679 = vpop.f32.mrb[0].mxu0
            %v6680 = vand.u32 %v5439, 4294901760
            %v6681 = vsub.f32 %v5439, %v6680
            %v6682 = vand.u32 %v6681, 4294901760
            %6683 = vmatprep.mubr.f32.mxu0 %v6682
            %v6684 = vand.u32 %v5438, 4294901760
            %v6685 = vsub.f32 %v5438, %v6684
            %v6686 = vand.u32 %v6685, 4294901760
            %6687 = vmatmul.mubr.f32.gmra.mrb[0].mxu0 %v6686
            %v6688 = vpop.f32.mrb[0].mxu0
            %v6689 = vadd.f32 %v6416, %v6688
            %v6690 = vpop.f32.mrb[0].mxu0
            %6691 = vdwg.mxu0
            %6692 = vmatprep.subr.mxu0 0.0
            %v6693 = vand.u32 %v5440, 4294901760
            %v6694 = vsub.f32 %v5440, %v6693
            %v6695 = vand.u32 %v6694, 4294901760
            %6696 = vmatpush1.msra.mxu0 %v6695
            %6697 = vmatprep.subr.mxu0 0.0
            %v6698 = vand.u32 %v5441, 4294901760
            %v6699 = vsub.f32 %v5441, %v6698
            %v6700 = vand.u32 %v6699, 4294901760
            %6701 = vmatpush1.msra.mxu0 %v6700
            %6702 = vmatprep.subr.mxu0 0.0
            %v6703 = vand.u32 %v5442, 4294901760
            %v6704 = vsub.f32 %v5442, %v6703
            %v6705 = vand.u32 %v6704, 4294901760
            %6706 = vmatpush1.msra.mxu0 %v6705
            %6707 = vmatprep.subr.mxu0 0.0
            %v6708 = vand.u32 %v5443, 4294901760
            %v6709 = vsub.f32 %v5443, %v6708
            %v6710 = vand.u32 %v6709, 4294901760
            %6711 = vmatpush1.msra.mxu0 %v6710
            %6712 = vmatprep.subr.mxu0 0.0
            %v6713 = vand.u32 %v5444, 4294901760
            %v6714 = vsub.f32 %v5444, %v6713
            %v6715 = vand.u32 %v6714, 4294901760
            %6716 = vmatpush1.msra.mxu0 %v6715
            %6717 = vmatprep.subr.mxu0 0.0
            %v6718 = vand.u32 %v5445, 4294901760
            %v6719 = vsub.f32 %v5445, %v6718
            %v6720 = vand.u32 %v6719, 4294901760
            %6721 = vmatpush1.msra.mxu0 %v6720
            %6722 = vmatprep.subr.mxu0 0.0
            %v6723 = vand.u32 %v5446, 4294901760
            %v6724 = vsub.f32 %v5446, %v6723
            %v6725 = vand.u32 %v6724, 4294901760
            %6726 = vmatpush1.msra.mxu0 %v6725
            %6727 = vmatprep.subr.mxu0 0.0
            %v6728 = vand.u32 %v5447, 4294901760
            %v6729 = vsub.f32 %v5447, %v6728
            %v6730 = vand.u32 %v6729, 4294901760
            %6731 = vmatpush1.msra.mxu0 %v6730
            %6732 = vmatprep.subr.mxu0 0.0
            %v6733 = vand.u32 %v5448, 4294901760
            %v6734 = vsub.f32 %v5448, %v6733
            %v6735 = vand.u32 %v6734, 4294901760
            %6736 = vmatpush1.msra.mxu0 %v6735
            %6737 = vmatprep.subr.mxu0 0.0
            %v6738 = vand.u32 %v5449, 4294901760
            %v6739 = vsub.f32 %v5449, %v6738
            %v6740 = vand.u32 %v6739, 4294901760
            %6741 = vmatpush1.msra.mxu0 %v6740
            %6742 = vmatprep.subr.mxu0 0.0
            %v6743 = vand.u32 %v5450, 4294901760
            %v6744 = vsub.f32 %v5450, %v6743
            %v6745 = vand.u32 %v6744, 4294901760
            %6746 = vmatpush1.msra.mxu0 %v6745
            %6747 = vmatprep.subr.mxu0 0.0
            %v6748 = vand.u32 %v5451, 4294901760
            %v6749 = vsub.f32 %v5451, %v6748
            %v6750 = vand.u32 %v6749, 4294901760
            %6751 = vmatpush1.msra.mxu0 %v6750
            %6752 = vmatprep.subr.mxu0 0.0
            %v6753 = vand.u32 %v5452, 4294901760
            %v6754 = vsub.f32 %v5452, %v6753
            %v6755 = vand.u32 %v6754, 4294901760
            %6756 = vmatpush1.msra.mxu0 %v6755
            %6757 = vmatprep.subr.mxu0 0.0
            %v6758 = vand.u32 %v5453, 4294901760
            %v6759 = vsub.f32 %v5453, %v6758
            %v6760 = vand.u32 %v6759, 4294901760
            %6761 = vmatpush1.msra.mxu0 %v6760
            %6762 = vmatprep.subr.mxu0 0.0
            %v6763 = vand.u32 %v5454, 4294901760
            %v6764 = vsub.f32 %v5454, %v6763
            %v6765 = vand.u32 %v6764, 4294901760
            %6766 = vmatpush1.msra.mxu0 %v6765
            %6767 = vmatprep.subr.mxu0 0.0
            %v6768 = vand.u32 %v5455, 4294901760
            %v6769 = vsub.f32 %v5455, %v6768
            %v6770 = vand.u32 %v6769, 4294901760
            %6771 = vmatpush1.msra.mxu0 %v6770
            %6772 = vmatprep.subr.mxu0 0.0
            %v6773 = vand.u32 %v5456, 4294901760
            %v6774 = vsub.f32 %v5456, %v6773
            %v6775 = vand.u32 %v6774, 4294901760
            %6776 = vmatpush1.msra.mxu0 %v6775
            %6777 = vmatprep.subr.mxu0 0.0
            %v6778 = vand.u32 %v5457, 4294901760
            %v6779 = vsub.f32 %v5457, %v6778
            %v6780 = vand.u32 %v6779, 4294901760
            %6781 = vmatpush1.msra.mxu0 %v6780
            %6782 = vmatprep.subr.mxu0 0.0
            %v6783 = vand.u32 %v5458, 4294901760
            %v6784 = vsub.f32 %v5458, %v6783
            %v6785 = vand.u32 %v6784, 4294901760
            %6786 = vmatpush1.msra.mxu0 %v6785
            %6787 = vmatprep.subr.mxu0 0.0
            %v6788 = vand.u32 %v5459, 4294901760
            %v6789 = vsub.f32 %v5459, %v6788
            %v6790 = vand.u32 %v6789, 4294901760
            %6791 = vmatpush1.msra.mxu0 %v6790
            %6792 = vmatprep.subr.mxu0 0.0
            %v6793 = vand.u32 %v5460, 4294901760
            %v6794 = vsub.f32 %v5460, %v6793
            %v6795 = vand.u32 %v6794, 4294901760
            %6796 = vmatpush1.msra.mxu0 %v6795
            %6797 = vmatprep.subr.mxu0 0.0
            %v6798 = vand.u32 %v5461, 4294901760
            %v6799 = vsub.f32 %v5461, %v6798
            %v6800 = vand.u32 %v6799, 4294901760
            %6801 = vmatpush1.msra.mxu0 %v6800
            %6802 = vmatprep.subr.mxu0 0.0
            %v6803 = vand.u32 %v5462, 4294901760
            %v6804 = vsub.f32 %v5462, %v6803
            %v6805 = vand.u32 %v6804, 4294901760
            %6806 = vmatpush1.msra.mxu0 %v6805
            %6807 = vmatprep.subr.mxu0 0.0
            %v6808 = vand.u32 %v5463, 4294901760
            %v6809 = vsub.f32 %v5463, %v6808
            %v6810 = vand.u32 %v6809, 4294901760
            %6811 = vmatpush1.msra.mxu0 %v6810
            %6812 = vmatprep.subr.mxu0 0.0
            %v6813 = vand.u32 %v5464, 4294901760
            %v6814 = vsub.f32 %v5464, %v6813
            %v6815 = vand.u32 %v6814, 4294901760
            %6816 = vmatpush1.msra.mxu0 %v6815
            %6817 = vmatprep.subr.mxu0 0.0
            %v6818 = vand.u32 %v5465, 4294901760
            %v6819 = vsub.f32 %v5465, %v6818
            %v6820 = vand.u32 %v6819, 4294901760
            %6821 = vmatpush1.msra.mxu0 %v6820
            %6822 = vmatprep.subr.mxu0 0.0
            %v6823 = vand.u32 %v5466, 4294901760
            %v6824 = vsub.f32 %v5466, %v6823
            %v6825 = vand.u32 %v6824, 4294901760
            %6826 = vmatpush1.msra.mxu0 %v6825
            %6827 = vmatprep.subr.mxu0 0.0
            %v6828 = vand.u32 %v5467, 4294901760
            %v6829 = vsub.f32 %v5467, %v6828
            %v6830 = vand.u32 %v6829, 4294901760
            %6831 = vmatpush1.msra.mxu0 %v6830
            %6832 = vmatprep.subr.mxu0 0.0
            %v6833 = vand.u32 %v5468, 4294901760
            %v6834 = vsub.f32 %v5468, %v6833
            %v6835 = vand.u32 %v6834, 4294901760
            %6836 = vmatpush1.msra.mxu0 %v6835
            %6837 = vmatprep.subr.mxu0 0.0
            %v6838 = vand.u32 %v5469, 4294901760
            %v6839 = vsub.f32 %v5469, %v6838
            %v6840 = vand.u32 %v6839, 4294901760
            %6841 = vmatpush1.msra.mxu0 %v6840
            %6842 = vmatprep.subr.mxu0 0.0
            %v6843 = vand.u32 %v5470, 4294901760
            %v6844 = vsub.f32 %v5470, %v6843
            %v6845 = vand.u32 %v6844, 4294901760
            %6846 = vmatpush1.msra.mxu0 %v6845
            %6847 = vmatprep.subr.mxu0 0.0
            %v6848 = vand.u32 %v5471, 4294901760
            %v6849 = vsub.f32 %v5471, %v6848
            %v6850 = vand.u32 %v6849, 4294901760
            %6851 = vmatpush1.msra.mxu0 %v6850
            %v6852 = vand.u32 %v5409, 4294901760
            %6853 = vmatprep.mubr.f32.mxu0 %v6852
            %v6854 = vand.u32 %v5408, 4294901760
            %6855 = vmatmul.mubr.f32.gmra.mrb[0].mxu0 %v6854
            %v6856 = vpop.f32.mrb[0].mxu0
            %v6857 = vadd.f32 %v6524, %v6856
            %v6858 = vpop.f32.mrb[0].mxu0
            %v6859 = vand.u32 %v5411, 4294901760
            %6860 = vmatprep.mubr.f32.mxu0 %v6859
            %v6861 = vand.u32 %v5410, 4294901760
            %6862 = vmatmul.mubr.f32.gmra.mrb[0].mxu0 %v6861
            %v6863 = vpop.f32.mrb[0].mxu0
            %v6864 = vadd.f32 %v6535, %v6863
            %v6865 = vpop.f32.mrb[0].mxu0
            %v6866 = vand.u32 %v5413, 4294901760
            %6867 = vmatprep.mubr.f32.mxu0 %v6866
            %v6868 = vand.u32 %v5412, 4294901760
            %6869 = vmatmul.mubr.f32.gmra.mrb[0].mxu0 %v6868
            %v6870 = vpop.f32.mrb[0].mxu0
            %v6871 = vadd.f32 %v6546, %v6870
            %v6872 = vpop.f32.mrb[0].mxu0
            %v6873 = vand.u32 %v5415, 4294901760
            %6874 = vmatprep.mubr.f32.mxu0 %v6873
            %v6875 = vand.u32 %v5414, 4294901760
            %6876 = vmatmul.mubr.f32.gmra.mrb[0].mxu0 %v6875
            %v6877 = vpop.f32.mrb[0].mxu0
            %v6878 = vadd.f32 %v6557, %v6877
            %v6879 = vpop.f32.mrb[0].mxu0
            %v6880 = vand.u32 %v5417, 4294901760
            %6881 = vmatprep.mubr.f32.mxu0 %v6880
            %v6882 = vand.u32 %v5416, 4294901760
            %6883 = vmatmul.mubr.f32.gmra.mrb[0].mxu0 %v6882
            %v6884 = vpop.f32.mrb[0].mxu0
            %v6885 = vadd.f32 %v6568, %v6884
            %v6886 = vpop.f32.mrb[0].mxu0
            %v6887 = vand.u32 %v5419, 4294901760
            %6888 = vmatprep.mubr.f32.mxu0 %v6887
            %v6889 = vand.u32 %v5418, 4294901760
            %6890 = vmatmul.mubr.f32.gmra.mrb[0].mxu0 %v6889
            %v6891 = vpop.f32.mrb[0].mxu0
            %v6892 = vadd.f32 %v6579, %v6891
            %v6893 = vpop.f32.mrb[0].mxu0
            %v6894 = vand.u32 %v5421, 4294901760
            %6895 = vmatprep.mubr.f32.mxu0 %v6894
            %v6896 = vand.u32 %v5420, 4294901760
            %6897 = vmatmul.mubr.f32.gmra.mrb[0].mxu0 %v6896
            %v6898 = vpop.f32.mrb[0].mxu0
            %v6899 = vadd.f32 %v6590, %v6898
            %v6900 = vpop.f32.mrb[0].mxu0
            %v6901 = vand.u32 %v5423, 4294901760
            %6902 = vmatprep.mubr.f32.mxu0 %v6901
            %v6903 = vand.u32 %v5422, 4294901760
            %6904 = vmatmul.mubr.f32.gmra.mrb[0].mxu0 %v6903
            %v6905 = vpop.f32.mrb[0].mxu0
            %v6906 = vadd.f32 %v6601, %v6905
            %v6907 = vpop.f32.mrb[0].mxu0
            %v6908 = vand.u32 %v5425, 4294901760
            %6909 = vmatprep.mubr.f32.mxu0 %v6908
            %v6910 = vand.u32 %v5424, 4294901760
            %6911 = vmatmul.mubr.f32.gmra.mrb[0].mxu0 %v6910
            %v6912 = vpop.f32.mrb[0].mxu0
            %v6913 = vadd.f32 %v6612, %v6912
            %v6914 = vpop.f32.mrb[0].mxu0
            %v6915 = vand.u32 %v5427, 4294901760
            %6916 = vmatprep.mubr.f32.mxu0 %v6915
            %v6917 = vand.u32 %v5426, 4294901760
            %6918 = vmatmul.mubr.f32.gmra.mrb[0].mxu0 %v6917
            %v6919 = vpop.f32.mrb[0].mxu0
            %v6920 = vadd.f32 %v6623, %v6919
            %v6921 = vpop.f32.mrb[0].mxu0
            %v6922 = vand.u32 %v5429, 4294901760
            %6923 = vmatprep.mubr.f32.mxu0 %v6922
            %v6924 = vand.u32 %v5428, 4294901760
            %6925 = vmatmul.mubr.f32.gmra.mrb[0].mxu0 %v6924
            %v6926 = vpop.f32.mrb[0].mxu0
            %v6927 = vadd.f32 %v6634, %v6926
            %v6928 = vpop.f32.mrb[0].mxu0
            %v6929 = vand.u32 %v5431, 4294901760
            %6930 = vmatprep.mubr.f32.mxu0 %v6929
            %v6931 = vand.u32 %v5430, 4294901760
            %6932 = vmatmul.mubr.f32.gmra.mrb[0].mxu0 %v6931
            %v6933 = vpop.f32.mrb[0].mxu0
            %v6934 = vadd.f32 %v6645, %v6933
            %v6935 = vpop.f32.mrb[0].mxu0
            %v6936 = vand.u32 %v5433, 4294901760
            %6937 = vmatprep.mubr.f32.mxu0 %v6936
            %v6938 = vand.u32 %v5432, 4294901760
            %6939 = vmatmul.mubr.f32.gmra.mrb[0].mxu0 %v6938
            %v6940 = vpop.f32.mrb[0].mxu0
            %v6941 = vadd.f32 %v6656, %v6940
            %v6942 = vpop.f32.mrb[0].mxu0
            %v6943 = vand.u32 %v5435, 4294901760
            %6944 = vmatprep.mubr.f32.mxu0 %v6943
            %v6945 = vand.u32 %v5434, 4294901760
            %6946 = vmatmul.mubr.f32.gmra.mrb[0].mxu0 %v6945
            %v6947 = vpop.f32.mrb[0].mxu0
            %v6948 = vadd.f32 %v6667, %v6947
            %v6949 = vpop.f32.mrb[0].mxu0
            %v6950 = vand.u32 %v5437, 4294901760
            %6951 = vmatprep.mubr.f32.mxu0 %v6950
            %v6952 = vand.u32 %v5436, 4294901760
            %6953 = vmatmul.mubr.f32.gmra.mrb[0].mxu0 %v6952
            %v6954 = vpop.f32.mrb[0].mxu0
            %v6955 = vadd.f32 %v6678, %v6954
            %v6956 = vpop.f32.mrb[0].mxu0
            %v6957 = vand.u32 %v5439, 4294901760
            %6958 = vmatprep.mubr.f32.mxu0 %v6957
            %v6959 = vand.u32 %v5438, 4294901760
            %6960 = vmatmul.mubr.f32.gmra.mrb[0].mxu0 %v6959
            %v6961 = vpop.f32.mrb[0].mxu0
            %v6962 = vadd.f32 %v6689, %v6961
            %v6963 = vpop.f32.mrb[0].mxu0
            %6964 = vdwg.mxu0
            %6965 = vmatprep.subr.mxu0 0.0
            %v6966 = vand.u32 %v5440, 4294901760
            %6967 = vmatpush1.msra.mxu0 %v6966
            %6968 = vmatprep.subr.mxu0 0.0
            %v6969 = vand.u32 %v5441, 4294901760
            %6970 = vmatpush1.msra.mxu0 %v6969
            %6971 = vmatprep.subr.mxu0 0.0
            %v6972 = vand.u32 %v5442, 4294901760
            %6973 = vmatpush1.msra.mxu0 %v6972
            %6974 = vmatprep.subr.mxu0 0.0
            %v6975 = vand.u32 %v5443, 4294901760
            %6976 = vmatpush1.msra.mxu0 %v6975
            %6977 = vmatprep.subr.mxu0 0.0
            %v6978 = vand.u32 %v5444, 4294901760
            %6979 = vmatpush1.msra.mxu0 %v6978
            %6980 = vmatprep.subr.mxu0 0.0
            %v6981 = vand.u32 %v5445, 4294901760
            %6982 = vmatpush1.msra.mxu0 %v6981
            %6983 = vmatprep.subr.mxu0 0.0
            %v6984 = vand.u32 %v5446, 4294901760
            %6985 = vmatpush1.msra.mxu0 %v6984
            %6986 = vmatprep.subr.mxu0 0.0
            %v6987 = vand.u32 %v5447, 4294901760
            %6988 = vmatpush1.msra.mxu0 %v6987
            %6989 = vmatprep.subr.mxu0 0.0
            %v6990 = vand.u32 %v5448, 4294901760
            %6991 = vmatpush1.msra.mxu0 %v6990
            %6992 = vmatprep.subr.mxu0 0.0
            %v6993 = vand.u32 %v5449, 4294901760
            %6994 = vmatpush1.msra.mxu0 %v6993
            %6995 = vmatprep.subr.mxu0 0.0
            %v6996 = vand.u32 %v5450, 4294901760
            %6997 = vmatpush1.msra.mxu0 %v6996
            %6998 = vmatprep.subr.mxu0 0.0
            %v6999 = vand.u32 %v5451, 4294901760
            %7000 = vmatpush1.msra.mxu0 %v6999
            %7001 = vmatprep.subr.mxu0 0.0
            %v7002 = vand.u32 %v5452, 4294901760
            %7003 = vmatpush1.msra.mxu0 %v7002
            %7004 = vmatprep.subr.mxu0 0.0
            %v7005 = vand.u32 %v5453, 4294901760
            %7006 = vmatpush1.msra.mxu0 %v7005
            %7007 = vmatprep.subr.mxu0 0.0
            %v7008 = vand.u32 %v5454, 4294901760
            %7009 = vmatpush1.msra.mxu0 %v7008
            %7010 = vmatprep.subr.mxu0 0.0
            %v7011 = vand.u32 %v5455, 4294901760
            %7012 = vmatpush1.msra.mxu0 %v7011
            %7013 = vmatprep.subr.mxu0 0.0
            %v7014 = vand.u32 %v5456, 4294901760
            %7015 = vmatpush1.msra.mxu0 %v7014
            %7016 = vmatprep.subr.mxu0 0.0
            %v7017 = vand.u32 %v5457, 4294901760
            %7018 = vmatpush1.msra.mxu0 %v7017
            %7019 = vmatprep.subr.mxu0 0.0
            %v7020 = vand.u32 %v5458, 4294901760
            %7021 = vmatpush1.msra.mxu0 %v7020
            %7022 = vmatprep.subr.mxu0 0.0
            %v7023 = vand.u32 %v5459, 4294901760
            %7024 = vmatpush1.msra.mxu0 %v7023
            %7025 = vmatprep.subr.mxu0 0.0
            %v7026 = vand.u32 %v5460, 4294901760
            %7027 = vmatpush1.msra.mxu0 %v7026
            %7028 = vmatprep.subr.mxu0 0.0
            %v7029 = vand.u32 %v5461, 4294901760
            %7030 = vmatpush1.msra.mxu0 %v7029
            %7031 = vmatprep.subr.mxu0 0.0
            %v7032 = vand.u32 %v5462, 4294901760
            %7033 = vmatpush1.msra.mxu0 %v7032
            %7034 = vmatprep.subr.mxu0 0.0
            %v7035 = vand.u32 %v5463, 4294901760
            %7036 = vmatpush1.msra.mxu0 %v7035
            %7037 = vmatprep.subr.mxu0 0.0
            %v7038 = vand.u32 %v5464, 4294901760
            %7039 = vmatpush1.msra.mxu0 %v7038
            %7040 = vmatprep.subr.mxu0 0.0
            %v7041 = vand.u32 %v5465, 4294901760
            %7042 = vmatpush1.msra.mxu0 %v7041
            %7043 = vmatprep.subr.mxu0 0.0
            %v7044 = vand.u32 %v5466, 4294901760
            %7045 = vmatpush1.msra.mxu0 %v7044
            %7046 = vmatprep.subr.mxu0 0.0
            %v7047 = vand.u32 %v5467, 4294901760
            %7048 = vmatpush1.msra.mxu0 %v7047
            %7049 = vmatprep.subr.mxu0 0.0
            %v7050 = vand.u32 %v5468, 4294901760
            %7051 = vmatpush1.msra.mxu0 %v7050
            %7052 = vmatprep.subr.mxu0 0.0
            %v7053 = vand.u32 %v5469, 4294901760
            %7054 = vmatpush1.msra.mxu0 %v7053
            %7055 = vmatprep.subr.mxu0 0.0
            %v7056 = vand.u32 %v5470, 4294901760
            %7057 = vmatpush1.msra.mxu0 %v7056
            %7058 = vmatprep.subr.mxu0 0.0
            %v7059 = vand.u32 %v5471, 4294901760
            %7060 = vmatpush1.msra.mxu0 %v7059
            %v7061 = vand.u32 %v5409, 4294901760
            %7062 = vmatprep.mubr.f32.mxu0 %v7061
            %v7063 = vand.u32 %v5408, 4294901760
            %7064 = vmatmul.mubr.f32.gmra.mrb[0].mxu0 %v7063
            %v7065 = vpop.f32.mrb[0].mxu0
            %v7066 = vadd.f32 %v6857, %v7065
            %v7067 = vpop.f32.mrb[0].mxu0
            %v7068 = vand.u32 %v5411, 4294901760
            %7069 = vmatprep.mubr.f32.mxu0 %v7068
            %v7070 = vand.u32 %v5410, 4294901760
            %7071 = vmatmul.mubr.f32.gmra.mrb[0].mxu0 %v7070
            %v7072 = vpop.f32.mrb[0].mxu0
            %v7073 = vadd.f32 %v6864, %v7072
            %v7074 = vpop.f32.mrb[0].mxu0
            %v7075 = vand.u32 %v5413, 4294901760
            %7076 = vmatprep.mubr.f32.mxu0 %v7075
            %v7077 = vand.u32 %v5412, 4294901760
            %7078 = vmatmul.mubr.f32.gmra.mrb[0].mxu0 %v7077
            %v7079 = vpop.f32.mrb[0].mxu0
            %v7080 = vadd.f32 %v6871, %v7079
            %v7081 = vpop.f32.mrb[0].mxu0
            %v7082 = vand.u32 %v5415, 4294901760
            %7083 = vmatprep.mubr.f32.mxu0 %v7082
            %v7084 = vand.u32 %v5414, 4294901760
            %7085 = vmatmul.mubr.f32.gmra.mrb[0].mxu0 %v7084
            %v7086 = vpop.f32.mrb[0].mxu0
            %v7087 = vadd.f32 %v6878, %v7086
            %v7088 = vpop.f32.mrb[0].mxu0
            %v7089 = vand.u32 %v5417, 4294901760
            %7090 = vmatprep.mubr.f32.mxu0 %v7089
            %v7091 = vand.u32 %v5416, 4294901760
            %7092 = vmatmul.mubr.f32.gmra.mrb[0].mxu0 %v7091
            %v7093 = vpop.f32.mrb[0].mxu0
            %v7094 = vadd.f32 %v6885, %v7093
            %v7095 = vpop.f32.mrb[0].mxu0
            %v7096 = vand.u32 %v5419, 4294901760
            %7097 = vmatprep.mubr.f32.mxu0 %v7096
            %v7098 = vand.u32 %v5418, 4294901760
            %7099 = vmatmul.mubr.f32.gmra.mrb[0].mxu0 %v7098
            %v7100 = vpop.f32.mrb[0].mxu0
            %v7101 = vadd.f32 %v6892, %v7100
            %v7102 = vpop.f32.mrb[0].mxu0
            %v7103 = vand.u32 %v5421, 4294901760
            %7104 = vmatprep.mubr.f32.mxu0 %v7103
            %v7105 = vand.u32 %v5420, 4294901760
            %7106 = vmatmul.mubr.f32.gmra.mrb[0].mxu0 %v7105
            %v7107 = vpop.f32.mrb[0].mxu0
            %v7108 = vadd.f32 %v6899, %v7107
            %v7109 = vpop.f32.mrb[0].mxu0
            %v7110 = vand.u32 %v5423, 4294901760
            %7111 = vmatprep.mubr.f32.mxu0 %v7110
            %v7112 = vand.u32 %v5422, 4294901760
            %7113 = vmatmul.mubr.f32.gmra.mrb[0].mxu0 %v7112
            %v7114 = vpop.f32.mrb[0].mxu0
            %v7115 = vadd.f32 %v6906, %v7114
            %v7116 = vpop.f32.mrb[0].mxu0
            %v7117 = vand.u32 %v5425, 4294901760
            %7118 = vmatprep.mubr.f32.mxu0 %v7117
            %v7119 = vand.u32 %v5424, 4294901760
            %7120 = vmatmul.mubr.f32.gmra.mrb[0].mxu0 %v7119
            %v7121 = vpop.f32.mrb[0].mxu0
            %v7122 = vadd.f32 %v6913, %v7121
            %v7123 = vpop.f32.mrb[0].mxu0
            %v7124 = vand.u32 %v5427, 4294901760
            %7125 = vmatprep.mubr.f32.mxu0 %v7124
            %v7126 = vand.u32 %v5426, 4294901760
            %7127 = vmatmul.mubr.f32.gmra.mrb[0].mxu0 %v7126
            %v7128 = vpop.f32.mrb[0].mxu0
            %v7129 = vadd.f32 %v6920, %v7128
            %v7130 = vpop.f32.mrb[0].mxu0
            %v7131 = vand.u32 %v5429, 4294901760
            %7132 = vmatprep.mubr.f32.mxu0 %v7131
            %v7133 = vand.u32 %v5428, 4294901760
            %7134 = vmatmul.mubr.f32.gmra.mrb[0].mxu0 %v7133
            %v7135 = vpop.f32.mrb[0].mxu0
            %v7136 = vadd.f32 %v6927, %v7135
            %v7137 = vpop.f32.mrb[0].mxu0
            %v7138 = vand.u32 %v5431, 4294901760
            %7139 = vmatprep.mubr.f32.mxu0 %v7138
            %v7140 = vand.u32 %v5430, 4294901760
            %7141 = vmatmul.mubr.f32.gmra.mrb[0].mxu0 %v7140
            %v7142 = vpop.f32.mrb[0].mxu0
            %v7143 = vadd.f32 %v6934, %v7142
            %v7144 = vpop.f32.mrb[0].mxu0
            %v7145 = vand.u32 %v5433, 4294901760
            %7146 = vmatprep.mubr.f32.mxu0 %v7145
            %v7147 = vand.u32 %v5432, 4294901760
            %7148 = vmatmul.mubr.f32.gmra.mrb[0].mxu0 %v7147
            %v7149 = vpop.f32.mrb[0].mxu0
            %v7150 = vadd.f32 %v6941, %v7149
            %v7151 = vpop.f32.mrb[0].mxu0
            %v7152 = vand.u32 %v5435, 4294901760
            %7153 = vmatprep.mubr.f32.mxu0 %v7152
            %v7154 = vand.u32 %v5434, 4294901760
            %7155 = vmatmul.mubr.f32.gmra.mrb[0].mxu0 %v7154
            %v7156 = vpop.f32.mrb[0].mxu0
            %v7157 = vadd.f32 %v6948, %v7156
            %v7158 = vpop.f32.mrb[0].mxu0
            %v7159 = vand.u32 %v5437, 4294901760
            %7160 = vmatprep.mubr.f32.mxu0 %v7159
            %v7161 = vand.u32 %v5436, 4294901760
            %7162 = vmatmul.mubr.f32.gmra.mrb[0].mxu0 %v7161
            %v7163 = vpop.f32.mrb[0].mxu0
            %v7164 = vadd.f32 %v6955, %v7163
            %v7165 = vpop.f32.mrb[0].mxu0
            %v7166 = vand.u32 %v5439, 4294901760
            %7167 = vmatprep.mubr.f32.mxu0 %v7166
            %v7168 = vand.u32 %v5438, 4294901760
            %7169 = vmatmul.mubr.f32.gmra.mrb[0].mxu0 %v7168
            %v7170 = vpop.f32.mrb[0].mxu0
            %v7171 = vadd.f32 %v6962, %v7170
            %v7172 = vpop.f32.mrb[0].mxu0
            %7173 = vdwg.mxu0
            %p7174 = scmp.lt.s32.totalorder %s39, 3
            // Predicated region
            $region89: #{tpu_custom_call.1} parent=87 // pred_check
              %p7175 = pneg %p7174
            $region90: #{tpu_custom_call.1} parent=87 // pred_check_branch
              %7177 = sbr.rel (%p7175) target = $region92
            $region91: #{tpu_custom_call.1} parent=87 // pred_region
              %s7178 = scalar_lea.vmem [#allocation2], %s491
              %7179 = vst [vmem:[%s7178] sm:$0xff] %v7066
              %7180 = vst [vmem:[%s7178 + $0x8] sm:$0xff] %v7073
              %7181 = vst [vmem:[%s7178 + $0x10] sm:$0xff] %v7080
              %7182 = vst [vmem:[%s7178 + $0x18] sm:$0xff] %v7087
              %7183 = vst [vmem:[%s7178 + $0x20] sm:$0xff] %v7094
              %7184 = vst [vmem:[%s7178 + $0x28] sm:$0xff] %v7101
              %7185 = vst [vmem:[%s7178 + $0x30] sm:$0xff] %v7108
              %7186 = vst [vmem:[%s7178 + $0x38] sm:$0xff] %v7115
              %7187 = vst [vmem:[%s7178 + $0x40] sm:$0xff] %v7122
              %7188 = vst [vmem:[%s7178 + $0x48] sm:$0xff] %v7129
              %7189 = vst [vmem:[%s7178 + $0x50] sm:$0xff] %v7136
              %7190 = vst [vmem:[%s7178 + $0x58] sm:$0xff] %v7143
              %7191 = vst [vmem:[%s7178 + $0x60] sm:$0xff] %v7150
              %7192 = vst [vmem:[%s7178 + $0x68] sm:$0xff] %v7157
              %7193 = vst [vmem:[%s7178 + $0x70] sm:$0xff] %v7164
              %7194 = vst [vmem:[%s7178 + $0x78] sm:$0xff] %v7171
            $region92: #{tpu_custom_call.1} parent=87 // pred_fallthru
              _
            %s7195 = scalar_lea.vmem [#allocation4], %s491
            %v7196 = vld [vmem:[%s7195] sm:$0xff]
            %v7197 = vld [vmem:[%s7195 + $0x8] sm:$0xff]
            %v7198 = vld [vmem:[%s7195 + $0x10] sm:$0xff]
            %v7199 = vld [vmem:[%s7195 + $0x18] sm:$0xff]
            %v7200 = vld [vmem:[%s7195 + $0x20] sm:$0xff]
            %v7201 = vld [vmem:[%s7195 + $0x28] sm:$0xff]
            %v7202 = vld [vmem:[%s7195 + $0x30] sm:$0xff]
            %v7203 = vld [vmem:[%s7195 + $0x38] sm:$0xff]
            %v7204 = vld [vmem:[%s7195 + $0x40] sm:$0xff]
            %v7205 = vld [vmem:[%s7195 + $0x48] sm:$0xff]
            %v7206 = vld [vmem:[%s7195 + $0x50] sm:$0xff]
            %v7207 = vld [vmem:[%s7195 + $0x58] sm:$0xff]
            %v7208 = vld [vmem:[%s7195 + $0x60] sm:$0xff]
            %v7209 = vld [vmem:[%s7195 + $0x68] sm:$0xff]
            %v7210 = vld [vmem:[%s7195 + $0x70] sm:$0xff]
            %v7211 = vld [vmem:[%s7195 + $0x78] sm:$0xff]
            %v7213 = vlaneseq
            %v7214 = vshrl.u32 %v7213, 7
            %v7215 = vsub.s32 0, %v7214
            %v7216 = vrot.slane %v492, %v7215
            %v7218 = vmul.f32 %v7066, %v7216
            %v7219 = vmul.f32 %v7073, %v7216
            %v7220 = vmul.f32 %v7080, %v7216
            %v7221 = vmul.f32 %v7087, %v7216
            %v7222 = vmul.f32 %v7094, %v7216
            %v7223 = vmul.f32 %v7101, %v7216
            %v7224 = vmul.f32 %v7108, %v7216
            %v7225 = vmul.f32 %v7115, %v7216
            %v7226 = vmul.f32 %v7122, %v7216
            %v7227 = vmul.f32 %v7129, %v7216
            %v7228 = vmul.f32 %v7136, %v7216
            %v7229 = vmul.f32 %v7143, %v7216
            %v7230 = vmul.f32 %v7150, %v7216
            %v7231 = vmul.f32 %v7157, %v7216
            %v7232 = vmul.f32 %v7164, %v7216
            %v7233 = vmul.f32 %v7171, %v7216
            %7234 = vadd.xlane.f32.xlu0 %v7218
            %v7235 = vpop.xlane.xlu0 %7234
            %7236 = vadd.xlane.f32.xlu0 %v7219
            %v7237 = vpop.xlane.xlu0 %7236
            %7238 = vadd.xlane.f32.xlu0 %v7220
            %v7239 = vpop.xlane.xlu0 %7238
            %7240 = vadd.xlane.f32.xlu0 %v7221
            %v7241 = vpop.xlane.xlu0 %7240
            %7242 = vadd.xlane.f32.xlu0 %v7222
            %v7243 = vpop.xlane.xlu0 %7242
            %7244 = vadd.xlane.f32.xlu0 %v7223
            %v7245 = vpop.xlane.xlu0 %7244
            %7246 = vadd.xlane.f32.xlu0 %v7224
            %v7247 = vpop.xlane.xlu0 %7246
            %7248 = vadd.xlane.f32.xlu0 %v7225
            %v7249 = vpop.xlane.xlu0 %7248
            %7250 = vadd.xlane.f32.xlu0 %v7226
            %v7251 = vpop.xlane.xlu0 %7250
            %7252 = vadd.xlane.f32.xlu0 %v7227
            %v7253 = vpop.xlane.xlu0 %7252
            %7254 = vadd.xlane.f32.xlu0 %v7228
            %v7255 = vpop.xlane.xlu0 %7254
            %7256 = vadd.xlane.f32.xlu0 %v7229
            %v7257 = vpop.xlane.xlu0 %7256
            %7258 = vadd.xlane.f32.xlu0 %v7230
            %v7259 = vpop.xlane.xlu0 %7258
            %7260 = vadd.xlane.f32.xlu0 %v7231
            %v7261 = vpop.xlane.xlu0 %7260
            %7262 = vadd.xlane.f32.xlu0 %v7232
            %v7263 = vpop.xlane.xlu0 %7262
            %7264 = vadd.xlane.f32.xlu0 %v7233
            %v7265 = vpop.xlane.xlu0 %7264
            %v7266 = vstv %s493
            %v7267 = vadd.f32 %v7235, %v7266
            %v7268 = vadd.f32 %v7237, %v7266
            %v7269 = vadd.f32 %v7239, %v7266
            %v7270 = vadd.f32 %v7241, %v7266
            %v7271 = vadd.f32 %v7243, %v7266
            %v7272 = vadd.f32 %v7245, %v7266
            %v7273 = vadd.f32 %v7247, %v7266
            %v7274 = vadd.f32 %v7249, %v7266
            %v7275 = vadd.f32 %v7251, %v7266
            %v7276 = vadd.f32 %v7253, %v7266
            %v7277 = vadd.f32 %v7255, %v7266
            %v7278 = vadd.f32 %v7257, %v7266
            %v7279 = vadd.f32 %v7259, %v7266
            %v7280 = vadd.f32 %v7261, %v7266
            %v7281 = vadd.f32 %v7263, %v7266
            %v7282 = vadd.f32 %v7265, %v7266
            %v7283 = vxor.u32 %v7267, 2147483648
            %v7284 = vxor.u32 %v7268, 2147483648
            %v7285 = vxor.u32 %v7269, 2147483648
            %v7286 = vxor.u32 %v7270, 2147483648
            %v7287 = vxor.u32 %v7271, 2147483648
            %v7288 = vxor.u32 %v7272, 2147483648
            %v7289 = vxor.u32 %v7273, 2147483648
            %v7290 = vxor.u32 %v7274, 2147483648
            %v7291 = vxor.u32 %v7275, 2147483648
            %v7292 = vxor.u32 %v7276, 2147483648
            %v7293 = vxor.u32 %v7277, 2147483648
            %v7294 = vxor.u32 %v7278, 2147483648
            %v7295 = vxor.u32 %v7279, 2147483648
            %v7296 = vxor.u32 %v7280, 2147483648
            %v7297 = vxor.u32 %v7281, 2147483648
            %v7298 = vxor.u32 %v7282, 2147483648
            %v7299 = vmul.f32 %v7283, 1.442695
            %v7300 = vpow.pop %v7299
            %v7301 = vmul.f32 %v7284, 1.442695
            %v7302 = vpow.pop %v7301
            %v7303 = vmul.f32 %v7285, 1.442695
            %v7304 = vpow.pop %v7303
            %v7305 = vmul.f32 %v7286, 1.442695
            %v7306 = vpow.pop %v7305
            %v7307 = vmul.f32 %v7287, 1.442695
            %v7308 = vpow.pop %v7307
            %v7309 = vmul.f32 %v7288, 1.442695
            %v7310 = vpow.pop %v7309
            %v7311 = vmul.f32 %v7289, 1.442695
            %v7312 = vpow.pop %v7311
            %v7313 = vmul.f32 %v7290, 1.442695
            %v7314 = vpow.pop %v7313
            %v7315 = vmul.f32 %v7291, 1.442695
            %v7316 = vpow.pop %v7315
            %v7317 = vmul.f32 %v7292, 1.442695
            %v7318 = vpow.pop %v7317
            %v7319 = vmul.f32 %v7293, 1.442695
            %v7320 = vpow.pop %v7319
            %v7321 = vmul.f32 %v7294, 1.442695
            %v7322 = vpow.pop %v7321
            %v7323 = vmul.f32 %v7295, 1.442695
            %v7324 = vpow.pop %v7323
            %v7325 = vmul.f32 %v7296, 1.442695
            %v7326 = vpow.pop %v7325
            %v7327 = vmul.f32 %v7297, 1.442695
            %v7328 = vpow.pop %v7327
            %v7329 = vmul.f32 %v7298, 1.442695
            %v7330 = vpow.pop %v7329
            %v7331 = vadd.f32 %v7300, 1.0
            %v7332 = vadd.f32 %v7302, 1.0
            %v7333 = vadd.f32 %v7304, 1.0
            %v7334 = vadd.f32 %v7306, 1.0
            %v7335 = vadd.f32 %v7308, 1.0
            %v7336 = vadd.f32 %v7310, 1.0
            %v7337 = vadd.f32 %v7312, 1.0
            %v7338 = vadd.f32 %v7314, 1.0
            %v7339 = vadd.f32 %v7316, 1.0
            %v7340 = vadd.f32 %v7318, 1.0
            %v7341 = vadd.f32 %v7320, 1.0
            %v7342 = vadd.f32 %v7322, 1.0
            %v7343 = vadd.f32 %v7324, 1.0
            %v7344 = vadd.f32 %v7326, 1.0
            %v7345 = vadd.f32 %v7328, 1.0
            %v7346 = vadd.f32 %v7330, 1.0
            %v7347 = vrcp.pop %v7331
            %v7348 = vmul.f32 1.0, %v7347
            %v7349 = vrcp.pop %v7332
            %v7350 = vmul.f32 1.0, %v7349
            %v7351 = vrcp.pop %v7333
            %v7352 = vmul.f32 1.0, %v7351
            %v7353 = vrcp.pop %v7334
            %v7354 = vmul.f32 1.0, %v7353
            %v7355 = vrcp.pop %v7335
            %v7356 = vmul.f32 1.0, %v7355
            %v7357 = vrcp.pop %v7336
            %v7358 = vmul.f32 1.0, %v7357
            %v7359 = vrcp.pop %v7337
            %v7360 = vmul.f32 1.0, %v7359
            %v7361 = vrcp.pop %v7338
            %v7362 = vmul.f32 1.0, %v7361
            %v7363 = vrcp.pop %v7339
            %v7364 = vmul.f32 1.0, %v7363
            %v7365 = vrcp.pop %v7340
            %v7366 = vmul.f32 1.0, %v7365
            %v7367 = vrcp.pop %v7341
            %v7368 = vmul.f32 1.0, %v7367
            %v7369 = vrcp.pop %v7342
            %v7370 = vmul.f32 1.0, %v7369
            %v7371 = vrcp.pop %v7343
            %v7372 = vmul.f32 1.0, %v7371
            %v7373 = vrcp.pop %v7344
            %v7374 = vmul.f32 1.0, %v7373
            %v7375 = vrcp.pop %v7345
            %v7376 = vmul.f32 1.0, %v7375
            %v7377 = vrcp.pop %v7346
            %v7378 = vmul.f32 1.0, %v7377
            %v7379 = vmul.f32 %v7348, %v7066
            %v7380 = vmul.f32 %v7350, %v7073
            %v7381 = vmul.f32 %v7352, %v7080
            %v7382 = vmul.f32 %v7354, %v7087
            %v7383 = vmul.f32 %v7356, %v7094
            %v7384 = vmul.f32 %v7358, %v7101
            %v7385 = vmul.f32 %v7360, %v7108
            %v7386 = vmul.f32 %v7362, %v7115
            %v7387 = vmul.f32 %v7364, %v7122
            %v7388 = vmul.f32 %v7366, %v7129
            %v7389 = vmul.f32 %v7368, %v7136
            %v7390 = vmul.f32 %v7370, %v7143
            %v7391 = vmul.f32 %v7372, %v7150
            %v7392 = vmul.f32 %v7374, %v7157
            %v7393 = vmul.f32 %v7376, %v7164
            %v7394 = vmul.f32 %v7378, %v7171
            %v7395 = vadd.f32 %v7196, %v7379
            %v7396 = vadd.f32 %v7197, %v7380
            %v7397 = vadd.f32 %v7198, %v7381
            %v7398 = vadd.f32 %v7199, %v7382
            %v7399 = vadd.f32 %v7200, %v7383
            %v7400 = vadd.f32 %v7201, %v7384
            %v7401 = vadd.f32 %v7202, %v7385
            %v7402 = vadd.f32 %v7203, %v7386
            %v7403 = vadd.f32 %v7204, %v7387
            %v7404 = vadd.f32 %v7205, %v7388
            %v7405 = vadd.f32 %v7206, %v7389
            %v7406 = vadd.f32 %v7207, %v7390
            %v7407 = vadd.f32 %v7208, %v7391
            %v7408 = vadd.f32 %v7209, %v7392
            %v7409 = vadd.f32 %v7210, %v7393
            %v7410 = vadd.f32 %v7211, %v7394
            %7411 = vst [vmem:[%s7195] sm:$0xff] %v7395
            %7412 = vst [vmem:[%s7195 + $0x8] sm:$0xff] %v7396
            %7413 = vst [vmem:[%s7195 + $0x10] sm:$0xff] %v7397
            %7414 = vst [vmem:[%s7195 + $0x18] sm:$0xff] %v7398
            %7415 = vst [vmem:[%s7195 + $0x20] sm:$0xff] %v7399
            %7416 = vst [vmem:[%s7195 + $0x28] sm:$0xff] %v7400
            %7417 = vst [vmem:[%s7195 + $0x30] sm:$0xff] %v7401
            %7418 = vst [vmem:[%s7195 + $0x38] sm:$0xff] %v7402
            %7419 = vst [vmem:[%s7195 + $0x40] sm:$0xff] %v7403
            %7420 = vst [vmem:[%s7195 + $0x48] sm:$0xff] %v7404
            %7421 = vst [vmem:[%s7195 + $0x50] sm:$0xff] %v7405
            %7422 = vst [vmem:[%s7195 + $0x58] sm:$0xff] %v7406
            %7423 = vst [vmem:[%s7195 + $0x60] sm:$0xff] %v7407
            %7424 = vst [vmem:[%s7195 + $0x68] sm:$0xff] %v7408
            %7425 = vst [vmem:[%s7195 + $0x70] sm:$0xff] %v7409
            %7426 = vst [vmem:[%s7195 + $0x78] sm:$0xff] %v7410
          $region88: #{tpu_custom_call.1} parent=75 // pred_fallthru
            _
        $region76: #{tpu_custom_call.1} parent=51 // pred_fallthru
          _
        %p7427 = scmp.eq.s32.totalorder %s39, 3
        // Predicated region
        $region93: #{tpu_custom_call.1} parent=51 // pred_check
          %p7428 = pneg %p7427
        $region94: #{tpu_custom_call.1} parent=51 // pred_check_branch
          %7430 = sbr.rel (%p7428) target = $region96
        $region95: #{tpu_custom_call.1} parent=51 // pred_region
          %s7431 = scalar_lea.vmem [#allocation4], %s491
          %v7432 = vld [vmem:[%s7431] sm:$0xff]
          %v7433 = vld [vmem:[%s7431 + $0x8] sm:$0xff]
          %v7434 = vld [vmem:[%s7431 + $0x10] sm:$0xff]
          %v7435 = vld [vmem:[%s7431 + $0x18] sm:$0xff]
          %v7436 = vld [vmem:[%s7431 + $0x20] sm:$0xff]
          %v7437 = vld [vmem:[%s7431 + $0x28] sm:$0xff]
          %v7438 = vld [vmem:[%s7431 + $0x30] sm:$0xff]
          %v7439 = vld [vmem:[%s7431 + $0x38] sm:$0xff]
          %v7440 = vld [vmem:[%s7431 + $0x40] sm:$0xff]
          %v7441 = vld [vmem:[%s7431 + $0x48] sm:$0xff]
          %v7442 = vld [vmem:[%s7431 + $0x50] sm:$0xff]
          %v7443 = vld [vmem:[%s7431 + $0x58] sm:$0xff]
          %v7444 = vld [vmem:[%s7431 + $0x60] sm:$0xff]
          %v7445 = vld [vmem:[%s7431 + $0x68] sm:$0xff]
          %v7446 = vld [vmem:[%s7431 + $0x70] sm:$0xff]
          %v7447 = vld [vmem:[%s7431 + $0x78] sm:$0xff]
          %7448 = vst [vmem:[%s474] sm:$0xff] %v7432
          %7449 = vst [vmem:[%s474 + $0x8] sm:$0xff] %v7433
          %7450 = vst [vmem:[%s474 + $0x10] sm:$0xff] %v7434
          %7451 = vst [vmem:[%s474 + $0x18] sm:$0xff] %v7435
          %7452 = vst [vmem:[%s474 + $0x20] sm:$0xff] %v7436
          %7453 = vst [vmem:[%s474 + $0x28] sm:$0xff] %v7437
          %7454 = vst [vmem:[%s474 + $0x30] sm:$0xff] %v7438
          %7455 = vst [vmem:[%s474 + $0x38] sm:$0xff] %v7439
          %7456 = vst [vmem:[%s474 + $0x40] sm:$0xff] %v7440
          %7457 = vst [vmem:[%s474 + $0x48] sm:$0xff] %v7441
          %7458 = vst [vmem:[%s474 + $0x50] sm:$0xff] %v7442
          %7459 = vst [vmem:[%s474 + $0x58] sm:$0xff] %v7443
          %7460 = vst [vmem:[%s474 + $0x60] sm:$0xff] %v7444
          %7461 = vst [vmem:[%s474 + $0x68] sm:$0xff] %v7445
          %7462 = vst [vmem:[%s474 + $0x70] sm:$0xff] %v7446
          %7463 = vst [vmem:[%s474 + $0x78] sm:$0xff] %v7447
          %v7464 = vlaneseq
          %v7465 = vand.u32 %v7464, 127
          %vm7466 = vcmp.lt.s32.totalorder %v7465, 10
          %v7467 = vsel %vm7466, %v7432, -inf
          %v7468 = vsel %vm7466, %v7433, -inf
          %v7469 = vsel %vm7466, %v7434, -inf
          %v7470 = vsel %vm7466, %v7435, -inf
          %v7471 = vsel %vm7466, %v7436, -inf
          %v7472 = vsel %vm7466, %v7437, -inf
          %v7473 = vsel %vm7466, %v7438, -inf
          %v7474 = vsel %vm7466, %v7439, -inf
          %v7475 = vsel %vm7466, %v7440, -inf
          %v7476 = vsel %vm7466, %v7441, -inf
          %v7477 = vsel %vm7466, %v7442, -inf
          %v7478 = vsel %vm7466, %v7443, -inf
          %v7479 = vsel %vm7466, %v7444, -inf
          %v7480 = vsel %vm7466, %v7445, -inf
          %v7481 = vsel %vm7466, %v7446, -inf
          %v7482 = vsel %vm7466, %v7447, -inf
          %7483 = vmax.xlane.f32.xlu0 %v7467
          %v7484 = vpop.xlane.xlu0 %7483
          %7485 = vmax.xlane.f32.xlu0 %v7468
          %v7486 = vpop.xlane.xlu0 %7485
          %7487 = vmax.xlane.f32.xlu0 %v7469
          %v7488 = vpop.xlane.xlu0 %7487
          %7489 = vmax.xlane.f32.xlu0 %v7470
          %v7490 = vpop.xlane.xlu0 %7489
          %7491 = vmax.xlane.f32.xlu0 %v7471
          %v7492 = vpop.xlane.xlu0 %7491
          %7493 = vmax.xlane.f32.xlu0 %v7472
          %v7494 = vpop.xlane.xlu0 %7493
          %7495 = vmax.xlane.f32.xlu0 %v7473
          %v7496 = vpop.xlane.xlu0 %7495
          %7497 = vmax.xlane.f32.xlu0 %v7474
          %v7498 = vpop.xlane.xlu0 %7497
          %7499 = vmax.xlane.f32.xlu0 %v7475
          %v7500 = vpop.xlane.xlu0 %7499
          %7501 = vmax.xlane.f32.xlu0 %v7476
          %v7502 = vpop.xlane.xlu0 %7501
          %7503 = vmax.xlane.f32.xlu0 %v7477
          %v7504 = vpop.xlane.xlu0 %7503
          %7505 = vmax.xlane.f32.xlu0 %v7478
          %v7506 = vpop.xlane.xlu0 %7505
          %7507 = vmax.xlane.f32.xlu0 %v7479
          %v7508 = vpop.xlane.xlu0 %7507
          %7509 = vmax.xlane.f32.xlu0 %v7480
          %v7510 = vpop.xlane.xlu0 %7509
          %7511 = vmax.xlane.f32.xlu0 %v7481
          %v7512 = vpop.xlane.xlu0 %7511
          %7513 = vmax.xlane.f32.xlu0 %v7482
          %v7514 = vpop.xlane.xlu0 %7513
          %v7515 = vsub.f32 %v7467, %v7484
          %v7516 = vsub.f32 %v7468, %v7486
          %v7517 = vsub.f32 %v7469, %v7488
          %v7518 = vsub.f32 %v7470, %v7490
          %v7519 = vsub.f32 %v7471, %v7492
          %v7520 = vsub.f32 %v7472, %v7494
          %v7521 = vsub.f32 %v7473, %v7496
          %v7522 = vsub.f32 %v7474, %v7498
          %v7523 = vsub.f32 %v7475, %v7500
          %v7524 = vsub.f32 %v7476, %v7502
          %v7525 = vsub.f32 %v7477, %v7504
          %v7526 = vsub.f32 %v7478, %v7506
          %v7527 = vsub.f32 %v7479, %v7508
          %v7528 = vsub.f32 %v7480, %v7510
          %v7529 = vsub.f32 %v7481, %v7512
          %v7530 = vsub.f32 %v7482, %v7514
          %v7531 = vmul.f32 %v7515, 1.442695
          %v7532 = vpow.pop %v7531
          %v7533 = vmul.f32 %v7516, 1.442695
          %v7534 = vpow.pop %v7533
          %v7535 = vmul.f32 %v7517, 1.442695
          %v7536 = vpow.pop %v7535
          %v7537 = vmul.f32 %v7518, 1.442695
          %v7538 = vpow.pop %v7537
          %v7539 = vmul.f32 %v7519, 1.442695
          %v7540 = vpow.pop %v7539
          %v7541 = vmul.f32 %v7520, 1.442695
          %v7542 = vpow.pop %v7541
          %v7543 = vmul.f32 %v7521, 1.442695
          %v7544 = vpow.pop %v7543
          %v7545 = vmul.f32 %v7522, 1.442695
          %v7546 = vpow.pop %v7545
          %v7547 = vmul.f32 %v7523, 1.442695
          %v7548 = vpow.pop %v7547
          %v7549 = vmul.f32 %v7524, 1.442695
          %v7550 = vpow.pop %v7549
          %v7551 = vmul.f32 %v7525, 1.442695
          %v7552 = vpow.pop %v7551
          %v7553 = vmul.f32 %v7526, 1.442695
          %v7554 = vpow.pop %v7553
          %v7555 = vmul.f32 %v7527, 1.442695
          %v7556 = vpow.pop %v7555
          %v7557 = vmul.f32 %v7528, 1.442695
          %v7558 = vpow.pop %v7557
          %v7559 = vmul.f32 %v7529, 1.442695
          %v7560 = vpow.pop %v7559
          %v7561 = vmul.f32 %v7530, 1.442695
          %v7562 = vpow.pop %v7561
          %7563 = vadd.xlane.f32.xlu0 %v7532
          %v7564 = vpop.xlane.xlu0 %7563
          %7565 = vadd.xlane.f32.xlu0 %v7534
          %v7566 = vpop.xlane.xlu0 %7565
          %7567 = vadd.xlane.f32.xlu0 %v7536
          %v7568 = vpop.xlane.xlu0 %7567
          %7569 = vadd.xlane.f32.xlu0 %v7538
          %v7570 = vpop.xlane.xlu0 %7569
          %7571 = vadd.xlane.f32.xlu0 %v7540
          %v7572 = vpop.xlane.xlu0 %7571
          %7573 = vadd.xlane.f32.xlu0 %v7542
          %v7574 = vpop.xlane.xlu0 %7573
          %7575 = vadd.xlane.f32.xlu0 %v7544
          %v7576 = vpop.xlane.xlu0 %7575
          %7577 = vadd.xlane.f32.xlu0 %v7546
          %v7578 = vpop.xlane.xlu0 %7577
          %7579 = vadd.xlane.f32.xlu0 %v7548
          %v7580 = vpop.xlane.xlu0 %7579
          %7581 = vadd.xlane.f32.xlu0 %v7550
          %v7582 = vpop.xlane.xlu0 %7581
          %7583 = vadd.xlane.f32.xlu0 %v7552
          %v7584 = vpop.xlane.xlu0 %7583
          %7585 = vadd.xlane.f32.xlu0 %v7554
          %v7586 = vpop.xlane.xlu0 %7585
          %7587 = vadd.xlane.f32.xlu0 %v7556
          %v7588 = vpop.xlane.xlu0 %7587
          %7589 = vadd.xlane.f32.xlu0 %v7558
          %v7590 = vpop.xlane.xlu0 %7589
          %7591 = vadd.xlane.f32.xlu0 %v7560
          %v7592 = vpop.xlane.xlu0 %7591
          %7593 = vadd.xlane.f32.xlu0 %v7562
          %v7594 = vpop.xlane.xlu0 %7593
          %v7595 = vlog2.pop %v7564
          %v7596 = vmul.f32 %v7595, 0.6931472
          %v7597 = vlog2.pop %v7566
          %v7598 = vmul.f32 %v7597, 0.6931472
          %v7599 = vlog2.pop %v7568
          %v7600 = vmul.f32 %v7599, 0.6931472
          %v7601 = vlog2.pop %v7570
          %v7602 = vmul.f32 %v7601, 0.6931472
          %v7603 = vlog2.pop %v7572
          %v7604 = vmul.f32 %v7603, 0.6931472
          %v7605 = vlog2.pop %v7574
          %v7606 = vmul.f32 %v7605, 0.6931472
          %v7607 = vlog2.pop %v7576
          %v7608 = vmul.f32 %v7607, 0.6931472
          %v7609 = vlog2.pop %v7578
          %v7610 = vmul.f32 %v7609, 0.6931472
          %v7611 = vlog2.pop %v7580
          %v7612 = vmul.f32 %v7611, 0.6931472
          %v7613 = vlog2.pop %v7582
          %v7614 = vmul.f32 %v7613, 0.6931472
          %v7615 = vlog2.pop %v7584
          %v7616 = vmul.f32 %v7615, 0.6931472
          %v7617 = vlog2.pop %v7586
          %v7618 = vmul.f32 %v7617, 0.6931472
          %v7619 = vlog2.pop %v7588
          %v7620 = vmul.f32 %v7619, 0.6931472
          %v7621 = vlog2.pop %v7590
          %v7622 = vmul.f32 %v7621, 0.6931472
          %v7623 = vlog2.pop %v7592
          %v7624 = vmul.f32 %v7623, 0.6931472
          %v7625 = vlog2.pop %v7594
          %v7626 = vmul.f32 %v7625, 0.6931472
          %v7627 = vsub.f32 %v7432, %v7484
          %v7628 = vsub.f32 %v7433, %v7486
          %v7629 = vsub.f32 %v7434, %v7488
          %v7630 = vsub.f32 %v7435, %v7490
          %v7631 = vsub.f32 %v7436, %v7492
          %v7632 = vsub.f32 %v7437, %v7494
          %v7633 = vsub.f32 %v7438, %v7496
          %v7634 = vsub.f32 %v7439, %v7498
          %v7635 = vsub.f32 %v7440, %v7500
          %v7636 = vsub.f32 %v7441, %v7502
          %v7637 = vsub.f32 %v7442, %v7504
          %v7638 = vsub.f32 %v7443, %v7506
          %v7639 = vsub.f32 %v7444, %v7508
          %v7640 = vsub.f32 %v7445, %v7510
          %v7641 = vsub.f32 %v7446, %v7512
          %v7642 = vsub.f32 %v7447, %v7514
          %v7643 = vsub.f32 %v7627, %v7596
          %v7644 = vsub.f32 %v7628, %v7598
          %v7645 = vsub.f32 %v7629, %v7600
          %v7646 = vsub.f32 %v7630, %v7602
          %v7647 = vsub.f32 %v7631, %v7604
          %v7648 = vsub.f32 %v7632, %v7606
          %v7649 = vsub.f32 %v7633, %v7608
          %v7650 = vsub.f32 %v7634, %v7610
          %v7651 = vsub.f32 %v7635, %v7612
          %v7652 = vsub.f32 %v7636, %v7614
          %v7653 = vsub.f32 %v7637, %v7616
          %v7654 = vsub.f32 %v7638, %v7618
          %v7655 = vsub.f32 %v7639, %v7620
          %v7656 = vsub.f32 %v7640, %v7622
          %v7657 = vsub.f32 %v7641, %v7624
          %v7658 = vsub.f32 %v7642, %v7626
          %7659 = vst [vmem:[%s467] sm:$0xff] %v7643
          %7660 = vst [vmem:[%s467 + $0x8] sm:$0xff] %v7644
          %7661 = vst [vmem:[%s467 + $0x10] sm:$0xff] %v7645
          %7662 = vst [vmem:[%s467 + $0x18] sm:$0xff] %v7646
          %7663 = vst [vmem:[%s467 + $0x20] sm:$0xff] %v7647
          %7664 = vst [vmem:[%s467 + $0x28] sm:$0xff] %v7648
          %7665 = vst [vmem:[%s467 + $0x30] sm:$0xff] %v7649
          %7666 = vst [vmem:[%s467 + $0x38] sm:$0xff] %v7650
          %7667 = vst [vmem:[%s467 + $0x40] sm:$0xff] %v7651
          %7668 = vst [vmem:[%s467 + $0x48] sm:$0xff] %v7652
          %7669 = vst [vmem:[%s467 + $0x50] sm:$0xff] %v7653
          %7670 = vst [vmem:[%s467 + $0x58] sm:$0xff] %v7654
          %7671 = vst [vmem:[%s467 + $0x60] sm:$0xff] %v7655
          %7672 = vst [vmem:[%s467 + $0x68] sm:$0xff] %v7656
          %7673 = vst [vmem:[%s467 + $0x70] sm:$0xff] %v7657
          %7674 = vst [vmem:[%s467 + $0x78] sm:$0xff] %v7658
        $region96: #{tpu_custom_call.1} parent=51 // pred_fallthru
          _
        %s7675 = sand.u32 %s251, 1
        %s7676 = scalar_lea.sflag [#allocation8], %s7675
        %s7677 = sand.u32 %s251, 1
        %s7678 = smul.addr %s7677, 128
        %s7679 = scalar_lea.vmem [#allocation14], %s7678
        %s7680 = sand.u32 %s283, 1
        %s7681 = scalar_lea.sflag [#allocation16], %s7680
        %s7682 = sand.u32 %s283, 1
        %s7683 = smul.addr %s7682, 128
        %s7684 = scalar_lea.vmem [#allocation15], %s7683
        // Predicated region
        $region97: #{tpu_custom_call.1} parent=51 // pred_check
          %p7685 = pneg %p261
        $region98: #{tpu_custom_call.1} parent=51 // pred_check_branch
          %7687 = sbr.rel (%p7685) target = $region100
        $region99: #{tpu_custom_call.1} parent=51 // pred_region
          %p7688 = scmp.eq.s32.totalorder %s39, 3
          %s7689 = scalar_select %p7688, 1, 0
          %s7690 = smul.u32 %s40, %s7689
          %s7691 = smul.u32 16, %s7690
          %s7693 = ssub.s32 2048, 2048
          %7694 = vsyncadd %s7676, %s7693
          %s7695 = smul.addr %s7691, 128
          %s7696 = scalar_lea.hbm %s8, %s7695
          %s7697 = sshll.u32 %s7679, 4
          %s7698 = int_to_ptr.vmem [resolvable:$true] %s7697
          %7703 = dma.vmem_to_hbm [thread:$0]  %s7698, 2048, %s7696, %s7676, 128, 128, 8
        $region100: #{tpu_custom_call.1} parent=51 // pred_fallthru
          _
        // Predicated region
        $region101: #{tpu_custom_call.1} parent=51 // pred_check
          %p7704 = pneg %p293
        $region102: #{tpu_custom_call.1} parent=51 // pred_check_branch
          %7706 = sbr.rel (%p7704) target = $region104
        $region103: #{tpu_custom_call.1} parent=51 // pred_region
          %p7707 = scmp.eq.s32.totalorder %s39, 3
          %s7708 = scalar_select %p7707, 1, 0
          %s7709 = smul.u32 %s40, %s7708
          %s7710 = smul.u32 16, %s7709
          %s7712 = ssub.s32 2048, 2048
          %7713 = vsyncadd %s7681, %s7712
          %s7714 = smul.addr %s7710, 128
          %s7715 = scalar_lea.hbm %s9, %s7714
          %s7716 = sshll.u32 %s7684, 4
          %s7717 = int_to_ptr.vmem [resolvable:$true] %s7716
          %7722 = dma.vmem_to_hbm [thread:$0]  %s7717, 2048, %s7715, %s7681, 128, 128, 8
        $region104: #{tpu_custom_call.1} parent=51 // pred_fallthru
          _
      $region52: #{tpu_custom_call.1} parent=5 // pred_fallthru
        _
      %p7723 = scmp.le.s32.totalorder 2, %s30
      // Predicated region
      $region105: #{tpu_custom_call.1} parent=5 // pred_check
        %p7724 = pneg %p7723
      $region106: #{tpu_custom_call.1} parent=5 // pred_check_branch
        %7726 = sbr.rel (%p7724) target = $region108
      $region107: #{tpu_custom_call.1} parent=5 // pred_region
        %s7727 = ssub.s32 %s30, 2
        // Predicated region
        $region109: #{tpu_custom_call.1} parent=107 // pred_check
          %p7728 = pneg %p267
        $region110: #{tpu_custom_call.1} parent=107 // pred_check_branch
          %7730 = sbr.rel (%p7728) target = $region112
        $region111: #{tpu_custom_call.1} parent=107 // pred_region
          %s7731 = sand.u32 %s252, 1
          %s7732 = scalar_lea.sflag [#allocation8], %s7731
          %s7733 = sand.u32 %s252, 1
          %s7734 = smul.addr %s7733, 128
          %s7735 = scalar_lea.vmem [#allocation14], %s7734
          %7736 = dma.done %s7732, 2048
        $region112: #{tpu_custom_call.1} parent=107 // pred_fallthru
          _
        // Predicated region
        $region113: #{tpu_custom_call.1} parent=107 // pred_check
          %p7737 = pneg %p299
        $region114: #{tpu_custom_call.1} parent=107 // pred_check_branch
          %7739 = sbr.rel (%p7737) target = $region116
        $region115: #{tpu_custom_call.1} parent=107 // pred_region
          %s7740 = sand.u32 %s284, 1
          %s7741 = scalar_lea.sflag [#allocation16], %s7740
          %s7742 = sand.u32 %s284, 1
          %s7743 = smul.addr %s7742, 128
          %s7744 = scalar_lea.vmem [#allocation15], %s7743
          %7745 = dma.done %s7741, 2048
        $region116: #{tpu_custom_call.1} parent=107 // pred_fallthru
          _
      $region108: #{tpu_custom_call.1} parent=5 // pred_fallthru
        _
    $region6: #{tpu_custom_call.1} parent=1 // loop_footer
      %s34 = sadd.s32 1, %s30
    $region7: #{tpu_custom_call.1} parent=1 // loop_footer_branch
      %29 = sbr.rel target = $region3
    $region8: #{tpu_custom_call.1} parent=1 // loop_exit
      _
    %7746 = vsyncpa [#allocation7], 1
    %s7747 = scalar_lea.sflag [#allocation7], 1
    %7748 = vsyncpa %s7747, 1
    %7749 = vsyncpa [#allocation10], 1
    %7750 = vsyncpa [#allocation13], 1
    %s7751 = scalar_lea.sflag [#allocation13], 1
    %7752 = vsyncpa %s7751, 1
    %7753 = vsyncpa [#allocation8], 1
    %s7754 = scalar_lea.sflag [#allocation8], 1
    %7755 = vsyncpa %s7754, 1
    %7756 = vsyncpa [#allocation16], 1
    %s7757 = scalar_lea.sflag [#allocation16], 1
    %7758 = vsyncpa %s7757, 1

</llo_original>
